<compile_context>
chip_gen: v6e
topology: v6e:2x2x1
jax: 0.10.0
libtpu: 0.0.40
codegen_flags: <defaults>
</compile_context>

<pallas_src>
import jax
import jax.numpy as jnp
import numpy as np
from jax import lax
from jax.experimental import pallas as pl
from jax.experimental.pallas import tpu as pltpu


# --------------------------------------------------------------------------
# Fused CABlock kernel: 3x (edge-pad + conv3x3 + LeakyReLU) + channel attention
# --------------------------------------------------------------------------
def cablock_kernel(x_ref, w1_ref, b1_ref, w2_ref, b2_ref, w3_ref, b3_ref,
                   wa1_ref, ba1_ref, wa2_ref, ba2_ref, o_ref, pad_ref):
    # x_ref : (1, H, W, Cin)              w{1,2,3}_ref: (9*Cin_l, C)  b*: (1, C)
    # wa1   : (C, Cr)  ba1: (1, Cr)       wa2: (Cr, C)  ba2: (1, C)
    # o_ref : (1, H*W, C)                 pad_ref: VMEM (H+2, W+2, max(Cin, C)) f32
    _, H, W, Cin = x_ref.shape
    C = w1_ref.shape[1]

    def store_padded(y_hwc, cdim):
        # Writes y (H, W, cdim) into pad_ref with replication (edge) padding.
        pad_ref[1:H + 1, 1:W + 1, :cdim] = y_hwc
        pad_ref[0:1, 1:W + 1, :cdim] = y_hwc[0:1]
        pad_ref[H + 1:H + 2, 1:W + 1, :cdim] = y_hwc[H - 1:H]
        # Columns (corners fall out of these since rows are already replicated).
        pad_ref[:, 0:1, :cdim] = pad_ref[:, 1:2, :cdim]
        pad_ref[:, W + 1:W + 2, :cdim] = pad_ref[:, W:W + 1, :cdim]

    def conv3x3_lrelu(cin, w_ref, b_ref):
        # Gather the 9 shifted tap windows along channels -> one K = 9*cin matmul.
        taps = jnp.concatenate(
            [pad_ref[dy:dy + H, dx:dx + W, :cin]
             for dy in range(3) for dx in range(3)],
            axis=-1)                                   # (H, W, 9*cin)
        taps = taps.reshape(H * W, 9 * cin)            # single collapse reshape
        acc = jnp.dot(taps, w_ref[...].astype(jnp.float32),
                      preferred_element_type=jnp.float32)
        acc = acc + b_ref[...]                         # (1, C) broadcast
        return jnp.maximum(acc, 0.2 * acc)             # LeakyReLU(0.2)

    # conv_block: three conv3x3 + LeakyReLU layers, all intermediates in VMEM.
    store_padded(x_ref[0].astype(jnp.float32), Cin)
    y = conv3x3_lrelu(Cin, w1_ref, b1_ref)             # (H*W, C)
    store_padded(y.reshape(H, W, C), C)
    y = conv3x3_lrelu(C, w2_ref, b2_ref)
    store_padded(y.reshape(H, W, C), C)
    y = conv3x3_lrelu(C, w3_ref, b3_ref)               # (H*W, C)

    # Channel attention: AdaptiveAvgPool2d(1) -> 1x1 -> ReLU -> 1x1 -> Sigmoid.
    pooled = jnp.sum(y, axis=0, keepdims=True) * (1.0 / (H * W))      # (1, C)
    h1 = jnp.dot(pooled, wa1_ref[...].astype(jnp.float32),
                 preferred_element_type=jnp.float32) + ba1_ref[...]
    h1 = jnp.maximum(h1, 0.0)
    h2 = jnp.dot(h1, wa2_ref[...].astype(jnp.float32),
                 preferred_element_type=jnp.float32) + ba2_ref[...]
    gate = 1.0 / (1.0 + jnp.exp(-h2))                                  # (1, C)

    out = y * gate                                                     # broadcast
    o_ref[...] = out.reshape(1, H * W, C).astype(o_ref.dtype)


# --------------------------------------------------------------------------
# Parameter init (deterministic, synthetic) and full forward
# --------------------------------------------------------------------------
def init_params(key, in_channels=32, out_channels=32, reduction=16):
    cr = out_channels // reduction
    ks = jax.random.split(key, 10)
    scale = 0.1

    def u(k, shape):
        return (jax.random.uniform(k, shape, jnp.float32) - 0.5) * 2.0 * scale

    return {
        # conv_block: three 3x3 convs, weights stored HWIO (3,3,Cin,Cout)
        "w_c1": u(ks[0], (3, 3, in_channels, out_channels)),
        "b_c1": u(ks[1], (out_channels,)),
        "w_c2": u(ks[2], (3, 3, out_channels, out_channels)),
        "b_c2": u(ks[3], (out_channels,)),
        "w_c3": u(ks[4], (3, 3, out_channels, out_channels)),
        "b_c3": u(ks[5], (out_channels,)),
        # attention 1x1 convs stored as dense matrices (Cin, Cout)
        "w_a1": u(ks[6], (out_channels, cr)),
        "b_a1": u(ks[7], (cr,)),
        "w_a2": u(ks[8], (cr, out_channels)),
        "b_a2": u(ks[9], (out_channels,)),
    }


@jax.jit
def cablock_forward(x_nchw, params):
    """CABlock forward. Input/output are NCHW (PyTorch convention)."""
    x = jnp.transpose(x_nchw, (0, 2, 3, 1))            # -> NHWC (channels on lanes)
    N, H, W, Cin = x.shape
    C = params["w_c1"].shape[-1]
    Cr = params["w_a1"].shape[-1]

    # Pre-reshape conv weights to (9*Cin, Cout) so each conv is one K=9*Cin matmul.
    w1 = params["w_c1"].reshape(9 * Cin, C)
    w2 = params["w_c2"].reshape(9 * C, C)
    w3 = params["w_c3"].reshape(9 * C, C)
    b1 = params["b_c1"].reshape(1, C)
    b2 = params["b_c2"].reshape(1, C)
    b3 = params["b_c3"].reshape(1, C)
    wa1 = params["w_a1"]
    ba1 = params["b_a1"].reshape(1, Cr)
    wa2 = params["w_a2"]
    ba2 = params["b_a2"].reshape(1, C)

    out = pl.pallas_call(
        cablock_kernel,
        out_shape=jax.ShapeDtypeStruct((N, H * W, C), x.dtype),
        grid=(N,),
        in_specs=[
            pl.BlockSpec((1, H, W, Cin), lambda n: (n, 0, 0, 0)),
            pl.BlockSpec((9 * Cin, C), lambda n: (0, 0)),
            pl.BlockSpec((1, C), lambda n: (0, 0)),
            pl.BlockSpec((9 * C, C), lambda n: (0, 0)),
            pl.BlockSpec((1, C), lambda n: (0, 0)),
            pl.BlockSpec((9 * C, C), lambda n: (0, 0)),
            pl.BlockSpec((1, C), lambda n: (0, 0)),
            pl.BlockSpec((C, Cr), lambda n: (0, 0)),
            pl.BlockSpec((1, Cr), lambda n: (0, 0)),
            pl.BlockSpec((Cr, C), lambda n: (0, 0)),
            pl.BlockSpec((1, C), lambda n: (0, 0)),
        ],
        out_specs=pl.BlockSpec((1, H * W, C), lambda n: (n, 0, 0)),
        scratch_shapes=[
            pltpu.VMEM((H + 2, W + 2, max(Cin, C)), jnp.float32),  # padded activation
        ],
        compiler_params=pltpu.CompilerParams(
            dimension_semantics=("parallel",)),        # one image per core on v7x
    )(x, w1, b1, w2, b2, w3, b3, wa1, ba1, wa2, ba2)

    out = out.reshape(N, H, W, C)
    return jnp.transpose(out, (0, 3, 1, 2))            # back to NCHW


# --------------------------------------------------------------------------
# Pure-JAX reference (for verification only)
# --------------------------------------------------------------------------
def _ref_conv3x3_lrelu(x, w, b):
    xp = jnp.pad(x, ((0, 0), (1, 1), (1, 1), (0, 0)), mode="edge")
    y = lax.conv_general_dilated(
        xp, w, window_strides=(1, 1), padding="VALID",
        dimension_numbers=("NHWC", "HWIO", "NHWC"))
    y = y + b
    return jnp.where(y >= 0.0, y, 0.2 * y)


def ref_forward(x_nchw, params):
    x = jnp.transpose(x_nchw, (0, 2, 3, 1))
    x = _ref_conv3x3_lrelu(x, params["w_c1"], params["b_c1"])
    x = _ref_conv3x3_lrelu(x, params["w_c2"], params["b_c2"])
    x = _ref_conv3x3_lrelu(x, params["w_c3"], params["b_c3"])
    pooled = jnp.mean(x, axis=(1, 2))                       # (N, C)
    h1 = jnp.maximum(pooled @ params["w_a1"] + params["b_a1"], 0.0)
    gate = jax.nn.sigmoid(h1 @ params["w_a2"] + params["b_a2"])
    out = x * gate[:, None, None, :]
    return jnp.transpose(out, (0, 3, 1, 2))


if __name__ == "__main__":
    key = jax.random.PRNGKey(0)
    k_x, k_p = jax.random.split(key)

    N, C, H, W = 2, 32, 16, 16          # in_channels = out_channels = 32, reduction = 16
    x = jax.random.normal(k_x, (N, C, H, W), jnp.float32)
    params = init_params(k_p, in_channels=C, out_channels=C, reduction=16)

    out = jax.block_until_ready(cablock_forward(x, params))
    ref = jax.block_until_ready(ref_forward(x, params))
    np.testing.assert_allclose(np.asarray(out), np.asarray(ref),
                               rtol=1e-3, atol=1e-3)

    print("KERNEL_OK")
</pallas_src>

<mosaic_0001>
module attributes {stable_mosaic.version = 11 : i64} {
  func.func @cablock_kernel(%arg0: i32, %arg1: memref<1x16x16x32xf32, #tpu.memory_space<vmem>>, %arg2: memref<288x32xf32, #tpu.memory_space<vmem>>, %arg3: memref<1x32xf32, #tpu.memory_space<vmem>>, %arg4: memref<288x32xf32, #tpu.memory_space<vmem>>, %arg5: memref<1x32xf32, #tpu.memory_space<vmem>>, %arg6: memref<288x32xf32, #tpu.memory_space<vmem>>, %arg7: memref<1x32xf32, #tpu.memory_space<vmem>>, %arg8: memref<32x2xf32, #tpu.memory_space<vmem>>, %arg9: memref<1x2xf32, #tpu.memory_space<vmem>>, %arg10: memref<2x32xf32, #tpu.memory_space<vmem>>, %arg11: memref<1x32xf32, #tpu.memory_space<vmem>>, %arg12: memref<1x256x32xf32, #tpu.memory_space<vmem>>, %arg13: memref<18x18x32xf32, #tpu.memory_space<vmem>>) attributes {dimension_semantics = [#tpu.dimension_semantics<parallel>], iteration_bounds = array<i64: 2>, scalar_prefetch = 0 : i64, scratch_operands = 1 : i64, tpu.core_type = #tpu.core_type<tc>, window_params = [{transform_indices = @transform_0, window_bounds = array<i64: 1, 16, 16, 32>}, {pipeline_mode = #tpu.pipeline_mode<synchronous>, transform_indices = @transform_1, window_bounds = array<i64: 288, 32>}, {pipeline_mode = #tpu.pipeline_mode<synchronous>, transform_indices = @transform_2, window_bounds = array<i64: 1, 32>}, {pipeline_mode = #tpu.pipeline_mode<synchronous>, transform_indices = @transform_3, window_bounds = array<i64: 288, 32>}, {pipeline_mode = #tpu.pipeline_mode<synchronous>, transform_indices = @transform_4, window_bounds = array<i64: 1, 32>}, {pipeline_mode = #tpu.pipeline_mode<synchronous>, transform_indices = @transform_5, window_bounds = array<i64: 288, 32>}, {pipeline_mode = #tpu.pipeline_mode<synchronous>, transform_indices = @transform_6, window_bounds = array<i64: 1, 32>}, {pipeline_mode = #tpu.pipeline_mode<synchronous>, transform_indices = @transform_7, window_bounds = array<i64: 32, 2>}, {pipeline_mode = #tpu.pipeline_mode<synchronous>, transform_indices = @transform_8, window_bounds = array<i64: 1, 2>}, {pipeline_mode = #tpu.pipeline_mode<synchronous>, transform_indices = @transform_9, window_bounds = array<i64: 2, 32>}, {pipeline_mode = #tpu.pipeline_mode<synchronous>, transform_indices = @transform_10, window_bounds = array<i64: 1, 32>}, {transform_indices = @transform_11, window_bounds = array<i64: 1, 256, 32>}]} {
    %c0 = arith.constant 0 : index
    %c0_0 = arith.constant 0 : index
    %c0_1 = arith.constant 0 : index
    %c0_2 = arith.constant 0 : index
    %0 = vector.load %arg1[%c0, %c0_0, %c0_1, %c0_2] : memref<1x16x16x32xf32, #tpu.memory_space<vmem>>, vector<1x16x16x32xf32>
    %1 = vector.shape_cast %0 : vector<1x16x16x32xf32> to vector<16x16x32xf32>
    %c1 = arith.constant 1 : index
    %c1_3 = arith.constant 1 : index
    %c0_4 = arith.constant 0 : index
    %2 = vector.load %arg13[%c1, %c1_3, %c0_4] : memref<18x18x32xf32, #tpu.memory_space<vmem>>, vector<16x16x32xf32>
    tpu.vector_store %arg13[%c1, %c1_3, %c0_4], %1 {strides = array<i32>} : memref<18x18x32xf32, #tpu.memory_space<vmem>>, vector<16x16x32xf32>,
    %3 = vector.extract_strided_slice %1 {offsets = [0, 0, 0], sizes = [1, 16, 32], strides = [1, 1, 1]} : vector<16x16x32xf32> to vector<1x16x32xf32>
    %c0_5 = arith.constant 0 : index
    %c1_6 = arith.constant 1 : index
    %c0_7 = arith.constant 0 : index
    %4 = vector.load %arg13[%c0_5, %c1_6, %c0_7] : memref<18x18x32xf32, #tpu.memory_space<vmem>>, vector<1x16x32xf32>
    tpu.vector_store %arg13[%c0_5, %c1_6, %c0_7], %3 {strides = array<i32>} : memref<18x18x32xf32, #tpu.memory_space<vmem>>, vector<1x16x32xf32>,
    %5 = vector.extract_strided_slice %1 {offsets = [15, 0, 0], sizes = [1, 16, 32], strides = [1, 1, 1]} : vector<16x16x32xf32> to vector<1x16x32xf32>
    %c17 = arith.constant 17 : index
    %c1_8 = arith.constant 1 : index
    %c0_9 = arith.constant 0 : index
    %6 = vector.load %arg13[%c17, %c1_8, %c0_9] : memref<18x18x32xf32, #tpu.memory_space<vmem>>, vector<1x16x32xf32>
    tpu.vector_store %arg13[%c17, %c1_8, %c0_9], %5 {strides = array<i32>} : memref<18x18x32xf32, #tpu.memory_space<vmem>>, vector<1x16x32xf32>,
    %c0_10 = arith.constant 0 : index
    %c1_11 = arith.constant 1 : index
    %c0_12 = arith.constant 0 : index
    %7 = vector.load %arg13[%c0_10, %c1_11, %c0_12] : memref<18x18x32xf32, #tpu.memory_space<vmem>>, vector<18x1x32xf32>
    %c0_13 = arith.constant 0 : index
    %c0_14 = arith.constant 0 : index
    %c0_15 = arith.constant 0 : index
    %8 = vector.load %arg13[%c0_13, %c0_14, %c0_15] : memref<18x18x32xf32, #tpu.memory_space<vmem>>, vector<18x1x32xf32>
    tpu.vector_store %arg13[%c0_13, %c0_14, %c0_15], %7 {strides = array<i32>} : memref<18x18x32xf32, #tpu.memory_space<vmem>>, vector<18x1x32xf32>,
    %c0_16 = arith.constant 0 : index
    %c16 = arith.constant 16 : index
    %c0_17 = arith.constant 0 : index
    %9 = vector.load %arg13[%c0_16, %c16, %c0_17] : memref<18x18x32xf32, #tpu.memory_space<vmem>>, vector<18x1x32xf32>
    %c0_18 = arith.constant 0 : index
    %c17_19 = arith.constant 17 : index
    %c0_20 = arith.constant 0 : index
    %10 = vector.load %arg13[%c0_18, %c17_19, %c0_20] : memref<18x18x32xf32, #tpu.memory_space<vmem>>, vector<18x1x32xf32>
    tpu.vector_store %arg13[%c0_18, %c17_19, %c0_20], %9 {strides = array<i32>} : memref<18x18x32xf32, #tpu.memory_space<vmem>>, vector<18x1x32xf32>,
    %c0_21 = arith.constant 0 : index
    %c0_22 = arith.constant 0 : index
    %c0_23 = arith.constant 0 : index
    %11 = vector.load %arg13[%c0_21, %c0_22, %c0_23] : memref<18x18x32xf32, #tpu.memory_space<vmem>>, vector<16x16x32xf32>
    %c0_24 = arith.constant 0 : index
    %c1_25 = arith.constant 1 : index
    %c0_26 = arith.constant 0 : index
    %12 = vector.load %arg13[%c0_24, %c1_25, %c0_26] : memref<18x18x32xf32, #tpu.memory_space<vmem>>, vector<16x16x32xf32>
    %c0_27 = arith.constant 0 : index
    %c2 = arith.constant 2 : index
    %c0_28 = arith.constant 0 : index
    %13 = vector.load %arg13[%c0_27, %c2, %c0_28] : memref<18x18x32xf32, #tpu.memory_space<vmem>>, vector<16x16x32xf32>
    %c1_29 = arith.constant 1 : index
    %c0_30 = arith.constant 0 : index
    %c0_31 = arith.constant 0 : index
    %14 = vector.load %arg13[%c1_29, %c0_30, %c0_31] : memref<18x18x32xf32, #tpu.memory_space<vmem>>, vector<16x16x32xf32>
    %c1_32 = arith.constant 1 : index
    %c1_33 = arith.constant 1 : index
    %c0_34 = arith.constant 0 : index
    %15 = vector.load %arg13[%c1_32, %c1_33, %c0_34] : memref<18x18x32xf32, #tpu.memory_space<vmem>>, vector<16x16x32xf32>
    %c1_35 = arith.constant 1 : index
    %c2_36 = arith.constant 2 : index
    %c0_37 = arith.constant 0 : index
    %16 = vector.load %arg13[%c1_35, %c2_36, %c0_37] : memref<18x18x32xf32, #tpu.memory_space<vmem>>, vector<16x16x32xf32>
    %c2_38 = arith.constant 2 : index
    %c0_39 = arith.constant 0 : index
    %c0_40 = arith.constant 0 : index
    %17 = vector.load %arg13[%c2_38, %c0_39, %c0_40] : memref<18x18x32xf32, #tpu.memory_space<vmem>>, vector<16x16x32xf32>
    %c2_41 = arith.constant 2 : index
    %c1_42 = arith.constant 1 : index
    %c0_43 = arith.constant 0 : index
    %18 = vector.load %arg13[%c2_41, %c1_42, %c0_43] : memref<18x18x32xf32, #tpu.memory_space<vmem>>, vector<16x16x32xf32>
    %c2_44 = arith.constant 2 : index
    %c2_45 = arith.constant 2 : index
    %c0_46 = arith.constant 0 : index
    %19 = vector.load %arg13[%c2_44, %c2_45, %c0_46] : memref<18x18x32xf32, #tpu.memory_space<vmem>>, vector<16x16x32xf32>
    %20 = tpu.concatenate %11, %12, %13, %14, %15, %16, %17, %18, %19 in 2 : vector<16x16x32xf32>, vector<16x16x32xf32>, vector<16x16x32xf32>, vector<16x16x32xf32>, vector<16x16x32xf32>, vector<16x16x32xf32>, vector<16x16x32xf32>, vector<16x16x32xf32>, vector<16x16x32xf32> -> vector<16x16x288xf32>
    %21 = vector.shape_cast %20 : vector<16x16x288xf32> to vector<256x288xf32>
    %c0_47 = arith.constant 0 : index
    %c0_48 = arith.constant 0 : index
    %22 = vector.load %arg2[%c0_47, %c0_48] : memref<288x32xf32, #tpu.memory_space<vmem>>, vector<288x32xf32>
    %cst = arith.constant dense<0.000000e+00> : vector<256x32xf32>
    %23 = tpu.matmul %21, %22, %cst {dimension_numbers = #tpu.dot_dimension_numbers<[1], [0], [0], [1], [0, 0, 1, 1], [], []>} : vector<256x288xf32>, vector<288x32xf32>, vector<256x32xf32> -> vector<256x32xf32>
    %c0_49 = arith.constant 0 : index
    %c0_50 = arith.constant 0 : index
    %24 = vector.load %arg3[%c0_49, %c0_50] : memref<1x32xf32, #tpu.memory_space<vmem>>, vector<1x32xf32>
    %25 = vector.broadcast %24 : vector<1x32xf32> to vector<256x32xf32>
    %26 = arith.addf %23, %25 : vector<256x32xf32>
    %cst_51 = arith.constant 2.000000e-01 : f32
    %27 = vector.broadcast %cst_51 : f32 to vector<256x32xf32>
    %28 = arith.mulf %27, %26 : vector<256x32xf32>
    %29 = arith.maximumf %26, %28 : vector<256x32xf32>
    %30 = vector.shape_cast %29 : vector<256x32xf32> to vector<16x16x32xf32>
    %c1_52 = arith.constant 1 : index
    %c1_53 = arith.constant 1 : index
    %c0_54 = arith.constant 0 : index
    %31 = vector.load %arg13[%c1_52, %c1_53, %c0_54] : memref<18x18x32xf32, #tpu.memory_space<vmem>>, vector<16x16x32xf32>
    tpu.vector_store %arg13[%c1_52, %c1_53, %c0_54], %30 {strides = array<i32>} : memref<18x18x32xf32, #tpu.memory_space<vmem>>, vector<16x16x32xf32>,
    %32 = vector.extract_strided_slice %30 {offsets = [0, 0, 0], sizes = [1, 16, 32], strides = [1, 1, 1]} : vector<16x16x32xf32> to vector<1x16x32xf32>
    %c0_55 = arith.constant 0 : index
    %c1_56 = arith.constant 1 : index
    %c0_57 = arith.constant 0 : index
    %33 = vector.load %arg13[%c0_55, %c1_56, %c0_57] : memref<18x18x32xf32, #tpu.memory_space<vmem>>, vector<1x16x32xf32>
    tpu.vector_store %arg13[%c0_55, %c1_56, %c0_57], %32 {strides = array<i32>} : memref<18x18x32xf32, #tpu.memory_space<vmem>>, vector<1x16x32xf32>,
    %34 = vector.extract_strided_slice %30 {offsets = [15, 0, 0], sizes = [1, 16, 32], strides = [1, 1, 1]} : vector<16x16x32xf32> to vector<1x16x32xf32>
    %c17_58 = arith.constant 17 : index
    %c1_59 = arith.constant 1 : index
    %c0_60 = arith.constant 0 : index
    %35 = vector.load %arg13[%c17_58, %c1_59, %c0_60] : memref<18x18x32xf32, #tpu.memory_space<vmem>>, vector<1x16x32xf32>
    tpu.vector_store %arg13[%c17_58, %c1_59, %c0_60], %34 {strides = array<i32>} : memref<18x18x32xf32, #tpu.memory_space<vmem>>, vector<1x16x32xf32>,
    %c0_61 = arith.constant 0 : index
    %c1_62 = arith.constant 1 : index
    %c0_63 = arith.constant 0 : index
    %36 = vector.load %arg13[%c0_61, %c1_62, %c0_63] : memref<18x18x32xf32, #tpu.memory_space<vmem>>, vector<18x1x32xf32>
    %c0_64 = arith.constant 0 : index
    %c0_65 = arith.constant 0 : index
    %c0_66 = arith.constant 0 : index
    %37 = vector.load %arg13[%c0_64, %c0_65, %c0_66] : memref<18x18x32xf32, #tpu.memory_space<vmem>>, vector<18x1x32xf32>
    tpu.vector_store %arg13[%c0_64, %c0_65, %c0_66], %36 {strides = array<i32>} : memref<18x18x32xf32, #tpu.memory_space<vmem>>, vector<18x1x32xf32>,
    %c0_67 = arith.constant 0 : index
    %c16_68 = arith.constant 16 : index
    %c0_69 = arith.constant 0 : index
    %38 = vector.load %arg13[%c0_67, %c16_68, %c0_69] : memref<18x18x32xf32, #tpu.memory_space<vmem>>, vector<18x1x32xf32>
    %c0_70 = arith.constant 0 : index
    %c17_71 = arith.constant 17 : index
    %c0_72 = arith.constant 0 : index
    %39 = vector.load %arg13[%c0_70, %c17_71, %c0_72] : memref<18x18x32xf32, #tpu.memory_space<vmem>>, vector<18x1x32xf32>
    tpu.vector_store %arg13[%c0_70, %c17_71, %c0_72], %38 {strides = array<i32>} : memref<18x18x32xf32, #tpu.memory_space<vmem>>, vector<18x1x32xf32>,
    %c0_73 = arith.constant 0 : index
    %c0_74 = arith.constant 0 : index
    %c0_75 = arith.constant 0 : index
    %40 = vector.load %arg13[%c0_73, %c0_74, %c0_75] : memref<18x18x32xf32, #tpu.memory_space<vmem>>, vector<16x16x32xf32>
    %c0_76 = arith.constant 0 : index
    %c1_77 = arith.constant 1 : index
    %c0_78 = arith.constant 0 : index
    %41 = vector.load %arg13[%c0_76, %c1_77, %c0_78] : memref<18x18x32xf32, #tpu.memory_space<vmem>>, vector<16x16x32xf32>
    %c0_79 = arith.constant 0 : index
    %c2_80 = arith.constant 2 : index
    %c0_81 = arith.constant 0 : index
    %42 = vector.load %arg13[%c0_79, %c2_80, %c0_81] : memref<18x18x32xf32, #tpu.memory_space<vmem>>, vector<16x16x32xf32>
    %c1_82 = arith.constant 1 : index
    %c0_83 = arith.constant 0 : index
    %c0_84 = arith.constant 0 : index
    %43 = vector.load %arg13[%c1_82, %c0_83, %c0_84] : memref<18x18x32xf32, #tpu.memory_space<vmem>>, vector<16x16x32xf32>
    %c1_85 = arith.constant 1 : index
    %c1_86 = arith.constant 1 : index
    %c0_87 = arith.constant 0 : index
    %44 = vector.load %arg13[%c1_85, %c1_86, %c0_87] : memref<18x18x32xf32, #tpu.memory_space<vmem>>, vector<16x16x32xf32>
    %c1_88 = arith.constant 1 : index
    %c2_89 = arith.constant 2 : index
    %c0_90 = arith.constant 0 : index
    %45 = vector.load %arg13[%c1_88, %c2_89, %c0_90] : memref<18x18x32xf32, #tpu.memory_space<vmem>>, vector<16x16x32xf32>
    %c2_91 = arith.constant 2 : index
    %c0_92 = arith.constant 0 : index
    %c0_93 = arith.constant 0 : index
    %46 = vector.load %arg13[%c2_91, %c0_92, %c0_93] : memref<18x18x32xf32, #tpu.memory_space<vmem>>, vector<16x16x32xf32>
    %c2_94 = arith.constant 2 : index
    %c1_95 = arith.constant 1 : index
    %c0_96 = arith.constant 0 : index
    %47 = vector.load %arg13[%c2_94, %c1_95, %c0_96] : memref<18x18x32xf32, #tpu.memory_space<vmem>>, vector<16x16x32xf32>
    %c2_97 = arith.constant 2 : index
    %c2_98 = arith.constant 2 : index
    %c0_99 = arith.constant 0 : index
    %48 = vector.load %arg13[%c2_97, %c2_98, %c0_99] : memref<18x18x32xf32, #tpu.memory_space<vmem>>, vector<16x16x32xf32>
    %49 = tpu.concatenate %40, %41, %42, %43, %44, %45, %46, %47, %48 in 2 : vector<16x16x32xf32>, vector<16x16x32xf32>, vector<16x16x32xf32>, vector<16x16x32xf32>, vector<16x16x32xf32>, vector<16x16x32xf32>, vector<16x16x32xf32>, vector<16x16x32xf32>, vector<16x16x32xf32> -> vector<16x16x288xf32>
    %50 = vector.shape_cast %49 : vector<16x16x288xf32> to vector<256x288xf32>
    %c0_100 = arith.constant 0 : index
    %c0_101 = arith.constant 0 : index
    %51 = vector.load %arg4[%c0_100, %c0_101] : memref<288x32xf32, #tpu.memory_space<vmem>>, vector<288x32xf32>
    %cst_102 = arith.constant dense<0.000000e+00> : vector<256x32xf32>
    %52 = tpu.matmul %50, %51, %cst_102 {dimension_numbers = #tpu.dot_dimension_numbers<[1], [0], [0], [1], [0, 0, 1, 1], [], []>} : vector<256x288xf32>, vector<288x32xf32>, vector<256x32xf32> -> vector<256x32xf32>
    %c0_103 = arith.constant 0 : index
    %c0_104 = arith.constant 0 : index
    %53 = vector.load %arg5[%c0_103, %c0_104] : memref<1x32xf32, #tpu.memory_space<vmem>>, vector<1x32xf32>
    %54 = vector.broadcast %53 : vector<1x32xf32> to vector<256x32xf32>
    %55 = arith.addf %52, %54 : vector<256x32xf32>
    %cst_105 = arith.constant 2.000000e-01 : f32
    %56 = vector.broadcast %cst_105 : f32 to vector<256x32xf32>
    %57 = arith.mulf %56, %55 : vector<256x32xf32>
    %58 = arith.maximumf %55, %57 : vector<256x32xf32>
    %59 = vector.shape_cast %58 : vector<256x32xf32> to vector<16x16x32xf32>
    %c1_106 = arith.constant 1 : index
    %c1_107 = arith.constant 1 : index
    %c0_108 = arith.constant 0 : index
    %60 = vector.load %arg13[%c1_106, %c1_107, %c0_108] : memref<18x18x32xf32, #tpu.memory_space<vmem>>, vector<16x16x32xf32>
    tpu.vector_store %arg13[%c1_106, %c1_107, %c0_108], %59 {strides = array<i32>} : memref<18x18x32xf32, #tpu.memory_space<vmem>>, vector<16x16x32xf32>,
    %61 = vector.extract_strided_slice %59 {offsets = [0, 0, 0], sizes = [1, 16, 32], strides = [1, 1, 1]} : vector<16x16x32xf32> to vector<1x16x32xf32>
    %c0_109 = arith.constant 0 : index
    %c1_110 = arith.constant 1 : index
    %c0_111 = arith.constant 0 : index
    %62 = vector.load %arg13[%c0_109, %c1_110, %c0_111] : memref<18x18x32xf32, #tpu.memory_space<vmem>>, vector<1x16x32xf32>
    tpu.vector_store %arg13[%c0_109, %c1_110, %c0_111], %61 {strides = array<i32>} : memref<18x18x32xf32, #tpu.memory_space<vmem>>, vector<1x16x32xf32>,
    %63 = vector.extract_strided_slice %59 {offsets = [15, 0, 0], sizes = [1, 16, 32], strides = [1, 1, 1]} : vector<16x16x32xf32> to vector<1x16x32xf32>
    %c17_112 = arith.constant 17 : index
    %c1_113 = arith.constant 1 : index
    %c0_114 = arith.constant 0 : index
    %64 = vector.load %arg13[%c17_112, %c1_113, %c0_114] : memref<18x18x32xf32, #tpu.memory_space<vmem>>, vector<1x16x32xf32>
    tpu.vector_store %arg13[%c17_112, %c1_113, %c0_114], %63 {strides = array<i32>} : memref<18x18x32xf32, #tpu.memory_space<vmem>>, vector<1x16x32xf32>,
    %c0_115 = arith.constant 0 : index
    %c1_116 = arith.constant 1 : index
    %c0_117 = arith.constant 0 : index
    %65 = vector.load %arg13[%c0_115, %c1_116, %c0_117] : memref<18x18x32xf32, #tpu.memory_space<vmem>>, vector<18x1x32xf32>
    %c0_118 = arith.constant 0 : index
    %c0_119 = arith.constant 0 : index
    %c0_120 = arith.constant 0 : index
    %66 = vector.load %arg13[%c0_118, %c0_119, %c0_120] : memref<18x18x32xf32, #tpu.memory_space<vmem>>, vector<18x1x32xf32>
    tpu.vector_store %arg13[%c0_118, %c0_119, %c0_120], %65 {strides = array<i32>} : memref<18x18x32xf32, #tpu.memory_space<vmem>>, vector<18x1x32xf32>,
    %c0_121 = arith.constant 0 : index
    %c16_122 = arith.constant 16 : index
    %c0_123 = arith.constant 0 : index
    %67 = vector.load %arg13[%c0_121, %c16_122, %c0_123] : memref<18x18x32xf32, #tpu.memory_space<vmem>>, vector<18x1x32xf32>
    %c0_124 = arith.constant 0 : index
    %c17_125 = arith.constant 17 : index
    %c0_126 = arith.constant 0 : index
    %68 = vector.load %arg13[%c0_124, %c17_125, %c0_126] : memref<18x18x32xf32, #tpu.memory_space<vmem>>, vector<18x1x32xf32>
    tpu.vector_store %arg13[%c0_124, %c17_125, %c0_126], %67 {strides = array<i32>} : memref<18x18x32xf32, #tpu.memory_space<vmem>>, vector<18x1x32xf32>,
    %c0_127 = arith.constant 0 : index
    %c0_128 = arith.constant 0 : index
    %c0_129 = arith.constant 0 : index
    %69 = vector.load %arg13[%c0_127, %c0_128, %c0_129] : memref<18x18x32xf32, #tpu.memory_space<vmem>>, vector<16x16x32xf32>
    %c0_130 = arith.constant 0 : index
    %c1_131 = arith.constant 1 : index
    %c0_132 = arith.constant 0 : index
    %70 = vector.load %arg13[%c0_130, %c1_131, %c0_132] : memref<18x18x32xf32, #tpu.memory_space<vmem>>, vector<16x16x32xf32>
    %c0_133 = arith.constant 0 : index
    %c2_134 = arith.constant 2 : index
    %c0_135 = arith.constant 0 : index
    %71 = vector.load %arg13[%c0_133, %c2_134, %c0_135] : memref<18x18x32xf32, #tpu.memory_space<vmem>>, vector<16x16x32xf32>
    %c1_136 = arith.constant 1 : index
    %c0_137 = arith.constant 0 : index
    %c0_138 = arith.constant 0 : index
    %72 = vector.load %arg13[%c1_136, %c0_137, %c0_138] : memref<18x18x32xf32, #tpu.memory_space<vmem>>, vector<16x16x32xf32>
    %c1_139 = arith.constant 1 : index
    %c1_140 = arith.constant 1 : index
    %c0_141 = arith.constant 0 : index
    %73 = vector.load %arg13[%c1_139, %c1_140, %c0_141] : memref<18x18x32xf32, #tpu.memory_space<vmem>>, vector<16x16x32xf32>
    %c1_142 = arith.constant 1 : index
    %c2_143 = arith.constant 2 : index
    %c0_144 = arith.constant 0 : index
    %74 = vector.load %arg13[%c1_142, %c2_143, %c0_144] : memref<18x18x32xf32, #tpu.memory_space<vmem>>, vector<16x16x32xf32>
    %c2_145 = arith.constant 2 : index
    %c0_146 = arith.constant 0 : index
    %c0_147 = arith.constant 0 : index
    %75 = vector.load %arg13[%c2_145, %c0_146, %c0_147] : memref<18x18x32xf32, #tpu.memory_space<vmem>>, vector<16x16x32xf32>
    %c2_148 = arith.constant 2 : index
    %c1_149 = arith.constant 1 : index
    %c0_150 = arith.constant 0 : index
    %76 = vector.load %arg13[%c2_148, %c1_149, %c0_150] : memref<18x18x32xf32, #tpu.memory_space<vmem>>, vector<16x16x32xf32>
    %c2_151 = arith.constant 2 : index
    %c2_152 = arith.constant 2 : index
    %c0_153 = arith.constant 0 : index
    %77 = vector.load %arg13[%c2_151, %c2_152, %c0_153] : memref<18x18x32xf32, #tpu.memory_space<vmem>>, vector<16x16x32xf32>
    %78 = tpu.concatenate %69, %70, %71, %72, %73, %74, %75, %76, %77 in 2 : vector<16x16x32xf32>, vector<16x16x32xf32>, vector<16x16x32xf32>, vector<16x16x32xf32>, vector<16x16x32xf32>, vector<16x16x32xf32>, vector<16x16x32xf32>, vector<16x16x32xf32>, vector<16x16x32xf32> -> vector<16x16x288xf32>
    %79 = vector.shape_cast %78 : vector<16x16x288xf32> to vector<256x288xf32>
    %c0_154 = arith.constant 0 : index
    %c0_155 = arith.constant 0 : index
    %80 = vector.load %arg6[%c0_154, %c0_155] : memref<288x32xf32, #tpu.memory_space<vmem>>, vector<288x32xf32>
    %cst_156 = arith.constant dense<0.000000e+00> : vector<256x32xf32>
    %81 = tpu.matmul %79, %80, %cst_156 {dimension_numbers = #tpu.dot_dimension_numbers<[1], [0], [0], [1], [0, 0, 1, 1], [], []>} : vector<256x288xf32>, vector<288x32xf32>, vector<256x32xf32> -> vector<256x32xf32>
    %c0_157 = arith.constant 0 : index
    %c0_158 = arith.constant 0 : index
    %82 = vector.load %arg7[%c0_157, %c0_158] : memref<1x32xf32, #tpu.memory_space<vmem>>, vector<1x32xf32>
    %83 = vector.broadcast %82 : vector<1x32xf32> to vector<256x32xf32>
    %84 = arith.addf %81, %83 : vector<256x32xf32>
    %cst_159 = arith.constant 2.000000e-01 : f32
    %85 = vector.broadcast %cst_159 : f32 to vector<256x32xf32>
    %86 = arith.mulf %85, %84 : vector<256x32xf32>
    %87 = arith.maximumf %84, %86 : vector<256x32xf32>
    %cst_160 = arith.constant dense<0.000000e+00> : vector<32xf32>
    %88 = vector.multi_reduction <add>, %87, %cst_160 [0] : vector<256x32xf32> to vector<32xf32>
    %89 = vector.shape_cast %88 : vector<32xf32> to vector<1x32xf32>
    %cst_161 = arith.constant 3.906250e-03 : f32
    %90 = vector.broadcast %cst_161 : f32 to vector<1x32xf32>
    %91 = arith.mulf %89, %90 : vector<1x32xf32>
    %c0_162 = arith.constant 0 : index
    %c0_163 = arith.constant 0 : index
    %92 = vector.load %arg8[%c0_162, %c0_163] : memref<32x2xf32, #tpu.memory_space<vmem>>, vector<32x2xf32>
    %cst_164 = arith.constant dense<0.000000e+00> : vector<1x2xf32>
    %93 = tpu.matmul %91, %92, %cst_164 {dimension_numbers = #tpu.dot_dimension_numbers<[1], [0], [0], [1], [0, 0, 1, 1], [], []>} : vector<1x32xf32>, vector<32x2xf32>, vector<1x2xf32> -> vector<1x2xf32>
    %c0_165 = arith.constant 0 : index
    %c0_166 = arith.constant 0 : index
    %94 = vector.load %arg9[%c0_165, %c0_166] : memref<1x2xf32, #tpu.memory_space<vmem>>, vector<1x2xf32>
    %95 = arith.addf %93, %94 : vector<1x2xf32>
    %cst_167 = arith.constant 0.000000e+00 : f32
    %96 = vector.broadcast %cst_167 : f32 to vector<1x2xf32>
    %97 = arith.maximumf %95, %96 : vector<1x2xf32>
    %c0_168 = arith.constant 0 : index
    %c0_169 = arith.constant 0 : index
    %98 = vector.load %arg10[%c0_168, %c0_169] : memref<2x32xf32, #tpu.memory_space<vmem>>, vector<2x32xf32>
    %cst_170 = arith.constant dense<0.000000e+00> : vector<1x32xf32>
    %99 = tpu.matmul %97, %98, %cst_170 {dimension_numbers = #tpu.dot_dimension_numbers<[1], [0], [0], [1], [0, 0, 1, 1], [], []>} : vector<1x2xf32>, vector<2x32xf32>, vector<1x32xf32> -> vector<1x32xf32>
    %c0_171 = arith.constant 0 : index
    %c0_172 = arith.constant 0 : index
    %100 = vector.load %arg11[%c0_171, %c0_172] : memref<1x32xf32, #tpu.memory_space<vmem>>, vector<1x32xf32>
    %101 = arith.addf %99, %100 : vector<1x32xf32>
    %cst_173 = arith.constant 0.000000e+00 : f32
    %102 = vector.broadcast %cst_173 : f32 to vector<1x32xf32>
    %103 = arith.subf %102, %101 : vector<1x32xf32>
    %104 = math.exp %103 : vector<1x32xf32>
    %cst_174 = arith.constant 1.000000e+00 : f32
    %105 = vector.broadcast %cst_174 : f32 to vector<1x32xf32>
    %106 = arith.addf %105, %104 : vector<1x32xf32>
    %cst_175 = arith.constant 1.000000e+00 : f32
    %107 = vector.broadcast %cst_175 : f32 to vector<1x32xf32>
    %108 = arith.divf %107, %106 : vector<1x32xf32>
    %109 = vector.broadcast %108 : vector<1x32xf32> to vector<256x32xf32>
    %110 = arith.mulf %87, %109 : vector<256x32xf32>
    %111 = vector.shape_cast %110 : vector<256x32xf32> to vector<1x256x32xf32>
    %c0_176 = arith.constant 0 : index
    %c0_177 = arith.constant 0 : index
    %c0_178 = arith.constant 0 : index
    %112 = vector.load %arg12[%c0_176, %c0_177, %c0_178] : memref<1x256x32xf32, #tpu.memory_space<vmem>>, vector<1x256x32xf32>
    tpu.vector_store %arg12[%c0_176, %c0_177, %c0_178], %111 {strides = array<i32>} : memref<1x256x32xf32, #tpu.memory_space<vmem>>, vector<1x256x32xf32>,
    return
  }
  func.func @transform_0(%arg0: i32) -> (i32, i32, i32, i32) {
    %c0_i32 = arith.constant 0 : i32
    %c0_i32_0 = arith.constant 0 : i32
    %c0_i32_1 = arith.constant 0 : i32
    %c0_i32_2 = arith.constant 0 : i32
    return %arg0, %c0_i32, %c0_i32_0, %c0_i32_1 : i32, i32, i32, i32
  }
  func.func @transform_1(%arg0: i32) -> (i32, i32) {
    %c0_i32 = arith.constant 0 : i32
    %c0_i32_0 = arith.constant 0 : i32
    %c0_i32_1 = arith.constant 0 : i32
    return %c0_i32, %c0_i32_0 : i32, i32
  }
  func.func @transform_2(%arg0: i32) -> (i32, i32) {
    %c0_i32 = arith.constant 0 : i32
    %c0_i32_0 = arith.constant 0 : i32
    %c0_i32_1 = arith.constant 0 : i32
    return %c0_i32, %c0_i32_0 : i32, i32
  }
  func.func @transform_3(%arg0: i32) -> (i32, i32) {
    %c0_i32 = arith.constant 0 : i32
    %c0_i32_0 = arith.constant 0 : i32
    %c0_i32_1 = arith.constant 0 : i32
    return %c0_i32, %c0_i32_0 : i32, i32
  }
  func.func @transform_4(%arg0: i32) -> (i32, i32) {
    %c0_i32 = arith.constant 0 : i32
    %c0_i32_0 = arith.constant 0 : i32
    %c0_i32_1 = arith.constant 0 : i32
    return %c0_i32, %c0_i32_0 : i32, i32
  }
  func.func @transform_5(%arg0: i32) -> (i32, i32) {
    %c0_i32 = arith.constant 0 : i32
    %c0_i32_0 = arith.constant 0 : i32
    %c0_i32_1 = arith.constant 0 : i32
    return %c0_i32, %c0_i32_0 : i32, i32
  }
  func.func @transform_6(%arg0: i32) -> (i32, i32) {
    %c0_i32 = arith.constant 0 : i32
    %c0_i32_0 = arith.constant 0 : i32
    %c0_i32_1 = arith.constant 0 : i32
    return %c0_i32, %c0_i32_0 : i32, i32
  }
  func.func @transform_7(%arg0: i32) -> (i32, i32) {
    %c0_i32 = arith.constant 0 : i32
    %c0_i32_0 = arith.constant 0 : i32
    %c0_i32_1 = arith.constant 0 : i32
    return %c0_i32, %c0_i32_0 : i32, i32
  }
  func.func @transform_8(%arg0: i32) -> (i32, i32) {
    %c0_i32 = arith.constant 0 : i32
    %c0_i32_0 = arith.constant 0 : i32
    %c0_i32_1 = arith.constant 0 : i32
    return %c0_i32, %c0_i32_0 : i32, i32
  }
  func.func @transform_9(%arg0: i32) -> (i32, i32) {
    %c0_i32 = arith.constant 0 : i32
    %c0_i32_0 = arith.constant 0 : i32
    %c0_i32_1 = arith.constant 0 : i32
    return %c0_i32, %c0_i32_0 : i32, i32
  }
  func.func @transform_10(%arg0: i32) -> (i32, i32) {
    %c0_i32 = arith.constant 0 : i32
    %c0_i32_0 = arith.constant 0 : i32
    %c0_i32_1 = arith.constant 0 : i32
    return %c0_i32, %c0_i32_0 : i32, i32
  }
  func.func @transform_11(%arg0: i32) -> (i32, i32, i32) {
    %c0_i32 = arith.constant 0 : i32
    %c0_i32_0 = arith.constant 0 : i32
    %c0_i32_1 = arith.constant 0 : i32
    return %arg0, %c0_i32, %c0_i32_0 : i32, i32, i32
  }
}

</mosaic_0001>

<llo_original>
// kernel: cablock_forward.1
$region0: #{cablock_forward.1}
  #allocation0 [shape = 'u32[]', space=smem, size = 0x4, offset = 0x4, fixed_abs, tag = 'smem constant byte address 0x4 - core index']
  #allocation1 [shape = 'u32[144,128]{1,0:T(1,128)}', space=vmem, size = 0x12000, scoped, tag = 'internal scratch']
  #allocation2 [shape = 'f32[18,18,32]{2,1,0:T(8,128)}', space=vmem, size = 0x36000, scoped, tag = 'scratch operand']
  %s0 = inlined_call_operand.hbm [shape: f32[2,16,16,32], index: 0, kind: input, shape index: {}]
  %s1 = inlined_call_operand.hbm [shape: f32[288,32], index: 1, kind: input, shape index: {}]
  %s2 = inlined_call_operand.vmem [shape: f32[1,32], index: 2, kind: input, shape index: {}]
  %s3 = inlined_call_operand.hbm [shape: f32[288,32], index: 3, kind: input, shape index: {}]
  %s4 = inlined_call_operand.vmem [shape: f32[1,32], index: 4, kind: input, shape index: {}]
  %s5 = inlined_call_operand.hbm [shape: f32[288,32], index: 5, kind: input, shape index: {}]
  %s6 = inlined_call_operand.vmem [shape: f32[1,32], index: 6, kind: input, shape index: {}]
  %s7 = inlined_call_operand.vmem [shape: f32[32,2], index: 7, kind: input, shape index: {}]
  %s8 = inlined_call_operand.vmem [shape: f32[1,2], index: 8, kind: input, shape index: {}]
  %s9 = inlined_call_operand.vmem [shape: f32[2,32], index: 9, kind: input, shape index: {}]
  %s10 = inlined_call_operand.vmem [shape: f32[1,32], index: 10, kind: input, shape index: {}]
  %s11 = inlined_call_operand.hbm [shape: f32[2,256,32], index: 11, kind: output, shape index: {}]
  %s12 = sld [smem:[#allocation0]]
  $region93: #{cablock_forward.1} parent=0
    _
  %s14 = ssub.s32 1, %s12
  %s15 = scalar_select 0, %s14, %s12
  $region1: #{cablock_forward.1} parent=0
    #allocation3 [shape = 'u8[262144]{0}', space=vmem, size = 0x40000, scoped, tag = 'input window, operand 0']
    #allocation4 [shape = 's32[2]{0}', space=sflag, size = 0x8, scoped, tag = 'scoped memory for cablock_forward.1']
    #allocation5 [shape = 's32[2]{0}', space=sflag, size = 0x8, scoped, tag = 'scoped memory for cablock_forward.1']
    #allocation6 [shape = 'u8[147456]{0}', space=vmem, size = 0x24000, scoped, tag = 'input window, operand 1, single buffered']
    #allocation7 [shape = 's32[1]{0}', space=sflag, size = 0x4, scoped, tag = 'scoped memory for cablock_forward.1']
    #allocation8 [shape = 'u8[147456]{0}', space=vmem, size = 0x24000, scoped, tag = 'input window, operand 3, single buffered']
    #allocation9 [shape = 'u8[147456]{0}', space=vmem, size = 0x24000, scoped, tag = 'input window, operand 5, single buffered']
    #allocation10 [shape = 's32[1]{0}', space=sflag, size = 0x4, scoped, tag = 'scoped memory for cablock_forward.1']
    #allocation11 [shape = 'u8[262144]{0}', space=vmem, size = 0x40000, scoped, tag = 'output window, operand 0']
    %16 = vsyncpa [#allocation4], 0
    %s17 = scalar_lea.sflag [#allocation4], 1
    %18 = vsyncpa %s17, 0
    %19 = vsyncpa [#allocation7], 0
    %20 = vsyncpa [#allocation10], 0
    %21 = vsyncpa [#allocation5], 0
    %s22 = scalar_lea.sflag [#allocation5], 1
    %23 = vsyncpa %s22, 0
    loop: start=0, step=1, limit=4
    $region2: #{cablock_forward.1} parent=1 // loop_pre_header
      _
    $region3: #{cablock_forward.1} parent=1 // loop_header
      %s25 = sphi 0, %s29
      %p26 = scmp.ge.s32.totalorder %s25, 4
      %s35 = sphi 0, %s37
      %s38 = sphi 0, %s35
      %s39 = sphi 0, %s38
      %s55 = sphi 0, %s39
      %s59 = sphi 0, %s59
      %s61 = sphi 0, %s59
      %s62 = sphi 0, %s61
      %s76 = sphi 0, %s62
      %s80 = sphi 0, %s80
      %s82 = sphi 0, %s80
      %s83 = sphi 0, %s82
      %s97 = sphi 0, %s83
      %s101 = sphi 0, %s101
      %s103 = sphi 0, %s101
      %s104 = sphi 0, %s103
      %s118 = sphi 0, %s104
      %s122 = sphi 0, %s122
      %s124 = sphi 0, %s122
      %s125 = sphi 0, %s124
      %s139 = sphi 0, %s125
      %s143 = sphi 0, %s143
      %s145 = sphi 0, %s143
      %s146 = sphi 0, %s145
      %s160 = sphi 0, %s146
      %s164 = sphi 0, %s164
      %s166 = sphi 0, %s164
      %s167 = sphi 0, %s166
      %s181 = sphi 0, %s167
      %s185 = sphi 0, %s185
      %s187 = sphi 0, %s185
      %s188 = sphi 0, %s187
      %s202 = sphi 0, %s188
      %s206 = sphi 0, %s206
      %s208 = sphi 0, %s206
      %s209 = sphi 0, %s208
      %s223 = sphi 0, %s209
      %s227 = sphi 0, %s227
      %s229 = sphi 0, %s227
      %s230 = sphi 0, %s229
      %s244 = sphi 0, %s230
      %s248 = sphi 0, %s248
      %s250 = sphi 0, %s248
      %s251 = sphi 0, %s250
      %s265 = sphi 0, %s251
      %s271 = sphi 0, %s273
      %s274 = sphi 0, %s271
      %s275 = sphi 0, %s274
      %s291 = sphi 0, %s275
    $region4: #{cablock_forward.1} parent=1 // loop_header_branch
      %28 = sbr.rel (%p26) target = $region8
    $region5: #{cablock_forward.1} parent=1 // loop_body
      %s30 = ssub.s32 %s25, 1
      %s31 = ssub.s32 %s25, 2
      %s32 = sadd.s32 %s25, 1
      %s33 = ssub.s32 %s25, %s32
      %p34 = scmp.eq.s32.totalorder %s33, 0
      %s36 = sadd.s32 %s35, 1
      %s37 = scalar_select %p34, %s35, %s36
      %p40 = pneg %p34
      %p41 = scmp.eq.s32.totalorder %s25, 1
      %p42 = por %p40, %p41
      %p43 = scmp.ne.s32.totalorder %s35, %s38
      %p44 = scmp.eq.s32.totalorder %s25, 0
      %p45 = por %p43, %p44
      %p46 = scmp.ne.s32.totalorder %s35, %s38
      %p47 = scmp.eq.s32.totalorder %s30, 1
      %p48 = por %p46, %p47
      %p49 = scmp.ne.s32.totalorder %s38, %s39
      %p50 = scmp.eq.s32.totalorder %s30, 0
      %p51 = por %p49, %p50
      %p52 = scmp.ne.s32.totalorder %s38, %s39
      %p53 = scmp.eq.s32.totalorder %s31, 1
      %p54 = por %p52, %p53
      %p56 = scmp.ne.s32.totalorder %s39, %s55
      %p57 = scmp.eq.s32.totalorder %s31, 0
      %p58 = por %p56, %p57
      %s60 = sadd.s32 %s59, 1
      %p63 = scmp.eq.s32.totalorder %s25, 1
      %p64 = scmp.ne.s32.totalorder %s59, %s61
      %p65 = scmp.eq.s32.totalorder %s25, 0
      %p66 = por %p64, %p65
      %p67 = scmp.ne.s32.totalorder %s59, %s61
      %p68 = scmp.eq.s32.totalorder %s30, 1
      %p69 = por %p67, %p68
      %p70 = scmp.ne.s32.totalorder %s61, %s62
      %p71 = scmp.eq.s32.totalorder %s30, 0
      %p72 = por %p70, %p71
      %p73 = scmp.ne.s32.totalorder %s61, %s62
      %p74 = scmp.eq.s32.totalorder %s31, 1
      %p75 = por %p73, %p74
      %p77 = scmp.ne.s32.totalorder %s62, %s76
      %p78 = scmp.eq.s32.totalorder %s31, 0
      %p79 = por %p77, %p78
      %s81 = sadd.s32 %s80, 1
      %p84 = scmp.eq.s32.totalorder %s25, 1
      %p85 = scmp.ne.s32.totalorder %s80, %s82
      %p86 = scmp.eq.s32.totalorder %s25, 0
      %p87 = por %p85, %p86
      %p88 = scmp.ne.s32.totalorder %s80, %s82
      %p89 = scmp.eq.s32.totalorder %s30, 1
      %p90 = por %p88, %p89
      %p91 = scmp.ne.s32.totalorder %s82, %s83
      %p92 = scmp.eq.s32.totalorder %s30, 0
      %p93 = por %p91, %p92
      %p94 = scmp.ne.s32.totalorder %s82, %s83
      %p95 = scmp.eq.s32.totalorder %s31, 1
      %p96 = por %p94, %p95
      %p98 = scmp.ne.s32.totalorder %s83, %s97
      %p99 = scmp.eq.s32.totalorder %s31, 0
      %p100 = por %p98, %p99
      %s102 = sadd.s32 %s101, 1
      %p105 = scmp.eq.s32.totalorder %s25, 1
      %p106 = scmp.ne.s32.totalorder %s101, %s103
      %p107 = scmp.eq.s32.totalorder %s25, 0
      %p108 = por %p106, %p107
      %p109 = scmp.ne.s32.totalorder %s101, %s103
      %p110 = scmp.eq.s32.totalorder %s30, 1
      %p111 = por %p109, %p110
      %p112 = scmp.ne.s32.totalorder %s103, %s104
      %p113 = scmp.eq.s32.totalorder %s30, 0
      %p114 = por %p112, %p113
      %p115 = scmp.ne.s32.totalorder %s103, %s104
      %p116 = scmp.eq.s32.totalorder %s31, 1
      %p117 = por %p115, %p116
      %p119 = scmp.ne.s32.totalorder %s104, %s118
      %p120 = scmp.eq.s32.totalorder %s31, 0
      %p121 = por %p119, %p120
      %s123 = sadd.s32 %s122, 1
      %p126 = scmp.eq.s32.totalorder %s25, 1
      %p127 = scmp.ne.s32.totalorder %s122, %s124
      %p128 = scmp.eq.s32.totalorder %s25, 0
      %p129 = por %p127, %p128
      %p130 = scmp.ne.s32.totalorder %s122, %s124
      %p131 = scmp.eq.s32.totalorder %s30, 1
      %p132 = por %p130, %p131
      %p133 = scmp.ne.s32.totalorder %s124, %s125
      %p134 = scmp.eq.s32.totalorder %s30, 0
      %p135 = por %p133, %p134
      %p136 = scmp.ne.s32.totalorder %s124, %s125
      %p137 = scmp.eq.s32.totalorder %s31, 1
      %p138 = por %p136, %p137
      %p140 = scmp.ne.s32.totalorder %s125, %s139
      %p141 = scmp.eq.s32.totalorder %s31, 0
      %p142 = por %p140, %p141
      %s144 = sadd.s32 %s143, 1
      %p147 = scmp.eq.s32.totalorder %s25, 1
      %p148 = scmp.ne.s32.totalorder %s143, %s145
      %p149 = scmp.eq.s32.totalorder %s25, 0
      %p150 = por %p148, %p149
      %p151 = scmp.ne.s32.totalorder %s143, %s145
      %p152 = scmp.eq.s32.totalorder %s30, 1
      %p153 = por %p151, %p152
      %p154 = scmp.ne.s32.totalorder %s145, %s146
      %p155 = scmp.eq.s32.totalorder %s30, 0
      %p156 = por %p154, %p155
      %p157 = scmp.ne.s32.totalorder %s145, %s146
      %p158 = scmp.eq.s32.totalorder %s31, 1
      %p159 = por %p157, %p158
      %p161 = scmp.ne.s32.totalorder %s146, %s160
      %p162 = scmp.eq.s32.totalorder %s31, 0
      %p163 = por %p161, %p162
      %s165 = sadd.s32 %s164, 1
      %p168 = scmp.eq.s32.totalorder %s25, 1
      %p169 = scmp.ne.s32.totalorder %s164, %s166
      %p170 = scmp.eq.s32.totalorder %s25, 0
      %p171 = por %p169, %p170
      %p172 = scmp.ne.s32.totalorder %s164, %s166
      %p173 = scmp.eq.s32.totalorder %s30, 1
      %p174 = por %p172, %p173
      %p175 = scmp.ne.s32.totalorder %s166, %s167
      %p176 = scmp.eq.s32.totalorder %s30, 0
      %p177 = por %p175, %p176
      %p178 = scmp.ne.s32.totalorder %s166, %s167
      %p179 = scmp.eq.s32.totalorder %s31, 1
      %p180 = por %p178, %p179
      %p182 = scmp.ne.s32.totalorder %s167, %s181
      %p183 = scmp.eq.s32.totalorder %s31, 0
      %p184 = por %p182, %p183
      %s186 = sadd.s32 %s185, 1
      %p189 = scmp.eq.s32.totalorder %s25, 1
      %p190 = scmp.ne.s32.totalorder %s185, %s187
      %p191 = scmp.eq.s32.totalorder %s25, 0
      %p192 = por %p190, %p191
      %p193 = scmp.ne.s32.totalorder %s185, %s187
      %p194 = scmp.eq.s32.totalorder %s30, 1
      %p195 = por %p193, %p194
      %p196 = scmp.ne.s32.totalorder %s187, %s188
      %p197 = scmp.eq.s32.totalorder %s30, 0
      %p198 = por %p196, %p197
      %p199 = scmp.ne.s32.totalorder %s187, %s188
      %p200 = scmp.eq.s32.totalorder %s31, 1
      %p201 = por %p199, %p200
      %p203 = scmp.ne.s32.totalorder %s188, %s202
      %p204 = scmp.eq.s32.totalorder %s31, 0
      %p205 = por %p203, %p204
      %s207 = sadd.s32 %s206, 1
      %p210 = scmp.eq.s32.totalorder %s25, 1
      %p211 = scmp.ne.s32.totalorder %s206, %s208
      %p212 = scmp.eq.s32.totalorder %s25, 0
      %p213 = por %p211, %p212
      %p214 = scmp.ne.s32.totalorder %s206, %s208
      %p215 = scmp.eq.s32.totalorder %s30, 1
      %p216 = por %p214, %p215
      %p217 = scmp.ne.s32.totalorder %s208, %s209
      %p218 = scmp.eq.s32.totalorder %s30, 0
      %p219 = por %p217, %p218
      %p220 = scmp.ne.s32.totalorder %s208, %s209
      %p221 = scmp.eq.s32.totalorder %s31, 1
      %p222 = por %p220, %p221
      %p224 = scmp.ne.s32.totalorder %s209, %s223
      %p225 = scmp.eq.s32.totalorder %s31, 0
      %p226 = por %p224, %p225
      %s228 = sadd.s32 %s227, 1
      %p231 = scmp.eq.s32.totalorder %s25, 1
      %p232 = scmp.ne.s32.totalorder %s227, %s229
      %p233 = scmp.eq.s32.totalorder %s25, 0
      %p234 = por %p232, %p233
      %p235 = scmp.ne.s32.totalorder %s227, %s229
      %p236 = scmp.eq.s32.totalorder %s30, 1
      %p237 = por %p235, %p236
      %p238 = scmp.ne.s32.totalorder %s229, %s230
      %p239 = scmp.eq.s32.totalorder %s30, 0
      %p240 = por %p238, %p239
      %p241 = scmp.ne.s32.totalorder %s229, %s230
      %p242 = scmp.eq.s32.totalorder %s31, 1
      %p243 = por %p241, %p242
      %p245 = scmp.ne.s32.totalorder %s230, %s244
      %p246 = scmp.eq.s32.totalorder %s31, 0
      %p247 = por %p245, %p246
      %s249 = sadd.s32 %s248, 1
      %p252 = scmp.eq.s32.totalorder %s25, 1
      %p253 = scmp.ne.s32.totalorder %s248, %s250
      %p254 = scmp.eq.s32.totalorder %s25, 0
      %p255 = por %p253, %p254
      %p256 = scmp.ne.s32.totalorder %s248, %s250
      %p257 = scmp.eq.s32.totalorder %s30, 1
      %p258 = por %p256, %p257
      %p259 = scmp.ne.s32.totalorder %s250, %s251
      %p260 = scmp.eq.s32.totalorder %s30, 0
      %p261 = por %p259, %p260
      %p262 = scmp.ne.s32.totalorder %s250, %s251
      %p263 = scmp.eq.s32.totalorder %s31, 1
      %p264 = por %p262, %p263
      %p266 = scmp.ne.s32.totalorder %s251, %s265
      %p267 = scmp.eq.s32.totalorder %s31, 0
      %p268 = por %p266, %p267
      %s269 = ssub.s32 %s25, %s32
      %p270 = scmp.eq.s32.totalorder %s269, 0
      %s272 = sadd.s32 %s271, 1
      %s273 = scalar_select %p270, %s271, %s272
      %p276 = pneg %p270
      %p277 = scmp.eq.s32.totalorder %s25, 1
      %p278 = por %p276, %p277
      %p279 = scmp.ne.s32.totalorder %s271, %s274
      %p280 = scmp.eq.s32.totalorder %s25, 0
      %p281 = por %p279, %p280
      %p282 = scmp.ne.s32.totalorder %s271, %s274
      %p283 = scmp.eq.s32.totalorder %s30, 1
      %p284 = por %p282, %p283
      %p285 = scmp.ne.s32.totalorder %s274, %s275
      %p286 = scmp.eq.s32.totalorder %s30, 0
      %p287 = por %p285, %p286
      %p288 = scmp.ne.s32.totalorder %s274, %s275
      %p289 = scmp.eq.s32.totalorder %s31, 1
      %p290 = por %p288, %p289
      %p292 = scmp.ne.s32.totalorder %s275, %s291
      %p293 = scmp.eq.s32.totalorder %s31, 0
      %p294 = por %p292, %p293
      %p295 = scmp.le.s32.totalorder 1, %s25
      %p296 = scmp.lt.s32.totalorder %s25, 3
      %p297 = pnand %p295, %p296
      %p298 = pneg %p297
      // Predicated region
      $region9: #{cablock_forward.1} parent=5 // pred_check
        _
      $region10: #{cablock_forward.1} parent=5 // pred_check_branch
        %300 = sbr.rel (%p297) target = $region12
      $region11: #{cablock_forward.1} parent=5 // pred_region
        %s301 = ssub.s32 %s25, 1
        // Predicated region
        $region13: #{cablock_forward.1} parent=11 // pred_check
          %p302 = pneg %p72
        $region14: #{cablock_forward.1} parent=11 // pred_check_branch
          %304 = sbr.rel (%p302) target = $region16
        $region15: #{cablock_forward.1} parent=11 // pred_region
          %s306 = ssub.s32 4608, 4608
          %307 = vsyncadd [#allocation7], %s306
          %s308 = sshll.u32 [#allocation6], 4
          %s309 = int_to_ptr.vmem [resolvable:$true] %s308
          %314 = dma.hbm_to_vmem [thread:$0]  %s1, 4608, %s309, [#allocation7], 128, 128, 8
        $region16: #{cablock_forward.1} parent=11 // pred_fallthru
          _
        // Predicated region
        $region17: #{cablock_forward.1} parent=11 // pred_check
          %p315 = pneg %p93
        $region18: #{cablock_forward.1} parent=11 // pred_check_branch
          %317 = sbr.rel (%p315) target = $region20
        $region19: #{cablock_forward.1} parent=11 // pred_region
          _
        $region20: #{cablock_forward.1} parent=11 // pred_fallthru
          _
        // Predicated region
        $region21: #{cablock_forward.1} parent=11 // pred_check
          %p318 = pneg %p114
        $region22: #{cablock_forward.1} parent=11 // pred_check_branch
          %320 = sbr.rel (%p318) target = $region24
        $region23: #{cablock_forward.1} parent=11 // pred_region
          %s322 = ssub.s32 4608, 4608
          %323 = vsyncadd [#allocation7], %s322
          %s324 = sshll.u32 [#allocation8], 4
          %s325 = int_to_ptr.vmem [resolvable:$true] %s324
          %330 = dma.hbm_to_vmem [thread:$0]  %s3, 4608, %s325, [#allocation7], 128, 128, 8
        $region24: #{cablock_forward.1} parent=11 // pred_fallthru
          _
        // Predicated region
        $region25: #{cablock_forward.1} parent=11 // pred_check
          %p331 = pneg %p135
        $region26: #{cablock_forward.1} parent=11 // pred_check_branch
          %333 = sbr.rel (%p331) target = $region28
        $region27: #{cablock_forward.1} parent=11 // pred_region
          _
        $region28: #{cablock_forward.1} parent=11 // pred_fallthru
          _
        // Predicated region
        $region29: #{cablock_forward.1} parent=11 // pred_check
          %p334 = pneg %p156
        $region30: #{cablock_forward.1} parent=11 // pred_check_branch
          %336 = sbr.rel (%p334) target = $region32
        $region31: #{cablock_forward.1} parent=11 // pred_region
          %s338 = ssub.s32 4608, 4608
          %339 = vsyncadd [#allocation10], %s338
          %s340 = sshll.u32 [#allocation9], 4
          %s341 = int_to_ptr.vmem [resolvable:$true] %s340
          %346 = dma.hbm_to_vmem [thread:$0]  %s5, 4608, %s341, [#allocation10], 128, 128, 8
        $region32: #{cablock_forward.1} parent=11 // pred_fallthru
          _
        // Predicated region
        $region33: #{cablock_forward.1} parent=11 // pred_check
          %p347 = pneg %p177
        $region34: #{cablock_forward.1} parent=11 // pred_check_branch
          %349 = sbr.rel (%p347) target = $region36
        $region35: #{cablock_forward.1} parent=11 // pred_region
          _
        $region36: #{cablock_forward.1} parent=11 // pred_fallthru
          _
        // Predicated region
        $region37: #{cablock_forward.1} parent=11 // pred_check
          %p350 = pneg %p198
        $region38: #{cablock_forward.1} parent=11 // pred_check_branch
          %352 = sbr.rel (%p350) target = $region40
        $region39: #{cablock_forward.1} parent=11 // pred_region
          _
        $region40: #{cablock_forward.1} parent=11 // pred_fallthru
          _
        // Predicated region
        $region41: #{cablock_forward.1} parent=11 // pred_check
          %p353 = pneg %p219
        $region42: #{cablock_forward.1} parent=11 // pred_check_branch
          %355 = sbr.rel (%p353) target = $region44
        $region43: #{cablock_forward.1} parent=11 // pred_region
          _
        $region44: #{cablock_forward.1} parent=11 // pred_fallthru
          _
        // Predicated region
        $region45: #{cablock_forward.1} parent=11 // pred_check
          %p356 = pneg %p240
        $region46: #{cablock_forward.1} parent=11 // pred_check_branch
          %358 = sbr.rel (%p356) target = $region48
        $region47: #{cablock_forward.1} parent=11 // pred_region
          _
        $region48: #{cablock_forward.1} parent=11 // pred_fallthru
          _
        // Predicated region
        $region49: #{cablock_forward.1} parent=11 // pred_check
          %p359 = pneg %p261
        $region50: #{cablock_forward.1} parent=11 // pred_check_branch
          %361 = sbr.rel (%p359) target = $region52
        $region51: #{cablock_forward.1} parent=11 // pred_region
          _
        $region52: #{cablock_forward.1} parent=11 // pred_fallthru
          _
      $region12: #{cablock_forward.1} parent=5 // pred_fallthru
        _
      %p362 = scmp.lt.s32.totalorder %s25, 2
      // Predicated region
      $region53: #{cablock_forward.1} parent=5 // pred_check
        %p363 = pneg %p362
      $region54: #{cablock_forward.1} parent=5 // pred_check_branch
        %365 = sbr.rel (%p363) target = $region56
      $region55: #{cablock_forward.1} parent=5 // pred_region
        // Predicated region
        $region57: #{cablock_forward.1} parent=55 // pred_check
          %p366 = pneg %p45
        $region58: #{cablock_forward.1} parent=55 // pred_check_branch
          %368 = sbr.rel (%p366) target = $region60
        $region59: #{cablock_forward.1} parent=55 // pred_region
          %s369 = sand.u32 %s35, 1
          %s370 = scalar_lea.sflag [#allocation4], %s369
          %s371 = sand.u32 %s35, 1
          %s372 = smul.addr %s371, 256
          %s373 = scalar_lea.vmem [#allocation3], %s372
          %s375 = ssub.s32 4096, 4096
          %376 = vsyncadd %s370, %s375
          %s377 = smul.addr %s25, 32
          %s378 = smul.addr %s377, 128
          %s379 = scalar_lea.hbm %s0, %s378
          %s380 = sshll.u32 %s373, 4
          %s381 = int_to_ptr.vmem [resolvable:$true] %s380
          %386 = dma.hbm_to_vmem [thread:$0]  %s379, 4096, %s381, %s370, 128, 128, 8
        $region60: #{cablock_forward.1} parent=55 // pred_fallthru
          _
      $region56: #{cablock_forward.1} parent=5 // pred_fallthru
        _
      %p387 = scmp.le.s32.totalorder 1, %s25
      %p388 = scmp.lt.s32.totalorder %s25, 3
      %p389 = pnand %p387, %p388
      %p390 = pneg %p389
      // Predicated region
      $region61: #{cablock_forward.1} parent=5 // pred_check
        _
      $region62: #{cablock_forward.1} parent=5 // pred_check_branch
        %392 = sbr.rel (%p389) target = $region64
      $region63: #{cablock_forward.1} parent=5 // pred_region
        %s393 = ssub.s32 %s25, 1
        %s394 = sand.u32 %s38, 1
        %s395 = scalar_lea.sflag [#allocation4], %s394
        %s396 = sand.u32 %s38, 1
        %s397 = smul.addr %s396, 256
        %s398 = scalar_lea.vmem [#allocation3], %s397
        // Predicated region
        $region65: #{cablock_forward.1} parent=63 // pred_check
          %p399 = pneg %p51
        $region66: #{cablock_forward.1} parent=63 // pred_check_branch
          %401 = sbr.rel (%p399) target = $region68
        $region67: #{cablock_forward.1} parent=63 // pred_region
          %402 = dma.done %s395, 4096
        $region68: #{cablock_forward.1} parent=63 // pred_fallthru
          _
        // Predicated region
        $region69: #{cablock_forward.1} parent=63 // pred_check
          %p403 = pneg %p72
        $region70: #{cablock_forward.1} parent=63 // pred_check_branch
          %405 = sbr.rel (%p403) target = $region72
        $region71: #{cablock_forward.1} parent=63 // pred_region
          %406 = dma.done [#allocation7], 4608
        $region72: #{cablock_forward.1} parent=63 // pred_fallthru
          _
        // Predicated region
        $region73: #{cablock_forward.1} parent=63 // pred_check
          %p407 = pneg %p114
        $region74: #{cablock_forward.1} parent=63 // pred_check_branch
          %409 = sbr.rel (%p407) target = $region76
        $region75: #{cablock_forward.1} parent=63 // pred_region
          %410 = dma.done [#allocation7], 4608
        $region76: #{cablock_forward.1} parent=63 // pred_fallthru
          _
        // Predicated region
        $region77: #{cablock_forward.1} parent=63 // pred_check
          %p411 = pneg %p156
        $region78: #{cablock_forward.1} parent=63 // pred_check_branch
          %413 = sbr.rel (%p411) target = $region80
        $region79: #{cablock_forward.1} parent=63 // pred_region
          %414 = dma.done [#allocation10], 4608
        $region80: #{cablock_forward.1} parent=63 // pred_fallthru
          _
        %s415 = sand.u32 %s38, 1
        %s416 = scalar_lea.sflag [#allocation4], %s415
        %s417 = sand.u32 %s38, 1
        %s418 = smul.addr %s417, 256
        %s419 = scalar_lea.vmem [#allocation3], %s418
        %p420 = pneg %p51
        %p421 = pneg %p48
        %p422 = pneg %p72
        %p423 = pneg %p69
        %p424 = pneg %p93
        %p425 = pneg %p90
        %p426 = pneg %p114
        %p427 = pneg %p111
        %p428 = pneg %p135
        %p429 = pneg %p132
        %p430 = pneg %p156
        %p431 = pneg %p153
        %p432 = pneg %p177
        %p433 = pneg %p174
        %p434 = pneg %p198
        %p435 = pneg %p195
        %p436 = pneg %p219
        %p437 = pneg %p216
        %p438 = pneg %p240
        %p439 = pneg %p237
        %p440 = pneg %p261
        %p441 = pneg %p258
        %p442 = pneg %p287
        %p443 = pneg %p284
        %s444 = sand.u32 %s274, 1
        %s445 = scalar_lea.sflag [#allocation5], %s444
        %s446 = sand.u32 %s274, 1
        %s447 = smul.addr %s446, 256
        %s448 = scalar_lea.vmem [#allocation11], %s447
        %v449 = vld [vmem:[%s398] sm:$0xff]
        %v450 = vld [vmem:[%s398 + $0x8] sm:$0xff]
        %v451 = vld [vmem:[%s398 + $0x10] sm:$0xff]
        %v452 = vld [vmem:[%s398 + $0x18] sm:$0xff]
        %v453 = vld [vmem:[%s398 + $0x20] sm:$0xff]
        %v454 = vld [vmem:[%s398 + $0x28] sm:$0xff]
        %v455 = vld [vmem:[%s398 + $0x30] sm:$0xff]
        %v456 = vld [vmem:[%s398 + $0x38] sm:$0xff]
        %v457 = vld [vmem:[%s398 + $0x40] sm:$0xff]
        %v458 = vld [vmem:[%s398 + $0x48] sm:$0xff]
        %v459 = vld [vmem:[%s398 + $0x50] sm:$0xff]
        %v460 = vld [vmem:[%s398 + $0x58] sm:$0xff]
        %v461 = vld [vmem:[%s398 + $0x60] sm:$0xff]
        %v462 = vld [vmem:[%s398 + $0x68] sm:$0xff]
        %v463 = vld [vmem:[%s398 + $0x70] sm:$0xff]
        %v464 = vld [vmem:[%s398 + $0x78] sm:$0xff]
        %v465 = vld [vmem:[%s398 + $0x80] sm:$0xff]
        %v466 = vld [vmem:[%s398 + $0x88] sm:$0xff]
        %v467 = vld [vmem:[%s398 + $0x90] sm:$0xff]
        %v468 = vld [vmem:[%s398 + $0x98] sm:$0xff]
        %v469 = vld [vmem:[%s398 + $0xa0] sm:$0xff]
        %v470 = vld [vmem:[%s398 + $0xa8] sm:$0xff]
        %v471 = vld [vmem:[%s398 + $0xb0] sm:$0xff]
        %v472 = vld [vmem:[%s398 + $0xb8] sm:$0xff]
        %v473 = vld [vmem:[%s398 + $0xc0] sm:$0xff]
        %v474 = vld [vmem:[%s398 + $0xc8] sm:$0xff]
        %v475 = vld [vmem:[%s398 + $0xd0] sm:$0xff]
        %v476 = vld [vmem:[%s398 + $0xd8] sm:$0xff]
        %v477 = vld [vmem:[%s398 + $0xe0] sm:$0xff]
        %v478 = vld [vmem:[%s398 + $0xe8] sm:$0xff]
        %v479 = vld [vmem:[%s398 + $0xf0] sm:$0xff]
        %v480 = vld [vmem:[%s398 + $0xf8] sm:$0xff]
        %s481 = scalar_lea.vmem [#allocation2], 24
        %vm482 = vcmask 261120
        %483 = vst.msk [vmem:[%s481 + $0x1] sm:$0xff] %vm482, %v449
        %484 = vst.msk [vmem:[%s481 + $0x9] sm:$0xff] %vm482, %v450
        %485 = vst.msk [vmem:[%s481 + $0x19] sm:$0xff] %vm482, %v451
        %486 = vst.msk [vmem:[%s481 + $0x21] sm:$0xff] %vm482, %v452
        %487 = vst.msk [vmem:[%s481 + $0x31] sm:$0xff] %vm482, %v453
        %488 = vst.msk [vmem:[%s481 + $0x39] sm:$0xff] %vm482, %v454
        %489 = vst.msk [vmem:[%s481 + $0x49] sm:$0xff] %vm482, %v455
        %490 = vst.msk [vmem:[%s481 + $0x51] sm:$0xff] %vm482, %v456
        %491 = vst.msk [vmem:[%s481 + $0x61] sm:$0xff] %vm482, %v457
        %492 = vst.msk [vmem:[%s481 + $0x69] sm:$0xff] %vm482, %v458
        %493 = vst.msk [vmem:[%s481 + $0x79] sm:$0xff] %vm482, %v459
        %494 = vst.msk [vmem:[%s481 + $0x81] sm:$0xff] %vm482, %v460
        %495 = vst.msk [vmem:[%s481 + $0x91] sm:$0xff] %vm482, %v461
        %496 = vst.msk [vmem:[%s481 + $0x99] sm:$0xff] %vm482, %v462
        %497 = vst.msk [vmem:[%s481 + $0xa9] sm:$0xff] %vm482, %v463
        %498 = vst.msk [vmem:[%s481 + $0xb1] sm:$0xff] %vm482, %v464
        %499 = vst.msk [vmem:[%s481 + $0xc1] sm:$0xff] %vm482, %v465
        %500 = vst.msk [vmem:[%s481 + $0xc9] sm:$0xff] %vm482, %v466
        %501 = vst.msk [vmem:[%s481 + $0xd9] sm:$0xff] %vm482, %v467
        %502 = vst.msk [vmem:[%s481 + $0xe1] sm:$0xff] %vm482, %v468
        %503 = vst.msk [vmem:[%s481 + $0xf1] sm:$0xff] %vm482, %v469
        %504 = vst.msk [vmem:[%s481 + $0xf9] sm:$0xff] %vm482, %v470
        %505 = vst.msk [vmem:[%s481 + $0x109] sm:$0xff] %vm482, %v471
        %506 = vst.msk [vmem:[%s481 + $0x111] sm:$0xff] %vm482, %v472
        %507 = vst.msk [vmem:[%s481 + $0x121] sm:$0xff] %vm482, %v473
        %508 = vst.msk [vmem:[%s481 + $0x129] sm:$0xff] %vm482, %v474
        %509 = vst.msk [vmem:[%s481 + $0x139] sm:$0xff] %vm482, %v475
        %510 = vst.msk [vmem:[%s481 + $0x141] sm:$0xff] %vm482, %v476
        %511 = vst.msk [vmem:[%s481 + $0x151] sm:$0xff] %vm482, %v477
        %512 = vst.msk [vmem:[%s481 + $0x159] sm:$0xff] %vm482, %v478
        %513 = vst.msk [vmem:[%s481 + $0x169] sm:$0xff] %vm482, %v479
        %514 = vst.msk [vmem:[%s481 + $0x171] sm:$0xff] %vm482, %v480
        %515 = vst.msk [vmem:[#allocation2 + $0x1] sm:$0xff] %vm482, %v449
        %516 = vst.msk [vmem:[#allocation2 + $0x9] sm:$0xff] %vm482, %v450
        %s517 = scalar_lea.vmem [#allocation2], 408
        %518 = vst.msk [vmem:[%s517 + $0x1] sm:$0xff] %vm482, %v479
        %519 = vst.msk [vmem:[%s517 + $0x9] sm:$0xff] %vm482, %v480
        %v520 = vld [vmem:[#allocation2 + $0x1] sm:$0x1]
        %v521 = vld [vmem:[#allocation2 + $0x19] sm:$0x1]
        %v522 = vld [vmem:[#allocation2 + $0x31] sm:$0x1]
        %v523 = vld [vmem:[#allocation2 + $0x49] sm:$0x1]
        %v524 = vld [vmem:[#allocation2 + $0x61] sm:$0x1]
        %v525 = vld [vmem:[#allocation2 + $0x79] sm:$0x1]
        %v526 = vld [vmem:[#allocation2 + $0x91] sm:$0x1]
        %v527 = vld [vmem:[#allocation2 + $0xa9] sm:$0x1]
        %v528 = vld [vmem:[#allocation2 + $0xc1] sm:$0x1]
        %v529 = vld [vmem:[#allocation2 + $0xd9] sm:$0x1]
        %v530 = vld [vmem:[#allocation2 + $0xf1] sm:$0x1]
        %v531 = vld [vmem:[#allocation2 + $0x109] sm:$0x1]
        %v532 = vld [vmem:[#allocation2 + $0x121] sm:$0x1]
        %v533 = vld [vmem:[#allocation2 + $0x139] sm:$0x1]
        %v534 = vld [vmem:[#allocation2 + $0x151] sm:$0x1]
        %v535 = vld [vmem:[#allocation2 + $0x169] sm:$0x1]
        %v536 = vld [vmem:[#allocation2 + $0x181] sm:$0x1]
        %v537 = vld [vmem:[#allocation2 + $0x199] sm:$0x1]
        %vm538 = vcmask 253952
        %539 = vst.msk [vmem:[#allocation2] sm:$0x1] %vm538, %v520
        %540 = vst.msk [vmem:[#allocation2 + $0x18] sm:$0x1] %vm538, %v521
        %541 = vst.msk [vmem:[#allocation2 + $0x30] sm:$0x1] %vm538, %v522
        %542 = vst.msk [vmem:[#allocation2 + $0x48] sm:$0x1] %vm538, %v523
        %543 = vst.msk [vmem:[#allocation2 + $0x60] sm:$0x1] %vm538, %v524
        %544 = vst.msk [vmem:[#allocation2 + $0x78] sm:$0x1] %vm538, %v525
        %545 = vst.msk [vmem:[#allocation2 + $0x90] sm:$0x1] %vm538, %v526
        %546 = vst.msk [vmem:[#allocation2 + $0xa8] sm:$0x1] %vm538, %v527
        %547 = vst.msk [vmem:[#allocation2 + $0xc0] sm:$0x1] %vm538, %v528
        %548 = vst.msk [vmem:[#allocation2 + $0xd8] sm:$0x1] %vm538, %v529
        %549 = vst.msk [vmem:[#allocation2 + $0xf0] sm:$0x1] %vm538, %v530
        %550 = vst.msk [vmem:[#allocation2 + $0x108] sm:$0x1] %vm538, %v531
        %551 = vst.msk [vmem:[#allocation2 + $0x120] sm:$0x1] %vm538, %v532
        %552 = vst.msk [vmem:[#allocation2 + $0x138] sm:$0x1] %vm538, %v533
        %553 = vst.msk [vmem:[#allocation2 + $0x150] sm:$0x1] %vm538, %v534
        %554 = vst.msk [vmem:[#allocation2 + $0x168] sm:$0x1] %vm538, %v535
        %555 = vst.msk [vmem:[#allocation2 + $0x180] sm:$0x1] %vm538, %v536
        %556 = vst.msk [vmem:[#allocation2 + $0x198] sm:$0x1] %vm538, %v537
        %v557 = vld [vmem:[#allocation2 + $0x10] sm:$0x1]
        %v558 = vld [vmem:[#allocation2 + $0x28] sm:$0x1]
        %v559 = vld [vmem:[#allocation2 + $0x40] sm:$0x1]
        %v560 = vld [vmem:[#allocation2 + $0x58] sm:$0x1]
        %v561 = vld [vmem:[#allocation2 + $0x70] sm:$0x1]
        %v562 = vld [vmem:[#allocation2 + $0x88] sm:$0x1]
        %v563 = vld [vmem:[#allocation2 + $0xa0] sm:$0x1]
        %v564 = vld [vmem:[#allocation2 + $0xb8] sm:$0x1]
        %v565 = vld [vmem:[#allocation2 + $0xd0] sm:$0x1]
        %v566 = vld [vmem:[#allocation2 + $0xe8] sm:$0x1]
        %v567 = vld [vmem:[#allocation2 + $0x100] sm:$0x1]
        %v568 = vld [vmem:[#allocation2 + $0x118] sm:$0x1]
        %v569 = vld [vmem:[#allocation2 + $0x130] sm:$0x1]
        %v570 = vld [vmem:[#allocation2 + $0x148] sm:$0x1]
        %v571 = vld [vmem:[#allocation2 + $0x160] sm:$0x1]
        %v572 = vld [vmem:[#allocation2 + $0x178] sm:$0x1]
        %v573 = vld [vmem:[#allocation2 + $0x190] sm:$0x1]
        %v574 = vld [vmem:[#allocation2 + $0x1a8] sm:$0x1]
        %575 = vst.msk [vmem:[#allocation2 + $0x11] sm:$0x1] %vm538, %v557
        %576 = vst.msk [vmem:[#allocation2 + $0x29] sm:$0x1] %vm538, %v558
        %577 = vst.msk [vmem:[#allocation2 + $0x41] sm:$0x1] %vm538, %v559
        %578 = vst.msk [vmem:[#allocation2 + $0x59] sm:$0x1] %vm538, %v560
        %579 = vst.msk [vmem:[#allocation2 + $0x71] sm:$0x1] %vm538, %v561
        %580 = vst.msk [vmem:[#allocation2 + $0x89] sm:$0x1] %vm538, %v562
        %581 = vst.msk [vmem:[#allocation2 + $0xa1] sm:$0x1] %vm538, %v563
        %582 = vst.msk [vmem:[#allocation2 + $0xb9] sm:$0x1] %vm538, %v564
        %583 = vst.msk [vmem:[#allocation2 + $0xd1] sm:$0x1] %vm538, %v565
        %584 = vst.msk [vmem:[#allocation2 + $0xe9] sm:$0x1] %vm538, %v566
        %585 = vst.msk [vmem:[#allocation2 + $0x101] sm:$0x1] %vm538, %v567
        %586 = vst.msk [vmem:[#allocation2 + $0x119] sm:$0x1] %vm538, %v568
        %587 = vst.msk [vmem:[#allocation2 + $0x131] sm:$0x1] %vm538, %v569
        %588 = vst.msk [vmem:[#allocation2 + $0x149] sm:$0x1] %vm538, %v570
        %589 = vst.msk [vmem:[#allocation2 + $0x161] sm:$0x1] %vm538, %v571
        %590 = vst.msk [vmem:[#allocation2 + $0x179] sm:$0x1] %vm538, %v572
        %591 = vst.msk [vmem:[#allocation2 + $0x191] sm:$0x1] %vm538, %v573
        %592 = vst.msk [vmem:[#allocation2 + $0x1a9] sm:$0x1] %vm538, %v574
        %v593 = vld [vmem:[#allocation2] sm:$0xff]
        %v594 = vld [vmem:[#allocation2 + $0x8] sm:$0xff]
        %v595 = vld [vmem:[#allocation2 + $0x18] sm:$0xff]
        %v596 = vld [vmem:[#allocation2 + $0x20] sm:$0xff]
        %v597 = vld [vmem:[#allocation2 + $0x30] sm:$0xff]
        %v598 = vld [vmem:[#allocation2 + $0x38] sm:$0xff]
        %v599 = vld [vmem:[#allocation2 + $0x48] sm:$0xff]
        %v600 = vld [vmem:[#allocation2 + $0x50] sm:$0xff]
        %v601 = vld [vmem:[#allocation2 + $0x60] sm:$0xff]
        %v602 = vld [vmem:[#allocation2 + $0x68] sm:$0xff]
        %v603 = vld [vmem:[#allocation2 + $0x78] sm:$0xff]
        %v604 = vld [vmem:[#allocation2 + $0x80] sm:$0xff]
        %v605 = vld [vmem:[#allocation2 + $0x90] sm:$0xff]
        %v606 = vld [vmem:[#allocation2 + $0x98] sm:$0xff]
        %v607 = vld [vmem:[#allocation2 + $0xa8] sm:$0xff]
        %v608 = vld [vmem:[#allocation2 + $0xb0] sm:$0xff]
        %v609 = vld [vmem:[#allocation2 + $0xc0] sm:$0xff]
        %v610 = vld [vmem:[#allocation2 + $0xc8] sm:$0xff]
        %v611 = vld [vmem:[#allocation2 + $0xd8] sm:$0xff]
        %v612 = vld [vmem:[#allocation2 + $0xe0] sm:$0xff]
        %v613 = vld [vmem:[#allocation2 + $0xf0] sm:$0xff]
        %v614 = vld [vmem:[#allocation2 + $0xf8] sm:$0xff]
        %v615 = vld [vmem:[#allocation2 + $0x108] sm:$0xff]
        %v616 = vld [vmem:[#allocation2 + $0x110] sm:$0xff]
        %v617 = vld [vmem:[#allocation2 + $0x120] sm:$0xff]
        %v618 = vld [vmem:[#allocation2 + $0x128] sm:$0xff]
        %v619 = vld [vmem:[#allocation2 + $0x138] sm:$0xff]
        %v620 = vld [vmem:[#allocation2 + $0x140] sm:$0xff]
        %v621 = vld [vmem:[#allocation2 + $0x150] sm:$0xff]
        %v622 = vld [vmem:[#allocation2 + $0x158] sm:$0xff]
        %v623 = vld [vmem:[#allocation2 + $0x168] sm:$0xff]
        %v624 = vld [vmem:[#allocation2 + $0x170] sm:$0xff]
        %v625 = vld [vmem:[#allocation2 + $0x1] sm:$0xff]
        %v626 = vld [vmem:[#allocation2 + $0x9] sm:$0xff]
        %v627 = vld [vmem:[#allocation2 + $0x19] sm:$0xff]
        %v628 = vld [vmem:[#allocation2 + $0x21] sm:$0xff]
        %v629 = vld [vmem:[#allocation2 + $0x31] sm:$0xff]
        %v630 = vld [vmem:[#allocation2 + $0x39] sm:$0xff]
        %v631 = vld [vmem:[#allocation2 + $0x49] sm:$0xff]
        %v632 = vld [vmem:[#allocation2 + $0x51] sm:$0xff]
        %v633 = vld [vmem:[#allocation2 + $0x61] sm:$0xff]
        %v634 = vld [vmem:[#allocation2 + $0x69] sm:$0xff]
        %v635 = vld [vmem:[#allocation2 + $0x79] sm:$0xff]
        %v636 = vld [vmem:[#allocation2 + $0x81] sm:$0xff]
        %v637 = vld [vmem:[#allocation2 + $0x91] sm:$0xff]
        %v638 = vld [vmem:[#allocation2 + $0x99] sm:$0xff]
        %v639 = vld [vmem:[#allocation2 + $0xa9] sm:$0xff]
        %v640 = vld [vmem:[#allocation2 + $0xb1] sm:$0xff]
        %v641 = vld [vmem:[#allocation2 + $0xc1] sm:$0xff]
        %v642 = vld [vmem:[#allocation2 + $0xc9] sm:$0xff]
        %v643 = vld [vmem:[#allocation2 + $0xd9] sm:$0xff]
        %v644 = vld [vmem:[#allocation2 + $0xe1] sm:$0xff]
        %v645 = vld [vmem:[#allocation2 + $0xf1] sm:$0xff]
        %v646 = vld [vmem:[#allocation2 + $0xf9] sm:$0xff]
        %v647 = vld [vmem:[#allocation2 + $0x109] sm:$0xff]
        %v648 = vld [vmem:[#allocation2 + $0x111] sm:$0xff]
        %v649 = vld [vmem:[#allocation2 + $0x121] sm:$0xff]
        %v650 = vld [vmem:[#allocation2 + $0x129] sm:$0xff]
        %v651 = vld [vmem:[#allocation2 + $0x139] sm:$0xff]
        %v652 = vld [vmem:[#allocation2 + $0x141] sm:$0xff]
        %v653 = vld [vmem:[#allocation2 + $0x151] sm:$0xff]
        %v654 = vld [vmem:[#allocation2 + $0x159] sm:$0xff]
        %v655 = vld [vmem:[#allocation2 + $0x169] sm:$0xff]
        %v656 = vld [vmem:[#allocation2 + $0x171] sm:$0xff]
        %v657 = vld [vmem:[#allocation2 + $0x2] sm:$0xff]
        %v658 = vld [vmem:[#allocation2 + $0xa] sm:$0xff]
        %v659 = vld [vmem:[#allocation2 + $0x1a] sm:$0xff]
        %v660 = vld [vmem:[#allocation2 + $0x22] sm:$0xff]
        %v661 = vld [vmem:[#allocation2 + $0x32] sm:$0xff]
        %v662 = vld [vmem:[#allocation2 + $0x3a] sm:$0xff]
        %v663 = vld [vmem:[#allocation2 + $0x4a] sm:$0xff]
        %v664 = vld [vmem:[#allocation2 + $0x52] sm:$0xff]
        %v665 = vld [vmem:[#allocation2 + $0x62] sm:$0xff]
        %v666 = vld [vmem:[#allocation2 + $0x6a] sm:$0xff]
        %v667 = vld [vmem:[#allocation2 + $0x7a] sm:$0xff]
        %v668 = vld [vmem:[#allocation2 + $0x82] sm:$0xff]
        %v669 = vld [vmem:[#allocation2 + $0x92] sm:$0xff]
        %v670 = vld [vmem:[#allocation2 + $0x9a] sm:$0xff]
        %v671 = vld [vmem:[#allocation2 + $0xaa] sm:$0xff]
        %v672 = vld [vmem:[#allocation2 + $0xb2] sm:$0xff]
        %v673 = vld [vmem:[#allocation2 + $0xc2] sm:$0xff]
        %v674 = vld [vmem:[#allocation2 + $0xca] sm:$0xff]
        %v675 = vld [vmem:[#allocation2 + $0xda] sm:$0xff]
        %v676 = vld [vmem:[#allocation2 + $0xe2] sm:$0xff]
        %v677 = vld [vmem:[#allocation2 + $0xf2] sm:$0xff]
        %v678 = vld [vmem:[#allocation2 + $0xfa] sm:$0xff]
        %v679 = vld [vmem:[#allocation2 + $0x10a] sm:$0xff]
        %v680 = vld [vmem:[#allocation2 + $0x112] sm:$0xff]
        %v681 = vld [vmem:[#allocation2 + $0x122] sm:$0xff]
        %v682 = vld [vmem:[#allocation2 + $0x12a] sm:$0xff]
        %v683 = vld [vmem:[#allocation2 + $0x13a] sm:$0xff]
        %v684 = vld [vmem:[#allocation2 + $0x142] sm:$0xff]
        %v685 = vld [vmem:[#allocation2 + $0x152] sm:$0xff]
        %v686 = vld [vmem:[#allocation2 + $0x15a] sm:$0xff]
        %v687 = vld [vmem:[#allocation2 + $0x16a] sm:$0xff]
        %v688 = vld [vmem:[#allocation2 + $0x172] sm:$0xff]
        %v689 = vld [vmem:[%s481] sm:$0xff]
        %v690 = vld [vmem:[%s481 + $0x8] sm:$0xff]
        %v691 = vld [vmem:[%s481 + $0x18] sm:$0xff]
        %v692 = vld [vmem:[%s481 + $0x20] sm:$0xff]
        %v693 = vld [vmem:[%s481 + $0x30] sm:$0xff]
        %v694 = vld [vmem:[%s481 + $0x38] sm:$0xff]
        %v695 = vld [vmem:[%s481 + $0x48] sm:$0xff]
        %v696 = vld [vmem:[%s481 + $0x50] sm:$0xff]
        %v697 = vld [vmem:[%s481 + $0x60] sm:$0xff]
        %v698 = vld [vmem:[%s481 + $0x68] sm:$0xff]
        %v699 = vld [vmem:[%s481 + $0x78] sm:$0xff]
        %v700 = vld [vmem:[%s481 + $0x80] sm:$0xff]
        %v701 = vld [vmem:[%s481 + $0x90] sm:$0xff]
        %v702 = vld [vmem:[%s481 + $0x98] sm:$0xff]
        %v703 = vld [vmem:[%s481 + $0xa8] sm:$0xff]
        %v704 = vld [vmem:[%s481 + $0xb0] sm:$0xff]
        %v705 = vld [vmem:[%s481 + $0xc0] sm:$0xff]
        %v706 = vld [vmem:[%s481 + $0xc8] sm:$0xff]
        %v707 = vld [vmem:[%s481 + $0xd8] sm:$0xff]
        %v708 = vld [vmem:[%s481 + $0xe0] sm:$0xff]
        %v709 = vld [vmem:[%s481 + $0xf0] sm:$0xff]
        %v710 = vld [vmem:[%s481 + $0xf8] sm:$0xff]
        %v711 = vld [vmem:[%s481 + $0x108] sm:$0xff]
        %v712 = vld [vmem:[%s481 + $0x110] sm:$0xff]
        %v713 = vld [vmem:[%s481 + $0x120] sm:$0xff]
        %v714 = vld [vmem:[%s481 + $0x128] sm:$0xff]
        %v715 = vld [vmem:[%s481 + $0x138] sm:$0xff]
        %v716 = vld [vmem:[%s481 + $0x140] sm:$0xff]
        %v717 = vld [vmem:[%s481 + $0x150] sm:$0xff]
        %v718 = vld [vmem:[%s481 + $0x158] sm:$0xff]
        %v719 = vld [vmem:[%s481 + $0x168] sm:$0xff]
        %v720 = vld [vmem:[%s481 + $0x170] sm:$0xff]
        %v721 = vld [vmem:[%s481 + $0x1] sm:$0xff]
        %v722 = vld [vmem:[%s481 + $0x9] sm:$0xff]
        %v723 = vld [vmem:[%s481 + $0x19] sm:$0xff]
        %v724 = vld [vmem:[%s481 + $0x21] sm:$0xff]
        %v725 = vld [vmem:[%s481 + $0x31] sm:$0xff]
        %v726 = vld [vmem:[%s481 + $0x39] sm:$0xff]
        %v727 = vld [vmem:[%s481 + $0x49] sm:$0xff]
        %v728 = vld [vmem:[%s481 + $0x51] sm:$0xff]
        %v729 = vld [vmem:[%s481 + $0x61] sm:$0xff]
        %v730 = vld [vmem:[%s481 + $0x69] sm:$0xff]
        %v731 = vld [vmem:[%s481 + $0x79] sm:$0xff]
        %v732 = vld [vmem:[%s481 + $0x81] sm:$0xff]
        %v733 = vld [vmem:[%s481 + $0x91] sm:$0xff]
        %v734 = vld [vmem:[%s481 + $0x99] sm:$0xff]
        %v735 = vld [vmem:[%s481 + $0xa9] sm:$0xff]
        %v736 = vld [vmem:[%s481 + $0xb1] sm:$0xff]
        %v737 = vld [vmem:[%s481 + $0xc1] sm:$0xff]
        %v738 = vld [vmem:[%s481 + $0xc9] sm:$0xff]
        %v739 = vld [vmem:[%s481 + $0xd9] sm:$0xff]
        %v740 = vld [vmem:[%s481 + $0xe1] sm:$0xff]
        %v741 = vld [vmem:[%s481 + $0xf1] sm:$0xff]
        %v742 = vld [vmem:[%s481 + $0xf9] sm:$0xff]
        %v743 = vld [vmem:[%s481 + $0x109] sm:$0xff]
        %v744 = vld [vmem:[%s481 + $0x111] sm:$0xff]
        %v745 = vld [vmem:[%s481 + $0x121] sm:$0xff]
        %v746 = vld [vmem:[%s481 + $0x129] sm:$0xff]
        %v747 = vld [vmem:[%s481 + $0x139] sm:$0xff]
        %v748 = vld [vmem:[%s481 + $0x141] sm:$0xff]
        %v749 = vld [vmem:[%s481 + $0x151] sm:$0xff]
        %v750 = vld [vmem:[%s481 + $0x159] sm:$0xff]
        %v751 = vld [vmem:[%s481 + $0x169] sm:$0xff]
        %v752 = vld [vmem:[%s481 + $0x171] sm:$0xff]
        %v753 = vld [vmem:[%s481 + $0x2] sm:$0xff]
        %v754 = vld [vmem:[%s481 + $0xa] sm:$0xff]
        %v755 = vld [vmem:[%s481 + $0x1a] sm:$0xff]
        %v756 = vld [vmem:[%s481 + $0x22] sm:$0xff]
        %v757 = vld [vmem:[%s481 + $0x32] sm:$0xff]
        %v758 = vld [vmem:[%s481 + $0x3a] sm:$0xff]
        %v759 = vld [vmem:[%s481 + $0x4a] sm:$0xff]
        %v760 = vld [vmem:[%s481 + $0x52] sm:$0xff]
        %v761 = vld [vmem:[%s481 + $0x62] sm:$0xff]
        %v762 = vld [vmem:[%s481 + $0x6a] sm:$0xff]
        %v763 = vld [vmem:[%s481 + $0x7a] sm:$0xff]
        %v764 = vld [vmem:[%s481 + $0x82] sm:$0xff]
        %v765 = vld [vmem:[%s481 + $0x92] sm:$0xff]
        %v766 = vld [vmem:[%s481 + $0x9a] sm:$0xff]
        %v767 = vld [vmem:[%s481 + $0xaa] sm:$0xff]
        %v768 = vld [vmem:[%s481 + $0xb2] sm:$0xff]
        %v769 = vld [vmem:[%s481 + $0xc2] sm:$0xff]
        %v770 = vld [vmem:[%s481 + $0xca] sm:$0xff]
        %v771 = vld [vmem:[%s481 + $0xda] sm:$0xff]
        %v772 = vld [vmem:[%s481 + $0xe2] sm:$0xff]
        %v773 = vld [vmem:[%s481 + $0xf2] sm:$0xff]
        %v774 = vld [vmem:[%s481 + $0xfa] sm:$0xff]
        %v775 = vld [vmem:[%s481 + $0x10a] sm:$0xff]
        %v776 = vld [vmem:[%s481 + $0x112] sm:$0xff]
        %v777 = vld [vmem:[%s481 + $0x122] sm:$0xff]
        %v778 = vld [vmem:[%s481 + $0x12a] sm:$0xff]
        %v779 = vld [vmem:[%s481 + $0x13a] sm:$0xff]
        %v780 = vld [vmem:[%s481 + $0x142] sm:$0xff]
        %v781 = vld [vmem:[%s481 + $0x152] sm:$0xff]
        %v782 = vld [vmem:[%s481 + $0x15a] sm:$0xff]
        %v783 = vld [vmem:[%s481 + $0x16a] sm:$0xff]
        %v784 = vld [vmem:[%s481 + $0x172] sm:$0xff]
        %s785 = scalar_lea.vmem [#allocation2], 48
        %v786 = vld [vmem:[%s785] sm:$0xff]
        %v787 = vld [vmem:[%s785 + $0x8] sm:$0xff]
        %v788 = vld [vmem:[%s785 + $0x18] sm:$0xff]
        %v789 = vld [vmem:[%s785 + $0x20] sm:$0xff]
        %v790 = vld [vmem:[%s785 + $0x30] sm:$0xff]
        %v791 = vld [vmem:[%s785 + $0x38] sm:$0xff]
        %v792 = vld [vmem:[%s785 + $0x48] sm:$0xff]
        %v793 = vld [vmem:[%s785 + $0x50] sm:$0xff]
        %v794 = vld [vmem:[%s785 + $0x60] sm:$0xff]
        %v795 = vld [vmem:[%s785 + $0x68] sm:$0xff]
        %v796 = vld [vmem:[%s785 + $0x78] sm:$0xff]
        %v797 = vld [vmem:[%s785 + $0x80] sm:$0xff]
        %v798 = vld [vmem:[%s785 + $0x90] sm:$0xff]
        %v799 = vld [vmem:[%s785 + $0x98] sm:$0xff]
        %v800 = vld [vmem:[%s785 + $0xa8] sm:$0xff]
        %v801 = vld [vmem:[%s785 + $0xb0] sm:$0xff]
        %v802 = vld [vmem:[%s785 + $0xc0] sm:$0xff]
        %v803 = vld [vmem:[%s785 + $0xc8] sm:$0xff]
        %v804 = vld [vmem:[%s785 + $0xd8] sm:$0xff]
        %v805 = vld [vmem:[%s785 + $0xe0] sm:$0xff]
        %v806 = vld [vmem:[%s785 + $0xf0] sm:$0xff]
        %v807 = vld [vmem:[%s785 + $0xf8] sm:$0xff]
        %v808 = vld [vmem:[%s785 + $0x108] sm:$0xff]
        %v809 = vld [vmem:[%s785 + $0x110] sm:$0xff]
        %v810 = vld [vmem:[%s785 + $0x120] sm:$0xff]
        %v811 = vld [vmem:[%s785 + $0x128] sm:$0xff]
        %v812 = vld [vmem:[%s785 + $0x138] sm:$0xff]
        %v813 = vld [vmem:[%s785 + $0x140] sm:$0xff]
        %v814 = vld [vmem:[%s785 + $0x150] sm:$0xff]
        %v815 = vld [vmem:[%s785 + $0x158] sm:$0xff]
        %v816 = vld [vmem:[%s785 + $0x168] sm:$0xff]
        %v817 = vld [vmem:[%s785 + $0x170] sm:$0xff]
        %v818 = vld [vmem:[%s785 + $0x1] sm:$0xff]
        %v819 = vld [vmem:[%s785 + $0x9] sm:$0xff]
        %v820 = vld [vmem:[%s785 + $0x19] sm:$0xff]
        %v821 = vld [vmem:[%s785 + $0x21] sm:$0xff]
        %v822 = vld [vmem:[%s785 + $0x31] sm:$0xff]
        %v823 = vld [vmem:[%s785 + $0x39] sm:$0xff]
        %v824 = vld [vmem:[%s785 + $0x49] sm:$0xff]
        %v825 = vld [vmem:[%s785 + $0x51] sm:$0xff]
        %v826 = vld [vmem:[%s785 + $0x61] sm:$0xff]
        %v827 = vld [vmem:[%s785 + $0x69] sm:$0xff]
        %v828 = vld [vmem:[%s785 + $0x79] sm:$0xff]
        %v829 = vld [vmem:[%s785 + $0x81] sm:$0xff]
        %v830 = vld [vmem:[%s785 + $0x91] sm:$0xff]
        %v831 = vld [vmem:[%s785 + $0x99] sm:$0xff]
        %v832 = vld [vmem:[%s785 + $0xa9] sm:$0xff]
        %v833 = vld [vmem:[%s785 + $0xb1] sm:$0xff]
        %v834 = vld [vmem:[%s785 + $0xc1] sm:$0xff]
        %v835 = vld [vmem:[%s785 + $0xc9] sm:$0xff]
        %v836 = vld [vmem:[%s785 + $0xd9] sm:$0xff]
        %v837 = vld [vmem:[%s785 + $0xe1] sm:$0xff]
        %v838 = vld [vmem:[%s785 + $0xf1] sm:$0xff]
        %v839 = vld [vmem:[%s785 + $0xf9] sm:$0xff]
        %v840 = vld [vmem:[%s785 + $0x109] sm:$0xff]
        %v841 = vld [vmem:[%s785 + $0x111] sm:$0xff]
        %v842 = vld [vmem:[%s785 + $0x121] sm:$0xff]
        %v843 = vld [vmem:[%s785 + $0x129] sm:$0xff]
        %v844 = vld [vmem:[%s785 + $0x139] sm:$0xff]
        %v845 = vld [vmem:[%s785 + $0x141] sm:$0xff]
        %v846 = vld [vmem:[%s785 + $0x151] sm:$0xff]
        %v847 = vld [vmem:[%s785 + $0x159] sm:$0xff]
        %v848 = vld [vmem:[%s785 + $0x169] sm:$0xff]
        %v849 = vld [vmem:[%s785 + $0x171] sm:$0xff]
        %v850 = vld [vmem:[%s785 + $0x2] sm:$0xff]
        %v851 = vld [vmem:[%s785 + $0xa] sm:$0xff]
        %v852 = vld [vmem:[%s785 + $0x1a] sm:$0xff]
        %v853 = vld [vmem:[%s785 + $0x22] sm:$0xff]
        %v854 = vld [vmem:[%s785 + $0x32] sm:$0xff]
        %v855 = vld [vmem:[%s785 + $0x3a] sm:$0xff]
        %v856 = vld [vmem:[%s785 + $0x4a] sm:$0xff]
        %v857 = vld [vmem:[%s785 + $0x52] sm:$0xff]
        %v858 = vld [vmem:[%s785 + $0x62] sm:$0xff]
        %v859 = vld [vmem:[%s785 + $0x6a] sm:$0xff]
        %v860 = vld [vmem:[%s785 + $0x7a] sm:$0xff]
        %v861 = vld [vmem:[%s785 + $0x82] sm:$0xff]
        %v862 = vld [vmem:[%s785 + $0x92] sm:$0xff]
        %v863 = vld [vmem:[%s785 + $0x9a] sm:$0xff]
        %v864 = vld [vmem:[%s785 + $0xaa] sm:$0xff]
        %v865 = vld [vmem:[%s785 + $0xb2] sm:$0xff]
        %v866 = vld [vmem:[%s785 + $0xc2] sm:$0xff]
        %v867 = vld [vmem:[%s785 + $0xca] sm:$0xff]
        %v868 = vld [vmem:[%s785 + $0xda] sm:$0xff]
        %v869 = vld [vmem:[%s785 + $0xe2] sm:$0xff]
        %v870 = vld [vmem:[%s785 + $0xf2] sm:$0xff]
        %v871 = vld [vmem:[%s785 + $0xfa] sm:$0xff]
        %v872 = vld [vmem:[%s785 + $0x10a] sm:$0xff]
        %v873 = vld [vmem:[%s785 + $0x112] sm:$0xff]
        %v874 = vld [vmem:[%s785 + $0x122] sm:$0xff]
        %v875 = vld [vmem:[%s785 + $0x12a] sm:$0xff]
        %v876 = vld [vmem:[%s785 + $0x13a] sm:$0xff]
        %v877 = vld [vmem:[%s785 + $0x142] sm:$0xff]
        %v878 = vld [vmem:[%s785 + $0x152] sm:$0xff]
        %v879 = vld [vmem:[%s785 + $0x15a] sm:$0xff]
        %v880 = vld [vmem:[%s785 + $0x16a] sm:$0xff]
        %v881 = vld [vmem:[%s785 + $0x172] sm:$0xff]
        %914 = vrot.lane.b32.xlu0 %v625, 32
        %v915 = vpop.permute.xlu0 %914
        %916 = vrot.lane.b32.xlu0 %v626, 32
        %v917 = vpop.permute.xlu0 %916
        %918 = vrot.lane.b32.xlu0 %v627, 32
        %v919 = vpop.permute.xlu0 %918
        %920 = vrot.lane.b32.xlu0 %v628, 32
        %v921 = vpop.permute.xlu0 %920
        %922 = vrot.lane.b32.xlu0 %v629, 32
        %v923 = vpop.permute.xlu0 %922
        %924 = vrot.lane.b32.xlu0 %v630, 32
        %v925 = vpop.permute.xlu0 %924
        %926 = vrot.lane.b32.xlu0 %v631, 32
        %v927 = vpop.permute.xlu0 %926
        %928 = vrot.lane.b32.xlu0 %v632, 32
        %v929 = vpop.permute.xlu0 %928
        %930 = vrot.lane.b32.xlu0 %v633, 32
        %v931 = vpop.permute.xlu0 %930
        %932 = vrot.lane.b32.xlu0 %v634, 32
        %v933 = vpop.permute.xlu0 %932
        %934 = vrot.lane.b32.xlu0 %v635, 32
        %v935 = vpop.permute.xlu0 %934
        %936 = vrot.lane.b32.xlu0 %v636, 32
        %v937 = vpop.permute.xlu0 %936
        %938 = vrot.lane.b32.xlu0 %v637, 32
        %v939 = vpop.permute.xlu0 %938
        %940 = vrot.lane.b32.xlu0 %v638, 32
        %v941 = vpop.permute.xlu0 %940
        %942 = vrot.lane.b32.xlu0 %v639, 32
        %v943 = vpop.permute.xlu0 %942
        %944 = vrot.lane.b32.xlu0 %v640, 32
        %v945 = vpop.permute.xlu0 %944
        %946 = vrot.lane.b32.xlu0 %v641, 32
        %v947 = vpop.permute.xlu0 %946
        %948 = vrot.lane.b32.xlu0 %v642, 32
        %v949 = vpop.permute.xlu0 %948
        %950 = vrot.lane.b32.xlu0 %v643, 32
        %v951 = vpop.permute.xlu0 %950
        %952 = vrot.lane.b32.xlu0 %v644, 32
        %v953 = vpop.permute.xlu0 %952
        %954 = vrot.lane.b32.xlu0 %v645, 32
        %v955 = vpop.permute.xlu0 %954
        %956 = vrot.lane.b32.xlu0 %v646, 32
        %v957 = vpop.permute.xlu0 %956
        %958 = vrot.lane.b32.xlu0 %v647, 32
        %v959 = vpop.permute.xlu0 %958
        %960 = vrot.lane.b32.xlu0 %v648, 32
        %v961 = vpop.permute.xlu0 %960
        %962 = vrot.lane.b32.xlu0 %v649, 32
        %v963 = vpop.permute.xlu0 %962
        %964 = vrot.lane.b32.xlu0 %v650, 32
        %v965 = vpop.permute.xlu0 %964
        %966 = vrot.lane.b32.xlu0 %v651, 32
        %v967 = vpop.permute.xlu0 %966
        %968 = vrot.lane.b32.xlu0 %v652, 32
        %v969 = vpop.permute.xlu0 %968
        %970 = vrot.lane.b32.xlu0 %v653, 32
        %v971 = vpop.permute.xlu0 %970
        %972 = vrot.lane.b32.xlu0 %v654, 32
        %v973 = vpop.permute.xlu0 %972
        %974 = vrot.lane.b32.xlu0 %v655, 32
        %v975 = vpop.permute.xlu0 %974
        %976 = vrot.lane.b32.xlu0 %v656, 32
        %v977 = vpop.permute.xlu0 %976
        %1042 = vrot.lane.b32.xlu0 %v657, 64
        %v1043 = vpop.permute.xlu0 %1042
        %1044 = vrot.lane.b32.xlu0 %v658, 64
        %v1045 = vpop.permute.xlu0 %1044
        %1046 = vrot.lane.b32.xlu0 %v659, 64
        %v1047 = vpop.permute.xlu0 %1046
        %1048 = vrot.lane.b32.xlu0 %v660, 64
        %v1049 = vpop.permute.xlu0 %1048
        %1050 = vrot.lane.b32.xlu0 %v661, 64
        %v1051 = vpop.permute.xlu0 %1050
        %1052 = vrot.lane.b32.xlu0 %v662, 64
        %v1053 = vpop.permute.xlu0 %1052
        %1054 = vrot.lane.b32.xlu0 %v663, 64
        %v1055 = vpop.permute.xlu0 %1054
        %1056 = vrot.lane.b32.xlu0 %v664, 64
        %v1057 = vpop.permute.xlu0 %1056
        %1058 = vrot.lane.b32.xlu0 %v665, 64
        %v1059 = vpop.permute.xlu0 %1058
        %1060 = vrot.lane.b32.xlu0 %v666, 64
        %v1061 = vpop.permute.xlu0 %1060
        %1062 = vrot.lane.b32.xlu0 %v667, 64
        %v1063 = vpop.permute.xlu0 %1062
        %1064 = vrot.lane.b32.xlu0 %v668, 64
        %v1065 = vpop.permute.xlu0 %1064
        %1066 = vrot.lane.b32.xlu0 %v669, 64
        %v1067 = vpop.permute.xlu0 %1066
        %1068 = vrot.lane.b32.xlu0 %v670, 64
        %v1069 = vpop.permute.xlu0 %1068
        %1070 = vrot.lane.b32.xlu0 %v671, 64
        %v1071 = vpop.permute.xlu0 %1070
        %1072 = vrot.lane.b32.xlu0 %v672, 64
        %v1073 = vpop.permute.xlu0 %1072
        %1074 = vrot.lane.b32.xlu0 %v673, 64
        %v1075 = vpop.permute.xlu0 %1074
        %1076 = vrot.lane.b32.xlu0 %v674, 64
        %v1077 = vpop.permute.xlu0 %1076
        %1078 = vrot.lane.b32.xlu0 %v675, 64
        %v1079 = vpop.permute.xlu0 %1078
        %1080 = vrot.lane.b32.xlu0 %v676, 64
        %v1081 = vpop.permute.xlu0 %1080
        %1082 = vrot.lane.b32.xlu0 %v677, 64
        %v1083 = vpop.permute.xlu0 %1082
        %1084 = vrot.lane.b32.xlu0 %v678, 64
        %v1085 = vpop.permute.xlu0 %1084
        %1086 = vrot.lane.b32.xlu0 %v679, 64
        %v1087 = vpop.permute.xlu0 %1086
        %1088 = vrot.lane.b32.xlu0 %v680, 64
        %v1089 = vpop.permute.xlu0 %1088
        %1090 = vrot.lane.b32.xlu0 %v681, 64
        %v1091 = vpop.permute.xlu0 %1090
        %1092 = vrot.lane.b32.xlu0 %v682, 64
        %v1093 = vpop.permute.xlu0 %1092
        %1094 = vrot.lane.b32.xlu0 %v683, 64
        %v1095 = vpop.permute.xlu0 %1094
        %1096 = vrot.lane.b32.xlu0 %v684, 64
        %v1097 = vpop.permute.xlu0 %1096
        %1098 = vrot.lane.b32.xlu0 %v685, 64
        %v1099 = vpop.permute.xlu0 %1098
        %1100 = vrot.lane.b32.xlu0 %v686, 64
        %v1101 = vpop.permute.xlu0 %1100
        %1102 = vrot.lane.b32.xlu0 %v687, 64
        %v1103 = vpop.permute.xlu0 %1102
        %1104 = vrot.lane.b32.xlu0 %v688, 64
        %v1105 = vpop.permute.xlu0 %1104
        %1170 = vrot.lane.b32.xlu0 %v689, 96
        %v1171 = vpop.permute.xlu0 %1170
        %1172 = vrot.lane.b32.xlu0 %v690, 96
        %v1173 = vpop.permute.xlu0 %1172
        %1174 = vrot.lane.b32.xlu0 %v691, 96
        %v1175 = vpop.permute.xlu0 %1174
        %1176 = vrot.lane.b32.xlu0 %v692, 96
        %v1177 = vpop.permute.xlu0 %1176
        %1178 = vrot.lane.b32.xlu0 %v693, 96
        %v1179 = vpop.permute.xlu0 %1178
        %1180 = vrot.lane.b32.xlu0 %v694, 96
        %v1181 = vpop.permute.xlu0 %1180
        %1182 = vrot.lane.b32.xlu0 %v695, 96
        %v1183 = vpop.permute.xlu0 %1182
        %1184 = vrot.lane.b32.xlu0 %v696, 96
        %v1185 = vpop.permute.xlu0 %1184
        %1186 = vrot.lane.b32.xlu0 %v697, 96
        %v1187 = vpop.permute.xlu0 %1186
        %1188 = vrot.lane.b32.xlu0 %v698, 96
        %v1189 = vpop.permute.xlu0 %1188
        %1190 = vrot.lane.b32.xlu0 %v699, 96
        %v1191 = vpop.permute.xlu0 %1190
        %1192 = vrot.lane.b32.xlu0 %v700, 96
        %v1193 = vpop.permute.xlu0 %1192
        %1194 = vrot.lane.b32.xlu0 %v701, 96
        %v1195 = vpop.permute.xlu0 %1194
        %1196 = vrot.lane.b32.xlu0 %v702, 96
        %v1197 = vpop.permute.xlu0 %1196
        %1198 = vrot.lane.b32.xlu0 %v703, 96
        %v1199 = vpop.permute.xlu0 %1198
        %1200 = vrot.lane.b32.xlu0 %v704, 96
        %v1201 = vpop.permute.xlu0 %1200
        %1202 = vrot.lane.b32.xlu0 %v705, 96
        %v1203 = vpop.permute.xlu0 %1202
        %1204 = vrot.lane.b32.xlu0 %v706, 96
        %v1205 = vpop.permute.xlu0 %1204
        %1206 = vrot.lane.b32.xlu0 %v707, 96
        %v1207 = vpop.permute.xlu0 %1206
        %1208 = vrot.lane.b32.xlu0 %v708, 96
        %v1209 = vpop.permute.xlu0 %1208
        %1210 = vrot.lane.b32.xlu0 %v709, 96
        %v1211 = vpop.permute.xlu0 %1210
        %1212 = vrot.lane.b32.xlu0 %v710, 96
        %v1213 = vpop.permute.xlu0 %1212
        %1214 = vrot.lane.b32.xlu0 %v711, 96
        %v1215 = vpop.permute.xlu0 %1214
        %1216 = vrot.lane.b32.xlu0 %v712, 96
        %v1217 = vpop.permute.xlu0 %1216
        %1218 = vrot.lane.b32.xlu0 %v713, 96
        %v1219 = vpop.permute.xlu0 %1218
        %1220 = vrot.lane.b32.xlu0 %v714, 96
        %v1221 = vpop.permute.xlu0 %1220
        %1222 = vrot.lane.b32.xlu0 %v715, 96
        %v1223 = vpop.permute.xlu0 %1222
        %1224 = vrot.lane.b32.xlu0 %v716, 96
        %v1225 = vpop.permute.xlu0 %1224
        %1226 = vrot.lane.b32.xlu0 %v717, 96
        %v1227 = vpop.permute.xlu0 %1226
        %1228 = vrot.lane.b32.xlu0 %v718, 96
        %v1229 = vpop.permute.xlu0 %1228
        %1230 = vrot.lane.b32.xlu0 %v719, 96
        %v1231 = vpop.permute.xlu0 %1230
        %1232 = vrot.lane.b32.xlu0 %v720, 96
        %v1233 = vpop.permute.xlu0 %1232
        %1298 = vrot.lane.b32.xlu0 %v753, 32
        %v1299 = vpop.permute.xlu0 %1298
        %1300 = vrot.lane.b32.xlu0 %v754, 32
        %v1301 = vpop.permute.xlu0 %1300
        %1302 = vrot.lane.b32.xlu0 %v755, 32
        %v1303 = vpop.permute.xlu0 %1302
        %1304 = vrot.lane.b32.xlu0 %v756, 32
        %v1305 = vpop.permute.xlu0 %1304
        %1306 = vrot.lane.b32.xlu0 %v757, 32
        %v1307 = vpop.permute.xlu0 %1306
        %1308 = vrot.lane.b32.xlu0 %v758, 32
        %v1309 = vpop.permute.xlu0 %1308
        %1310 = vrot.lane.b32.xlu0 %v759, 32
        %v1311 = vpop.permute.xlu0 %1310
        %1312 = vrot.lane.b32.xlu0 %v760, 32
        %v1313 = vpop.permute.xlu0 %1312
        %1314 = vrot.lane.b32.xlu0 %v761, 32
        %v1315 = vpop.permute.xlu0 %1314
        %1316 = vrot.lane.b32.xlu0 %v762, 32
        %v1317 = vpop.permute.xlu0 %1316
        %1318 = vrot.lane.b32.xlu0 %v763, 32
        %v1319 = vpop.permute.xlu0 %1318
        %1320 = vrot.lane.b32.xlu0 %v764, 32
        %v1321 = vpop.permute.xlu0 %1320
        %1322 = vrot.lane.b32.xlu0 %v765, 32
        %v1323 = vpop.permute.xlu0 %1322
        %1324 = vrot.lane.b32.xlu0 %v766, 32
        %v1325 = vpop.permute.xlu0 %1324
        %1326 = vrot.lane.b32.xlu0 %v767, 32
        %v1327 = vpop.permute.xlu0 %1326
        %1328 = vrot.lane.b32.xlu0 %v768, 32
        %v1329 = vpop.permute.xlu0 %1328
        %1330 = vrot.lane.b32.xlu0 %v769, 32
        %v1331 = vpop.permute.xlu0 %1330
        %1332 = vrot.lane.b32.xlu0 %v770, 32
        %v1333 = vpop.permute.xlu0 %1332
        %1334 = vrot.lane.b32.xlu0 %v771, 32
        %v1335 = vpop.permute.xlu0 %1334
        %1336 = vrot.lane.b32.xlu0 %v772, 32
        %v1337 = vpop.permute.xlu0 %1336
        %1338 = vrot.lane.b32.xlu0 %v773, 32
        %v1339 = vpop.permute.xlu0 %1338
        %1340 = vrot.lane.b32.xlu0 %v774, 32
        %v1341 = vpop.permute.xlu0 %1340
        %1342 = vrot.lane.b32.xlu0 %v775, 32
        %v1343 = vpop.permute.xlu0 %1342
        %1344 = vrot.lane.b32.xlu0 %v776, 32
        %v1345 = vpop.permute.xlu0 %1344
        %1346 = vrot.lane.b32.xlu0 %v777, 32
        %v1347 = vpop.permute.xlu0 %1346
        %1348 = vrot.lane.b32.xlu0 %v778, 32
        %v1349 = vpop.permute.xlu0 %1348
        %1350 = vrot.lane.b32.xlu0 %v779, 32
        %v1351 = vpop.permute.xlu0 %1350
        %1352 = vrot.lane.b32.xlu0 %v780, 32
        %v1353 = vpop.permute.xlu0 %1352
        %1354 = vrot.lane.b32.xlu0 %v781, 32
        %v1355 = vpop.permute.xlu0 %1354
        %1356 = vrot.lane.b32.xlu0 %v782, 32
        %v1357 = vpop.permute.xlu0 %1356
        %1358 = vrot.lane.b32.xlu0 %v783, 32
        %v1359 = vpop.permute.xlu0 %1358
        %1360 = vrot.lane.b32.xlu0 %v784, 32
        %v1361 = vpop.permute.xlu0 %1360
        %1426 = vrot.lane.b32.xlu0 %v786, 64
        %v1427 = vpop.permute.xlu0 %1426
        %1428 = vrot.lane.b32.xlu0 %v787, 64
        %v1429 = vpop.permute.xlu0 %1428
        %1430 = vrot.lane.b32.xlu0 %v788, 64
        %v1431 = vpop.permute.xlu0 %1430
        %1432 = vrot.lane.b32.xlu0 %v789, 64
        %v1433 = vpop.permute.xlu0 %1432
        %1434 = vrot.lane.b32.xlu0 %v790, 64
        %v1435 = vpop.permute.xlu0 %1434
        %1436 = vrot.lane.b32.xlu0 %v791, 64
        %v1437 = vpop.permute.xlu0 %1436
        %1438 = vrot.lane.b32.xlu0 %v792, 64
        %v1439 = vpop.permute.xlu0 %1438
        %1440 = vrot.lane.b32.xlu0 %v793, 64
        %v1441 = vpop.permute.xlu0 %1440
        %1442 = vrot.lane.b32.xlu0 %v794, 64
        %v1443 = vpop.permute.xlu0 %1442
        %1444 = vrot.lane.b32.xlu0 %v795, 64
        %v1445 = vpop.permute.xlu0 %1444
        %1446 = vrot.lane.b32.xlu0 %v796, 64
        %v1447 = vpop.permute.xlu0 %1446
        %1448 = vrot.lane.b32.xlu0 %v797, 64
        %v1449 = vpop.permute.xlu0 %1448
        %1450 = vrot.lane.b32.xlu0 %v798, 64
        %v1451 = vpop.permute.xlu0 %1450
        %1452 = vrot.lane.b32.xlu0 %v799, 64
        %v1453 = vpop.permute.xlu0 %1452
        %1454 = vrot.lane.b32.xlu0 %v800, 64
        %v1455 = vpop.permute.xlu0 %1454
        %1456 = vrot.lane.b32.xlu0 %v801, 64
        %v1457 = vpop.permute.xlu0 %1456
        %1458 = vrot.lane.b32.xlu0 %v802, 64
        %v1459 = vpop.permute.xlu0 %1458
        %1460 = vrot.lane.b32.xlu0 %v803, 64
        %v1461 = vpop.permute.xlu0 %1460
        %1462 = vrot.lane.b32.xlu0 %v804, 64
        %v1463 = vpop.permute.xlu0 %1462
        %1464 = vrot.lane.b32.xlu0 %v805, 64
        %v1465 = vpop.permute.xlu0 %1464
        %1466 = vrot.lane.b32.xlu0 %v806, 64
        %v1467 = vpop.permute.xlu0 %1466
        %1468 = vrot.lane.b32.xlu0 %v807, 64
        %v1469 = vpop.permute.xlu0 %1468
        %1470 = vrot.lane.b32.xlu0 %v808, 64
        %v1471 = vpop.permute.xlu0 %1470
        %1472 = vrot.lane.b32.xlu0 %v809, 64
        %v1473 = vpop.permute.xlu0 %1472
        %1474 = vrot.lane.b32.xlu0 %v810, 64
        %v1475 = vpop.permute.xlu0 %1474
        %1476 = vrot.lane.b32.xlu0 %v811, 64
        %v1477 = vpop.permute.xlu0 %1476
        %1478 = vrot.lane.b32.xlu0 %v812, 64
        %v1479 = vpop.permute.xlu0 %1478
        %1480 = vrot.lane.b32.xlu0 %v813, 64
        %v1481 = vpop.permute.xlu0 %1480
        %1482 = vrot.lane.b32.xlu0 %v814, 64
        %v1483 = vpop.permute.xlu0 %1482
        %1484 = vrot.lane.b32.xlu0 %v815, 64
        %v1485 = vpop.permute.xlu0 %1484
        %1486 = vrot.lane.b32.xlu0 %v816, 64
        %v1487 = vpop.permute.xlu0 %1486
        %1488 = vrot.lane.b32.xlu0 %v817, 64
        %v1489 = vpop.permute.xlu0 %1488
        %1554 = vrot.lane.b32.xlu0 %v818, 96
        %v1555 = vpop.permute.xlu0 %1554
        %1556 = vrot.lane.b32.xlu0 %v819, 96
        %v1557 = vpop.permute.xlu0 %1556
        %1558 = vrot.lane.b32.xlu0 %v820, 96
        %v1559 = vpop.permute.xlu0 %1558
        %1560 = vrot.lane.b32.xlu0 %v821, 96
        %v1561 = vpop.permute.xlu0 %1560
        %1562 = vrot.lane.b32.xlu0 %v822, 96
        %v1563 = vpop.permute.xlu0 %1562
        %1564 = vrot.lane.b32.xlu0 %v823, 96
        %v1565 = vpop.permute.xlu0 %1564
        %1566 = vrot.lane.b32.xlu0 %v824, 96
        %v1567 = vpop.permute.xlu0 %1566
        %1568 = vrot.lane.b32.xlu0 %v825, 96
        %v1569 = vpop.permute.xlu0 %1568
        %1570 = vrot.lane.b32.xlu0 %v826, 96
        %v1571 = vpop.permute.xlu0 %1570
        %1572 = vrot.lane.b32.xlu0 %v827, 96
        %v1573 = vpop.permute.xlu0 %1572
        %1574 = vrot.lane.b32.xlu0 %v828, 96
        %v1575 = vpop.permute.xlu0 %1574
        %1576 = vrot.lane.b32.xlu0 %v829, 96
        %v1577 = vpop.permute.xlu0 %1576
        %1578 = vrot.lane.b32.xlu0 %v830, 96
        %v1579 = vpop.permute.xlu0 %1578
        %1580 = vrot.lane.b32.xlu0 %v831, 96
        %v1581 = vpop.permute.xlu0 %1580
        %1582 = vrot.lane.b32.xlu0 %v832, 96
        %v1583 = vpop.permute.xlu0 %1582
        %1584 = vrot.lane.b32.xlu0 %v833, 96
        %v1585 = vpop.permute.xlu0 %1584
        %1586 = vrot.lane.b32.xlu0 %v834, 96
        %v1587 = vpop.permute.xlu0 %1586
        %1588 = vrot.lane.b32.xlu0 %v835, 96
        %v1589 = vpop.permute.xlu0 %1588
        %1590 = vrot.lane.b32.xlu0 %v836, 96
        %v1591 = vpop.permute.xlu0 %1590
        %1592 = vrot.lane.b32.xlu0 %v837, 96
        %v1593 = vpop.permute.xlu0 %1592
        %1594 = vrot.lane.b32.xlu0 %v838, 96
        %v1595 = vpop.permute.xlu0 %1594
        %1596 = vrot.lane.b32.xlu0 %v839, 96
        %v1597 = vpop.permute.xlu0 %1596
        %1598 = vrot.lane.b32.xlu0 %v840, 96
        %v1599 = vpop.permute.xlu0 %1598
        %1600 = vrot.lane.b32.xlu0 %v841, 96
        %v1601 = vpop.permute.xlu0 %1600
        %1602 = vrot.lane.b32.xlu0 %v842, 96
        %v1603 = vpop.permute.xlu0 %1602
        %1604 = vrot.lane.b32.xlu0 %v843, 96
        %v1605 = vpop.permute.xlu0 %1604
        %1606 = vrot.lane.b32.xlu0 %v844, 96
        %v1607 = vpop.permute.xlu0 %1606
        %1608 = vrot.lane.b32.xlu0 %v845, 96
        %v1609 = vpop.permute.xlu0 %1608
        %1610 = vrot.lane.b32.xlu0 %v846, 96
        %v1611 = vpop.permute.xlu0 %1610
        %1612 = vrot.lane.b32.xlu0 %v847, 96
        %v1613 = vpop.permute.xlu0 %1612
        %1614 = vrot.lane.b32.xlu0 %v848, 96
        %v1615 = vpop.permute.xlu0 %1614
        %1616 = vrot.lane.b32.xlu0 %v849, 96
        %v1617 = vpop.permute.xlu0 %1616
        %v1650 = vsel %vm482, %v593, %v915
        %v1651 = vsel %vm482, %v594, %v917
        %v1652 = vsel %vm482, %v595, %v919
        %v1653 = vsel %vm482, %v596, %v921
        %v1654 = vsel %vm482, %v597, %v923
        %v1655 = vsel %vm482, %v598, %v925
        %v1656 = vsel %vm482, %v599, %v927
        %v1657 = vsel %vm482, %v600, %v929
        %v1658 = vsel %vm482, %v601, %v931
        %v1659 = vsel %vm482, %v602, %v933
        %v1660 = vsel %vm482, %v603, %v935
        %v1661 = vsel %vm482, %v604, %v937
        %v1662 = vsel %vm482, %v605, %v939
        %v1663 = vsel %vm482, %v606, %v941
        %v1664 = vsel %vm482, %v607, %v943
        %v1665 = vsel %vm482, %v608, %v945
        %v1666 = vsel %vm482, %v609, %v947
        %v1667 = vsel %vm482, %v610, %v949
        %v1668 = vsel %vm482, %v611, %v951
        %v1669 = vsel %vm482, %v612, %v953
        %v1670 = vsel %vm482, %v613, %v955
        %v1671 = vsel %vm482, %v614, %v957
        %v1672 = vsel %vm482, %v615, %v959
        %v1673 = vsel %vm482, %v616, %v961
        %v1674 = vsel %vm482, %v617, %v963
        %v1675 = vsel %vm482, %v618, %v965
        %v1676 = vsel %vm482, %v619, %v967
        %v1677 = vsel %vm482, %v620, %v969
        %v1678 = vsel %vm482, %v621, %v971
        %v1679 = vsel %vm482, %v622, %v973
        %v1680 = vsel %vm482, %v623, %v975
        %v1681 = vsel %vm482, %v624, %v977
        %vm1682 = vcmask 523264
        %v1683 = vsel %vm1682, %v1650, %v1043
        %v1684 = vsel %vm1682, %v1651, %v1045
        %v1685 = vsel %vm1682, %v1652, %v1047
        %v1686 = vsel %vm1682, %v1653, %v1049
        %v1687 = vsel %vm1682, %v1654, %v1051
        %v1688 = vsel %vm1682, %v1655, %v1053
        %v1689 = vsel %vm1682, %v1656, %v1055
        %v1690 = vsel %vm1682, %v1657, %v1057
        %v1691 = vsel %vm1682, %v1658, %v1059
        %v1692 = vsel %vm1682, %v1659, %v1061
        %v1693 = vsel %vm1682, %v1660, %v1063
        %v1694 = vsel %vm1682, %v1661, %v1065
        %v1695 = vsel %vm1682, %v1662, %v1067
        %v1696 = vsel %vm1682, %v1663, %v1069
        %v1697 = vsel %vm1682, %v1664, %v1071
        %v1698 = vsel %vm1682, %v1665, %v1073
        %v1699 = vsel %vm1682, %v1666, %v1075
        %v1700 = vsel %vm1682, %v1667, %v1077
        %v1701 = vsel %vm1682, %v1668, %v1079
        %v1702 = vsel %vm1682, %v1669, %v1081
        %v1703 = vsel %vm1682, %v1670, %v1083
        %v1704 = vsel %vm1682, %v1671, %v1085
        %v1705 = vsel %vm1682, %v1672, %v1087
        %v1706 = vsel %vm1682, %v1673, %v1089
        %v1707 = vsel %vm1682, %v1674, %v1091
        %v1708 = vsel %vm1682, %v1675, %v1093
        %v1709 = vsel %vm1682, %v1676, %v1095
        %v1710 = vsel %vm1682, %v1677, %v1097
        %v1711 = vsel %vm1682, %v1678, %v1099
        %v1712 = vsel %vm1682, %v1679, %v1101
        %v1713 = vsel %vm1682, %v1680, %v1103
        %v1714 = vsel %vm1682, %v1681, %v1105
        %vm1715 = vcmask 785408
        %v1716 = vsel %vm1715, %v1683, %v1171
        %v1717 = vsel %vm1715, %v1684, %v1173
        %v1718 = vsel %vm1715, %v1685, %v1175
        %v1719 = vsel %vm1715, %v1686, %v1177
        %v1720 = vsel %vm1715, %v1687, %v1179
        %v1721 = vsel %vm1715, %v1688, %v1181
        %v1722 = vsel %vm1715, %v1689, %v1183
        %v1723 = vsel %vm1715, %v1690, %v1185
        %v1724 = vsel %vm1715, %v1691, %v1187
        %v1725 = vsel %vm1715, %v1692, %v1189
        %v1726 = vsel %vm1715, %v1693, %v1191
        %v1727 = vsel %vm1715, %v1694, %v1193
        %v1728 = vsel %vm1715, %v1695, %v1195
        %v1729 = vsel %vm1715, %v1696, %v1197
        %v1730 = vsel %vm1715, %v1697, %v1199
        %v1731 = vsel %vm1715, %v1698, %v1201
        %v1732 = vsel %vm1715, %v1699, %v1203
        %v1733 = vsel %vm1715, %v1700, %v1205
        %v1734 = vsel %vm1715, %v1701, %v1207
        %v1735 = vsel %vm1715, %v1702, %v1209
        %v1736 = vsel %vm1715, %v1703, %v1211
        %v1737 = vsel %vm1715, %v1704, %v1213
        %v1738 = vsel %vm1715, %v1705, %v1215
        %v1739 = vsel %vm1715, %v1706, %v1217
        %v1740 = vsel %vm1715, %v1707, %v1219
        %v1741 = vsel %vm1715, %v1708, %v1221
        %v1742 = vsel %vm1715, %v1709, %v1223
        %v1743 = vsel %vm1715, %v1710, %v1225
        %v1744 = vsel %vm1715, %v1711, %v1227
        %v1745 = vsel %vm1715, %v1712, %v1229
        %v1746 = vsel %vm1715, %v1713, %v1231
        %v1747 = vsel %vm1715, %v1714, %v1233
        %v1748 = vsel %vm482, %v721, %v1299
        %v1749 = vsel %vm482, %v722, %v1301
        %v1750 = vsel %vm482, %v723, %v1303
        %v1751 = vsel %vm482, %v724, %v1305
        %v1752 = vsel %vm482, %v725, %v1307
        %v1753 = vsel %vm482, %v726, %v1309
        %v1754 = vsel %vm482, %v727, %v1311
        %v1755 = vsel %vm482, %v728, %v1313
        %v1756 = vsel %vm482, %v729, %v1315
        %v1757 = vsel %vm482, %v730, %v1317
        %v1758 = vsel %vm482, %v731, %v1319
        %v1759 = vsel %vm482, %v732, %v1321
        %v1760 = vsel %vm482, %v733, %v1323
        %v1761 = vsel %vm482, %v734, %v1325
        %v1762 = vsel %vm482, %v735, %v1327
        %v1763 = vsel %vm482, %v736, %v1329
        %v1764 = vsel %vm482, %v737, %v1331
        %v1765 = vsel %vm482, %v738, %v1333
        %v1766 = vsel %vm482, %v739, %v1335
        %v1767 = vsel %vm482, %v740, %v1337
        %v1768 = vsel %vm482, %v741, %v1339
        %v1769 = vsel %vm482, %v742, %v1341
        %v1770 = vsel %vm482, %v743, %v1343
        %v1771 = vsel %vm482, %v744, %v1345
        %v1772 = vsel %vm482, %v745, %v1347
        %v1773 = vsel %vm482, %v746, %v1349
        %v1774 = vsel %vm482, %v747, %v1351
        %v1775 = vsel %vm482, %v748, %v1353
        %v1776 = vsel %vm482, %v749, %v1355
        %v1777 = vsel %vm482, %v750, %v1357
        %v1778 = vsel %vm482, %v751, %v1359
        %v1779 = vsel %vm482, %v752, %v1361
        %v1780 = vsel %vm1682, %v1748, %v1427
        %v1781 = vsel %vm1682, %v1749, %v1429
        %v1782 = vsel %vm1682, %v1750, %v1431
        %v1783 = vsel %vm1682, %v1751, %v1433
        %v1784 = vsel %vm1682, %v1752, %v1435
        %v1785 = vsel %vm1682, %v1753, %v1437
        %v1786 = vsel %vm1682, %v1754, %v1439
        %v1787 = vsel %vm1682, %v1755, %v1441
        %v1788 = vsel %vm1682, %v1756, %v1443
        %v1789 = vsel %vm1682, %v1757, %v1445
        %v1790 = vsel %vm1682, %v1758, %v1447
        %v1791 = vsel %vm1682, %v1759, %v1449
        %v1792 = vsel %vm1682, %v1760, %v1451
        %v1793 = vsel %vm1682, %v1761, %v1453
        %v1794 = vsel %vm1682, %v1762, %v1455
        %v1795 = vsel %vm1682, %v1763, %v1457
        %v1796 = vsel %vm1682, %v1764, %v1459
        %v1797 = vsel %vm1682, %v1765, %v1461
        %v1798 = vsel %vm1682, %v1766, %v1463
        %v1799 = vsel %vm1682, %v1767, %v1465
        %v1800 = vsel %vm1682, %v1768, %v1467
        %v1801 = vsel %vm1682, %v1769, %v1469
        %v1802 = vsel %vm1682, %v1770, %v1471
        %v1803 = vsel %vm1682, %v1771, %v1473
        %v1804 = vsel %vm1682, %v1772, %v1475
        %v1805 = vsel %vm1682, %v1773, %v1477
        %v1806 = vsel %vm1682, %v1774, %v1479
        %v1807 = vsel %vm1682, %v1775, %v1481
        %v1808 = vsel %vm1682, %v1776, %v1483
        %v1809 = vsel %vm1682, %v1777, %v1485
        %v1810 = vsel %vm1682, %v1778, %v1487
        %v1811 = vsel %vm1682, %v1779, %v1489
        %v1812 = vsel %vm1715, %v1780, %v1555
        %v1813 = vsel %vm1715, %v1781, %v1557
        %v1814 = vsel %vm1715, %v1782, %v1559
        %v1815 = vsel %vm1715, %v1783, %v1561
        %v1816 = vsel %vm1715, %v1784, %v1563
        %v1817 = vsel %vm1715, %v1785, %v1565
        %v1818 = vsel %vm1715, %v1786, %v1567
        %v1819 = vsel %vm1715, %v1787, %v1569
        %v1820 = vsel %vm1715, %v1788, %v1571
        %v1821 = vsel %vm1715, %v1789, %v1573
        %v1822 = vsel %vm1715, %v1790, %v1575
        %v1823 = vsel %vm1715, %v1791, %v1577
        %v1824 = vsel %vm1715, %v1792, %v1579
        %v1825 = vsel %vm1715, %v1793, %v1581
        %v1826 = vsel %vm1715, %v1794, %v1583
        %v1827 = vsel %vm1715, %v1795, %v1585
        %v1828 = vsel %vm1715, %v1796, %v1587
        %v1829 = vsel %vm1715, %v1797, %v1589
        %v1830 = vsel %vm1715, %v1798, %v1591
        %v1831 = vsel %vm1715, %v1799, %v1593
        %v1832 = vsel %vm1715, %v1800, %v1595
        %v1833 = vsel %vm1715, %v1801, %v1597
        %v1834 = vsel %vm1715, %v1802, %v1599
        %v1835 = vsel %vm1715, %v1803, %v1601
        %v1836 = vsel %vm1715, %v1804, %v1603
        %v1837 = vsel %vm1715, %v1805, %v1605
        %v1838 = vsel %vm1715, %v1806, %v1607
        %v1839 = vsel %vm1715, %v1807, %v1609
        %v1840 = vsel %vm1715, %v1808, %v1611
        %v1841 = vsel %vm1715, %v1809, %v1613
        %v1842 = vsel %vm1715, %v1810, %v1615
        %v1843 = vsel %vm1715, %v1811, %v1617
        %v1844 = vld [vmem:[#allocation6] sm:$0xff]
        %v1845 = vld [vmem:[#allocation6 + $0x8] sm:$0xff]
        %v1846 = vld [vmem:[#allocation6 + $0x10] sm:$0xff]
        %v1847 = vld [vmem:[#allocation6 + $0x18] sm:$0xff]
        %v1848 = vld [vmem:[#allocation6 + $0x20] sm:$0xff]
        %v1849 = vld [vmem:[#allocation6 + $0x28] sm:$0xff]
        %v1850 = vld [vmem:[#allocation6 + $0x30] sm:$0xff]
        %v1851 = vld [vmem:[#allocation6 + $0x38] sm:$0xff]
        %v1852 = vld [vmem:[#allocation6 + $0x40] sm:$0xff]
        %v1853 = vld [vmem:[#allocation6 + $0x48] sm:$0xff]
        %v1854 = vld [vmem:[#allocation6 + $0x50] sm:$0xff]
        %v1855 = vld [vmem:[#allocation6 + $0x58] sm:$0xff]
        %v1856 = vld [vmem:[#allocation6 + $0x60] sm:$0xff]
        %v1857 = vld [vmem:[#allocation6 + $0x68] sm:$0xff]
        %v1858 = vld [vmem:[#allocation6 + $0x70] sm:$0xff]
        %v1859 = vld [vmem:[#allocation6 + $0x78] sm:$0xff]
        %v1860 = vld [vmem:[#allocation6 + $0x80] sm:$0xff]
        %v1861 = vld [vmem:[#allocation6 + $0x88] sm:$0xff]
        %v1862 = vld [vmem:[#allocation6 + $0x90] sm:$0xff]
        %v1863 = vld [vmem:[#allocation6 + $0x98] sm:$0xff]
        %v1864 = vld [vmem:[#allocation6 + $0xa0] sm:$0xff]
        %v1865 = vld [vmem:[#allocation6 + $0xa8] sm:$0xff]
        %v1866 = vld [vmem:[#allocation6 + $0xb0] sm:$0xff]
        %v1867 = vld [vmem:[#allocation6 + $0xb8] sm:$0xff]
        %v1868 = vld [vmem:[#allocation6 + $0xc0] sm:$0xff]
        %v1869 = vld [vmem:[#allocation6 + $0xc8] sm:$0xff]
        %v1870 = vld [vmem:[#allocation6 + $0xd0] sm:$0xff]
        %v1871 = vld [vmem:[#allocation6 + $0xd8] sm:$0xff]
        %v1872 = vld [vmem:[#allocation6 + $0xe0] sm:$0xff]
        %v1873 = vld [vmem:[#allocation6 + $0xe8] sm:$0xff]
        %v1874 = vld [vmem:[#allocation6 + $0xf0] sm:$0xff]
        %v1875 = vld [vmem:[#allocation6 + $0xf8] sm:$0xff]
        %v1876 = vld [vmem:[#allocation6 + $0x100] sm:$0xff]
        %v1877 = vld [vmem:[#allocation6 + $0x108] sm:$0xff]
        %v1878 = vld [vmem:[#allocation6 + $0x110] sm:$0xff]
        %v1879 = vld [vmem:[#allocation6 + $0x118] sm:$0xff]
        %v1880 = vld [vmem:[%s2] sm:$0x1]
        %v1882 = vlaneseq
        %v1883 = vshrl.u32 %v1882, 7
        %v1884 = vsub.s32 0, %v1883
        %v1885 = vrot.slane %v1880, %v1884
        %v1888 = vsel %vm482, %v850, 0
        %v1891 = vsel %vm482, %v851, 0
        %v1894 = vsel %vm482, %v852, 0
        %v1897 = vsel %vm482, %v853, 0
        %v1900 = vsel %vm482, %v854, 0
        %v1903 = vsel %vm482, %v855, 0
        %v1906 = vsel %vm482, %v856, 0
        %v1909 = vsel %vm482, %v857, 0
        %v1912 = vsel %vm482, %v858, 0
        %v1915 = vsel %vm482, %v859, 0
        %v1918 = vsel %vm482, %v860, 0
        %v1921 = vsel %vm482, %v861, 0
        %v1924 = vsel %vm482, %v862, 0
        %v1927 = vsel %vm482, %v863, 0
        %v1930 = vsel %vm482, %v864, 0
        %v1933 = vsel %vm482, %v865, 0
        %v1936 = vsel %vm482, %v866, 0
        %v1939 = vsel %vm482, %v867, 0
        %v1942 = vsel %vm482, %v868, 0
        %v1945 = vsel %vm482, %v869, 0
        %v1948 = vsel %vm482, %v870, 0
        %v1951 = vsel %vm482, %v871, 0
        %v1954 = vsel %vm482, %v872, 0
        %v1957 = vsel %vm482, %v873, 0
        %v1960 = vsel %vm482, %v874, 0
        %v1963 = vsel %vm482, %v875, 0
        %v1966 = vsel %vm482, %v876, 0
        %v1969 = vsel %vm482, %v877, 0
        %v1972 = vsel %vm482, %v878, 0
        %v1975 = vsel %vm482, %v879, 0
        %v1978 = vsel %vm482, %v880, 0
        %v1981 = vsel %vm482, %v881, 0
        %1983 = vmatprep.subr.mxu0 0.0
        %1984 = vmatpush1.msra.mxu0 %v1859
        %1985 = vmatprep.subr.mxu0 0.0
        %1986 = vmatpush1.msra.mxu0 %v1858
        %1987 = vmatprep.subr.mxu0 0.0
        %1988 = vmatpush1.msra.mxu0 %v1857
        %1989 = vmatprep.subr.mxu0 0.0
        %1990 = vmatpush1.msra.mxu0 %v1856
        %1991 = vmatprep.subr.mxu0 0.0
        %1992 = vmatpush1.msra.mxu0 %v1855
        %1993 = vmatprep.subr.mxu0 0.0
        %1994 = vmatpush1.msra.mxu0 %v1854
        %1995 = vmatprep.subr.mxu0 0.0
        %1996 = vmatpush1.msra.mxu0 %v1853
        %1997 = vmatprep.subr.mxu0 0.0
        %1998 = vmatpush1.msra.mxu0 %v1852
        %1999 = vmatprep.subr.mxu0 0.0
        %2000 = vmatpush1.msra.mxu0 %v1851
        %2001 = vmatprep.subr.mxu0 0.0
        %2002 = vmatpush1.msra.mxu0 %v1850
        %2003 = vmatprep.subr.mxu0 0.0
        %2004 = vmatpush1.msra.mxu0 %v1849
        %2005 = vmatprep.subr.mxu0 0.0
        %2006 = vmatpush1.msra.mxu0 %v1848
        %2007 = vmatprep.subr.mxu0 0.0
        %2008 = vmatpush1.msra.mxu0 %v1847
        %2009 = vmatprep.subr.mxu0 0.0
        %2010 = vmatpush1.msra.mxu0 %v1846
        %2011 = vmatprep.subr.mxu0 0.0
        %2012 = vmatpush1.msra.mxu0 %v1845
        %2013 = vmatprep.subr.mxu0 0.0
        %2014 = vmatpush1.msra.mxu0 %v1844
        %2015 = vmatprep.subr.mxu0 0.0
        %2016 = vmatpush2.msra.mxu0 %v1875
        %2017 = vmatprep.subr.mxu0 0.0
        %2018 = vmatpush2.msra.mxu0 %v1874
        %2019 = vmatprep.subr.mxu0 0.0
        %2020 = vmatpush2.msra.mxu0 %v1873
        %2021 = vmatprep.subr.mxu0 0.0
        %2022 = vmatpush2.msra.mxu0 %v1872
        %2023 = vmatprep.subr.mxu0 0.0
        %2024 = vmatpush2.msra.mxu0 %v1871
        %2025 = vmatprep.subr.mxu0 0.0
        %2026 = vmatpush2.msra.mxu0 %v1870
        %2027 = vmatprep.subr.mxu0 0.0
        %2028 = vmatpush2.msra.mxu0 %v1869
        %2029 = vmatprep.subr.mxu0 0.0
        %2030 = vmatpush2.msra.mxu0 %v1868
        %2031 = vmatprep.subr.mxu0 0.0
        %2032 = vmatpush2.msra.mxu0 %v1867
        %2033 = vmatprep.subr.mxu0 0.0
        %2034 = vmatpush2.msra.mxu0 %v1866
        %2035 = vmatprep.subr.mxu0 0.0
        %2036 = vmatpush2.msra.mxu0 %v1865
        %2037 = vmatprep.subr.mxu0 0.0
        %2038 = vmatpush2.msra.mxu0 %v1864
        %2039 = vmatprep.subr.mxu0 0.0
        %2040 = vmatpush2.msra.mxu0 %v1863
        %2041 = vmatprep.subr.mxu0 0.0
        %2042 = vmatpush2.msra.mxu0 %v1862
        %2043 = vmatprep.subr.mxu0 0.0
        %2044 = vmatpush2.msra.mxu0 %v1861
        %2045 = vmatprep.subr.mxu0 0.0
        %2046 = vmatpush2.msra.mxu0 %v1860
        %2047 = vmatprep.mubr.f32.mxu0 %v1812
        %2048 = vmatmul.mubr.f32.gmra.mxu0 %v1716
        %v2049 = vpop.f32.mrf.mxu0
        %v2050 = vadd.f32 %v1885, %v2049
        %v2051 = vpop.f32.mrf.mxu0
        %2052 = vmatprep.mubr.f32.mxu0 %v1813
        %2053 = vmatmul.mubr.f32.gmra.mxu0 %v1717
        %v2054 = vpop.f32.mrf.mxu0
        %v2055 = vadd.f32 %v1885, %v2054
        %v2056 = vpop.f32.mrf.mxu0
        %2057 = vmatprep.mubr.f32.mxu0 %v1814
        %2058 = vmatmul.mubr.f32.gmra.mxu0 %v1718
        %v2059 = vpop.f32.mrf.mxu0
        %v2060 = vadd.f32 %v1885, %v2059
        %v2061 = vpop.f32.mrf.mxu0
        %2062 = vmatprep.mubr.f32.mxu0 %v1815
        %2063 = vmatmul.mubr.f32.gmra.mxu0 %v1719
        %v2064 = vpop.f32.mrf.mxu0
        %v2065 = vadd.f32 %v1885, %v2064
        %v2066 = vpop.f32.mrf.mxu0
        %2067 = vmatprep.mubr.f32.mxu0 %v1816
        %2068 = vmatmul.mubr.f32.gmra.mxu0 %v1720
        %v2069 = vpop.f32.mrf.mxu0
        %v2070 = vadd.f32 %v1885, %v2069
        %v2071 = vpop.f32.mrf.mxu0
        %2072 = vmatprep.mubr.f32.mxu0 %v1817
        %2073 = vmatmul.mubr.f32.gmra.mxu0 %v1721
        %v2074 = vpop.f32.mrf.mxu0
        %v2075 = vadd.f32 %v1885, %v2074
        %v2076 = vpop.f32.mrf.mxu0
        %2077 = vmatprep.mubr.f32.mxu0 %v1818
        %2078 = vmatmul.mubr.f32.gmra.mxu0 %v1722
        %v2079 = vpop.f32.mrf.mxu0
        %v2080 = vadd.f32 %v1885, %v2079
        %v2081 = vpop.f32.mrf.mxu0
        %2082 = vmatprep.mubr.f32.mxu0 %v1819
        %2083 = vmatmul.mubr.f32.gmra.mxu0 %v1723
        %v2084 = vpop.f32.mrf.mxu0
        %v2085 = vadd.f32 %v1885, %v2084
        %v2086 = vpop.f32.mrf.mxu0
        %2087 = vmatprep.mubr.f32.mxu0 %v1820
        %2088 = vmatmul.mubr.f32.gmra.mxu0 %v1724
        %v2089 = vpop.f32.mrf.mxu0
        %v2090 = vadd.f32 %v1885, %v2089
        %v2091 = vpop.f32.mrf.mxu0
        %2092 = vmatprep.mubr.f32.mxu0 %v1821
        %2093 = vmatmul.mubr.f32.gmra.mxu0 %v1725
        %v2094 = vpop.f32.mrf.mxu0
        %v2095 = vadd.f32 %v1885, %v2094
        %v2096 = vpop.f32.mrf.mxu0
        %2097 = vmatprep.mubr.f32.mxu0 %v1822
        %2098 = vmatmul.mubr.f32.gmra.mxu0 %v1726
        %v2099 = vpop.f32.mrf.mxu0
        %v2100 = vadd.f32 %v1885, %v2099
        %v2101 = vpop.f32.mrf.mxu0
        %2102 = vmatprep.mubr.f32.mxu0 %v1823
        %2103 = vmatmul.mubr.f32.gmra.mxu0 %v1727
        %v2104 = vpop.f32.mrf.mxu0
        %v2105 = vadd.f32 %v1885, %v2104
        %v2106 = vpop.f32.mrf.mxu0
        %2107 = vmatprep.mubr.f32.mxu0 %v1824
        %2108 = vmatmul.mubr.f32.gmra.mxu0 %v1728
        %v2109 = vpop.f32.mrf.mxu0
        %v2110 = vadd.f32 %v1885, %v2109
        %v2111 = vpop.f32.mrf.mxu0
        %2112 = vmatprep.mubr.f32.mxu0 %v1825
        %2113 = vmatmul.mubr.f32.gmra.mxu0 %v1729
        %v2114 = vpop.f32.mrf.mxu0
        %v2115 = vadd.f32 %v1885, %v2114
        %v2116 = vpop.f32.mrf.mxu0
        %2117 = vmatprep.mubr.f32.mxu0 %v1826
        %2118 = vmatmul.mubr.f32.gmra.mxu0 %v1730
        %v2119 = vpop.f32.mrf.mxu0
        %v2120 = vadd.f32 %v1885, %v2119
        %v2121 = vpop.f32.mrf.mxu0
        %2122 = vmatprep.mubr.f32.mxu0 %v1827
        %2123 = vmatmul.mubr.f32.gmra.mxu0 %v1731
        %v2124 = vpop.f32.mrf.mxu0
        %v2125 = vadd.f32 %v1885, %v2124
        %v2126 = vpop.f32.mrf.mxu0
        %2127 = vmatprep.mubr.f32.mxu0 %v1828
        %2128 = vmatmul.mubr.f32.gmra.mxu0 %v1732
        %v2129 = vpop.f32.mrf.mxu0
        %v2130 = vadd.f32 %v1885, %v2129
        %v2131 = vpop.f32.mrf.mxu0
        %2132 = vmatprep.mubr.f32.mxu0 %v1829
        %2133 = vmatmul.mubr.f32.gmra.mxu0 %v1733
        %v2134 = vpop.f32.mrf.mxu0
        %v2135 = vadd.f32 %v1885, %v2134
        %v2136 = vpop.f32.mrf.mxu0
        %2137 = vmatprep.mubr.f32.mxu0 %v1830
        %2138 = vmatmul.mubr.f32.gmra.mxu0 %v1734
        %v2139 = vpop.f32.mrf.mxu0
        %v2140 = vadd.f32 %v1885, %v2139
        %v2141 = vpop.f32.mrf.mxu0
        %2142 = vmatprep.mubr.f32.mxu0 %v1831
        %2143 = vmatmul.mubr.f32.gmra.mxu0 %v1735
        %v2144 = vpop.f32.mrf.mxu0
        %v2145 = vadd.f32 %v1885, %v2144
        %v2146 = vpop.f32.mrf.mxu0
        %2147 = vmatprep.mubr.f32.mxu0 %v1832
        %2148 = vmatmul.mubr.f32.gmra.mxu0 %v1736
        %v2149 = vpop.f32.mrf.mxu0
        %v2150 = vadd.f32 %v1885, %v2149
        %v2151 = vpop.f32.mrf.mxu0
        %2152 = vmatprep.mubr.f32.mxu0 %v1833
        %2153 = vmatmul.mubr.f32.gmra.mxu0 %v1737
        %v2154 = vpop.f32.mrf.mxu0
        %v2155 = vadd.f32 %v1885, %v2154
        %v2156 = vpop.f32.mrf.mxu0
        %2157 = vmatprep.mubr.f32.mxu0 %v1834
        %2158 = vmatmul.mubr.f32.gmra.mxu0 %v1738
        %v2159 = vpop.f32.mrf.mxu0
        %v2160 = vadd.f32 %v1885, %v2159
        %v2161 = vpop.f32.mrf.mxu0
        %2162 = vmatprep.mubr.f32.mxu0 %v1835
        %2163 = vmatmul.mubr.f32.gmra.mxu0 %v1739
        %v2164 = vpop.f32.mrf.mxu0
        %v2165 = vadd.f32 %v1885, %v2164
        %v2166 = vpop.f32.mrf.mxu0
        %2167 = vmatprep.mubr.f32.mxu0 %v1836
        %2168 = vmatmul.mubr.f32.gmra.mxu0 %v1740
        %v2169 = vpop.f32.mrf.mxu0
        %v2170 = vadd.f32 %v1885, %v2169
        %v2171 = vpop.f32.mrf.mxu0
        %2172 = vmatprep.mubr.f32.mxu0 %v1837
        %2173 = vmatmul.mubr.f32.gmra.mxu0 %v1741
        %v2174 = vpop.f32.mrf.mxu0
        %v2175 = vadd.f32 %v1885, %v2174
        %v2176 = vpop.f32.mrf.mxu0
        %2177 = vmatprep.mubr.f32.mxu0 %v1838
        %2178 = vmatmul.mubr.f32.gmra.mxu0 %v1742
        %v2179 = vpop.f32.mrf.mxu0
        %v2180 = vadd.f32 %v1885, %v2179
        %v2181 = vpop.f32.mrf.mxu0
        %2182 = vmatprep.mubr.f32.mxu0 %v1839
        %2183 = vmatmul.mubr.f32.gmra.mxu0 %v1743
        %v2184 = vpop.f32.mrf.mxu0
        %v2185 = vadd.f32 %v1885, %v2184
        %v2186 = vpop.f32.mrf.mxu0
        %2187 = vmatprep.mubr.f32.mxu0 %v1840
        %2188 = vmatmul.mubr.f32.gmra.mxu0 %v1744
        %v2189 = vpop.f32.mrf.mxu0
        %v2190 = vadd.f32 %v1885, %v2189
        %v2191 = vpop.f32.mrf.mxu0
        %2192 = vmatprep.mubr.f32.mxu0 %v1841
        %2193 = vmatmul.mubr.f32.gmra.mxu0 %v1745
        %v2194 = vpop.f32.mrf.mxu0
        %v2195 = vadd.f32 %v1885, %v2194
        %v2196 = vpop.f32.mrf.mxu0
        %2197 = vmatprep.mubr.f32.mxu0 %v1842
        %2198 = vmatmul.mubr.f32.gmra.mxu0 %v1746
        %v2199 = vpop.f32.mrf.mxu0
        %v2200 = vadd.f32 %v1885, %v2199
        %v2201 = vpop.f32.mrf.mxu0
        %2202 = vmatprep.mubr.f32.mxu0 %v1843
        %2203 = vmatmul.mubr.f32.gmra.mxu0 %v1747
        %v2204 = vpop.f32.mrf.mxu0
        %v2205 = vadd.f32 %v1885, %v2204
        %v2206 = vpop.f32.mrf.mxu0
        %2207 = vdwg.mxu0
        %2208 = vmatprep.subr.mxu0 0.0
        %2209 = vmatpush1.msra.mxu0 0.0
        %2210 = vmatprep.subr.mxu0 0.0
        %2211 = vmatpush1.msra.mxu0 0.0
        %2212 = vmatprep.subr.mxu0 0.0
        %2213 = vmatpush1.msra.mxu0 0.0
        %2214 = vmatprep.subr.mxu0 0.0
        %2215 = vmatpush1.msra.mxu0 0.0
        %2216 = vmatprep.subr.mxu0 0.0
        %2217 = vmatpush1.msra.mxu0 0.0
        %2218 = vmatprep.subr.mxu0 0.0
        %2219 = vmatpush1.msra.mxu0 0.0
        %2220 = vmatprep.subr.mxu0 0.0
        %2221 = vmatpush1.msra.mxu0 0.0
        %2222 = vmatprep.subr.mxu0 0.0
        %2223 = vmatpush1.msra.mxu0 0.0
        %2224 = vmatprep.subr.mxu0 0.0
        %2225 = vmatpush1.msra.mxu0 0.0
        %2226 = vmatprep.subr.mxu0 0.0
        %2227 = vmatpush1.msra.mxu0 0.0
        %2228 = vmatprep.subr.mxu0 0.0
        %2229 = vmatpush1.msra.mxu0 0.0
        %2230 = vmatprep.subr.mxu0 0.0
        %2231 = vmatpush1.msra.mxu0 0.0
        %2232 = vmatprep.subr.mxu0 0.0
        %2233 = vmatpush1.msra.mxu0 %v1879
        %2234 = vmatprep.subr.mxu0 0.0
        %2235 = vmatpush1.msra.mxu0 %v1878
        %2236 = vmatprep.subr.mxu0 0.0
        %2237 = vmatpush1.msra.mxu0 %v1877
        %2238 = vmatprep.subr.mxu0 0.0
        %2239 = vmatpush1.msra.mxu0 %v1876
        %2240 = vmatprep.subr.mxu0 0.0
        %2241 = vmatpush2.msra.mxu0 0.0
        %2242 = vmatprep.subr.mxu0 0.0
        %2243 = vmatpush2.msra.mxu0 0.0
        %2244 = vmatprep.subr.mxu0 0.0
        %2245 = vmatpush2.msra.mxu0 0.0
        %2246 = vmatprep.subr.mxu0 0.0
        %2247 = vmatpush2.msra.mxu0 0.0
        %2248 = vmatprep.subr.mxu0 0.0
        %2249 = vmatpush2.msra.mxu0 0.0
        %2250 = vmatprep.subr.mxu0 0.0
        %2251 = vmatpush2.msra.mxu0 0.0
        %2252 = vmatprep.subr.mxu0 0.0
        %2253 = vmatpush2.msra.mxu0 0.0
        %2254 = vmatprep.subr.mxu0 0.0
        %2255 = vmatpush2.msra.mxu0 0.0
        %2256 = vmatprep.subr.mxu0 0.0
        %2257 = vmatpush2.msra.mxu0 0.0
        %2258 = vmatprep.subr.mxu0 0.0
        %2259 = vmatpush2.msra.mxu0 0.0
        %2260 = vmatprep.subr.mxu0 0.0
        %2261 = vmatpush2.msra.mxu0 0.0
        %2262 = vmatprep.subr.mxu0 0.0
        %2263 = vmatpush2.msra.mxu0 0.0
        %2264 = vmatprep.subr.mxu0 0.0
        %2265 = vmatpush2.msra.mxu0 0.0
        %2266 = vmatprep.subr.mxu0 0.0
        %2267 = vmatpush2.msra.mxu0 0.0
        %2268 = vmatprep.subr.mxu0 0.0
        %2269 = vmatpush2.msra.mxu0 0.0
        %2270 = vmatprep.subr.mxu0 0.0
        %2271 = vmatpush2.msra.mxu0 0.0
        %2272 = vmatprep.mubr.f32.mxu0 0.0
        %2273 = vmatmul.mubr.f32.gmra.mxu0 %v1888
        %v2274 = vpop.f32.mrf.mxu0
        %v2275 = vadd.f32 %v2050, %v2274
        %v2276 = vpop.f32.mrf.mxu0
        %2277 = vmatprep.mubr.f32.mxu0 0.0
        %2278 = vmatmul.mubr.f32.gmra.mxu0 %v1891
        %v2279 = vpop.f32.mrf.mxu0
        %v2280 = vadd.f32 %v2055, %v2279
        %v2281 = vpop.f32.mrf.mxu0
        %2282 = vmatprep.mubr.f32.mxu0 0.0
        %2283 = vmatmul.mubr.f32.gmra.mxu0 %v1894
        %v2284 = vpop.f32.mrf.mxu0
        %v2285 = vadd.f32 %v2060, %v2284
        %v2286 = vpop.f32.mrf.mxu0
        %2287 = vmatprep.mubr.f32.mxu0 0.0
        %2288 = vmatmul.mubr.f32.gmra.mxu0 %v1897
        %v2289 = vpop.f32.mrf.mxu0
        %v2290 = vadd.f32 %v2065, %v2289
        %v2291 = vpop.f32.mrf.mxu0
        %2292 = vmatprep.mubr.f32.mxu0 0.0
        %2293 = vmatmul.mubr.f32.gmra.mxu0 %v1900
        %v2294 = vpop.f32.mrf.mxu0
        %v2295 = vadd.f32 %v2070, %v2294
        %v2296 = vpop.f32.mrf.mxu0
        %2297 = vmatprep.mubr.f32.mxu0 0.0
        %2298 = vmatmul.mubr.f32.gmra.mxu0 %v1903
        %v2299 = vpop.f32.mrf.mxu0
        %v2300 = vadd.f32 %v2075, %v2299
        %v2301 = vpop.f32.mrf.mxu0
        %2302 = vmatprep.mubr.f32.mxu0 0.0
        %2303 = vmatmul.mubr.f32.gmra.mxu0 %v1906
        %v2304 = vpop.f32.mrf.mxu0
        %v2305 = vadd.f32 %v2080, %v2304
        %v2306 = vpop.f32.mrf.mxu0
        %2307 = vmatprep.mubr.f32.mxu0 0.0
        %2308 = vmatmul.mubr.f32.gmra.mxu0 %v1909
        %v2309 = vpop.f32.mrf.mxu0
        %v2310 = vadd.f32 %v2085, %v2309
        %v2311 = vpop.f32.mrf.mxu0
        %2312 = vmatprep.mubr.f32.mxu0 0.0
        %2313 = vmatmul.mubr.f32.gmra.mxu0 %v1912
        %v2314 = vpop.f32.mrf.mxu0
        %v2315 = vadd.f32 %v2090, %v2314
        %v2316 = vpop.f32.mrf.mxu0
        %2317 = vmatprep.mubr.f32.mxu0 0.0
        %2318 = vmatmul.mubr.f32.gmra.mxu0 %v1915
        %v2319 = vpop.f32.mrf.mxu0
        %v2320 = vadd.f32 %v2095, %v2319
        %v2321 = vpop.f32.mrf.mxu0
        %2322 = vmatprep.mubr.f32.mxu0 0.0
        %2323 = vmatmul.mubr.f32.gmra.mxu0 %v1918
        %v2324 = vpop.f32.mrf.mxu0
        %v2325 = vadd.f32 %v2100, %v2324
        %v2326 = vpop.f32.mrf.mxu0
        %2327 = vmatprep.mubr.f32.mxu0 0.0
        %2328 = vmatmul.mubr.f32.gmra.mxu0 %v1921
        %v2329 = vpop.f32.mrf.mxu0
        %v2330 = vadd.f32 %v2105, %v2329
        %v2331 = vpop.f32.mrf.mxu0
        %2332 = vmatprep.mubr.f32.mxu0 0.0
        %2333 = vmatmul.mubr.f32.gmra.mxu0 %v1924
        %v2334 = vpop.f32.mrf.mxu0
        %v2335 = vadd.f32 %v2110, %v2334
        %v2336 = vpop.f32.mrf.mxu0
        %2337 = vmatprep.mubr.f32.mxu0 0.0
        %2338 = vmatmul.mubr.f32.gmra.mxu0 %v1927
        %v2339 = vpop.f32.mrf.mxu0
        %v2340 = vadd.f32 %v2115, %v2339
        %v2341 = vpop.f32.mrf.mxu0
        %2342 = vmatprep.mubr.f32.mxu0 0.0
        %2343 = vmatmul.mubr.f32.gmra.mxu0 %v1930
        %v2344 = vpop.f32.mrf.mxu0
        %v2345 = vadd.f32 %v2120, %v2344
        %v2346 = vpop.f32.mrf.mxu0
        %2347 = vmatprep.mubr.f32.mxu0 0.0
        %2348 = vmatmul.mubr.f32.gmra.mxu0 %v1933
        %v2349 = vpop.f32.mrf.mxu0
        %v2350 = vadd.f32 %v2125, %v2349
        %v2351 = vpop.f32.mrf.mxu0
        %2352 = vmatprep.mubr.f32.mxu0 0.0
        %2353 = vmatmul.mubr.f32.gmra.mxu0 %v1936
        %v2354 = vpop.f32.mrf.mxu0
        %v2355 = vadd.f32 %v2130, %v2354
        %v2356 = vpop.f32.mrf.mxu0
        %2357 = vmatprep.mubr.f32.mxu0 0.0
        %2358 = vmatmul.mubr.f32.gmra.mxu0 %v1939
        %v2359 = vpop.f32.mrf.mxu0
        %v2360 = vadd.f32 %v2135, %v2359
        %v2361 = vpop.f32.mrf.mxu0
        %2362 = vmatprep.mubr.f32.mxu0 0.0
        %2363 = vmatmul.mubr.f32.gmra.mxu0 %v1942
        %v2364 = vpop.f32.mrf.mxu0
        %v2365 = vadd.f32 %v2140, %v2364
        %v2366 = vpop.f32.mrf.mxu0
        %2367 = vmatprep.mubr.f32.mxu0 0.0
        %2368 = vmatmul.mubr.f32.gmra.mxu0 %v1945
        %v2369 = vpop.f32.mrf.mxu0
        %v2370 = vadd.f32 %v2145, %v2369
        %v2371 = vpop.f32.mrf.mxu0
        %2372 = vmatprep.mubr.f32.mxu0 0.0
        %2373 = vmatmul.mubr.f32.gmra.mxu0 %v1948
        %v2374 = vpop.f32.mrf.mxu0
        %v2375 = vadd.f32 %v2150, %v2374
        %v2376 = vpop.f32.mrf.mxu0
        %2377 = vmatprep.mubr.f32.mxu0 0.0
        %2378 = vmatmul.mubr.f32.gmra.mxu0 %v1951
        %v2379 = vpop.f32.mrf.mxu0
        %v2380 = vadd.f32 %v2155, %v2379
        %v2381 = vpop.f32.mrf.mxu0
        %2382 = vmatprep.mubr.f32.mxu0 0.0
        %2383 = vmatmul.mubr.f32.gmra.mxu0 %v1954
        %v2384 = vpop.f32.mrf.mxu0
        %v2385 = vadd.f32 %v2160, %v2384
        %v2386 = vpop.f32.mrf.mxu0
        %2387 = vmatprep.mubr.f32.mxu0 0.0
        %2388 = vmatmul.mubr.f32.gmra.mxu0 %v1957
        %v2389 = vpop.f32.mrf.mxu0
        %v2390 = vadd.f32 %v2165, %v2389
        %v2391 = vpop.f32.mrf.mxu0
        %2392 = vmatprep.mubr.f32.mxu0 0.0
        %2393 = vmatmul.mubr.f32.gmra.mxu0 %v1960
        %v2394 = vpop.f32.mrf.mxu0
        %v2395 = vadd.f32 %v2170, %v2394
        %v2396 = vpop.f32.mrf.mxu0
        %2397 = vmatprep.mubr.f32.mxu0 0.0
        %2398 = vmatmul.mubr.f32.gmra.mxu0 %v1963
        %v2399 = vpop.f32.mrf.mxu0
        %v2400 = vadd.f32 %v2175, %v2399
        %v2401 = vpop.f32.mrf.mxu0
        %2402 = vmatprep.mubr.f32.mxu0 0.0
        %2403 = vmatmul.mubr.f32.gmra.mxu0 %v1966
        %v2404 = vpop.f32.mrf.mxu0
        %v2405 = vadd.f32 %v2180, %v2404
        %v2406 = vpop.f32.mrf.mxu0
        %2407 = vmatprep.mubr.f32.mxu0 0.0
        %2408 = vmatmul.mubr.f32.gmra.mxu0 %v1969
        %v2409 = vpop.f32.mrf.mxu0
        %v2410 = vadd.f32 %v2185, %v2409
        %v2411 = vpop.f32.mrf.mxu0
        %2412 = vmatprep.mubr.f32.mxu0 0.0
        %2413 = vmatmul.mubr.f32.gmra.mxu0 %v1972
        %v2414 = vpop.f32.mrf.mxu0
        %v2415 = vadd.f32 %v2190, %v2414
        %v2416 = vpop.f32.mrf.mxu0
        %2417 = vmatprep.mubr.f32.mxu0 0.0
        %2418 = vmatmul.mubr.f32.gmra.mxu0 %v1975
        %v2419 = vpop.f32.mrf.mxu0
        %v2420 = vadd.f32 %v2195, %v2419
        %v2421 = vpop.f32.mrf.mxu0
        %2422 = vmatprep.mubr.f32.mxu0 0.0
        %2423 = vmatmul.mubr.f32.gmra.mxu0 %v1978
        %v2424 = vpop.f32.mrf.mxu0
        %v2425 = vadd.f32 %v2200, %v2424
        %v2426 = vpop.f32.mrf.mxu0
        %2427 = vmatprep.mubr.f32.mxu0 0.0
        %2428 = vmatmul.mubr.f32.gmra.mxu0 %v1981
        %v2429 = vpop.f32.mrf.mxu0
        %v2430 = vadd.f32 %v2205, %v2429
        %v2431 = vpop.f32.mrf.mxu0
        %2432 = vdwg.mxu0
        %v2433 = vmul.f32 %v2275, 0.2
        %v2434 = vmul.f32 %v2280, 0.2
        %v2435 = vmul.f32 %v2285, 0.2
        %v2436 = vmul.f32 %v2290, 0.2
        %v2437 = vmul.f32 %v2295, 0.2
        %v2438 = vmul.f32 %v2300, 0.2
        %v2439 = vmul.f32 %v2305, 0.2
        %v2440 = vmul.f32 %v2310, 0.2
        %v2441 = vmul.f32 %v2315, 0.2
        %v2442 = vmul.f32 %v2320, 0.2
        %v2443 = vmul.f32 %v2325, 0.2
        %v2444 = vmul.f32 %v2330, 0.2
        %v2445 = vmul.f32 %v2335, 0.2
        %v2446 = vmul.f32 %v2340, 0.2
        %v2447 = vmul.f32 %v2345, 0.2
        %v2448 = vmul.f32 %v2350, 0.2
        %v2449 = vmul.f32 %v2355, 0.2
        %v2450 = vmul.f32 %v2360, 0.2
        %v2451 = vmul.f32 %v2365, 0.2
        %v2452 = vmul.f32 %v2370, 0.2
        %v2453 = vmul.f32 %v2375, 0.2
        %v2454 = vmul.f32 %v2380, 0.2
        %v2455 = vmul.f32 %v2385, 0.2
        %v2456 = vmul.f32 %v2390, 0.2
        %v2457 = vmul.f32 %v2395, 0.2
        %v2458 = vmul.f32 %v2400, 0.2
        %v2459 = vmul.f32 %v2405, 0.2
        %v2460 = vmul.f32 %v2410, 0.2
        %v2461 = vmul.f32 %v2415, 0.2
        %v2462 = vmul.f32 %v2420, 0.2
        %v2463 = vmul.f32 %v2425, 0.2
        %v2464 = vmul.f32 %v2430, 0.2
        %v2465 = vmax.f32 %v2275, %v2433
        %v2466 = vmax.f32 %v2280, %v2434
        %v2467 = vmax.f32 %v2285, %v2435
        %v2468 = vmax.f32 %v2290, %v2436
        %v2469 = vmax.f32 %v2295, %v2437
        %v2470 = vmax.f32 %v2300, %v2438
        %v2471 = vmax.f32 %v2305, %v2439
        %v2472 = vmax.f32 %v2310, %v2440
        %v2473 = vmax.f32 %v2315, %v2441
        %v2474 = vmax.f32 %v2320, %v2442
        %v2475 = vmax.f32 %v2325, %v2443
        %v2476 = vmax.f32 %v2330, %v2444
        %v2477 = vmax.f32 %v2335, %v2445
        %v2478 = vmax.f32 %v2340, %v2446
        %v2479 = vmax.f32 %v2345, %v2447
        %v2480 = vmax.f32 %v2350, %v2448
        %v2481 = vmax.f32 %v2355, %v2449
        %v2482 = vmax.f32 %v2360, %v2450
        %v2483 = vmax.f32 %v2365, %v2451
        %v2484 = vmax.f32 %v2370, %v2452
        %v2485 = vmax.f32 %v2375, %v2453
        %v2486 = vmax.f32 %v2380, %v2454
        %v2487 = vmax.f32 %v2385, %v2455
        %v2488 = vmax.f32 %v2390, %v2456
        %v2489 = vmax.f32 %v2395, %v2457
        %v2490 = vmax.f32 %v2400, %v2458
        %v2491 = vmax.f32 %v2405, %v2459
        %v2492 = vmax.f32 %v2410, %v2460
        %v2493 = vmax.f32 %v2415, %v2461
        %v2494 = vmax.f32 %v2420, %v2462
        %v2495 = vmax.f32 %v2425, %v2463
        %v2496 = vmax.f32 %v2430, %v2464
        %2497 = vst.msk [vmem:[%s481 + $0x1] sm:$0xff] %vm482, %v2465
        %2498 = vst.msk [vmem:[%s481 + $0x9] sm:$0xff] %vm482, %v2466
        %2499 = vst.msk [vmem:[%s481 + $0x19] sm:$0xff] %vm482, %v2467
        %2500 = vst.msk [vmem:[%s481 + $0x21] sm:$0xff] %vm482, %v2468
        %2501 = vst.msk [vmem:[%s481 + $0x31] sm:$0xff] %vm482, %v2469
        %2502 = vst.msk [vmem:[%s481 + $0x39] sm:$0xff] %vm482, %v2470
        %2503 = vst.msk [vmem:[%s481 + $0x49] sm:$0xff] %vm482, %v2471
        %2504 = vst.msk [vmem:[%s481 + $0x51] sm:$0xff] %vm482, %v2472
        %2505 = vst.msk [vmem:[%s481 + $0x61] sm:$0xff] %vm482, %v2473
        %2506 = vst.msk [vmem:[%s481 + $0x69] sm:$0xff] %vm482, %v2474
        %2507 = vst.msk [vmem:[%s481 + $0x79] sm:$0xff] %vm482, %v2475
        %2508 = vst.msk [vmem:[%s481 + $0x81] sm:$0xff] %vm482, %v2476
        %2509 = vst.msk [vmem:[%s481 + $0x91] sm:$0xff] %vm482, %v2477
        %2510 = vst.msk [vmem:[%s481 + $0x99] sm:$0xff] %vm482, %v2478
        %2511 = vst.msk [vmem:[%s481 + $0xa9] sm:$0xff] %vm482, %v2479
        %2512 = vst.msk [vmem:[%s481 + $0xb1] sm:$0xff] %vm482, %v2480
        %2513 = vst.msk [vmem:[%s481 + $0xc1] sm:$0xff] %vm482, %v2481
        %2514 = vst.msk [vmem:[%s481 + $0xc9] sm:$0xff] %vm482, %v2482
        %2515 = vst.msk [vmem:[%s481 + $0xd9] sm:$0xff] %vm482, %v2483
        %2516 = vst.msk [vmem:[%s481 + $0xe1] sm:$0xff] %vm482, %v2484
        %2517 = vst.msk [vmem:[%s481 + $0xf1] sm:$0xff] %vm482, %v2485
        %2518 = vst.msk [vmem:[%s481 + $0xf9] sm:$0xff] %vm482, %v2486
        %2519 = vst.msk [vmem:[%s481 + $0x109] sm:$0xff] %vm482, %v2487
        %2520 = vst.msk [vmem:[%s481 + $0x111] sm:$0xff] %vm482, %v2488
        %2521 = vst.msk [vmem:[%s481 + $0x121] sm:$0xff] %vm482, %v2489
        %2522 = vst.msk [vmem:[%s481 + $0x129] sm:$0xff] %vm482, %v2490
        %2523 = vst.msk [vmem:[%s481 + $0x139] sm:$0xff] %vm482, %v2491
        %2524 = vst.msk [vmem:[%s481 + $0x141] sm:$0xff] %vm482, %v2492
        %2525 = vst.msk [vmem:[%s481 + $0x151] sm:$0xff] %vm482, %v2493
        %2526 = vst.msk [vmem:[%s481 + $0x159] sm:$0xff] %vm482, %v2494
        %2527 = vst.msk [vmem:[%s481 + $0x169] sm:$0xff] %vm482, %v2495
        %2528 = vst.msk [vmem:[%s481 + $0x171] sm:$0xff] %vm482, %v2496
        %2529 = vst.msk [vmem:[#allocation2 + $0x1] sm:$0xff] %vm482, %v2465
        %2530 = vst.msk [vmem:[#allocation2 + $0x9] sm:$0xff] %vm482, %v2466
        %2531 = vst.msk [vmem:[%s517 + $0x1] sm:$0xff] %vm482, %v2495
        %2532 = vst.msk [vmem:[%s517 + $0x9] sm:$0xff] %vm482, %v2496
        %v2533 = vld [vmem:[#allocation2 + $0x1] sm:$0x1]
        %v2534 = vld [vmem:[#allocation2 + $0x19] sm:$0x1]
        %v2535 = vld [vmem:[#allocation2 + $0x31] sm:$0x1]
        %v2536 = vld [vmem:[#allocation2 + $0x49] sm:$0x1]
        %v2537 = vld [vmem:[#allocation2 + $0x61] sm:$0x1]
        %v2538 = vld [vmem:[#allocation2 + $0x79] sm:$0x1]
        %v2539 = vld [vmem:[#allocation2 + $0x91] sm:$0x1]
        %v2540 = vld [vmem:[#allocation2 + $0xa9] sm:$0x1]
        %v2541 = vld [vmem:[#allocation2 + $0xc1] sm:$0x1]
        %v2542 = vld [vmem:[#allocation2 + $0xd9] sm:$0x1]
        %v2543 = vld [vmem:[#allocation2 + $0xf1] sm:$0x1]
        %v2544 = vld [vmem:[#allocation2 + $0x109] sm:$0x1]
        %v2545 = vld [vmem:[#allocation2 + $0x121] sm:$0x1]
        %v2546 = vld [vmem:[#allocation2 + $0x139] sm:$0x1]
        %v2547 = vld [vmem:[#allocation2 + $0x151] sm:$0x1]
        %v2548 = vld [vmem:[#allocation2 + $0x169] sm:$0x1]
        %v2549 = vld [vmem:[#allocation2 + $0x181] sm:$0x1]
        %v2550 = vld [vmem:[#allocation2 + $0x199] sm:$0x1]
        %2551 = vst.msk [vmem:[#allocation2] sm:$0x1] %vm538, %v2533
        %2552 = vst.msk [vmem:[#allocation2 + $0x18] sm:$0x1] %vm538, %v2534
        %2553 = vst.msk [vmem:[#allocation2 + $0x30] sm:$0x1] %vm538, %v2535
        %2554 = vst.msk [vmem:[#allocation2 + $0x48] sm:$0x1] %vm538, %v2536
        %2555 = vst.msk [vmem:[#allocation2 + $0x60] sm:$0x1] %vm538, %v2537
        %2556 = vst.msk [vmem:[#allocation2 + $0x78] sm:$0x1] %vm538, %v2538
        %2557 = vst.msk [vmem:[#allocation2 + $0x90] sm:$0x1] %vm538, %v2539
        %2558 = vst.msk [vmem:[#allocation2 + $0xa8] sm:$0x1] %vm538, %v2540
        %2559 = vst.msk [vmem:[#allocation2 + $0xc0] sm:$0x1] %vm538, %v2541
        %2560 = vst.msk [vmem:[#allocation2 + $0xd8] sm:$0x1] %vm538, %v2542
        %2561 = vst.msk [vmem:[#allocation2 + $0xf0] sm:$0x1] %vm538, %v2543
        %2562 = vst.msk [vmem:[#allocation2 + $0x108] sm:$0x1] %vm538, %v2544
        %2563 = vst.msk [vmem:[#allocation2 + $0x120] sm:$0x1] %vm538, %v2545
        %2564 = vst.msk [vmem:[#allocation2 + $0x138] sm:$0x1] %vm538, %v2546
        %2565 = vst.msk [vmem:[#allocation2 + $0x150] sm:$0x1] %vm538, %v2547
        %2566 = vst.msk [vmem:[#allocation2 + $0x168] sm:$0x1] %vm538, %v2548
        %2567 = vst.msk [vmem:[#allocation2 + $0x180] sm:$0x1] %vm538, %v2549
        %2568 = vst.msk [vmem:[#allocation2 + $0x198] sm:$0x1] %vm538, %v2550
        %v2569 = vld [vmem:[#allocation2 + $0x10] sm:$0x1]
        %v2570 = vld [vmem:[#allocation2 + $0x28] sm:$0x1]
        %v2571 = vld [vmem:[#allocation2 + $0x40] sm:$0x1]
        %v2572 = vld [vmem:[#allocation2 + $0x58] sm:$0x1]
        %v2573 = vld [vmem:[#allocation2 + $0x70] sm:$0x1]
        %v2574 = vld [vmem:[#allocation2 + $0x88] sm:$0x1]
        %v2575 = vld [vmem:[#allocation2 + $0xa0] sm:$0x1]
        %v2576 = vld [vmem:[#allocation2 + $0xb8] sm:$0x1]
        %v2577 = vld [vmem:[#allocation2 + $0xd0] sm:$0x1]
        %v2578 = vld [vmem:[#allocation2 + $0xe8] sm:$0x1]
        %v2579 = vld [vmem:[#allocation2 + $0x100] sm:$0x1]
        %v2580 = vld [vmem:[#allocation2 + $0x118] sm:$0x1]
        %v2581 = vld [vmem:[#allocation2 + $0x130] sm:$0x1]
        %v2582 = vld [vmem:[#allocation2 + $0x148] sm:$0x1]
        %v2583 = vld [vmem:[#allocation2 + $0x160] sm:$0x1]
        %v2584 = vld [vmem:[#allocation2 + $0x178] sm:$0x1]
        %v2585 = vld [vmem:[#allocation2 + $0x190] sm:$0x1]
        %v2586 = vld [vmem:[#allocation2 + $0x1a8] sm:$0x1]
        %2587 = vst.msk [vmem:[#allocation2 + $0x11] sm:$0x1] %vm538, %v2569
        %2588 = vst.msk [vmem:[#allocation2 + $0x29] sm:$0x1] %vm538, %v2570
        %2589 = vst.msk [vmem:[#allocation2 + $0x41] sm:$0x1] %vm538, %v2571
        %2590 = vst.msk [vmem:[#allocation2 + $0x59] sm:$0x1] %vm538, %v2572
        %2591 = vst.msk [vmem:[#allocation2 + $0x71] sm:$0x1] %vm538, %v2573
        %2592 = vst.msk [vmem:[#allocation2 + $0x89] sm:$0x1] %vm538, %v2574
        %2593 = vst.msk [vmem:[#allocation2 + $0xa1] sm:$0x1] %vm538, %v2575
        %2594 = vst.msk [vmem:[#allocation2 + $0xb9] sm:$0x1] %vm538, %v2576
        %2595 = vst.msk [vmem:[#allocation2 + $0xd1] sm:$0x1] %vm538, %v2577
        %2596 = vst.msk [vmem:[#allocation2 + $0xe9] sm:$0x1] %vm538, %v2578
        %2597 = vst.msk [vmem:[#allocation2 + $0x101] sm:$0x1] %vm538, %v2579
        %2598 = vst.msk [vmem:[#allocation2 + $0x119] sm:$0x1] %vm538, %v2580
        %2599 = vst.msk [vmem:[#allocation2 + $0x131] sm:$0x1] %vm538, %v2581
        %2600 = vst.msk [vmem:[#allocation2 + $0x149] sm:$0x1] %vm538, %v2582
        %2601 = vst.msk [vmem:[#allocation2 + $0x161] sm:$0x1] %vm538, %v2583
        %2602 = vst.msk [vmem:[#allocation2 + $0x179] sm:$0x1] %vm538, %v2584
        %2603 = vst.msk [vmem:[#allocation2 + $0x191] sm:$0x1] %vm538, %v2585
        %2604 = vst.msk [vmem:[#allocation2 + $0x1a9] sm:$0x1] %vm538, %v2586
        %v2605 = vld [vmem:[#allocation2] sm:$0xff]
        %v2606 = vld [vmem:[#allocation2 + $0x8] sm:$0xff]
        %v2607 = vld [vmem:[#allocation2 + $0x18] sm:$0xff]
        %v2608 = vld [vmem:[#allocation2 + $0x20] sm:$0xff]
        %v2609 = vld [vmem:[#allocation2 + $0x30] sm:$0xff]
        %v2610 = vld [vmem:[#allocation2 + $0x38] sm:$0xff]
        %v2611 = vld [vmem:[#allocation2 + $0x48] sm:$0xff]
        %v2612 = vld [vmem:[#allocation2 + $0x50] sm:$0xff]
        %v2613 = vld [vmem:[#allocation2 + $0x60] sm:$0xff]
        %v2614 = vld [vmem:[#allocation2 + $0x68] sm:$0xff]
        %v2615 = vld [vmem:[#allocation2 + $0x78] sm:$0xff]
        %v2616 = vld [vmem:[#allocation2 + $0x80] sm:$0xff]
        %v2617 = vld [vmem:[#allocation2 + $0x90] sm:$0xff]
        %v2618 = vld [vmem:[#allocation2 + $0x98] sm:$0xff]
        %v2619 = vld [vmem:[#allocation2 + $0xa8] sm:$0xff]
        %v2620 = vld [vmem:[#allocation2 + $0xb0] sm:$0xff]
        %v2621 = vld [vmem:[#allocation2 + $0xc0] sm:$0xff]
        %v2622 = vld [vmem:[#allocation2 + $0xc8] sm:$0xff]
        %v2623 = vld [vmem:[#allocation2 + $0xd8] sm:$0xff]
        %v2624 = vld [vmem:[#allocation2 + $0xe0] sm:$0xff]
        %v2625 = vld [vmem:[#allocation2 + $0xf0] sm:$0xff]
        %v2626 = vld [vmem:[#allocation2 + $0xf8] sm:$0xff]
        %v2627 = vld [vmem:[#allocation2 + $0x108] sm:$0xff]
        %v2628 = vld [vmem:[#allocation2 + $0x110] sm:$0xff]
        %v2629 = vld [vmem:[#allocation2 + $0x120] sm:$0xff]
        %v2630 = vld [vmem:[#allocation2 + $0x128] sm:$0xff]
        %v2631 = vld [vmem:[#allocation2 + $0x138] sm:$0xff]
        %v2632 = vld [vmem:[#allocation2 + $0x140] sm:$0xff]
        %v2633 = vld [vmem:[#allocation2 + $0x150] sm:$0xff]
        %v2634 = vld [vmem:[#allocation2 + $0x158] sm:$0xff]
        %v2635 = vld [vmem:[#allocation2 + $0x168] sm:$0xff]
        %v2636 = vld [vmem:[#allocation2 + $0x170] sm:$0xff]
        %v2637 = vld [vmem:[#allocation2 + $0x1] sm:$0xff]
        %v2638 = vld [vmem:[#allocation2 + $0x9] sm:$0xff]
        %v2639 = vld [vmem:[#allocation2 + $0x19] sm:$0xff]
        %v2640 = vld [vmem:[#allocation2 + $0x21] sm:$0xff]
        %v2641 = vld [vmem:[#allocation2 + $0x31] sm:$0xff]
        %v2642 = vld [vmem:[#allocation2 + $0x39] sm:$0xff]
        %v2643 = vld [vmem:[#allocation2 + $0x49] sm:$0xff]
        %v2644 = vld [vmem:[#allocation2 + $0x51] sm:$0xff]
        %v2645 = vld [vmem:[#allocation2 + $0x61] sm:$0xff]
        %v2646 = vld [vmem:[#allocation2 + $0x69] sm:$0xff]
        %v2647 = vld [vmem:[#allocation2 + $0x79] sm:$0xff]
        %v2648 = vld [vmem:[#allocation2 + $0x81] sm:$0xff]
        %v2649 = vld [vmem:[#allocation2 + $0x91] sm:$0xff]
        %v2650 = vld [vmem:[#allocation2 + $0x99] sm:$0xff]
        %v2651 = vld [vmem:[#allocation2 + $0xa9] sm:$0xff]
        %v2652 = vld [vmem:[#allocation2 + $0xb1] sm:$0xff]
        %v2653 = vld [vmem:[#allocation2 + $0xc1] sm:$0xff]
        %v2654 = vld [vmem:[#allocation2 + $0xc9] sm:$0xff]
        %v2655 = vld [vmem:[#allocation2 + $0xd9] sm:$0xff]
        %v2656 = vld [vmem:[#allocation2 + $0xe1] sm:$0xff]
        %v2657 = vld [vmem:[#allocation2 + $0xf1] sm:$0xff]
        %v2658 = vld [vmem:[#allocation2 + $0xf9] sm:$0xff]
        %v2659 = vld [vmem:[#allocation2 + $0x109] sm:$0xff]
        %v2660 = vld [vmem:[#allocation2 + $0x111] sm:$0xff]
        %v2661 = vld [vmem:[#allocation2 + $0x121] sm:$0xff]
        %v2662 = vld [vmem:[#allocation2 + $0x129] sm:$0xff]
        %v2663 = vld [vmem:[#allocation2 + $0x139] sm:$0xff]
        %v2664 = vld [vmem:[#allocation2 + $0x141] sm:$0xff]
        %v2665 = vld [vmem:[#allocation2 + $0x151] sm:$0xff]
        %v2666 = vld [vmem:[#allocation2 + $0x159] sm:$0xff]
        %v2667 = vld [vmem:[#allocation2 + $0x169] sm:$0xff]
        %v2668 = vld [vmem:[#allocation2 + $0x171] sm:$0xff]
        %v2669 = vld [vmem:[#allocation2 + $0x2] sm:$0xff]
        %v2670 = vld [vmem:[#allocation2 + $0xa] sm:$0xff]
        %v2671 = vld [vmem:[#allocation2 + $0x1a] sm:$0xff]
        %v2672 = vld [vmem:[#allocation2 + $0x22] sm:$0xff]
        %v2673 = vld [vmem:[#allocation2 + $0x32] sm:$0xff]
        %v2674 = vld [vmem:[#allocation2 + $0x3a] sm:$0xff]
        %v2675 = vld [vmem:[#allocation2 + $0x4a] sm:$0xff]
        %v2676 = vld [vmem:[#allocation2 + $0x52] sm:$0xff]
        %v2677 = vld [vmem:[#allocation2 + $0x62] sm:$0xff]
        %v2678 = vld [vmem:[#allocation2 + $0x6a] sm:$0xff]
        %v2679 = vld [vmem:[#allocation2 + $0x7a] sm:$0xff]
        %v2680 = vld [vmem:[#allocation2 + $0x82] sm:$0xff]
        %v2681 = vld [vmem:[#allocation2 + $0x92] sm:$0xff]
        %v2682 = vld [vmem:[#allocation2 + $0x9a] sm:$0xff]
        %v2683 = vld [vmem:[#allocation2 + $0xaa] sm:$0xff]
        %v2684 = vld [vmem:[#allocation2 + $0xb2] sm:$0xff]
        %v2685 = vld [vmem:[#allocation2 + $0xc2] sm:$0xff]
        %v2686 = vld [vmem:[#allocation2 + $0xca] sm:$0xff]
        %v2687 = vld [vmem:[#allocation2 + $0xda] sm:$0xff]
        %v2688 = vld [vmem:[#allocation2 + $0xe2] sm:$0xff]
        %v2689 = vld [vmem:[#allocation2 + $0xf2] sm:$0xff]
        %v2690 = vld [vmem:[#allocation2 + $0xfa] sm:$0xff]
        %v2691 = vld [vmem:[#allocation2 + $0x10a] sm:$0xff]
        %v2692 = vld [vmem:[#allocation2 + $0x112] sm:$0xff]
        %v2693 = vld [vmem:[#allocation2 + $0x122] sm:$0xff]
        %v2694 = vld [vmem:[#allocation2 + $0x12a] sm:$0xff]
        %v2695 = vld [vmem:[#allocation2 + $0x13a] sm:$0xff]
        %v2696 = vld [vmem:[#allocation2 + $0x142] sm:$0xff]
        %v2697 = vld [vmem:[#allocation2 + $0x152] sm:$0xff]
        %v2698 = vld [vmem:[#allocation2 + $0x15a] sm:$0xff]
        %v2699 = vld [vmem:[#allocation2 + $0x16a] sm:$0xff]
        %v2700 = vld [vmem:[#allocation2 + $0x172] sm:$0xff]
        %v2701 = vld [vmem:[%s481] sm:$0xff]
        %v2702 = vld [vmem:[%s481 + $0x8] sm:$0xff]
        %v2703 = vld [vmem:[%s481 + $0x18] sm:$0xff]
        %v2704 = vld [vmem:[%s481 + $0x20] sm:$0xff]
        %v2705 = vld [vmem:[%s481 + $0x30] sm:$0xff]
        %v2706 = vld [vmem:[%s481 + $0x38] sm:$0xff]
        %v2707 = vld [vmem:[%s481 + $0x48] sm:$0xff]
        %v2708 = vld [vmem:[%s481 + $0x50] sm:$0xff]
        %v2709 = vld [vmem:[%s481 + $0x60] sm:$0xff]
        %v2710 = vld [vmem:[%s481 + $0x68] sm:$0xff]
        %v2711 = vld [vmem:[%s481 + $0x78] sm:$0xff]
        %v2712 = vld [vmem:[%s481 + $0x80] sm:$0xff]
        %v2713 = vld [vmem:[%s481 + $0x90] sm:$0xff]
        %v2714 = vld [vmem:[%s481 + $0x98] sm:$0xff]
        %v2715 = vld [vmem:[%s481 + $0xa8] sm:$0xff]
        %v2716 = vld [vmem:[%s481 + $0xb0] sm:$0xff]
        %v2717 = vld [vmem:[%s481 + $0xc0] sm:$0xff]
        %v2718 = vld [vmem:[%s481 + $0xc8] sm:$0xff]
        %v2719 = vld [vmem:[%s481 + $0xd8] sm:$0xff]
        %v2720 = vld [vmem:[%s481 + $0xe0] sm:$0xff]
        %v2721 = vld [vmem:[%s481 + $0xf0] sm:$0xff]
        %v2722 = vld [vmem:[%s481 + $0xf8] sm:$0xff]
        %v2723 = vld [vmem:[%s481 + $0x108] sm:$0xff]
        %v2724 = vld [vmem:[%s481 + $0x110] sm:$0xff]
        %v2725 = vld [vmem:[%s481 + $0x120] sm:$0xff]
        %v2726 = vld [vmem:[%s481 + $0x128] sm:$0xff]
        %v2727 = vld [vmem:[%s481 + $0x138] sm:$0xff]
        %v2728 = vld [vmem:[%s481 + $0x140] sm:$0xff]
        %v2729 = vld [vmem:[%s481 + $0x150] sm:$0xff]
        %v2730 = vld [vmem:[%s481 + $0x158] sm:$0xff]
        %v2731 = vld [vmem:[%s481 + $0x168] sm:$0xff]
        %v2732 = vld [vmem:[%s481 + $0x170] sm:$0xff]
        %v2733 = vld [vmem:[%s481 + $0x1] sm:$0xff]
        %v2734 = vld [vmem:[%s481 + $0x9] sm:$0xff]
        %v2735 = vld [vmem:[%s481 + $0x19] sm:$0xff]
        %v2736 = vld [vmem:[%s481 + $0x21] sm:$0xff]
        %v2737 = vld [vmem:[%s481 + $0x31] sm:$0xff]
        %v2738 = vld [vmem:[%s481 + $0x39] sm:$0xff]
        %v2739 = vld [vmem:[%s481 + $0x49] sm:$0xff]
        %v2740 = vld [vmem:[%s481 + $0x51] sm:$0xff]
        %v2741 = vld [vmem:[%s481 + $0x61] sm:$0xff]
        %v2742 = vld [vmem:[%s481 + $0x69] sm:$0xff]
        %v2743 = vld [vmem:[%s481 + $0x79] sm:$0xff]
        %v2744 = vld [vmem:[%s481 + $0x81] sm:$0xff]
        %v2745 = vld [vmem:[%s481 + $0x91] sm:$0xff]
        %v2746 = vld [vmem:[%s481 + $0x99] sm:$0xff]
        %v2747 = vld [vmem:[%s481 + $0xa9] sm:$0xff]
        %v2748 = vld [vmem:[%s481 + $0xb1] sm:$0xff]
        %v2749 = vld [vmem:[%s481 + $0xc1] sm:$0xff]
        %v2750 = vld [vmem:[%s481 + $0xc9] sm:$0xff]
        %v2751 = vld [vmem:[%s481 + $0xd9] sm:$0xff]
        %v2752 = vld [vmem:[%s481 + $0xe1] sm:$0xff]
        %v2753 = vld [vmem:[%s481 + $0xf1] sm:$0xff]
        %v2754 = vld [vmem:[%s481 + $0xf9] sm:$0xff]
        %v2755 = vld [vmem:[%s481 + $0x109] sm:$0xff]
        %v2756 = vld [vmem:[%s481 + $0x111] sm:$0xff]
        %v2757 = vld [vmem:[%s481 + $0x121] sm:$0xff]
        %v2758 = vld [vmem:[%s481 + $0x129] sm:$0xff]
        %v2759 = vld [vmem:[%s481 + $0x139] sm:$0xff]
        %v2760 = vld [vmem:[%s481 + $0x141] sm:$0xff]
        %v2761 = vld [vmem:[%s481 + $0x151] sm:$0xff]
        %v2762 = vld [vmem:[%s481 + $0x159] sm:$0xff]
        %v2763 = vld [vmem:[%s481 + $0x169] sm:$0xff]
        %v2764 = vld [vmem:[%s481 + $0x171] sm:$0xff]
        %v2765 = vld [vmem:[%s481 + $0x2] sm:$0xff]
        %v2766 = vld [vmem:[%s481 + $0xa] sm:$0xff]
        %v2767 = vld [vmem:[%s481 + $0x1a] sm:$0xff]
        %v2768 = vld [vmem:[%s481 + $0x22] sm:$0xff]
        %v2769 = vld [vmem:[%s481 + $0x32] sm:$0xff]
        %v2770 = vld [vmem:[%s481 + $0x3a] sm:$0xff]
        %v2771 = vld [vmem:[%s481 + $0x4a] sm:$0xff]
        %v2772 = vld [vmem:[%s481 + $0x52] sm:$0xff]
        %v2773 = vld [vmem:[%s481 + $0x62] sm:$0xff]
        %v2774 = vld [vmem:[%s481 + $0x6a] sm:$0xff]
        %v2775 = vld [vmem:[%s481 + $0x7a] sm:$0xff]
        %v2776 = vld [vmem:[%s481 + $0x82] sm:$0xff]
        %v2777 = vld [vmem:[%s481 + $0x92] sm:$0xff]
        %v2778 = vld [vmem:[%s481 + $0x9a] sm:$0xff]
        %v2779 = vld [vmem:[%s481 + $0xaa] sm:$0xff]
        %v2780 = vld [vmem:[%s481 + $0xb2] sm:$0xff]
        %v2781 = vld [vmem:[%s481 + $0xc2] sm:$0xff]
        %v2782 = vld [vmem:[%s481 + $0xca] sm:$0xff]
        %v2783 = vld [vmem:[%s481 + $0xda] sm:$0xff]
        %v2784 = vld [vmem:[%s481 + $0xe2] sm:$0xff]
        %v2785 = vld [vmem:[%s481 + $0xf2] sm:$0xff]
        %v2786 = vld [vmem:[%s481 + $0xfa] sm:$0xff]
        %v2787 = vld [vmem:[%s481 + $0x10a] sm:$0xff]
        %v2788 = vld [vmem:[%s481 + $0x112] sm:$0xff]
        %v2789 = vld [vmem:[%s481 + $0x122] sm:$0xff]
        %v2790 = vld [vmem:[%s481 + $0x12a] sm:$0xff]
        %v2791 = vld [vmem:[%s481 + $0x13a] sm:$0xff]
        %v2792 = vld [vmem:[%s481 + $0x142] sm:$0xff]
        %v2793 = vld [vmem:[%s481 + $0x152] sm:$0xff]
        %v2794 = vld [vmem:[%s481 + $0x15a] sm:$0xff]
        %v2795 = vld [vmem:[%s481 + $0x16a] sm:$0xff]
        %v2796 = vld [vmem:[%s481 + $0x172] sm:$0xff]
        %v2797 = vld [vmem:[%s785] sm:$0xff]
        %v2798 = vld [vmem:[%s785 + $0x8] sm:$0xff]
        %v2799 = vld [vmem:[%s785 + $0x18] sm:$0xff]
        %v2800 = vld [vmem:[%s785 + $0x20] sm:$0xff]
        %v2801 = vld [vmem:[%s785 + $0x30] sm:$0xff]
        %v2802 = vld [vmem:[%s785 + $0x38] sm:$0xff]
        %v2803 = vld [vmem:[%s785 + $0x48] sm:$0xff]
        %v2804 = vld [vmem:[%s785 + $0x50] sm:$0xff]
        %v2805 = vld [vmem:[%s785 + $0x60] sm:$0xff]
        %v2806 = vld [vmem:[%s785 + $0x68] sm:$0xff]
        %v2807 = vld [vmem:[%s785 + $0x78] sm:$0xff]
        %v2808 = vld [vmem:[%s785 + $0x80] sm:$0xff]
        %v2809 = vld [vmem:[%s785 + $0x90] sm:$0xff]
        %v2810 = vld [vmem:[%s785 + $0x98] sm:$0xff]
        %v2811 = vld [vmem:[%s785 + $0xa8] sm:$0xff]
        %v2812 = vld [vmem:[%s785 + $0xb0] sm:$0xff]
        %v2813 = vld [vmem:[%s785 + $0xc0] sm:$0xff]
        %v2814 = vld [vmem:[%s785 + $0xc8] sm:$0xff]
        %v2815 = vld [vmem:[%s785 + $0xd8] sm:$0xff]
        %v2816 = vld [vmem:[%s785 + $0xe0] sm:$0xff]
        %v2817 = vld [vmem:[%s785 + $0xf0] sm:$0xff]
        %v2818 = vld [vmem:[%s785 + $0xf8] sm:$0xff]
        %v2819 = vld [vmem:[%s785 + $0x108] sm:$0xff]
        %v2820 = vld [vmem:[%s785 + $0x110] sm:$0xff]
        %v2821 = vld [vmem:[%s785 + $0x120] sm:$0xff]
        %v2822 = vld [vmem:[%s785 + $0x128] sm:$0xff]
        %v2823 = vld [vmem:[%s785 + $0x138] sm:$0xff]
        %v2824 = vld [vmem:[%s785 + $0x140] sm:$0xff]
        %v2825 = vld [vmem:[%s785 + $0x150] sm:$0xff]
        %v2826 = vld [vmem:[%s785 + $0x158] sm:$0xff]
        %v2827 = vld [vmem:[%s785 + $0x168] sm:$0xff]
        %v2828 = vld [vmem:[%s785 + $0x170] sm:$0xff]
        %v2829 = vld [vmem:[%s785 + $0x1] sm:$0xff]
        %v2830 = vld [vmem:[%s785 + $0x9] sm:$0xff]
        %v2831 = vld [vmem:[%s785 + $0x19] sm:$0xff]
        %v2832 = vld [vmem:[%s785 + $0x21] sm:$0xff]
        %v2833 = vld [vmem:[%s785 + $0x31] sm:$0xff]
        %v2834 = vld [vmem:[%s785 + $0x39] sm:$0xff]
        %v2835 = vld [vmem:[%s785 + $0x49] sm:$0xff]
        %v2836 = vld [vmem:[%s785 + $0x51] sm:$0xff]
        %v2837 = vld [vmem:[%s785 + $0x61] sm:$0xff]
        %v2838 = vld [vmem:[%s785 + $0x69] sm:$0xff]
        %v2839 = vld [vmem:[%s785 + $0x79] sm:$0xff]
        %v2840 = vld [vmem:[%s785 + $0x81] sm:$0xff]
        %v2841 = vld [vmem:[%s785 + $0x91] sm:$0xff]
        %v2842 = vld [vmem:[%s785 + $0x99] sm:$0xff]
        %v2843 = vld [vmem:[%s785 + $0xa9] sm:$0xff]
        %v2844 = vld [vmem:[%s785 + $0xb1] sm:$0xff]
        %v2845 = vld [vmem:[%s785 + $0xc1] sm:$0xff]
        %v2846 = vld [vmem:[%s785 + $0xc9] sm:$0xff]
        %v2847 = vld [vmem:[%s785 + $0xd9] sm:$0xff]
        %v2848 = vld [vmem:[%s785 + $0xe1] sm:$0xff]
        %v2849 = vld [vmem:[%s785 + $0xf1] sm:$0xff]
        %v2850 = vld [vmem:[%s785 + $0xf9] sm:$0xff]
        %v2851 = vld [vmem:[%s785 + $0x109] sm:$0xff]
        %v2852 = vld [vmem:[%s785 + $0x111] sm:$0xff]
        %v2853 = vld [vmem:[%s785 + $0x121] sm:$0xff]
        %v2854 = vld [vmem:[%s785 + $0x129] sm:$0xff]
        %v2855 = vld [vmem:[%s785 + $0x139] sm:$0xff]
        %v2856 = vld [vmem:[%s785 + $0x141] sm:$0xff]
        %v2857 = vld [vmem:[%s785 + $0x151] sm:$0xff]
        %v2858 = vld [vmem:[%s785 + $0x159] sm:$0xff]
        %v2859 = vld [vmem:[%s785 + $0x169] sm:$0xff]
        %v2860 = vld [vmem:[%s785 + $0x171] sm:$0xff]
        %v2861 = vld [vmem:[%s785 + $0x2] sm:$0xff]
        %v2862 = vld [vmem:[%s785 + $0xa] sm:$0xff]
        %v2863 = vld [vmem:[%s785 + $0x1a] sm:$0xff]
        %v2864 = vld [vmem:[%s785 + $0x22] sm:$0xff]
        %v2865 = vld [vmem:[%s785 + $0x32] sm:$0xff]
        %v2866 = vld [vmem:[%s785 + $0x3a] sm:$0xff]
        %v2867 = vld [vmem:[%s785 + $0x4a] sm:$0xff]
        %v2868 = vld [vmem:[%s785 + $0x52] sm:$0xff]
        %v2869 = vld [vmem:[%s785 + $0x62] sm:$0xff]
        %v2870 = vld [vmem:[%s785 + $0x6a] sm:$0xff]
        %v2871 = vld [vmem:[%s785 + $0x7a] sm:$0xff]
        %v2872 = vld [vmem:[%s785 + $0x82] sm:$0xff]
        %v2873 = vld [vmem:[%s785 + $0x92] sm:$0xff]
        %v2874 = vld [vmem:[%s785 + $0x9a] sm:$0xff]
        %v2875 = vld [vmem:[%s785 + $0xaa] sm:$0xff]
        %v2876 = vld [vmem:[%s785 + $0xb2] sm:$0xff]
        %v2877 = vld [vmem:[%s785 + $0xc2] sm:$0xff]
        %v2878 = vld [vmem:[%s785 + $0xca] sm:$0xff]
        %v2879 = vld [vmem:[%s785 + $0xda] sm:$0xff]
        %v2880 = vld [vmem:[%s785 + $0xe2] sm:$0xff]
        %v2881 = vld [vmem:[%s785 + $0xf2] sm:$0xff]
        %v2882 = vld [vmem:[%s785 + $0xfa] sm:$0xff]
        %v2883 = vld [vmem:[%s785 + $0x10a] sm:$0xff]
        %v2884 = vld [vmem:[%s785 + $0x112] sm:$0xff]
        %v2885 = vld [vmem:[%s785 + $0x122] sm:$0xff]
        %v2886 = vld [vmem:[%s785 + $0x12a] sm:$0xff]
        %v2887 = vld [vmem:[%s785 + $0x13a] sm:$0xff]
        %v2888 = vld [vmem:[%s785 + $0x142] sm:$0xff]
        %v2889 = vld [vmem:[%s785 + $0x152] sm:$0xff]
        %v2890 = vld [vmem:[%s785 + $0x15a] sm:$0xff]
        %v2891 = vld [vmem:[%s785 + $0x16a] sm:$0xff]
        %v2892 = vld [vmem:[%s785 + $0x172] sm:$0xff]
        %2925 = vrot.lane.b32.xlu0 %v2637, 32
        %v2926 = vpop.permute.xlu0 %2925
        %2927 = vrot.lane.b32.xlu0 %v2638, 32
        %v2928 = vpop.permute.xlu0 %2927
        %2929 = vrot.lane.b32.xlu0 %v2639, 32
        %v2930 = vpop.permute.xlu0 %2929
        %2931 = vrot.lane.b32.xlu0 %v2640, 32
        %v2932 = vpop.permute.xlu0 %2931
        %2933 = vrot.lane.b32.xlu0 %v2641, 32
        %v2934 = vpop.permute.xlu0 %2933
        %2935 = vrot.lane.b32.xlu0 %v2642, 32
        %v2936 = vpop.permute.xlu0 %2935
        %2937 = vrot.lane.b32.xlu0 %v2643, 32
        %v2938 = vpop.permute.xlu0 %2937
        %2939 = vrot.lane.b32.xlu0 %v2644, 32
        %v2940 = vpop.permute.xlu0 %2939
        %2941 = vrot.lane.b32.xlu0 %v2645, 32
        %v2942 = vpop.permute.xlu0 %2941
        %2943 = vrot.lane.b32.xlu0 %v2646, 32
        %v2944 = vpop.permute.xlu0 %2943
        %2945 = vrot.lane.b32.xlu0 %v2647, 32
        %v2946 = vpop.permute.xlu0 %2945
        %2947 = vrot.lane.b32.xlu0 %v2648, 32
        %v2948 = vpop.permute.xlu0 %2947
        %2949 = vrot.lane.b32.xlu0 %v2649, 32
        %v2950 = vpop.permute.xlu0 %2949
        %2951 = vrot.lane.b32.xlu0 %v2650, 32
        %v2952 = vpop.permute.xlu0 %2951
        %2953 = vrot.lane.b32.xlu0 %v2651, 32
        %v2954 = vpop.permute.xlu0 %2953
        %2955 = vrot.lane.b32.xlu0 %v2652, 32
        %v2956 = vpop.permute.xlu0 %2955
        %2957 = vrot.lane.b32.xlu0 %v2653, 32
        %v2958 = vpop.permute.xlu0 %2957
        %2959 = vrot.lane.b32.xlu0 %v2654, 32
        %v2960 = vpop.permute.xlu0 %2959
        %2961 = vrot.lane.b32.xlu0 %v2655, 32
        %v2962 = vpop.permute.xlu0 %2961
        %2963 = vrot.lane.b32.xlu0 %v2656, 32
        %v2964 = vpop.permute.xlu0 %2963
        %2965 = vrot.lane.b32.xlu0 %v2657, 32
        %v2966 = vpop.permute.xlu0 %2965
        %2967 = vrot.lane.b32.xlu0 %v2658, 32
        %v2968 = vpop.permute.xlu0 %2967
        %2969 = vrot.lane.b32.xlu0 %v2659, 32
        %v2970 = vpop.permute.xlu0 %2969
        %2971 = vrot.lane.b32.xlu0 %v2660, 32
        %v2972 = vpop.permute.xlu0 %2971
        %2973 = vrot.lane.b32.xlu0 %v2661, 32
        %v2974 = vpop.permute.xlu0 %2973
        %2975 = vrot.lane.b32.xlu0 %v2662, 32
        %v2976 = vpop.permute.xlu0 %2975
        %2977 = vrot.lane.b32.xlu0 %v2663, 32
        %v2978 = vpop.permute.xlu0 %2977
        %2979 = vrot.lane.b32.xlu0 %v2664, 32
        %v2980 = vpop.permute.xlu0 %2979
        %2981 = vrot.lane.b32.xlu0 %v2665, 32
        %v2982 = vpop.permute.xlu0 %2981
        %2983 = vrot.lane.b32.xlu0 %v2666, 32
        %v2984 = vpop.permute.xlu0 %2983
        %2985 = vrot.lane.b32.xlu0 %v2667, 32
        %v2986 = vpop.permute.xlu0 %2985
        %2987 = vrot.lane.b32.xlu0 %v2668, 32
        %v2988 = vpop.permute.xlu0 %2987
        %3053 = vrot.lane.b32.xlu0 %v2669, 64
        %v3054 = vpop.permute.xlu0 %3053
        %3055 = vrot.lane.b32.xlu0 %v2670, 64
        %v3056 = vpop.permute.xlu0 %3055
        %3057 = vrot.lane.b32.xlu0 %v2671, 64
        %v3058 = vpop.permute.xlu0 %3057
        %3059 = vrot.lane.b32.xlu0 %v2672, 64
        %v3060 = vpop.permute.xlu0 %3059
        %3061 = vrot.lane.b32.xlu0 %v2673, 64
        %v3062 = vpop.permute.xlu0 %3061
        %3063 = vrot.lane.b32.xlu0 %v2674, 64
        %v3064 = vpop.permute.xlu0 %3063
        %3065 = vrot.lane.b32.xlu0 %v2675, 64
        %v3066 = vpop.permute.xlu0 %3065
        %3067 = vrot.lane.b32.xlu0 %v2676, 64
        %v3068 = vpop.permute.xlu0 %3067
        %3069 = vrot.lane.b32.xlu0 %v2677, 64
        %v3070 = vpop.permute.xlu0 %3069
        %3071 = vrot.lane.b32.xlu0 %v2678, 64
        %v3072 = vpop.permute.xlu0 %3071
        %3073 = vrot.lane.b32.xlu0 %v2679, 64
        %v3074 = vpop.permute.xlu0 %3073
        %3075 = vrot.lane.b32.xlu0 %v2680, 64
        %v3076 = vpop.permute.xlu0 %3075
        %3077 = vrot.lane.b32.xlu0 %v2681, 64
        %v3078 = vpop.permute.xlu0 %3077
        %3079 = vrot.lane.b32.xlu0 %v2682, 64
        %v3080 = vpop.permute.xlu0 %3079
        %3081 = vrot.lane.b32.xlu0 %v2683, 64
        %v3082 = vpop.permute.xlu0 %3081
        %3083 = vrot.lane.b32.xlu0 %v2684, 64
        %v3084 = vpop.permute.xlu0 %3083
        %3085 = vrot.lane.b32.xlu0 %v2685, 64
        %v3086 = vpop.permute.xlu0 %3085
        %3087 = vrot.lane.b32.xlu0 %v2686, 64
        %v3088 = vpop.permute.xlu0 %3087
        %3089 = vrot.lane.b32.xlu0 %v2687, 64
        %v3090 = vpop.permute.xlu0 %3089
        %3091 = vrot.lane.b32.xlu0 %v2688, 64
        %v3092 = vpop.permute.xlu0 %3091
        %3093 = vrot.lane.b32.xlu0 %v2689, 64
        %v3094 = vpop.permute.xlu0 %3093
        %3095 = vrot.lane.b32.xlu0 %v2690, 64
        %v3096 = vpop.permute.xlu0 %3095
        %3097 = vrot.lane.b32.xlu0 %v2691, 64
        %v3098 = vpop.permute.xlu0 %3097
        %3099 = vrot.lane.b32.xlu0 %v2692, 64
        %v3100 = vpop.permute.xlu0 %3099
        %3101 = vrot.lane.b32.xlu0 %v2693, 64
        %v3102 = vpop.permute.xlu0 %3101
        %3103 = vrot.lane.b32.xlu0 %v2694, 64
        %v3104 = vpop.permute.xlu0 %3103
        %3105 = vrot.lane.b32.xlu0 %v2695, 64
        %v3106 = vpop.permute.xlu0 %3105
        %3107 = vrot.lane.b32.xlu0 %v2696, 64
        %v3108 = vpop.permute.xlu0 %3107
        %3109 = vrot.lane.b32.xlu0 %v2697, 64
        %v3110 = vpop.permute.xlu0 %3109
        %3111 = vrot.lane.b32.xlu0 %v2698, 64
        %v3112 = vpop.permute.xlu0 %3111
        %3113 = vrot.lane.b32.xlu0 %v2699, 64
        %v3114 = vpop.permute.xlu0 %3113
        %3115 = vrot.lane.b32.xlu0 %v2700, 64
        %v3116 = vpop.permute.xlu0 %3115
        %3181 = vrot.lane.b32.xlu0 %v2701, 96
        %v3182 = vpop.permute.xlu0 %3181
        %3183 = vrot.lane.b32.xlu0 %v2702, 96
        %v3184 = vpop.permute.xlu0 %3183
        %3185 = vrot.lane.b32.xlu0 %v2703, 96
        %v3186 = vpop.permute.xlu0 %3185
        %3187 = vrot.lane.b32.xlu0 %v2704, 96
        %v3188 = vpop.permute.xlu0 %3187
        %3189 = vrot.lane.b32.xlu0 %v2705, 96
        %v3190 = vpop.permute.xlu0 %3189
        %3191 = vrot.lane.b32.xlu0 %v2706, 96
        %v3192 = vpop.permute.xlu0 %3191
        %3193 = vrot.lane.b32.xlu0 %v2707, 96
        %v3194 = vpop.permute.xlu0 %3193
        %3195 = vrot.lane.b32.xlu0 %v2708, 96
        %v3196 = vpop.permute.xlu0 %3195
        %3197 = vrot.lane.b32.xlu0 %v2709, 96
        %v3198 = vpop.permute.xlu0 %3197
        %3199 = vrot.lane.b32.xlu0 %v2710, 96
        %v3200 = vpop.permute.xlu0 %3199
        %3201 = vrot.lane.b32.xlu0 %v2711, 96
        %v3202 = vpop.permute.xlu0 %3201
        %3203 = vrot.lane.b32.xlu0 %v2712, 96
        %v3204 = vpop.permute.xlu0 %3203
        %3205 = vrot.lane.b32.xlu0 %v2713, 96
        %v3206 = vpop.permute.xlu0 %3205
        %3207 = vrot.lane.b32.xlu0 %v2714, 96
        %v3208 = vpop.permute.xlu0 %3207
        %3209 = vrot.lane.b32.xlu0 %v2715, 96
        %v3210 = vpop.permute.xlu0 %3209
        %3211 = vrot.lane.b32.xlu0 %v2716, 96
        %v3212 = vpop.permute.xlu0 %3211
        %3213 = vrot.lane.b32.xlu0 %v2717, 96
        %v3214 = vpop.permute.xlu0 %3213
        %3215 = vrot.lane.b32.xlu0 %v2718, 96
        %v3216 = vpop.permute.xlu0 %3215
        %3217 = vrot.lane.b32.xlu0 %v2719, 96
        %v3218 = vpop.permute.xlu0 %3217
        %3219 = vrot.lane.b32.xlu0 %v2720, 96
        %v3220 = vpop.permute.xlu0 %3219
        %3221 = vrot.lane.b32.xlu0 %v2721, 96
        %v3222 = vpop.permute.xlu0 %3221
        %3223 = vrot.lane.b32.xlu0 %v2722, 96
        %v3224 = vpop.permute.xlu0 %3223
        %3225 = vrot.lane.b32.xlu0 %v2723, 96
        %v3226 = vpop.permute.xlu0 %3225
        %3227 = vrot.lane.b32.xlu0 %v2724, 96
        %v3228 = vpop.permute.xlu0 %3227
        %3229 = vrot.lane.b32.xlu0 %v2725, 96
        %v3230 = vpop.permute.xlu0 %3229
        %3231 = vrot.lane.b32.xlu0 %v2726, 96
        %v3232 = vpop.permute.xlu0 %3231
        %3233 = vrot.lane.b32.xlu0 %v2727, 96
        %v3234 = vpop.permute.xlu0 %3233
        %3235 = vrot.lane.b32.xlu0 %v2728, 96
        %v3236 = vpop.permute.xlu0 %3235
        %3237 = vrot.lane.b32.xlu0 %v2729, 96
        %v3238 = vpop.permute.xlu0 %3237
        %3239 = vrot.lane.b32.xlu0 %v2730, 96
        %v3240 = vpop.permute.xlu0 %3239
        %3241 = vrot.lane.b32.xlu0 %v2731, 96
        %v3242 = vpop.permute.xlu0 %3241
        %3243 = vrot.lane.b32.xlu0 %v2732, 96
        %v3244 = vpop.permute.xlu0 %3243
        %3309 = vrot.lane.b32.xlu0 %v2765, 32
        %v3310 = vpop.permute.xlu0 %3309
        %3311 = vrot.lane.b32.xlu0 %v2766, 32
        %v3312 = vpop.permute.xlu0 %3311
        %3313 = vrot.lane.b32.xlu0 %v2767, 32
        %v3314 = vpop.permute.xlu0 %3313
        %3315 = vrot.lane.b32.xlu0 %v2768, 32
        %v3316 = vpop.permute.xlu0 %3315
        %3317 = vrot.lane.b32.xlu0 %v2769, 32
        %v3318 = vpop.permute.xlu0 %3317
        %3319 = vrot.lane.b32.xlu0 %v2770, 32
        %v3320 = vpop.permute.xlu0 %3319
        %3321 = vrot.lane.b32.xlu0 %v2771, 32
        %v3322 = vpop.permute.xlu0 %3321
        %3323 = vrot.lane.b32.xlu0 %v2772, 32
        %v3324 = vpop.permute.xlu0 %3323
        %3325 = vrot.lane.b32.xlu0 %v2773, 32
        %v3326 = vpop.permute.xlu0 %3325
        %3327 = vrot.lane.b32.xlu0 %v2774, 32
        %v3328 = vpop.permute.xlu0 %3327
        %3329 = vrot.lane.b32.xlu0 %v2775, 32
        %v3330 = vpop.permute.xlu0 %3329
        %3331 = vrot.lane.b32.xlu0 %v2776, 32
        %v3332 = vpop.permute.xlu0 %3331
        %3333 = vrot.lane.b32.xlu0 %v2777, 32
        %v3334 = vpop.permute.xlu0 %3333
        %3335 = vrot.lane.b32.xlu0 %v2778, 32
        %v3336 = vpop.permute.xlu0 %3335
        %3337 = vrot.lane.b32.xlu0 %v2779, 32
        %v3338 = vpop.permute.xlu0 %3337
        %3339 = vrot.lane.b32.xlu0 %v2780, 32
        %v3340 = vpop.permute.xlu0 %3339
        %3341 = vrot.lane.b32.xlu0 %v2781, 32
        %v3342 = vpop.permute.xlu0 %3341
        %3343 = vrot.lane.b32.xlu0 %v2782, 32
        %v3344 = vpop.permute.xlu0 %3343
        %3345 = vrot.lane.b32.xlu0 %v2783, 32
        %v3346 = vpop.permute.xlu0 %3345
        %3347 = vrot.lane.b32.xlu0 %v2784, 32
        %v3348 = vpop.permute.xlu0 %3347
        %3349 = vrot.lane.b32.xlu0 %v2785, 32
        %v3350 = vpop.permute.xlu0 %3349
        %3351 = vrot.lane.b32.xlu0 %v2786, 32
        %v3352 = vpop.permute.xlu0 %3351
        %3353 = vrot.lane.b32.xlu0 %v2787, 32
        %v3354 = vpop.permute.xlu0 %3353
        %3355 = vrot.lane.b32.xlu0 %v2788, 32
        %v3356 = vpop.permute.xlu0 %3355
        %3357 = vrot.lane.b32.xlu0 %v2789, 32
        %v3358 = vpop.permute.xlu0 %3357
        %3359 = vrot.lane.b32.xlu0 %v2790, 32
        %v3360 = vpop.permute.xlu0 %3359
        %3361 = vrot.lane.b32.xlu0 %v2791, 32
        %v3362 = vpop.permute.xlu0 %3361
        %3363 = vrot.lane.b32.xlu0 %v2792, 32
        %v3364 = vpop.permute.xlu0 %3363
        %3365 = vrot.lane.b32.xlu0 %v2793, 32
        %v3366 = vpop.permute.xlu0 %3365
        %3367 = vrot.lane.b32.xlu0 %v2794, 32
        %v3368 = vpop.permute.xlu0 %3367
        %3369 = vrot.lane.b32.xlu0 %v2795, 32
        %v3370 = vpop.permute.xlu0 %3369
        %3371 = vrot.lane.b32.xlu0 %v2796, 32
        %v3372 = vpop.permute.xlu0 %3371
        %3437 = vrot.lane.b32.xlu0 %v2797, 64
        %v3438 = vpop.permute.xlu0 %3437
        %3439 = vrot.lane.b32.xlu0 %v2798, 64
        %v3440 = vpop.permute.xlu0 %3439
        %3441 = vrot.lane.b32.xlu0 %v2799, 64
        %v3442 = vpop.permute.xlu0 %3441
        %3443 = vrot.lane.b32.xlu0 %v2800, 64
        %v3444 = vpop.permute.xlu0 %3443
        %3445 = vrot.lane.b32.xlu0 %v2801, 64
        %v3446 = vpop.permute.xlu0 %3445
        %3447 = vrot.lane.b32.xlu0 %v2802, 64
        %v3448 = vpop.permute.xlu0 %3447
        %3449 = vrot.lane.b32.xlu0 %v2803, 64
        %v3450 = vpop.permute.xlu0 %3449
        %3451 = vrot.lane.b32.xlu0 %v2804, 64
        %v3452 = vpop.permute.xlu0 %3451
        %3453 = vrot.lane.b32.xlu0 %v2805, 64
        %v3454 = vpop.permute.xlu0 %3453
        %3455 = vrot.lane.b32.xlu0 %v2806, 64
        %v3456 = vpop.permute.xlu0 %3455
        %3457 = vrot.lane.b32.xlu0 %v2807, 64
        %v3458 = vpop.permute.xlu0 %3457
        %3459 = vrot.lane.b32.xlu0 %v2808, 64
        %v3460 = vpop.permute.xlu0 %3459
        %3461 = vrot.lane.b32.xlu0 %v2809, 64
        %v3462 = vpop.permute.xlu0 %3461
        %3463 = vrot.lane.b32.xlu0 %v2810, 64
        %v3464 = vpop.permute.xlu0 %3463
        %3465 = vrot.lane.b32.xlu0 %v2811, 64
        %v3466 = vpop.permute.xlu0 %3465
        %3467 = vrot.lane.b32.xlu0 %v2812, 64
        %v3468 = vpop.permute.xlu0 %3467
        %3469 = vrot.lane.b32.xlu0 %v2813, 64
        %v3470 = vpop.permute.xlu0 %3469
        %3471 = vrot.lane.b32.xlu0 %v2814, 64
        %v3472 = vpop.permute.xlu0 %3471
        %3473 = vrot.lane.b32.xlu0 %v2815, 64
        %v3474 = vpop.permute.xlu0 %3473
        %3475 = vrot.lane.b32.xlu0 %v2816, 64
        %v3476 = vpop.permute.xlu0 %3475
        %3477 = vrot.lane.b32.xlu0 %v2817, 64
        %v3478 = vpop.permute.xlu0 %3477
        %3479 = vrot.lane.b32.xlu0 %v2818, 64
        %v3480 = vpop.permute.xlu0 %3479
        %3481 = vrot.lane.b32.xlu0 %v2819, 64
        %v3482 = vpop.permute.xlu0 %3481
        %3483 = vrot.lane.b32.xlu0 %v2820, 64
        %v3484 = vpop.permute.xlu0 %3483
        %3485 = vrot.lane.b32.xlu0 %v2821, 64
        %v3486 = vpop.permute.xlu0 %3485
        %3487 = vrot.lane.b32.xlu0 %v2822, 64
        %v3488 = vpop.permute.xlu0 %3487
        %3489 = vrot.lane.b32.xlu0 %v2823, 64
        %v3490 = vpop.permute.xlu0 %3489
        %3491 = vrot.lane.b32.xlu0 %v2824, 64
        %v3492 = vpop.permute.xlu0 %3491
        %3493 = vrot.lane.b32.xlu0 %v2825, 64
        %v3494 = vpop.permute.xlu0 %3493
        %3495 = vrot.lane.b32.xlu0 %v2826, 64
        %v3496 = vpop.permute.xlu0 %3495
        %3497 = vrot.lane.b32.xlu0 %v2827, 64
        %v3498 = vpop.permute.xlu0 %3497
        %3499 = vrot.lane.b32.xlu0 %v2828, 64
        %v3500 = vpop.permute.xlu0 %3499
        %3565 = vrot.lane.b32.xlu0 %v2829, 96
        %v3566 = vpop.permute.xlu0 %3565
        %3567 = vrot.lane.b32.xlu0 %v2830, 96
        %v3568 = vpop.permute.xlu0 %3567
        %3569 = vrot.lane.b32.xlu0 %v2831, 96
        %v3570 = vpop.permute.xlu0 %3569
        %3571 = vrot.lane.b32.xlu0 %v2832, 96
        %v3572 = vpop.permute.xlu0 %3571
        %3573 = vrot.lane.b32.xlu0 %v2833, 96
        %v3574 = vpop.permute.xlu0 %3573
        %3575 = vrot.lane.b32.xlu0 %v2834, 96
        %v3576 = vpop.permute.xlu0 %3575
        %3577 = vrot.lane.b32.xlu0 %v2835, 96
        %v3578 = vpop.permute.xlu0 %3577
        %3579 = vrot.lane.b32.xlu0 %v2836, 96
        %v3580 = vpop.permute.xlu0 %3579
        %3581 = vrot.lane.b32.xlu0 %v2837, 96
        %v3582 = vpop.permute.xlu0 %3581
        %3583 = vrot.lane.b32.xlu0 %v2838, 96
        %v3584 = vpop.permute.xlu0 %3583
        %3585 = vrot.lane.b32.xlu0 %v2839, 96
        %v3586 = vpop.permute.xlu0 %3585
        %3587 = vrot.lane.b32.xlu0 %v2840, 96
        %v3588 = vpop.permute.xlu0 %3587
        %3589 = vrot.lane.b32.xlu0 %v2841, 96
        %v3590 = vpop.permute.xlu0 %3589
        %3591 = vrot.lane.b32.xlu0 %v2842, 96
        %v3592 = vpop.permute.xlu0 %3591
        %3593 = vrot.lane.b32.xlu0 %v2843, 96
        %v3594 = vpop.permute.xlu0 %3593
        %3595 = vrot.lane.b32.xlu0 %v2844, 96
        %v3596 = vpop.permute.xlu0 %3595
        %3597 = vrot.lane.b32.xlu0 %v2845, 96
        %v3598 = vpop.permute.xlu0 %3597
        %3599 = vrot.lane.b32.xlu0 %v2846, 96
        %v3600 = vpop.permute.xlu0 %3599
        %3601 = vrot.lane.b32.xlu0 %v2847, 96
        %v3602 = vpop.permute.xlu0 %3601
        %3603 = vrot.lane.b32.xlu0 %v2848, 96
        %v3604 = vpop.permute.xlu0 %3603
        %3605 = vrot.lane.b32.xlu0 %v2849, 96
        %v3606 = vpop.permute.xlu0 %3605
        %3607 = vrot.lane.b32.xlu0 %v2850, 96
        %v3608 = vpop.permute.xlu0 %3607
        %3609 = vrot.lane.b32.xlu0 %v2851, 96
        %v3610 = vpop.permute.xlu0 %3609
        %3611 = vrot.lane.b32.xlu0 %v2852, 96
        %v3612 = vpop.permute.xlu0 %3611
        %3613 = vrot.lane.b32.xlu0 %v2853, 96
        %v3614 = vpop.permute.xlu0 %3613
        %3615 = vrot.lane.b32.xlu0 %v2854, 96
        %v3616 = vpop.permute.xlu0 %3615
        %3617 = vrot.lane.b32.xlu0 %v2855, 96
        %v3618 = vpop.permute.xlu0 %3617
        %3619 = vrot.lane.b32.xlu0 %v2856, 96
        %v3620 = vpop.permute.xlu0 %3619
        %3621 = vrot.lane.b32.xlu0 %v2857, 96
        %v3622 = vpop.permute.xlu0 %3621
        %3623 = vrot.lane.b32.xlu0 %v2858, 96
        %v3624 = vpop.permute.xlu0 %3623
        %3625 = vrot.lane.b32.xlu0 %v2859, 96
        %v3626 = vpop.permute.xlu0 %3625
        %3627 = vrot.lane.b32.xlu0 %v2860, 96
        %v3628 = vpop.permute.xlu0 %3627
        %v3661 = vsel %vm482, %v2605, %v2926
        %v3662 = vsel %vm482, %v2606, %v2928
        %v3663 = vsel %vm482, %v2607, %v2930
        %v3664 = vsel %vm482, %v2608, %v2932
        %v3665 = vsel %vm482, %v2609, %v2934
        %v3666 = vsel %vm482, %v2610, %v2936
        %v3667 = vsel %vm482, %v2611, %v2938
        %v3668 = vsel %vm482, %v2612, %v2940
        %v3669 = vsel %vm482, %v2613, %v2942
        %v3670 = vsel %vm482, %v2614, %v2944
        %v3671 = vsel %vm482, %v2615, %v2946
        %v3672 = vsel %vm482, %v2616, %v2948
        %v3673 = vsel %vm482, %v2617, %v2950
        %v3674 = vsel %vm482, %v2618, %v2952
        %v3675 = vsel %vm482, %v2619, %v2954
        %v3676 = vsel %vm482, %v2620, %v2956
        %v3677 = vsel %vm482, %v2621, %v2958
        %v3678 = vsel %vm482, %v2622, %v2960
        %v3679 = vsel %vm482, %v2623, %v2962
        %v3680 = vsel %vm482, %v2624, %v2964
        %v3681 = vsel %vm482, %v2625, %v2966
        %v3682 = vsel %vm482, %v2626, %v2968
        %v3683 = vsel %vm482, %v2627, %v2970
        %v3684 = vsel %vm482, %v2628, %v2972
        %v3685 = vsel %vm482, %v2629, %v2974
        %v3686 = vsel %vm482, %v2630, %v2976
        %v3687 = vsel %vm482, %v2631, %v2978
        %v3688 = vsel %vm482, %v2632, %v2980
        %v3689 = vsel %vm482, %v2633, %v2982
        %v3690 = vsel %vm482, %v2634, %v2984
        %v3691 = vsel %vm482, %v2635, %v2986
        %v3692 = vsel %vm482, %v2636, %v2988
        %v3693 = vsel %vm1682, %v3661, %v3054
        %v3694 = vsel %vm1682, %v3662, %v3056
        %v3695 = vsel %vm1682, %v3663, %v3058
        %v3696 = vsel %vm1682, %v3664, %v3060
        %v3697 = vsel %vm1682, %v3665, %v3062
        %v3698 = vsel %vm1682, %v3666, %v3064
        %v3699 = vsel %vm1682, %v3667, %v3066
        %v3700 = vsel %vm1682, %v3668, %v3068
        %v3701 = vsel %vm1682, %v3669, %v3070
        %v3702 = vsel %vm1682, %v3670, %v3072
        %v3703 = vsel %vm1682, %v3671, %v3074
        %v3704 = vsel %vm1682, %v3672, %v3076
        %v3705 = vsel %vm1682, %v3673, %v3078
        %v3706 = vsel %vm1682, %v3674, %v3080
        %v3707 = vsel %vm1682, %v3675, %v3082
        %v3708 = vsel %vm1682, %v3676, %v3084
        %v3709 = vsel %vm1682, %v3677, %v3086
        %v3710 = vsel %vm1682, %v3678, %v3088
        %v3711 = vsel %vm1682, %v3679, %v3090
        %v3712 = vsel %vm1682, %v3680, %v3092
        %v3713 = vsel %vm1682, %v3681, %v3094
        %v3714 = vsel %vm1682, %v3682, %v3096
        %v3715 = vsel %vm1682, %v3683, %v3098
        %v3716 = vsel %vm1682, %v3684, %v3100
        %v3717 = vsel %vm1682, %v3685, %v3102
        %v3718 = vsel %vm1682, %v3686, %v3104
        %v3719 = vsel %vm1682, %v3687, %v3106
        %v3720 = vsel %vm1682, %v3688, %v3108
        %v3721 = vsel %vm1682, %v3689, %v3110
        %v3722 = vsel %vm1682, %v3690, %v3112
        %v3723 = vsel %vm1682, %v3691, %v3114
        %v3724 = vsel %vm1682, %v3692, %v3116
        %v3725 = vsel %vm1715, %v3693, %v3182
        %v3726 = vsel %vm1715, %v3694, %v3184
        %v3727 = vsel %vm1715, %v3695, %v3186
        %v3728 = vsel %vm1715, %v3696, %v3188
        %v3729 = vsel %vm1715, %v3697, %v3190
        %v3730 = vsel %vm1715, %v3698, %v3192
        %v3731 = vsel %vm1715, %v3699, %v3194
        %v3732 = vsel %vm1715, %v3700, %v3196
        %v3733 = vsel %vm1715, %v3701, %v3198
        %v3734 = vsel %vm1715, %v3702, %v3200
        %v3735 = vsel %vm1715, %v3703, %v3202
        %v3736 = vsel %vm1715, %v3704, %v3204
        %v3737 = vsel %vm1715, %v3705, %v3206
        %v3738 = vsel %vm1715, %v3706, %v3208
        %v3739 = vsel %vm1715, %v3707, %v3210
        %v3740 = vsel %vm1715, %v3708, %v3212
        %v3741 = vsel %vm1715, %v3709, %v3214
        %v3742 = vsel %vm1715, %v3710, %v3216
        %v3743 = vsel %vm1715, %v3711, %v3218
        %v3744 = vsel %vm1715, %v3712, %v3220
        %v3745 = vsel %vm1715, %v3713, %v3222
        %v3746 = vsel %vm1715, %v3714, %v3224
        %v3747 = vsel %vm1715, %v3715, %v3226
        %v3748 = vsel %vm1715, %v3716, %v3228
        %v3749 = vsel %vm1715, %v3717, %v3230
        %v3750 = vsel %vm1715, %v3718, %v3232
        %v3751 = vsel %vm1715, %v3719, %v3234
        %v3752 = vsel %vm1715, %v3720, %v3236
        %v3753 = vsel %vm1715, %v3721, %v3238
        %v3754 = vsel %vm1715, %v3722, %v3240
        %v3755 = vsel %vm1715, %v3723, %v3242
        %v3756 = vsel %vm1715, %v3724, %v3244
        %v3757 = vsel %vm482, %v2733, %v3310
        %v3758 = vsel %vm482, %v2734, %v3312
        %v3759 = vsel %vm482, %v2735, %v3314
        %v3760 = vsel %vm482, %v2736, %v3316
        %v3761 = vsel %vm482, %v2737, %v3318
        %v3762 = vsel %vm482, %v2738, %v3320
        %v3763 = vsel %vm482, %v2739, %v3322
        %v3764 = vsel %vm482, %v2740, %v3324
        %v3765 = vsel %vm482, %v2741, %v3326
        %v3766 = vsel %vm482, %v2742, %v3328
        %v3767 = vsel %vm482, %v2743, %v3330
        %v3768 = vsel %vm482, %v2744, %v3332
        %v3769 = vsel %vm482, %v2745, %v3334
        %v3770 = vsel %vm482, %v2746, %v3336
        %v3771 = vsel %vm482, %v2747, %v3338
        %v3772 = vsel %vm482, %v2748, %v3340
        %v3773 = vsel %vm482, %v2749, %v3342
        %v3774 = vsel %vm482, %v2750, %v3344
        %v3775 = vsel %vm482, %v2751, %v3346
        %v3776 = vsel %vm482, %v2752, %v3348
        %v3777 = vsel %vm482, %v2753, %v3350
        %v3778 = vsel %vm482, %v2754, %v3352
        %v3779 = vsel %vm482, %v2755, %v3354
        %v3780 = vsel %vm482, %v2756, %v3356
        %v3781 = vsel %vm482, %v2757, %v3358
        %v3782 = vsel %vm482, %v2758, %v3360
        %v3783 = vsel %vm482, %v2759, %v3362
        %v3784 = vsel %vm482, %v2760, %v3364
        %v3785 = vsel %vm482, %v2761, %v3366
        %v3786 = vsel %vm482, %v2762, %v3368
        %v3787 = vsel %vm482, %v2763, %v3370
        %v3788 = vsel %vm482, %v2764, %v3372
        %v3789 = vsel %vm1682, %v3757, %v3438
        %v3790 = vsel %vm1682, %v3758, %v3440
        %v3791 = vsel %vm1682, %v3759, %v3442
        %v3792 = vsel %vm1682, %v3760, %v3444
        %v3793 = vsel %vm1682, %v3761, %v3446
        %v3794 = vsel %vm1682, %v3762, %v3448
        %v3795 = vsel %vm1682, %v3763, %v3450
        %v3796 = vsel %vm1682, %v3764, %v3452
        %v3797 = vsel %vm1682, %v3765, %v3454
        %v3798 = vsel %vm1682, %v3766, %v3456
        %v3799 = vsel %vm1682, %v3767, %v3458
        %v3800 = vsel %vm1682, %v3768, %v3460
        %v3801 = vsel %vm1682, %v3769, %v3462
        %v3802 = vsel %vm1682, %v3770, %v3464
        %v3803 = vsel %vm1682, %v3771, %v3466
        %v3804 = vsel %vm1682, %v3772, %v3468
        %v3805 = vsel %vm1682, %v3773, %v3470
        %v3806 = vsel %vm1682, %v3774, %v3472
        %v3807 = vsel %vm1682, %v3775, %v3474
        %v3808 = vsel %vm1682, %v3776, %v3476
        %v3809 = vsel %vm1682, %v3777, %v3478
        %v3810 = vsel %vm1682, %v3778, %v3480
        %v3811 = vsel %vm1682, %v3779, %v3482
        %v3812 = vsel %vm1682, %v3780, %v3484
        %v3813 = vsel %vm1682, %v3781, %v3486
        %v3814 = vsel %vm1682, %v3782, %v3488
        %v3815 = vsel %vm1682, %v3783, %v3490
        %v3816 = vsel %vm1682, %v3784, %v3492
        %v3817 = vsel %vm1682, %v3785, %v3494
        %v3818 = vsel %vm1682, %v3786, %v3496
        %v3819 = vsel %vm1682, %v3787, %v3498
        %v3820 = vsel %vm1682, %v3788, %v3500
        %v3821 = vsel %vm1715, %v3789, %v3566
        %v3822 = vsel %vm1715, %v3790, %v3568
        %v3823 = vsel %vm1715, %v3791, %v3570
        %v3824 = vsel %vm1715, %v3792, %v3572
        %v3825 = vsel %vm1715, %v3793, %v3574
        %v3826 = vsel %vm1715, %v3794, %v3576
        %v3827 = vsel %vm1715, %v3795, %v3578
        %v3828 = vsel %vm1715, %v3796, %v3580
        %v3829 = vsel %vm1715, %v3797, %v3582
        %v3830 = vsel %vm1715, %v3798, %v3584
        %v3831 = vsel %vm1715, %v3799, %v3586
        %v3832 = vsel %vm1715, %v3800, %v3588
        %v3833 = vsel %vm1715, %v3801, %v3590
        %v3834 = vsel %vm1715, %v3802, %v3592
        %v3835 = vsel %vm1715, %v3803, %v3594
        %v3836 = vsel %vm1715, %v3804, %v3596
        %v3837 = vsel %vm1715, %v3805, %v3598
        %v3838 = vsel %vm1715, %v3806, %v3600
        %v3839 = vsel %vm1715, %v3807, %v3602
        %v3840 = vsel %vm1715, %v3808, %v3604
        %v3841 = vsel %vm1715, %v3809, %v3606
        %v3842 = vsel %vm1715, %v3810, %v3608
        %v3843 = vsel %vm1715, %v3811, %v3610
        %v3844 = vsel %vm1715, %v3812, %v3612
        %v3845 = vsel %vm1715, %v3813, %v3614
        %v3846 = vsel %vm1715, %v3814, %v3616
        %v3847 = vsel %vm1715, %v3815, %v3618
        %v3848 = vsel %vm1715, %v3816, %v3620
        %v3849 = vsel %vm1715, %v3817, %v3622
        %v3850 = vsel %vm1715, %v3818, %v3624
        %v3851 = vsel %vm1715, %v3819, %v3626
        %v3852 = vsel %vm1715, %v3820, %v3628
        %v3853 = vld [vmem:[#allocation8] sm:$0xff]
        %v3854 = vld [vmem:[#allocation8 + $0x8] sm:$0xff]
        %v3855 = vld [vmem:[#allocation8 + $0x10] sm:$0xff]
        %v3856 = vld [vmem:[#allocation8 + $0x18] sm:$0xff]
        %v3857 = vld [vmem:[#allocation8 + $0x20] sm:$0xff]
        %v3858 = vld [vmem:[#allocation8 + $0x28] sm:$0xff]
        %v3859 = vld [vmem:[#allocation8 + $0x30] sm:$0xff]
        %v3860 = vld [vmem:[#allocation8 + $0x38] sm:$0xff]
        %v3861 = vld [vmem:[#allocation8 + $0x40] sm:$0xff]
        %v3862 = vld [vmem:[#allocation8 + $0x48] sm:$0xff]
        %v3863 = vld [vmem:[#allocation8 + $0x50] sm:$0xff]
        %v3864 = vld [vmem:[#allocation8 + $0x58] sm:$0xff]
        %v3865 = vld [vmem:[#allocation8 + $0x60] sm:$0xff]
        %v3866 = vld [vmem:[#allocation8 + $0x68] sm:$0xff]
        %v3867 = vld [vmem:[#allocation8 + $0x70] sm:$0xff]
        %v3868 = vld [vmem:[#allocation8 + $0x78] sm:$0xff]
        %v3869 = vld [vmem:[#allocation8 + $0x80] sm:$0xff]
        %v3870 = vld [vmem:[#allocation8 + $0x88] sm:$0xff]
        %v3871 = vld [vmem:[#allocation8 + $0x90] sm:$0xff]
        %v3872 = vld [vmem:[#allocation8 + $0x98] sm:$0xff]
        %v3873 = vld [vmem:[#allocation8 + $0xa0] sm:$0xff]
        %v3874 = vld [vmem:[#allocation8 + $0xa8] sm:$0xff]
        %v3875 = vld [vmem:[#allocation8 + $0xb0] sm:$0xff]
        %v3876 = vld [vmem:[#allocation8 + $0xb8] sm:$0xff]
        %v3877 = vld [vmem:[#allocation8 + $0xc0] sm:$0xff]
        %v3878 = vld [vmem:[#allocation8 + $0xc8] sm:$0xff]
        %v3879 = vld [vmem:[#allocation8 + $0xd0] sm:$0xff]
        %v3880 = vld [vmem:[#allocation8 + $0xd8] sm:$0xff]
        %v3881 = vld [vmem:[#allocation8 + $0xe0] sm:$0xff]
        %v3882 = vld [vmem:[#allocation8 + $0xe8] sm:$0xff]
        %v3883 = vld [vmem:[#allocation8 + $0xf0] sm:$0xff]
        %v3884 = vld [vmem:[#allocation8 + $0xf8] sm:$0xff]
        %v3885 = vld [vmem:[#allocation8 + $0x100] sm:$0xff]
        %v3886 = vld [vmem:[#allocation8 + $0x108] sm:$0xff]
        %v3887 = vld [vmem:[#allocation8 + $0x110] sm:$0xff]
        %v3888 = vld [vmem:[#allocation8 + $0x118] sm:$0xff]
        %v3889 = vld [vmem:[%s4] sm:$0x1]
        %v3891 = vlaneseq
        %v3892 = vshrl.u32 %v3891, 7
        %v3893 = vsub.s32 0, %v3892
        %v3894 = vrot.slane %v3889, %v3893
        %v3897 = vsel %vm482, %v2861, 0
        %v3900 = vsel %vm482, %v2862, 0
        %v3903 = vsel %vm482, %v2863, 0
        %v3906 = vsel %vm482, %v2864, 0
        %v3909 = vsel %vm482, %v2865, 0
        %v3912 = vsel %vm482, %v2866, 0
        %v3915 = vsel %vm482, %v2867, 0
        %v3918 = vsel %vm482, %v2868, 0
        %v3921 = vsel %vm482, %v2869, 0
        %v3924 = vsel %vm482, %v2870, 0
        %v3927 = vsel %vm482, %v2871, 0
        %v3930 = vsel %vm482, %v2872, 0
        %v3933 = vsel %vm482, %v2873, 0
        %v3936 = vsel %vm482, %v2874, 0
        %v3939 = vsel %vm482, %v2875, 0
        %v3942 = vsel %vm482, %v2876, 0
        %v3945 = vsel %vm482, %v2877, 0
        %v3948 = vsel %vm482, %v2878, 0
        %v3951 = vsel %vm482, %v2879, 0
        %v3954 = vsel %vm482, %v2880, 0
        %v3957 = vsel %vm482, %v2881, 0
        %v3960 = vsel %vm482, %v2882, 0
        %v3963 = vsel %vm482, %v2883, 0
        %v3966 = vsel %vm482, %v2884, 0
        %v3969 = vsel %vm482, %v2885, 0
        %v3972 = vsel %vm482, %v2886, 0
        %v3975 = vsel %vm482, %v2887, 0
        %v3978 = vsel %vm482, %v2888, 0
        %v3981 = vsel %vm482, %v2889, 0
        %v3984 = vsel %vm482, %v2890, 0
        %v3987 = vsel %vm482, %v2891, 0
        %v3990 = vsel %vm482, %v2892, 0
        %3992 = vmatprep.subr.mxu0 0.0
        %3993 = vmatpush1.msra.mxu0 %v3868
        %3994 = vmatprep.subr.mxu0 0.0
        %3995 = vmatpush1.msra.mxu0 %v3867
        %3996 = vmatprep.subr.mxu0 0.0
        %3997 = vmatpush1.msra.mxu0 %v3866
        %3998 = vmatprep.subr.mxu0 0.0
        %3999 = vmatpush1.msra.mxu0 %v3865
        %4000 = vmatprep.subr.mxu0 0.0
        %4001 = vmatpush1.msra.mxu0 %v3864
        %4002 = vmatprep.subr.mxu0 0.0
        %4003 = vmatpush1.msra.mxu0 %v3863
        %4004 = vmatprep.subr.mxu0 0.0
        %4005 = vmatpush1.msra.mxu0 %v3862
        %4006 = vmatprep.subr.mxu0 0.0
        %4007 = vmatpush1.msra.mxu0 %v3861
        %4008 = vmatprep.subr.mxu0 0.0
        %4009 = vmatpush1.msra.mxu0 %v3860
        %4010 = vmatprep.subr.mxu0 0.0
        %4011 = vmatpush1.msra.mxu0 %v3859
        %4012 = vmatprep.subr.mxu0 0.0
        %4013 = vmatpush1.msra.mxu0 %v3858
        %4014 = vmatprep.subr.mxu0 0.0
        %4015 = vmatpush1.msra.mxu0 %v3857
        %4016 = vmatprep.subr.mxu0 0.0
        %4017 = vmatpush1.msra.mxu0 %v3856
        %4018 = vmatprep.subr.mxu0 0.0
        %4019 = vmatpush1.msra.mxu0 %v3855
        %4020 = vmatprep.subr.mxu0 0.0
        %4021 = vmatpush1.msra.mxu0 %v3854
        %4022 = vmatprep.subr.mxu0 0.0
        %4023 = vmatpush1.msra.mxu0 %v3853
        %4024 = vmatprep.subr.mxu0 0.0
        %4025 = vmatpush2.msra.mxu0 %v3884
        %4026 = vmatprep.subr.mxu0 0.0
        %4027 = vmatpush2.msra.mxu0 %v3883
        %4028 = vmatprep.subr.mxu0 0.0
        %4029 = vmatpush2.msra.mxu0 %v3882
        %4030 = vmatprep.subr.mxu0 0.0
        %4031 = vmatpush2.msra.mxu0 %v3881
        %4032 = vmatprep.subr.mxu0 0.0
        %4033 = vmatpush2.msra.mxu0 %v3880
        %4034 = vmatprep.subr.mxu0 0.0
        %4035 = vmatpush2.msra.mxu0 %v3879
        %4036 = vmatprep.subr.mxu0 0.0
        %4037 = vmatpush2.msra.mxu0 %v3878
        %4038 = vmatprep.subr.mxu0 0.0
        %4039 = vmatpush2.msra.mxu0 %v3877
        %4040 = vmatprep.subr.mxu0 0.0
        %4041 = vmatpush2.msra.mxu0 %v3876
        %4042 = vmatprep.subr.mxu0 0.0
        %4043 = vmatpush2.msra.mxu0 %v3875
        %4044 = vmatprep.subr.mxu0 0.0
        %4045 = vmatpush2.msra.mxu0 %v3874
        %4046 = vmatprep.subr.mxu0 0.0
        %4047 = vmatpush2.msra.mxu0 %v3873
        %4048 = vmatprep.subr.mxu0 0.0
        %4049 = vmatpush2.msra.mxu0 %v3872
        %4050 = vmatprep.subr.mxu0 0.0
        %4051 = vmatpush2.msra.mxu0 %v3871
        %4052 = vmatprep.subr.mxu0 0.0
        %4053 = vmatpush2.msra.mxu0 %v3870
        %4054 = vmatprep.subr.mxu0 0.0
        %4055 = vmatpush2.msra.mxu0 %v3869
        %4056 = vmatprep.mubr.f32.mxu0 %v3821
        %4057 = vmatmul.mubr.f32.gmra.mxu0 %v3725
        %v4058 = vpop.f32.mrf.mxu0
        %v4059 = vadd.f32 %v3894, %v4058
        %v4060 = vpop.f32.mrf.mxu0
        %4061 = vmatprep.mubr.f32.mxu0 %v3822
        %4062 = vmatmul.mubr.f32.gmra.mxu0 %v3726
        %v4063 = vpop.f32.mrf.mxu0
        %v4064 = vadd.f32 %v3894, %v4063
        %v4065 = vpop.f32.mrf.mxu0
        %4066 = vmatprep.mubr.f32.mxu0 %v3823
        %4067 = vmatmul.mubr.f32.gmra.mxu0 %v3727
        %v4068 = vpop.f32.mrf.mxu0
        %v4069 = vadd.f32 %v3894, %v4068
        %v4070 = vpop.f32.mrf.mxu0
        %4071 = vmatprep.mubr.f32.mxu0 %v3824
        %4072 = vmatmul.mubr.f32.gmra.mxu0 %v3728
        %v4073 = vpop.f32.mrf.mxu0
        %v4074 = vadd.f32 %v3894, %v4073
        %v4075 = vpop.f32.mrf.mxu0
        %4076 = vmatprep.mubr.f32.mxu0 %v3825
        %4077 = vmatmul.mubr.f32.gmra.mxu0 %v3729
        %v4078 = vpop.f32.mrf.mxu0
        %v4079 = vadd.f32 %v3894, %v4078
        %v4080 = vpop.f32.mrf.mxu0
        %4081 = vmatprep.mubr.f32.mxu0 %v3826
        %4082 = vmatmul.mubr.f32.gmra.mxu0 %v3730
        %v4083 = vpop.f32.mrf.mxu0
        %v4084 = vadd.f32 %v3894, %v4083
        %v4085 = vpop.f32.mrf.mxu0
        %4086 = vmatprep.mubr.f32.mxu0 %v3827
        %4087 = vmatmul.mubr.f32.gmra.mxu0 %v3731
        %v4088 = vpop.f32.mrf.mxu0
        %v4089 = vadd.f32 %v3894, %v4088
        %v4090 = vpop.f32.mrf.mxu0
        %4091 = vmatprep.mubr.f32.mxu0 %v3828
        %4092 = vmatmul.mubr.f32.gmra.mxu0 %v3732
        %v4093 = vpop.f32.mrf.mxu0
        %v4094 = vadd.f32 %v3894, %v4093
        %v4095 = vpop.f32.mrf.mxu0
        %4096 = vmatprep.mubr.f32.mxu0 %v3829
        %4097 = vmatmul.mubr.f32.gmra.mxu0 %v3733
        %v4098 = vpop.f32.mrf.mxu0
        %v4099 = vadd.f32 %v3894, %v4098
        %v4100 = vpop.f32.mrf.mxu0
        %4101 = vmatprep.mubr.f32.mxu0 %v3830
        %4102 = vmatmul.mubr.f32.gmra.mxu0 %v3734
        %v4103 = vpop.f32.mrf.mxu0
        %v4104 = vadd.f32 %v3894, %v4103
        %v4105 = vpop.f32.mrf.mxu0
        %4106 = vmatprep.mubr.f32.mxu0 %v3831
        %4107 = vmatmul.mubr.f32.gmra.mxu0 %v3735
        %v4108 = vpop.f32.mrf.mxu0
        %v4109 = vadd.f32 %v3894, %v4108
        %v4110 = vpop.f32.mrf.mxu0
        %4111 = vmatprep.mubr.f32.mxu0 %v3832
        %4112 = vmatmul.mubr.f32.gmra.mxu0 %v3736
        %v4113 = vpop.f32.mrf.mxu0
        %v4114 = vadd.f32 %v3894, %v4113
        %v4115 = vpop.f32.mrf.mxu0
        %4116 = vmatprep.mubr.f32.mxu0 %v3833
        %4117 = vmatmul.mubr.f32.gmra.mxu0 %v3737
        %v4118 = vpop.f32.mrf.mxu0
        %v4119 = vadd.f32 %v3894, %v4118
        %v4120 = vpop.f32.mrf.mxu0
        %4121 = vmatprep.mubr.f32.mxu0 %v3834
        %4122 = vmatmul.mubr.f32.gmra.mxu0 %v3738
        %v4123 = vpop.f32.mrf.mxu0
        %v4124 = vadd.f32 %v3894, %v4123
        %v4125 = vpop.f32.mrf.mxu0
        %4126 = vmatprep.mubr.f32.mxu0 %v3835
        %4127 = vmatmul.mubr.f32.gmra.mxu0 %v3739
        %v4128 = vpop.f32.mrf.mxu0
        %v4129 = vadd.f32 %v3894, %v4128
        %v4130 = vpop.f32.mrf.mxu0
        %4131 = vmatprep.mubr.f32.mxu0 %v3836
        %4132 = vmatmul.mubr.f32.gmra.mxu0 %v3740
        %v4133 = vpop.f32.mrf.mxu0
        %v4134 = vadd.f32 %v3894, %v4133
        %v4135 = vpop.f32.mrf.mxu0
        %4136 = vmatprep.mubr.f32.mxu0 %v3837
        %4137 = vmatmul.mubr.f32.gmra.mxu0 %v3741
        %v4138 = vpop.f32.mrf.mxu0
        %v4139 = vadd.f32 %v3894, %v4138
        %v4140 = vpop.f32.mrf.mxu0
        %4141 = vmatprep.mubr.f32.mxu0 %v3838
        %4142 = vmatmul.mubr.f32.gmra.mxu0 %v3742
        %v4143 = vpop.f32.mrf.mxu0
        %v4144 = vadd.f32 %v3894, %v4143
        %v4145 = vpop.f32.mrf.mxu0
        %4146 = vmatprep.mubr.f32.mxu0 %v3839
        %4147 = vmatmul.mubr.f32.gmra.mxu0 %v3743
        %v4148 = vpop.f32.mrf.mxu0
        %v4149 = vadd.f32 %v3894, %v4148
        %v4150 = vpop.f32.mrf.mxu0
        %4151 = vmatprep.mubr.f32.mxu0 %v3840
        %4152 = vmatmul.mubr.f32.gmra.mxu0 %v3744
        %v4153 = vpop.f32.mrf.mxu0
        %v4154 = vadd.f32 %v3894, %v4153
        %v4155 = vpop.f32.mrf.mxu0
        %4156 = vmatprep.mubr.f32.mxu0 %v3841
        %4157 = vmatmul.mubr.f32.gmra.mxu0 %v3745
        %v4158 = vpop.f32.mrf.mxu0
        %v4159 = vadd.f32 %v3894, %v4158
        %v4160 = vpop.f32.mrf.mxu0
        %4161 = vmatprep.mubr.f32.mxu0 %v3842
        %4162 = vmatmul.mubr.f32.gmra.mxu0 %v3746
        %v4163 = vpop.f32.mrf.mxu0
        %v4164 = vadd.f32 %v3894, %v4163
        %v4165 = vpop.f32.mrf.mxu0
        %4166 = vmatprep.mubr.f32.mxu0 %v3843
        %4167 = vmatmul.mubr.f32.gmra.mxu0 %v3747
        %v4168 = vpop.f32.mrf.mxu0
        %v4169 = vadd.f32 %v3894, %v4168
        %v4170 = vpop.f32.mrf.mxu0
        %4171 = vmatprep.mubr.f32.mxu0 %v3844
        %4172 = vmatmul.mubr.f32.gmra.mxu0 %v3748
        %v4173 = vpop.f32.mrf.mxu0
        %v4174 = vadd.f32 %v3894, %v4173
        %v4175 = vpop.f32.mrf.mxu0
        %4176 = vmatprep.mubr.f32.mxu0 %v3845
        %4177 = vmatmul.mubr.f32.gmra.mxu0 %v3749
        %v4178 = vpop.f32.mrf.mxu0
        %v4179 = vadd.f32 %v3894, %v4178
        %v4180 = vpop.f32.mrf.mxu0
        %4181 = vmatprep.mubr.f32.mxu0 %v3846
        %4182 = vmatmul.mubr.f32.gmra.mxu0 %v3750
        %v4183 = vpop.f32.mrf.mxu0
        %v4184 = vadd.f32 %v3894, %v4183
        %v4185 = vpop.f32.mrf.mxu0
        %4186 = vmatprep.mubr.f32.mxu0 %v3847
        %4187 = vmatmul.mubr.f32.gmra.mxu0 %v3751
        %v4188 = vpop.f32.mrf.mxu0
        %v4189 = vadd.f32 %v3894, %v4188
        %v4190 = vpop.f32.mrf.mxu0
        %4191 = vmatprep.mubr.f32.mxu0 %v3848
        %4192 = vmatmul.mubr.f32.gmra.mxu0 %v3752
        %v4193 = vpop.f32.mrf.mxu0
        %v4194 = vadd.f32 %v3894, %v4193
        %v4195 = vpop.f32.mrf.mxu0
        %4196 = vmatprep.mubr.f32.mxu0 %v3849
        %4197 = vmatmul.mubr.f32.gmra.mxu0 %v3753
        %v4198 = vpop.f32.mrf.mxu0
        %v4199 = vadd.f32 %v3894, %v4198
        %v4200 = vpop.f32.mrf.mxu0
        %4201 = vmatprep.mubr.f32.mxu0 %v3850
        %4202 = vmatmul.mubr.f32.gmra.mxu0 %v3754
        %v4203 = vpop.f32.mrf.mxu0
        %v4204 = vadd.f32 %v3894, %v4203
        %v4205 = vpop.f32.mrf.mxu0
        %4206 = vmatprep.mubr.f32.mxu0 %v3851
        %4207 = vmatmul.mubr.f32.gmra.mxu0 %v3755
        %v4208 = vpop.f32.mrf.mxu0
        %v4209 = vadd.f32 %v3894, %v4208
        %v4210 = vpop.f32.mrf.mxu0
        %4211 = vmatprep.mubr.f32.mxu0 %v3852
        %4212 = vmatmul.mubr.f32.gmra.mxu0 %v3756
        %v4213 = vpop.f32.mrf.mxu0
        %v4214 = vadd.f32 %v3894, %v4213
        %v4215 = vpop.f32.mrf.mxu0
        %4216 = vdwg.mxu0
        %4217 = vmatprep.subr.mxu0 0.0
        %4218 = vmatpush1.msra.mxu0 0.0
        %4219 = vmatprep.subr.mxu0 0.0
        %4220 = vmatpush1.msra.mxu0 0.0
        %4221 = vmatprep.subr.mxu0 0.0
        %4222 = vmatpush1.msra.mxu0 0.0
        %4223 = vmatprep.subr.mxu0 0.0
        %4224 = vmatpush1.msra.mxu0 0.0
        %4225 = vmatprep.subr.mxu0 0.0
        %4226 = vmatpush1.msra.mxu0 0.0
        %4227 = vmatprep.subr.mxu0 0.0
        %4228 = vmatpush1.msra.mxu0 0.0
        %4229 = vmatprep.subr.mxu0 0.0
        %4230 = vmatpush1.msra.mxu0 0.0
        %4231 = vmatprep.subr.mxu0 0.0
        %4232 = vmatpush1.msra.mxu0 0.0
        %4233 = vmatprep.subr.mxu0 0.0
        %4234 = vmatpush1.msra.mxu0 0.0
        %4235 = vmatprep.subr.mxu0 0.0
        %4236 = vmatpush1.msra.mxu0 0.0
        %4237 = vmatprep.subr.mxu0 0.0
        %4238 = vmatpush1.msra.mxu0 0.0
        %4239 = vmatprep.subr.mxu0 0.0
        %4240 = vmatpush1.msra.mxu0 0.0
        %4241 = vmatprep.subr.mxu0 0.0
        %4242 = vmatpush1.msra.mxu0 %v3888
        %4243 = vmatprep.subr.mxu0 0.0
        %4244 = vmatpush1.msra.mxu0 %v3887
        %4245 = vmatprep.subr.mxu0 0.0
        %4246 = vmatpush1.msra.mxu0 %v3886
        %4247 = vmatprep.subr.mxu0 0.0
        %4248 = vmatpush1.msra.mxu0 %v3885
        %4249 = vmatprep.subr.mxu0 0.0
        %4250 = vmatpush2.msra.mxu0 0.0
        %4251 = vmatprep.subr.mxu0 0.0
        %4252 = vmatpush2.msra.mxu0 0.0
        %4253 = vmatprep.subr.mxu0 0.0
        %4254 = vmatpush2.msra.mxu0 0.0
        %4255 = vmatprep.subr.mxu0 0.0
        %4256 = vmatpush2.msra.mxu0 0.0
        %4257 = vmatprep.subr.mxu0 0.0
        %4258 = vmatpush2.msra.mxu0 0.0
        %4259 = vmatprep.subr.mxu0 0.0
        %4260 = vmatpush2.msra.mxu0 0.0
        %4261 = vmatprep.subr.mxu0 0.0
        %4262 = vmatpush2.msra.mxu0 0.0
        %4263 = vmatprep.subr.mxu0 0.0
        %4264 = vmatpush2.msra.mxu0 0.0
        %4265 = vmatprep.subr.mxu0 0.0
        %4266 = vmatpush2.msra.mxu0 0.0
        %4267 = vmatprep.subr.mxu0 0.0
        %4268 = vmatpush2.msra.mxu0 0.0
        %4269 = vmatprep.subr.mxu0 0.0
        %4270 = vmatpush2.msra.mxu0 0.0
        %4271 = vmatprep.subr.mxu0 0.0
        %4272 = vmatpush2.msra.mxu0 0.0
        %4273 = vmatprep.subr.mxu0 0.0
        %4274 = vmatpush2.msra.mxu0 0.0
        %4275 = vmatprep.subr.mxu0 0.0
        %4276 = vmatpush2.msra.mxu0 0.0
        %4277 = vmatprep.subr.mxu0 0.0
        %4278 = vmatpush2.msra.mxu0 0.0
        %4279 = vmatprep.subr.mxu0 0.0
        %4280 = vmatpush2.msra.mxu0 0.0
        %4281 = vmatprep.mubr.f32.mxu0 0.0
        %4282 = vmatmul.mubr.f32.gmra.mxu0 %v3897
        %v4283 = vpop.f32.mrf.mxu0
        %v4284 = vadd.f32 %v4059, %v4283
        %v4285 = vpop.f32.mrf.mxu0
        %4286 = vmatprep.mubr.f32.mxu0 0.0
        %4287 = vmatmul.mubr.f32.gmra.mxu0 %v3900
        %v4288 = vpop.f32.mrf.mxu0
        %v4289 = vadd.f32 %v4064, %v4288
        %v4290 = vpop.f32.mrf.mxu0
        %4291 = vmatprep.mubr.f32.mxu0 0.0
        %4292 = vmatmul.mubr.f32.gmra.mxu0 %v3903
        %v4293 = vpop.f32.mrf.mxu0
        %v4294 = vadd.f32 %v4069, %v4293
        %v4295 = vpop.f32.mrf.mxu0
        %4296 = vmatprep.mubr.f32.mxu0 0.0
        %4297 = vmatmul.mubr.f32.gmra.mxu0 %v3906
        %v4298 = vpop.f32.mrf.mxu0
        %v4299 = vadd.f32 %v4074, %v4298
        %v4300 = vpop.f32.mrf.mxu0
        %4301 = vmatprep.mubr.f32.mxu0 0.0
        %4302 = vmatmul.mubr.f32.gmra.mxu0 %v3909
        %v4303 = vpop.f32.mrf.mxu0
        %v4304 = vadd.f32 %v4079, %v4303
        %v4305 = vpop.f32.mrf.mxu0
        %4306 = vmatprep.mubr.f32.mxu0 0.0
        %4307 = vmatmul.mubr.f32.gmra.mxu0 %v3912
        %v4308 = vpop.f32.mrf.mxu0
        %v4309 = vadd.f32 %v4084, %v4308
        %v4310 = vpop.f32.mrf.mxu0
        %4311 = vmatprep.mubr.f32.mxu0 0.0
        %4312 = vmatmul.mubr.f32.gmra.mxu0 %v3915
        %v4313 = vpop.f32.mrf.mxu0
        %v4314 = vadd.f32 %v4089, %v4313
        %v4315 = vpop.f32.mrf.mxu0
        %4316 = vmatprep.mubr.f32.mxu0 0.0
        %4317 = vmatmul.mubr.f32.gmra.mxu0 %v3918
        %v4318 = vpop.f32.mrf.mxu0
        %v4319 = vadd.f32 %v4094, %v4318
        %v4320 = vpop.f32.mrf.mxu0
        %4321 = vmatprep.mubr.f32.mxu0 0.0
        %4322 = vmatmul.mubr.f32.gmra.mxu0 %v3921
        %v4323 = vpop.f32.mrf.mxu0
        %v4324 = vadd.f32 %v4099, %v4323
        %v4325 = vpop.f32.mrf.mxu0
        %4326 = vmatprep.mubr.f32.mxu0 0.0
        %4327 = vmatmul.mubr.f32.gmra.mxu0 %v3924
        %v4328 = vpop.f32.mrf.mxu0
        %v4329 = vadd.f32 %v4104, %v4328
        %v4330 = vpop.f32.mrf.mxu0
        %4331 = vmatprep.mubr.f32.mxu0 0.0
        %4332 = vmatmul.mubr.f32.gmra.mxu0 %v3927
        %v4333 = vpop.f32.mrf.mxu0
        %v4334 = vadd.f32 %v4109, %v4333
        %v4335 = vpop.f32.mrf.mxu0
        %4336 = vmatprep.mubr.f32.mxu0 0.0
        %4337 = vmatmul.mubr.f32.gmra.mxu0 %v3930
        %v4338 = vpop.f32.mrf.mxu0
        %v4339 = vadd.f32 %v4114, %v4338
        %v4340 = vpop.f32.mrf.mxu0
        %4341 = vmatprep.mubr.f32.mxu0 0.0
        %4342 = vmatmul.mubr.f32.gmra.mxu0 %v3933
        %v4343 = vpop.f32.mrf.mxu0
        %v4344 = vadd.f32 %v4119, %v4343
        %v4345 = vpop.f32.mrf.mxu0
        %4346 = vmatprep.mubr.f32.mxu0 0.0
        %4347 = vmatmul.mubr.f32.gmra.mxu0 %v3936
        %v4348 = vpop.f32.mrf.mxu0
        %v4349 = vadd.f32 %v4124, %v4348
        %v4350 = vpop.f32.mrf.mxu0
        %4351 = vmatprep.mubr.f32.mxu0 0.0
        %4352 = vmatmul.mubr.f32.gmra.mxu0 %v3939
        %v4353 = vpop.f32.mrf.mxu0
        %v4354 = vadd.f32 %v4129, %v4353
        %v4355 = vpop.f32.mrf.mxu0
        %4356 = vmatprep.mubr.f32.mxu0 0.0
        %4357 = vmatmul.mubr.f32.gmra.mxu0 %v3942
        %v4358 = vpop.f32.mrf.mxu0
        %v4359 = vadd.f32 %v4134, %v4358
        %v4360 = vpop.f32.mrf.mxu0
        %4361 = vmatprep.mubr.f32.mxu0 0.0
        %4362 = vmatmul.mubr.f32.gmra.mxu0 %v3945
        %v4363 = vpop.f32.mrf.mxu0
        %v4364 = vadd.f32 %v4139, %v4363
        %v4365 = vpop.f32.mrf.mxu0
        %4366 = vmatprep.mubr.f32.mxu0 0.0
        %4367 = vmatmul.mubr.f32.gmra.mxu0 %v3948
        %v4368 = vpop.f32.mrf.mxu0
        %v4369 = vadd.f32 %v4144, %v4368
        %v4370 = vpop.f32.mrf.mxu0
        %4371 = vmatprep.mubr.f32.mxu0 0.0
        %4372 = vmatmul.mubr.f32.gmra.mxu0 %v3951
        %v4373 = vpop.f32.mrf.mxu0
        %v4374 = vadd.f32 %v4149, %v4373
        %v4375 = vpop.f32.mrf.mxu0
        %4376 = vmatprep.mubr.f32.mxu0 0.0
        %4377 = vmatmul.mubr.f32.gmra.mxu0 %v3954
        %v4378 = vpop.f32.mrf.mxu0
        %v4379 = vadd.f32 %v4154, %v4378
        %v4380 = vpop.f32.mrf.mxu0
        %4381 = vmatprep.mubr.f32.mxu0 0.0
        %4382 = vmatmul.mubr.f32.gmra.mxu0 %v3957
        %v4383 = vpop.f32.mrf.mxu0
        %v4384 = vadd.f32 %v4159, %v4383
        %v4385 = vpop.f32.mrf.mxu0
        %4386 = vmatprep.mubr.f32.mxu0 0.0
        %4387 = vmatmul.mubr.f32.gmra.mxu0 %v3960
        %v4388 = vpop.f32.mrf.mxu0
        %v4389 = vadd.f32 %v4164, %v4388
        %v4390 = vpop.f32.mrf.mxu0
        %4391 = vmatprep.mubr.f32.mxu0 0.0
        %4392 = vmatmul.mubr.f32.gmra.mxu0 %v3963
        %v4393 = vpop.f32.mrf.mxu0
        %v4394 = vadd.f32 %v4169, %v4393
        %v4395 = vpop.f32.mrf.mxu0
        %4396 = vmatprep.mubr.f32.mxu0 0.0
        %4397 = vmatmul.mubr.f32.gmra.mxu0 %v3966
        %v4398 = vpop.f32.mrf.mxu0
        %v4399 = vadd.f32 %v4174, %v4398
        %v4400 = vpop.f32.mrf.mxu0
        %4401 = vmatprep.mubr.f32.mxu0 0.0
        %4402 = vmatmul.mubr.f32.gmra.mxu0 %v3969
        %v4403 = vpop.f32.mrf.mxu0
        %v4404 = vadd.f32 %v4179, %v4403
        %v4405 = vpop.f32.mrf.mxu0
        %4406 = vmatprep.mubr.f32.mxu0 0.0
        %4407 = vmatmul.mubr.f32.gmra.mxu0 %v3972
        %v4408 = vpop.f32.mrf.mxu0
        %v4409 = vadd.f32 %v4184, %v4408
        %v4410 = vpop.f32.mrf.mxu0
        %4411 = vmatprep.mubr.f32.mxu0 0.0
        %4412 = vmatmul.mubr.f32.gmra.mxu0 %v3975
        %v4413 = vpop.f32.mrf.mxu0
        %v4414 = vadd.f32 %v4189, %v4413
        %v4415 = vpop.f32.mrf.mxu0
        %4416 = vmatprep.mubr.f32.mxu0 0.0
        %4417 = vmatmul.mubr.f32.gmra.mxu0 %v3978
        %v4418 = vpop.f32.mrf.mxu0
        %v4419 = vadd.f32 %v4194, %v4418
        %v4420 = vpop.f32.mrf.mxu0
        %4421 = vmatprep.mubr.f32.mxu0 0.0
        %4422 = vmatmul.mubr.f32.gmra.mxu0 %v3981
        %v4423 = vpop.f32.mrf.mxu0
        %v4424 = vadd.f32 %v4199, %v4423
        %v4425 = vpop.f32.mrf.mxu0
        %4426 = vmatprep.mubr.f32.mxu0 0.0
        %4427 = vmatmul.mubr.f32.gmra.mxu0 %v3984
        %v4428 = vpop.f32.mrf.mxu0
        %v4429 = vadd.f32 %v4204, %v4428
        %v4430 = vpop.f32.mrf.mxu0
        %4431 = vmatprep.mubr.f32.mxu0 0.0
        %4432 = vmatmul.mubr.f32.gmra.mxu0 %v3987
        %v4433 = vpop.f32.mrf.mxu0
        %v4434 = vadd.f32 %v4209, %v4433
        %v4435 = vpop.f32.mrf.mxu0
        %4436 = vmatprep.mubr.f32.mxu0 0.0
        %4437 = vmatmul.mubr.f32.gmra.mxu0 %v3990
        %v4438 = vpop.f32.mrf.mxu0
        %v4439 = vadd.f32 %v4214, %v4438
        %v4440 = vpop.f32.mrf.mxu0
        %4441 = vdwg.mxu0
        %v4442 = vmul.f32 %v4284, 0.2
        %v4443 = vmul.f32 %v4289, 0.2
        %v4444 = vmul.f32 %v4294, 0.2
        %v4445 = vmul.f32 %v4299, 0.2
        %v4446 = vmul.f32 %v4304, 0.2
        %v4447 = vmul.f32 %v4309, 0.2
        %v4448 = vmul.f32 %v4314, 0.2
        %v4449 = vmul.f32 %v4319, 0.2
        %v4450 = vmul.f32 %v4324, 0.2
        %v4451 = vmul.f32 %v4329, 0.2
        %v4452 = vmul.f32 %v4334, 0.2
        %v4453 = vmul.f32 %v4339, 0.2
        %v4454 = vmul.f32 %v4344, 0.2
        %v4455 = vmul.f32 %v4349, 0.2
        %v4456 = vmul.f32 %v4354, 0.2
        %v4457 = vmul.f32 %v4359, 0.2
        %v4458 = vmul.f32 %v4364, 0.2
        %v4459 = vmul.f32 %v4369, 0.2
        %v4460 = vmul.f32 %v4374, 0.2
        %v4461 = vmul.f32 %v4379, 0.2
        %v4462 = vmul.f32 %v4384, 0.2
        %v4463 = vmul.f32 %v4389, 0.2
        %v4464 = vmul.f32 %v4394, 0.2
        %v4465 = vmul.f32 %v4399, 0.2
        %v4466 = vmul.f32 %v4404, 0.2
        %v4467 = vmul.f32 %v4409, 0.2
        %v4468 = vmul.f32 %v4414, 0.2
        %v4469 = vmul.f32 %v4419, 0.2
        %v4470 = vmul.f32 %v4424, 0.2
        %v4471 = vmul.f32 %v4429, 0.2
        %v4472 = vmul.f32 %v4434, 0.2
        %v4473 = vmul.f32 %v4439, 0.2
        %v4474 = vmax.f32 %v4284, %v4442
        %v4475 = vmax.f32 %v4289, %v4443
        %v4476 = vmax.f32 %v4294, %v4444
        %v4477 = vmax.f32 %v4299, %v4445
        %v4478 = vmax.f32 %v4304, %v4446
        %v4479 = vmax.f32 %v4309, %v4447
        %v4480 = vmax.f32 %v4314, %v4448
        %v4481 = vmax.f32 %v4319, %v4449
        %v4482 = vmax.f32 %v4324, %v4450
        %v4483 = vmax.f32 %v4329, %v4451
        %v4484 = vmax.f32 %v4334, %v4452
        %v4485 = vmax.f32 %v4339, %v4453
        %v4486 = vmax.f32 %v4344, %v4454
        %v4487 = vmax.f32 %v4349, %v4455
        %v4488 = vmax.f32 %v4354, %v4456
        %v4489 = vmax.f32 %v4359, %v4457
        %v4490 = vmax.f32 %v4364, %v4458
        %v4491 = vmax.f32 %v4369, %v4459
        %v4492 = vmax.f32 %v4374, %v4460
        %v4493 = vmax.f32 %v4379, %v4461
        %v4494 = vmax.f32 %v4384, %v4462
        %v4495 = vmax.f32 %v4389, %v4463
        %v4496 = vmax.f32 %v4394, %v4464
        %v4497 = vmax.f32 %v4399, %v4465
        %v4498 = vmax.f32 %v4404, %v4466
        %v4499 = vmax.f32 %v4409, %v4467
        %v4500 = vmax.f32 %v4414, %v4468
        %v4501 = vmax.f32 %v4419, %v4469
        %v4502 = vmax.f32 %v4424, %v4470
        %v4503 = vmax.f32 %v4429, %v4471
        %v4504 = vmax.f32 %v4434, %v4472
        %v4505 = vmax.f32 %v4439, %v4473
        %4506 = vst.msk [vmem:[%s481 + $0x1] sm:$0xff] %vm482, %v4474
        %4507 = vst.msk [vmem:[%s481 + $0x9] sm:$0xff] %vm482, %v4475
        %4508 = vst.msk [vmem:[%s481 + $0x19] sm:$0xff] %vm482, %v4476
        %4509 = vst.msk [vmem:[%s481 + $0x21] sm:$0xff] %vm482, %v4477
        %4510 = vst.msk [vmem:[%s481 + $0x31] sm:$0xff] %vm482, %v4478
        %4511 = vst.msk [vmem:[%s481 + $0x39] sm:$0xff] %vm482, %v4479
        %4512 = vst.msk [vmem:[%s481 + $0x49] sm:$0xff] %vm482, %v4480
        %4513 = vst.msk [vmem:[%s481 + $0x51] sm:$0xff] %vm482, %v4481
        %4514 = vst.msk [vmem:[%s481 + $0x61] sm:$0xff] %vm482, %v4482
        %4515 = vst.msk [vmem:[%s481 + $0x69] sm:$0xff] %vm482, %v4483
        %4516 = vst.msk [vmem:[%s481 + $0x79] sm:$0xff] %vm482, %v4484
        %4517 = vst.msk [vmem:[%s481 + $0x81] sm:$0xff] %vm482, %v4485
        %4518 = vst.msk [vmem:[%s481 + $0x91] sm:$0xff] %vm482, %v4486
        %4519 = vst.msk [vmem:[%s481 + $0x99] sm:$0xff] %vm482, %v4487
        %4520 = vst.msk [vmem:[%s481 + $0xa9] sm:$0xff] %vm482, %v4488
        %4521 = vst.msk [vmem:[%s481 + $0xb1] sm:$0xff] %vm482, %v4489
        %4522 = vst.msk [vmem:[%s481 + $0xc1] sm:$0xff] %vm482, %v4490
        %4523 = vst.msk [vmem:[%s481 + $0xc9] sm:$0xff] %vm482, %v4491
        %4524 = vst.msk [vmem:[%s481 + $0xd9] sm:$0xff] %vm482, %v4492
        %4525 = vst.msk [vmem:[%s481 + $0xe1] sm:$0xff] %vm482, %v4493
        %4526 = vst.msk [vmem:[%s481 + $0xf1] sm:$0xff] %vm482, %v4494
        %4527 = vst.msk [vmem:[%s481 + $0xf9] sm:$0xff] %vm482, %v4495
        %4528 = vst.msk [vmem:[%s481 + $0x109] sm:$0xff] %vm482, %v4496
        %4529 = vst.msk [vmem:[%s481 + $0x111] sm:$0xff] %vm482, %v4497
        %4530 = vst.msk [vmem:[%s481 + $0x121] sm:$0xff] %vm482, %v4498
        %4531 = vst.msk [vmem:[%s481 + $0x129] sm:$0xff] %vm482, %v4499
        %4532 = vst.msk [vmem:[%s481 + $0x139] sm:$0xff] %vm482, %v4500
        %4533 = vst.msk [vmem:[%s481 + $0x141] sm:$0xff] %vm482, %v4501
        %4534 = vst.msk [vmem:[%s481 + $0x151] sm:$0xff] %vm482, %v4502
        %4535 = vst.msk [vmem:[%s481 + $0x159] sm:$0xff] %vm482, %v4503
        %4536 = vst.msk [vmem:[%s481 + $0x169] sm:$0xff] %vm482, %v4504
        %4537 = vst.msk [vmem:[%s481 + $0x171] sm:$0xff] %vm482, %v4505
        %4538 = vst.msk [vmem:[#allocation2 + $0x1] sm:$0xff] %vm482, %v4474
        %4539 = vst.msk [vmem:[#allocation2 + $0x9] sm:$0xff] %vm482, %v4475
        %4540 = vst.msk [vmem:[%s517 + $0x1] sm:$0xff] %vm482, %v4504
        %4541 = vst.msk [vmem:[%s517 + $0x9] sm:$0xff] %vm482, %v4505
        %v4542 = vld [vmem:[#allocation2 + $0x1] sm:$0x1]
        %v4543 = vld [vmem:[#allocation2 + $0x19] sm:$0x1]
        %v4544 = vld [vmem:[#allocation2 + $0x31] sm:$0x1]
        %v4545 = vld [vmem:[#allocation2 + $0x49] sm:$0x1]
        %v4546 = vld [vmem:[#allocation2 + $0x61] sm:$0x1]
        %v4547 = vld [vmem:[#allocation2 + $0x79] sm:$0x1]
        %v4548 = vld [vmem:[#allocation2 + $0x91] sm:$0x1]
        %v4549 = vld [vmem:[#allocation2 + $0xa9] sm:$0x1]
        %v4550 = vld [vmem:[#allocation2 + $0xc1] sm:$0x1]
        %v4551 = vld [vmem:[#allocation2 + $0xd9] sm:$0x1]
        %v4552 = vld [vmem:[#allocation2 + $0xf1] sm:$0x1]
        %v4553 = vld [vmem:[#allocation2 + $0x109] sm:$0x1]
        %v4554 = vld [vmem:[#allocation2 + $0x121] sm:$0x1]
        %v4555 = vld [vmem:[#allocation2 + $0x139] sm:$0x1]
        %v4556 = vld [vmem:[#allocation2 + $0x151] sm:$0x1]
        %v4557 = vld [vmem:[#allocation2 + $0x169] sm:$0x1]
        %v4558 = vld [vmem:[#allocation2 + $0x181] sm:$0x1]
        %v4559 = vld [vmem:[#allocation2 + $0x199] sm:$0x1]
        %4560 = vst.msk [vmem:[#allocation2] sm:$0x1] %vm538, %v4542
        %4561 = vst.msk [vmem:[#allocation2 + $0x18] sm:$0x1] %vm538, %v4543
        %4562 = vst.msk [vmem:[#allocation2 + $0x30] sm:$0x1] %vm538, %v4544
        %4563 = vst.msk [vmem:[#allocation2 + $0x48] sm:$0x1] %vm538, %v4545
        %4564 = vst.msk [vmem:[#allocation2 + $0x60] sm:$0x1] %vm538, %v4546
        %4565 = vst.msk [vmem:[#allocation2 + $0x78] sm:$0x1] %vm538, %v4547
        %4566 = vst.msk [vmem:[#allocation2 + $0x90] sm:$0x1] %vm538, %v4548
        %4567 = vst.msk [vmem:[#allocation2 + $0xa8] sm:$0x1] %vm538, %v4549
        %4568 = vst.msk [vmem:[#allocation2 + $0xc0] sm:$0x1] %vm538, %v4550
        %4569 = vst.msk [vmem:[#allocation2 + $0xd8] sm:$0x1] %vm538, %v4551
        %4570 = vst.msk [vmem:[#allocation2 + $0xf0] sm:$0x1] %vm538, %v4552
        %4571 = vst.msk [vmem:[#allocation2 + $0x108] sm:$0x1] %vm538, %v4553
        %4572 = vst.msk [vmem:[#allocation2 + $0x120] sm:$0x1] %vm538, %v4554
        %4573 = vst.msk [vmem:[#allocation2 + $0x138] sm:$0x1] %vm538, %v4555
        %4574 = vst.msk [vmem:[#allocation2 + $0x150] sm:$0x1] %vm538, %v4556
        %4575 = vst.msk [vmem:[#allocation2 + $0x168] sm:$0x1] %vm538, %v4557
        %4576 = vst.msk [vmem:[#allocation2 + $0x180] sm:$0x1] %vm538, %v4558
        %4577 = vst.msk [vmem:[#allocation2 + $0x198] sm:$0x1] %vm538, %v4559
        %v4578 = vld [vmem:[#allocation2 + $0x10] sm:$0x1]
        %v4579 = vld [vmem:[#allocation2 + $0x28] sm:$0x1]
        %v4580 = vld [vmem:[#allocation2 + $0x40] sm:$0x1]
        %v4581 = vld [vmem:[#allocation2 + $0x58] sm:$0x1]
        %v4582 = vld [vmem:[#allocation2 + $0x70] sm:$0x1]
        %v4583 = vld [vmem:[#allocation2 + $0x88] sm:$0x1]
        %v4584 = vld [vmem:[#allocation2 + $0xa0] sm:$0x1]
        %v4585 = vld [vmem:[#allocation2 + $0xb8] sm:$0x1]
        %v4586 = vld [vmem:[#allocation2 + $0xd0] sm:$0x1]
        %v4587 = vld [vmem:[#allocation2 + $0xe8] sm:$0x1]
        %v4588 = vld [vmem:[#allocation2 + $0x100] sm:$0x1]
        %v4589 = vld [vmem:[#allocation2 + $0x118] sm:$0x1]
        %v4590 = vld [vmem:[#allocation2 + $0x130] sm:$0x1]
        %v4591 = vld [vmem:[#allocation2 + $0x148] sm:$0x1]
        %v4592 = vld [vmem:[#allocation2 + $0x160] sm:$0x1]
        %v4593 = vld [vmem:[#allocation2 + $0x178] sm:$0x1]
        %v4594 = vld [vmem:[#allocation2 + $0x190] sm:$0x1]
        %v4595 = vld [vmem:[#allocation2 + $0x1a8] sm:$0x1]
        %4596 = vst.msk [vmem:[#allocation2 + $0x11] sm:$0x1] %vm538, %v4578
        %4597 = vst.msk [vmem:[#allocation2 + $0x29] sm:$0x1] %vm538, %v4579
        %4598 = vst.msk [vmem:[#allocation2 + $0x41] sm:$0x1] %vm538, %v4580
        %4599 = vst.msk [vmem:[#allocation2 + $0x59] sm:$0x1] %vm538, %v4581
        %4600 = vst.msk [vmem:[#allocation2 + $0x71] sm:$0x1] %vm538, %v4582
        %4601 = vst.msk [vmem:[#allocation2 + $0x89] sm:$0x1] %vm538, %v4583
        %4602 = vst.msk [vmem:[#allocation2 + $0xa1] sm:$0x1] %vm538, %v4584
        %4603 = vst.msk [vmem:[#allocation2 + $0xb9] sm:$0x1] %vm538, %v4585
        %4604 = vst.msk [vmem:[#allocation2 + $0xd1] sm:$0x1] %vm538, %v4586
        %4605 = vst.msk [vmem:[#allocation2 + $0xe9] sm:$0x1] %vm538, %v4587
        %4606 = vst.msk [vmem:[#allocation2 + $0x101] sm:$0x1] %vm538, %v4588
        %4607 = vst.msk [vmem:[#allocation2 + $0x119] sm:$0x1] %vm538, %v4589
        %4608 = vst.msk [vmem:[#allocation2 + $0x131] sm:$0x1] %vm538, %v4590
        %4609 = vst.msk [vmem:[#allocation2 + $0x149] sm:$0x1] %vm538, %v4591
        %4610 = vst.msk [vmem:[#allocation2 + $0x161] sm:$0x1] %vm538, %v4592
        %4611 = vst.msk [vmem:[#allocation2 + $0x179] sm:$0x1] %vm538, %v4593
        %4612 = vst.msk [vmem:[#allocation2 + $0x191] sm:$0x1] %vm538, %v4594
        %4613 = vst.msk [vmem:[#allocation2 + $0x1a9] sm:$0x1] %vm538, %v4595
        %v4614 = vld [vmem:[#allocation2] sm:$0xff]
        %v4615 = vld [vmem:[#allocation2 + $0x8] sm:$0xff]
        %v4616 = vld [vmem:[#allocation2 + $0x18] sm:$0xff]
        %v4617 = vld [vmem:[#allocation2 + $0x20] sm:$0xff]
        %v4618 = vld [vmem:[#allocation2 + $0x30] sm:$0xff]
        %v4619 = vld [vmem:[#allocation2 + $0x38] sm:$0xff]
        %v4620 = vld [vmem:[#allocation2 + $0x48] sm:$0xff]
        %v4621 = vld [vmem:[#allocation2 + $0x50] sm:$0xff]
        %v4622 = vld [vmem:[#allocation2 + $0x60] sm:$0xff]
        %v4623 = vld [vmem:[#allocation2 + $0x68] sm:$0xff]
        %v4624 = vld [vmem:[#allocation2 + $0x78] sm:$0xff]
        %v4625 = vld [vmem:[#allocation2 + $0x80] sm:$0xff]
        %v4626 = vld [vmem:[#allocation2 + $0x90] sm:$0xff]
        %v4627 = vld [vmem:[#allocation2 + $0x98] sm:$0xff]
        %v4628 = vld [vmem:[#allocation2 + $0xa8] sm:$0xff]
        %v4629 = vld [vmem:[#allocation2 + $0xb0] sm:$0xff]
        %v4630 = vld [vmem:[#allocation2 + $0xc0] sm:$0xff]
        %v4631 = vld [vmem:[#allocation2 + $0xc8] sm:$0xff]
        %v4632 = vld [vmem:[#allocation2 + $0xd8] sm:$0xff]
        %v4633 = vld [vmem:[#allocation2 + $0xe0] sm:$0xff]
        %v4634 = vld [vmem:[#allocation2 + $0xf0] sm:$0xff]
        %v4635 = vld [vmem:[#allocation2 + $0xf8] sm:$0xff]
        %v4636 = vld [vmem:[#allocation2 + $0x108] sm:$0xff]
        %v4637 = vld [vmem:[#allocation2 + $0x110] sm:$0xff]
        %v4638 = vld [vmem:[#allocation2 + $0x120] sm:$0xff]
        %v4639 = vld [vmem:[#allocation2 + $0x128] sm:$0xff]
        %v4640 = vld [vmem:[#allocation2 + $0x138] sm:$0xff]
        %v4641 = vld [vmem:[#allocation2 + $0x140] sm:$0xff]
        %v4642 = vld [vmem:[#allocation2 + $0x150] sm:$0xff]
        %v4643 = vld [vmem:[#allocation2 + $0x158] sm:$0xff]
        %v4644 = vld [vmem:[#allocation2 + $0x168] sm:$0xff]
        %v4645 = vld [vmem:[#allocation2 + $0x170] sm:$0xff]
        %v4646 = vld [vmem:[#allocation2 + $0x1] sm:$0xff]
        %v4647 = vld [vmem:[#allocation2 + $0x9] sm:$0xff]
        %v4648 = vld [vmem:[#allocation2 + $0x19] sm:$0xff]
        %v4649 = vld [vmem:[#allocation2 + $0x21] sm:$0xff]
        %v4650 = vld [vmem:[#allocation2 + $0x31] sm:$0xff]
        %v4651 = vld [vmem:[#allocation2 + $0x39] sm:$0xff]
        %v4652 = vld [vmem:[#allocation2 + $0x49] sm:$0xff]
        %v4653 = vld [vmem:[#allocation2 + $0x51] sm:$0xff]
        %v4654 = vld [vmem:[#allocation2 + $0x61] sm:$0xff]
        %v4655 = vld [vmem:[#allocation2 + $0x69] sm:$0xff]
        %v4656 = vld [vmem:[#allocation2 + $0x79] sm:$0xff]
        %v4657 = vld [vmem:[#allocation2 + $0x81] sm:$0xff]
        %v4658 = vld [vmem:[#allocation2 + $0x91] sm:$0xff]
        %v4659 = vld [vmem:[#allocation2 + $0x99] sm:$0xff]
        %v4660 = vld [vmem:[#allocation2 + $0xa9] sm:$0xff]
        %v4661 = vld [vmem:[#allocation2 + $0xb1] sm:$0xff]
        %v4662 = vld [vmem:[#allocation2 + $0xc1] sm:$0xff]
        %v4663 = vld [vmem:[#allocation2 + $0xc9] sm:$0xff]
        %v4664 = vld [vmem:[#allocation2 + $0xd9] sm:$0xff]
        %v4665 = vld [vmem:[#allocation2 + $0xe1] sm:$0xff]
        %v4666 = vld [vmem:[#allocation2 + $0xf1] sm:$0xff]
        %v4667 = vld [vmem:[#allocation2 + $0xf9] sm:$0xff]
        %v4668 = vld [vmem:[#allocation2 + $0x109] sm:$0xff]
        %v4669 = vld [vmem:[#allocation2 + $0x111] sm:$0xff]
        %v4670 = vld [vmem:[#allocation2 + $0x121] sm:$0xff]
        %v4671 = vld [vmem:[#allocation2 + $0x129] sm:$0xff]
        %v4672 = vld [vmem:[#allocation2 + $0x139] sm:$0xff]
        %v4673 = vld [vmem:[#allocation2 + $0x141] sm:$0xff]
        %v4674 = vld [vmem:[#allocation2 + $0x151] sm:$0xff]
        %v4675 = vld [vmem:[#allocation2 + $0x159] sm:$0xff]
        %v4676 = vld [vmem:[#allocation2 + $0x169] sm:$0xff]
        %v4677 = vld [vmem:[#allocation2 + $0x171] sm:$0xff]
        %v4678 = vld [vmem:[#allocation2 + $0x2] sm:$0xff]
        %v4679 = vld [vmem:[#allocation2 + $0xa] sm:$0xff]
        %v4680 = vld [vmem:[#allocation2 + $0x1a] sm:$0xff]
        %v4681 = vld [vmem:[#allocation2 + $0x22] sm:$0xff]
        %v4682 = vld [vmem:[#allocation2 + $0x32] sm:$0xff]
        %v4683 = vld [vmem:[#allocation2 + $0x3a] sm:$0xff]
        %v4684 = vld [vmem:[#allocation2 + $0x4a] sm:$0xff]
        %v4685 = vld [vmem:[#allocation2 + $0x52] sm:$0xff]
        %v4686 = vld [vmem:[#allocation2 + $0x62] sm:$0xff]
        %v4687 = vld [vmem:[#allocation2 + $0x6a] sm:$0xff]
        %v4688 = vld [vmem:[#allocation2 + $0x7a] sm:$0xff]
        %v4689 = vld [vmem:[#allocation2 + $0x82] sm:$0xff]
        %v4690 = vld [vmem:[#allocation2 + $0x92] sm:$0xff]
        %v4691 = vld [vmem:[#allocation2 + $0x9a] sm:$0xff]
        %v4692 = vld [vmem:[#allocation2 + $0xaa] sm:$0xff]
        %v4693 = vld [vmem:[#allocation2 + $0xb2] sm:$0xff]
        %v4694 = vld [vmem:[#allocation2 + $0xc2] sm:$0xff]
        %v4695 = vld [vmem:[#allocation2 + $0xca] sm:$0xff]
        %v4696 = vld [vmem:[#allocation2 + $0xda] sm:$0xff]
        %v4697 = vld [vmem:[#allocation2 + $0xe2] sm:$0xff]
        %v4698 = vld [vmem:[#allocation2 + $0xf2] sm:$0xff]
        %v4699 = vld [vmem:[#allocation2 + $0xfa] sm:$0xff]
        %v4700 = vld [vmem:[#allocation2 + $0x10a] sm:$0xff]
        %v4701 = vld [vmem:[#allocation2 + $0x112] sm:$0xff]
        %v4702 = vld [vmem:[#allocation2 + $0x122] sm:$0xff]
        %v4703 = vld [vmem:[#allocation2 + $0x12a] sm:$0xff]
        %v4704 = vld [vmem:[#allocation2 + $0x13a] sm:$0xff]
        %v4705 = vld [vmem:[#allocation2 + $0x142] sm:$0xff]
        %v4706 = vld [vmem:[#allocation2 + $0x152] sm:$0xff]
        %v4707 = vld [vmem:[#allocation2 + $0x15a] sm:$0xff]
        %v4708 = vld [vmem:[#allocation2 + $0x16a] sm:$0xff]
        %v4709 = vld [vmem:[#allocation2 + $0x172] sm:$0xff]
        %v4710 = vld [vmem:[%s481] sm:$0xff]
        %v4711 = vld [vmem:[%s481 + $0x8] sm:$0xff]
        %v4712 = vld [vmem:[%s481 + $0x18] sm:$0xff]
        %v4713 = vld [vmem:[%s481 + $0x20] sm:$0xff]
        %v4714 = vld [vmem:[%s481 + $0x30] sm:$0xff]
        %v4715 = vld [vmem:[%s481 + $0x38] sm:$0xff]
        %v4716 = vld [vmem:[%s481 + $0x48] sm:$0xff]
        %v4717 = vld [vmem:[%s481 + $0x50] sm:$0xff]
        %v4718 = vld [vmem:[%s481 + $0x60] sm:$0xff]
        %v4719 = vld [vmem:[%s481 + $0x68] sm:$0xff]
        %v4720 = vld [vmem:[%s481 + $0x78] sm:$0xff]
        %v4721 = vld [vmem:[%s481 + $0x80] sm:$0xff]
        %v4722 = vld [vmem:[%s481 + $0x90] sm:$0xff]
        %v4723 = vld [vmem:[%s481 + $0x98] sm:$0xff]
        %v4724 = vld [vmem:[%s481 + $0xa8] sm:$0xff]
        %v4725 = vld [vmem:[%s481 + $0xb0] sm:$0xff]
        %v4726 = vld [vmem:[%s481 + $0xc0] sm:$0xff]
        %v4727 = vld [vmem:[%s481 + $0xc8] sm:$0xff]
        %v4728 = vld [vmem:[%s481 + $0xd8] sm:$0xff]
        %v4729 = vld [vmem:[%s481 + $0xe0] sm:$0xff]
        %v4730 = vld [vmem:[%s481 + $0xf0] sm:$0xff]
        %v4731 = vld [vmem:[%s481 + $0xf8] sm:$0xff]
        %v4732 = vld [vmem:[%s481 + $0x108] sm:$0xff]
        %v4733 = vld [vmem:[%s481 + $0x110] sm:$0xff]
        %v4734 = vld [vmem:[%s481 + $0x120] sm:$0xff]
        %v4735 = vld [vmem:[%s481 + $0x128] sm:$0xff]
        %v4736 = vld [vmem:[%s481 + $0x138] sm:$0xff]
        %v4737 = vld [vmem:[%s481 + $0x140] sm:$0xff]
        %v4738 = vld [vmem:[%s481 + $0x150] sm:$0xff]
        %v4739 = vld [vmem:[%s481 + $0x158] sm:$0xff]
        %v4740 = vld [vmem:[%s481 + $0x168] sm:$0xff]
        %v4741 = vld [vmem:[%s481 + $0x170] sm:$0xff]
        %v4742 = vld [vmem:[%s481 + $0x1] sm:$0xff]
        %v4743 = vld [vmem:[%s481 + $0x9] sm:$0xff]
        %v4744 = vld [vmem:[%s481 + $0x19] sm:$0xff]
        %v4745 = vld [vmem:[%s481 + $0x21] sm:$0xff]
        %v4746 = vld [vmem:[%s481 + $0x31] sm:$0xff]
        %v4747 = vld [vmem:[%s481 + $0x39] sm:$0xff]
        %v4748 = vld [vmem:[%s481 + $0x49] sm:$0xff]
        %v4749 = vld [vmem:[%s481 + $0x51] sm:$0xff]
        %v4750 = vld [vmem:[%s481 + $0x61] sm:$0xff]
        %v4751 = vld [vmem:[%s481 + $0x69] sm:$0xff]
        %v4752 = vld [vmem:[%s481 + $0x79] sm:$0xff]
        %v4753 = vld [vmem:[%s481 + $0x81] sm:$0xff]
        %v4754 = vld [vmem:[%s481 + $0x91] sm:$0xff]
        %v4755 = vld [vmem:[%s481 + $0x99] sm:$0xff]
        %v4756 = vld [vmem:[%s481 + $0xa9] sm:$0xff]
        %v4757 = vld [vmem:[%s481 + $0xb1] sm:$0xff]
        %v4758 = vld [vmem:[%s481 + $0xc1] sm:$0xff]
        %v4759 = vld [vmem:[%s481 + $0xc9] sm:$0xff]
        %v4760 = vld [vmem:[%s481 + $0xd9] sm:$0xff]
        %v4761 = vld [vmem:[%s481 + $0xe1] sm:$0xff]
        %v4762 = vld [vmem:[%s481 + $0xf1] sm:$0xff]
        %v4763 = vld [vmem:[%s481 + $0xf9] sm:$0xff]
        %v4764 = vld [vmem:[%s481 + $0x109] sm:$0xff]
        %v4765 = vld [vmem:[%s481 + $0x111] sm:$0xff]
        %v4766 = vld [vmem:[%s481 + $0x121] sm:$0xff]
        %v4767 = vld [vmem:[%s481 + $0x129] sm:$0xff]
        %v4768 = vld [vmem:[%s481 + $0x139] sm:$0xff]
        %v4769 = vld [vmem:[%s481 + $0x141] sm:$0xff]
        %v4770 = vld [vmem:[%s481 + $0x151] sm:$0xff]
        %v4771 = vld [vmem:[%s481 + $0x159] sm:$0xff]
        %v4772 = vld [vmem:[%s481 + $0x169] sm:$0xff]
        %v4773 = vld [vmem:[%s481 + $0x171] sm:$0xff]
        %v4774 = vld [vmem:[%s481 + $0x2] sm:$0xff]
        %v4775 = vld [vmem:[%s481 + $0xa] sm:$0xff]
        %v4776 = vld [vmem:[%s481 + $0x1a] sm:$0xff]
        %v4777 = vld [vmem:[%s481 + $0x22] sm:$0xff]
        %v4778 = vld [vmem:[%s481 + $0x32] sm:$0xff]
        %v4779 = vld [vmem:[%s481 + $0x3a] sm:$0xff]
        %v4780 = vld [vmem:[%s481 + $0x4a] sm:$0xff]
        %v4781 = vld [vmem:[%s481 + $0x52] sm:$0xff]
        %v4782 = vld [vmem:[%s481 + $0x62] sm:$0xff]
        %v4783 = vld [vmem:[%s481 + $0x6a] sm:$0xff]
        %v4784 = vld [vmem:[%s481 + $0x7a] sm:$0xff]
        %v4785 = vld [vmem:[%s481 + $0x82] sm:$0xff]
        %v4786 = vld [vmem:[%s481 + $0x92] sm:$0xff]
        %v4787 = vld [vmem:[%s481 + $0x9a] sm:$0xff]
        %v4788 = vld [vmem:[%s481 + $0xaa] sm:$0xff]
        %v4789 = vld [vmem:[%s481 + $0xb2] sm:$0xff]
        %v4790 = vld [vmem:[%s481 + $0xc2] sm:$0xff]
        %v4791 = vld [vmem:[%s481 + $0xca] sm:$0xff]
        %v4792 = vld [vmem:[%s481 + $0xda] sm:$0xff]
        %v4793 = vld [vmem:[%s481 + $0xe2] sm:$0xff]
        %v4794 = vld [vmem:[%s481 + $0xf2] sm:$0xff]
        %v4795 = vld [vmem:[%s481 + $0xfa] sm:$0xff]
        %v4796 = vld [vmem:[%s481 + $0x10a] sm:$0xff]
        %v4797 = vld [vmem:[%s481 + $0x112] sm:$0xff]
        %v4798 = vld [vmem:[%s481 + $0x122] sm:$0xff]
        %v4799 = vld [vmem:[%s481 + $0x12a] sm:$0xff]
        %v4800 = vld [vmem:[%s481 + $0x13a] sm:$0xff]
        %v4801 = vld [vmem:[%s481 + $0x142] sm:$0xff]
        %v4802 = vld [vmem:[%s481 + $0x152] sm:$0xff]
        %v4803 = vld [vmem:[%s481 + $0x15a] sm:$0xff]
        %v4804 = vld [vmem:[%s481 + $0x16a] sm:$0xff]
        %v4805 = vld [vmem:[%s481 + $0x172] sm:$0xff]
        %v4806 = vld [vmem:[%s785] sm:$0xff]
        %v4807 = vld [vmem:[%s785 + $0x8] sm:$0xff]
        %v4808 = vld [vmem:[%s785 + $0x18] sm:$0xff]
        %v4809 = vld [vmem:[%s785 + $0x20] sm:$0xff]
        %v4810 = vld [vmem:[%s785 + $0x30] sm:$0xff]
        %v4811 = vld [vmem:[%s785 + $0x38] sm:$0xff]
        %v4812 = vld [vmem:[%s785 + $0x48] sm:$0xff]
        %v4813 = vld [vmem:[%s785 + $0x50] sm:$0xff]
        %v4814 = vld [vmem:[%s785 + $0x60] sm:$0xff]
        %v4815 = vld [vmem:[%s785 + $0x68] sm:$0xff]
        %v4816 = vld [vmem:[%s785 + $0x78] sm:$0xff]
        %v4817 = vld [vmem:[%s785 + $0x80] sm:$0xff]
        %v4818 = vld [vmem:[%s785 + $0x90] sm:$0xff]
        %v4819 = vld [vmem:[%s785 + $0x98] sm:$0xff]
        %v4820 = vld [vmem:[%s785 + $0xa8] sm:$0xff]
        %v4821 = vld [vmem:[%s785 + $0xb0] sm:$0xff]
        %v4822 = vld [vmem:[%s785 + $0xc0] sm:$0xff]
        %v4823 = vld [vmem:[%s785 + $0xc8] sm:$0xff]
        %v4824 = vld [vmem:[%s785 + $0xd8] sm:$0xff]
        %v4825 = vld [vmem:[%s785 + $0xe0] sm:$0xff]
        %v4826 = vld [vmem:[%s785 + $0xf0] sm:$0xff]
        %v4827 = vld [vmem:[%s785 + $0xf8] sm:$0xff]
        %v4828 = vld [vmem:[%s785 + $0x108] sm:$0xff]
        %v4829 = vld [vmem:[%s785 + $0x110] sm:$0xff]
        %v4830 = vld [vmem:[%s785 + $0x120] sm:$0xff]
        %v4831 = vld [vmem:[%s785 + $0x128] sm:$0xff]
        %v4832 = vld [vmem:[%s785 + $0x138] sm:$0xff]
        %v4833 = vld [vmem:[%s785 + $0x140] sm:$0xff]
        %v4834 = vld [vmem:[%s785 + $0x150] sm:$0xff]
        %v4835 = vld [vmem:[%s785 + $0x158] sm:$0xff]
        %v4836 = vld [vmem:[%s785 + $0x168] sm:$0xff]
        %v4837 = vld [vmem:[%s785 + $0x170] sm:$0xff]
        %v4838 = vld [vmem:[%s785 + $0x1] sm:$0xff]
        %v4839 = vld [vmem:[%s785 + $0x9] sm:$0xff]
        %v4840 = vld [vmem:[%s785 + $0x19] sm:$0xff]
        %v4841 = vld [vmem:[%s785 + $0x21] sm:$0xff]
        %v4842 = vld [vmem:[%s785 + $0x31] sm:$0xff]
        %v4843 = vld [vmem:[%s785 + $0x39] sm:$0xff]
        %v4844 = vld [vmem:[%s785 + $0x49] sm:$0xff]
        %v4845 = vld [vmem:[%s785 + $0x51] sm:$0xff]
        %v4846 = vld [vmem:[%s785 + $0x61] sm:$0xff]
        %v4847 = vld [vmem:[%s785 + $0x69] sm:$0xff]
        %v4848 = vld [vmem:[%s785 + $0x79] sm:$0xff]
        %v4849 = vld [vmem:[%s785 + $0x81] sm:$0xff]
        %v4850 = vld [vmem:[%s785 + $0x91] sm:$0xff]
        %v4851 = vld [vmem:[%s785 + $0x99] sm:$0xff]
        %v4852 = vld [vmem:[%s785 + $0xa9] sm:$0xff]
        %v4853 = vld [vmem:[%s785 + $0xb1] sm:$0xff]
        %v4854 = vld [vmem:[%s785 + $0xc1] sm:$0xff]
        %v4855 = vld [vmem:[%s785 + $0xc9] sm:$0xff]
        %v4856 = vld [vmem:[%s785 + $0xd9] sm:$0xff]
        %v4857 = vld [vmem:[%s785 + $0xe1] sm:$0xff]
        %v4858 = vld [vmem:[%s785 + $0xf1] sm:$0xff]
        %v4859 = vld [vmem:[%s785 + $0xf9] sm:$0xff]
        %v4860 = vld [vmem:[%s785 + $0x109] sm:$0xff]
        %v4861 = vld [vmem:[%s785 + $0x111] sm:$0xff]
        %v4862 = vld [vmem:[%s785 + $0x121] sm:$0xff]
        %v4863 = vld [vmem:[%s785 + $0x129] sm:$0xff]
        %v4864 = vld [vmem:[%s785 + $0x139] sm:$0xff]
        %v4865 = vld [vmem:[%s785 + $0x141] sm:$0xff]
        %v4866 = vld [vmem:[%s785 + $0x151] sm:$0xff]
        %v4867 = vld [vmem:[%s785 + $0x159] sm:$0xff]
        %v4868 = vld [vmem:[%s785 + $0x169] sm:$0xff]
        %v4869 = vld [vmem:[%s785 + $0x171] sm:$0xff]
        %v4870 = vld [vmem:[%s785 + $0x2] sm:$0xff]
        %v4871 = vld [vmem:[%s785 + $0xa] sm:$0xff]
        %v4872 = vld [vmem:[%s785 + $0x1a] sm:$0xff]
        %v4873 = vld [vmem:[%s785 + $0x22] sm:$0xff]
        %v4874 = vld [vmem:[%s785 + $0x32] sm:$0xff]
        %v4875 = vld [vmem:[%s785 + $0x3a] sm:$0xff]
        %v4876 = vld [vmem:[%s785 + $0x4a] sm:$0xff]
        %v4877 = vld [vmem:[%s785 + $0x52] sm:$0xff]
        %v4878 = vld [vmem:[%s785 + $0x62] sm:$0xff]
        %v4879 = vld [vmem:[%s785 + $0x6a] sm:$0xff]
        %v4880 = vld [vmem:[%s785 + $0x7a] sm:$0xff]
        %v4881 = vld [vmem:[%s785 + $0x82] sm:$0xff]
        %v4882 = vld [vmem:[%s785 + $0x92] sm:$0xff]
        %v4883 = vld [vmem:[%s785 + $0x9a] sm:$0xff]
        %v4884 = vld [vmem:[%s785 + $0xaa] sm:$0xff]
        %v4885 = vld [vmem:[%s785 + $0xb2] sm:$0xff]
        %v4886 = vld [vmem:[%s785 + $0xc2] sm:$0xff]
        %v4887 = vld [vmem:[%s785 + $0xca] sm:$0xff]
        %v4888 = vld [vmem:[%s785 + $0xda] sm:$0xff]
        %v4889 = vld [vmem:[%s785 + $0xe2] sm:$0xff]
        %v4890 = vld [vmem:[%s785 + $0xf2] sm:$0xff]
        %v4891 = vld [vmem:[%s785 + $0xfa] sm:$0xff]
        %v4892 = vld [vmem:[%s785 + $0x10a] sm:$0xff]
        %v4893 = vld [vmem:[%s785 + $0x112] sm:$0xff]
        %v4894 = vld [vmem:[%s785 + $0x122] sm:$0xff]
        %v4895 = vld [vmem:[%s785 + $0x12a] sm:$0xff]
        %v4896 = vld [vmem:[%s785 + $0x13a] sm:$0xff]
        %v4897 = vld [vmem:[%s785 + $0x142] sm:$0xff]
        %v4898 = vld [vmem:[%s785 + $0x152] sm:$0xff]
        %v4899 = vld [vmem:[%s785 + $0x15a] sm:$0xff]
        %v4900 = vld [vmem:[%s785 + $0x16a] sm:$0xff]
        %v4901 = vld [vmem:[%s785 + $0x172] sm:$0xff]
        %4934 = vrot.lane.b32.xlu0 %v4646, 32
        %v4935 = vpop.permute.xlu0 %4934
        %4936 = vrot.lane.b32.xlu0 %v4647, 32
        %v4937 = vpop.permute.xlu0 %4936
        %4938 = vrot.lane.b32.xlu0 %v4648, 32
        %v4939 = vpop.permute.xlu0 %4938
        %4940 = vrot.lane.b32.xlu0 %v4649, 32
        %v4941 = vpop.permute.xlu0 %4940
        %4942 = vrot.lane.b32.xlu0 %v4650, 32
        %v4943 = vpop.permute.xlu0 %4942
        %4944 = vrot.lane.b32.xlu0 %v4651, 32
        %v4945 = vpop.permute.xlu0 %4944
        %4946 = vrot.lane.b32.xlu0 %v4652, 32
        %v4947 = vpop.permute.xlu0 %4946
        %4948 = vrot.lane.b32.xlu0 %v4653, 32
        %v4949 = vpop.permute.xlu0 %4948
        %4950 = vrot.lane.b32.xlu0 %v4654, 32
        %v4951 = vpop.permute.xlu0 %4950
        %4952 = vrot.lane.b32.xlu0 %v4655, 32
        %v4953 = vpop.permute.xlu0 %4952
        %4954 = vrot.lane.b32.xlu0 %v4656, 32
        %v4955 = vpop.permute.xlu0 %4954
        %4956 = vrot.lane.b32.xlu0 %v4657, 32
        %v4957 = vpop.permute.xlu0 %4956
        %4958 = vrot.lane.b32.xlu0 %v4658, 32
        %v4959 = vpop.permute.xlu0 %4958
        %4960 = vrot.lane.b32.xlu0 %v4659, 32
        %v4961 = vpop.permute.xlu0 %4960
        %4962 = vrot.lane.b32.xlu0 %v4660, 32
        %v4963 = vpop.permute.xlu0 %4962
        %4964 = vrot.lane.b32.xlu0 %v4661, 32
        %v4965 = vpop.permute.xlu0 %4964
        %4966 = vrot.lane.b32.xlu0 %v4662, 32
        %v4967 = vpop.permute.xlu0 %4966
        %4968 = vrot.lane.b32.xlu0 %v4663, 32
        %v4969 = vpop.permute.xlu0 %4968
        %4970 = vrot.lane.b32.xlu0 %v4664, 32
        %v4971 = vpop.permute.xlu0 %4970
        %4972 = vrot.lane.b32.xlu0 %v4665, 32
        %v4973 = vpop.permute.xlu0 %4972
        %4974 = vrot.lane.b32.xlu0 %v4666, 32
        %v4975 = vpop.permute.xlu0 %4974
        %4976 = vrot.lane.b32.xlu0 %v4667, 32
        %v4977 = vpop.permute.xlu0 %4976
        %4978 = vrot.lane.b32.xlu0 %v4668, 32
        %v4979 = vpop.permute.xlu0 %4978
        %4980 = vrot.lane.b32.xlu0 %v4669, 32
        %v4981 = vpop.permute.xlu0 %4980
        %4982 = vrot.lane.b32.xlu0 %v4670, 32
        %v4983 = vpop.permute.xlu0 %4982
        %4984 = vrot.lane.b32.xlu0 %v4671, 32
        %v4985 = vpop.permute.xlu0 %4984
        %4986 = vrot.lane.b32.xlu0 %v4672, 32
        %v4987 = vpop.permute.xlu0 %4986
        %4988 = vrot.lane.b32.xlu0 %v4673, 32
        %v4989 = vpop.permute.xlu0 %4988
        %4990 = vrot.lane.b32.xlu0 %v4674, 32
        %v4991 = vpop.permute.xlu0 %4990
        %4992 = vrot.lane.b32.xlu0 %v4675, 32
        %v4993 = vpop.permute.xlu0 %4992
        %4994 = vrot.lane.b32.xlu0 %v4676, 32
        %v4995 = vpop.permute.xlu0 %4994
        %4996 = vrot.lane.b32.xlu0 %v4677, 32
        %v4997 = vpop.permute.xlu0 %4996
        %5062 = vrot.lane.b32.xlu0 %v4678, 64
        %v5063 = vpop.permute.xlu0 %5062
        %5064 = vrot.lane.b32.xlu0 %v4679, 64
        %v5065 = vpop.permute.xlu0 %5064
        %5066 = vrot.lane.b32.xlu0 %v4680, 64
        %v5067 = vpop.permute.xlu0 %5066
        %5068 = vrot.lane.b32.xlu0 %v4681, 64
        %v5069 = vpop.permute.xlu0 %5068
        %5070 = vrot.lane.b32.xlu0 %v4682, 64
        %v5071 = vpop.permute.xlu0 %5070
        %5072 = vrot.lane.b32.xlu0 %v4683, 64
        %v5073 = vpop.permute.xlu0 %5072
        %5074 = vrot.lane.b32.xlu0 %v4684, 64
        %v5075 = vpop.permute.xlu0 %5074
        %5076 = vrot.lane.b32.xlu0 %v4685, 64
        %v5077 = vpop.permute.xlu0 %5076
        %5078 = vrot.lane.b32.xlu0 %v4686, 64
        %v5079 = vpop.permute.xlu0 %5078
        %5080 = vrot.lane.b32.xlu0 %v4687, 64
        %v5081 = vpop.permute.xlu0 %5080
        %5082 = vrot.lane.b32.xlu0 %v4688, 64
        %v5083 = vpop.permute.xlu0 %5082
        %5084 = vrot.lane.b32.xlu0 %v4689, 64
        %v5085 = vpop.permute.xlu0 %5084
        %5086 = vrot.lane.b32.xlu0 %v4690, 64
        %v5087 = vpop.permute.xlu0 %5086
        %5088 = vrot.lane.b32.xlu0 %v4691, 64
        %v5089 = vpop.permute.xlu0 %5088
        %5090 = vrot.lane.b32.xlu0 %v4692, 64
        %v5091 = vpop.permute.xlu0 %5090
        %5092 = vrot.lane.b32.xlu0 %v4693, 64
        %v5093 = vpop.permute.xlu0 %5092
        %5094 = vrot.lane.b32.xlu0 %v4694, 64
        %v5095 = vpop.permute.xlu0 %5094
        %5096 = vrot.lane.b32.xlu0 %v4695, 64
        %v5097 = vpop.permute.xlu0 %5096
        %5098 = vrot.lane.b32.xlu0 %v4696, 64
        %v5099 = vpop.permute.xlu0 %5098
        %5100 = vrot.lane.b32.xlu0 %v4697, 64
        %v5101 = vpop.permute.xlu0 %5100
        %5102 = vrot.lane.b32.xlu0 %v4698, 64
        %v5103 = vpop.permute.xlu0 %5102
        %5104 = vrot.lane.b32.xlu0 %v4699, 64
        %v5105 = vpop.permute.xlu0 %5104
        %5106 = vrot.lane.b32.xlu0 %v4700, 64
        %v5107 = vpop.permute.xlu0 %5106
        %5108 = vrot.lane.b32.xlu0 %v4701, 64
        %v5109 = vpop.permute.xlu0 %5108
        %5110 = vrot.lane.b32.xlu0 %v4702, 64
        %v5111 = vpop.permute.xlu0 %5110
        %5112 = vrot.lane.b32.xlu0 %v4703, 64
        %v5113 = vpop.permute.xlu0 %5112
        %5114 = vrot.lane.b32.xlu0 %v4704, 64
        %v5115 = vpop.permute.xlu0 %5114
        %5116 = vrot.lane.b32.xlu0 %v4705, 64
        %v5117 = vpop.permute.xlu0 %5116
        %5118 = vrot.lane.b32.xlu0 %v4706, 64
        %v5119 = vpop.permute.xlu0 %5118
        %5120 = vrot.lane.b32.xlu0 %v4707, 64
        %v5121 = vpop.permute.xlu0 %5120
        %5122 = vrot.lane.b32.xlu0 %v4708, 64
        %v5123 = vpop.permute.xlu0 %5122
        %5124 = vrot.lane.b32.xlu0 %v4709, 64
        %v5125 = vpop.permute.xlu0 %5124
        %5190 = vrot.lane.b32.xlu0 %v4710, 96
        %v5191 = vpop.permute.xlu0 %5190
        %5192 = vrot.lane.b32.xlu0 %v4711, 96
        %v5193 = vpop.permute.xlu0 %5192
        %5194 = vrot.lane.b32.xlu0 %v4712, 96
        %v5195 = vpop.permute.xlu0 %5194
        %5196 = vrot.lane.b32.xlu0 %v4713, 96
        %v5197 = vpop.permute.xlu0 %5196
        %5198 = vrot.lane.b32.xlu0 %v4714, 96
        %v5199 = vpop.permute.xlu0 %5198
        %5200 = vrot.lane.b32.xlu0 %v4715, 96
        %v5201 = vpop.permute.xlu0 %5200
        %5202 = vrot.lane.b32.xlu0 %v4716, 96
        %v5203 = vpop.permute.xlu0 %5202
        %5204 = vrot.lane.b32.xlu0 %v4717, 96
        %v5205 = vpop.permute.xlu0 %5204
        %5206 = vrot.lane.b32.xlu0 %v4718, 96
        %v5207 = vpop.permute.xlu0 %5206
        %5208 = vrot.lane.b32.xlu0 %v4719, 96
        %v5209 = vpop.permute.xlu0 %5208
        %5210 = vrot.lane.b32.xlu0 %v4720, 96
        %v5211 = vpop.permute.xlu0 %5210
        %5212 = vrot.lane.b32.xlu0 %v4721, 96
        %v5213 = vpop.permute.xlu0 %5212
        %5214 = vrot.lane.b32.xlu0 %v4722, 96
        %v5215 = vpop.permute.xlu0 %5214
        %5216 = vrot.lane.b32.xlu0 %v4723, 96
        %v5217 = vpop.permute.xlu0 %5216
        %5218 = vrot.lane.b32.xlu0 %v4724, 96
        %v5219 = vpop.permute.xlu0 %5218
        %5220 = vrot.lane.b32.xlu0 %v4725, 96
        %v5221 = vpop.permute.xlu0 %5220
        %5222 = vrot.lane.b32.xlu0 %v4726, 96
        %v5223 = vpop.permute.xlu0 %5222
        %5224 = vrot.lane.b32.xlu0 %v4727, 96
        %v5225 = vpop.permute.xlu0 %5224
        %5226 = vrot.lane.b32.xlu0 %v4728, 96
        %v5227 = vpop.permute.xlu0 %5226
        %5228 = vrot.lane.b32.xlu0 %v4729, 96
        %v5229 = vpop.permute.xlu0 %5228
        %5230 = vrot.lane.b32.xlu0 %v4730, 96
        %v5231 = vpop.permute.xlu0 %5230
        %5232 = vrot.lane.b32.xlu0 %v4731, 96
        %v5233 = vpop.permute.xlu0 %5232
        %5234 = vrot.lane.b32.xlu0 %v4732, 96
        %v5235 = vpop.permute.xlu0 %5234
        %5236 = vrot.lane.b32.xlu0 %v4733, 96
        %v5237 = vpop.permute.xlu0 %5236
        %5238 = vrot.lane.b32.xlu0 %v4734, 96
        %v5239 = vpop.permute.xlu0 %5238
        %5240 = vrot.lane.b32.xlu0 %v4735, 96
        %v5241 = vpop.permute.xlu0 %5240
        %5242 = vrot.lane.b32.xlu0 %v4736, 96
        %v5243 = vpop.permute.xlu0 %5242
        %5244 = vrot.lane.b32.xlu0 %v4737, 96
        %v5245 = vpop.permute.xlu0 %5244
        %5246 = vrot.lane.b32.xlu0 %v4738, 96
        %v5247 = vpop.permute.xlu0 %5246
        %5248 = vrot.lane.b32.xlu0 %v4739, 96
        %v5249 = vpop.permute.xlu0 %5248
        %5250 = vrot.lane.b32.xlu0 %v4740, 96
        %v5251 = vpop.permute.xlu0 %5250
        %5252 = vrot.lane.b32.xlu0 %v4741, 96
        %v5253 = vpop.permute.xlu0 %5252
        %5318 = vrot.lane.b32.xlu0 %v4774, 32
        %v5319 = vpop.permute.xlu0 %5318
        %5320 = vrot.lane.b32.xlu0 %v4775, 32
        %v5321 = vpop.permute.xlu0 %5320
        %5322 = vrot.lane.b32.xlu0 %v4776, 32
        %v5323 = vpop.permute.xlu0 %5322
        %5324 = vrot.lane.b32.xlu0 %v4777, 32
        %v5325 = vpop.permute.xlu0 %5324
        %5326 = vrot.lane.b32.xlu0 %v4778, 32
        %v5327 = vpop.permute.xlu0 %5326
        %5328 = vrot.lane.b32.xlu0 %v4779, 32
        %v5329 = vpop.permute.xlu0 %5328
        %5330 = vrot.lane.b32.xlu0 %v4780, 32
        %v5331 = vpop.permute.xlu0 %5330
        %5332 = vrot.lane.b32.xlu0 %v4781, 32
        %v5333 = vpop.permute.xlu0 %5332
        %5334 = vrot.lane.b32.xlu0 %v4782, 32
        %v5335 = vpop.permute.xlu0 %5334
        %5336 = vrot.lane.b32.xlu0 %v4783, 32
        %v5337 = vpop.permute.xlu0 %5336
        %5338 = vrot.lane.b32.xlu0 %v4784, 32
        %v5339 = vpop.permute.xlu0 %5338
        %5340 = vrot.lane.b32.xlu0 %v4785, 32
        %v5341 = vpop.permute.xlu0 %5340
        %5342 = vrot.lane.b32.xlu0 %v4786, 32
        %v5343 = vpop.permute.xlu0 %5342
        %5344 = vrot.lane.b32.xlu0 %v4787, 32
        %v5345 = vpop.permute.xlu0 %5344
        %5346 = vrot.lane.b32.xlu0 %v4788, 32
        %v5347 = vpop.permute.xlu0 %5346
        %5348 = vrot.lane.b32.xlu0 %v4789, 32
        %v5349 = vpop.permute.xlu0 %5348
        %5350 = vrot.lane.b32.xlu0 %v4790, 32
        %v5351 = vpop.permute.xlu0 %5350
        %5352 = vrot.lane.b32.xlu0 %v4791, 32
        %v5353 = vpop.permute.xlu0 %5352
        %5354 = vrot.lane.b32.xlu0 %v4792, 32
        %v5355 = vpop.permute.xlu0 %5354
        %5356 = vrot.lane.b32.xlu0 %v4793, 32
        %v5357 = vpop.permute.xlu0 %5356
        %5358 = vrot.lane.b32.xlu0 %v4794, 32
        %v5359 = vpop.permute.xlu0 %5358
        %5360 = vrot.lane.b32.xlu0 %v4795, 32
        %v5361 = vpop.permute.xlu0 %5360
        %5362 = vrot.lane.b32.xlu0 %v4796, 32
        %v5363 = vpop.permute.xlu0 %5362
        %5364 = vrot.lane.b32.xlu0 %v4797, 32
        %v5365 = vpop.permute.xlu0 %5364
        %5366 = vrot.lane.b32.xlu0 %v4798, 32
        %v5367 = vpop.permute.xlu0 %5366
        %5368 = vrot.lane.b32.xlu0 %v4799, 32
        %v5369 = vpop.permute.xlu0 %5368
        %5370 = vrot.lane.b32.xlu0 %v4800, 32
        %v5371 = vpop.permute.xlu0 %5370
        %5372 = vrot.lane.b32.xlu0 %v4801, 32
        %v5373 = vpop.permute.xlu0 %5372
        %5374 = vrot.lane.b32.xlu0 %v4802, 32
        %v5375 = vpop.permute.xlu0 %5374
        %5376 = vrot.lane.b32.xlu0 %v4803, 32
        %v5377 = vpop.permute.xlu0 %5376
        %5378 = vrot.lane.b32.xlu0 %v4804, 32
        %v5379 = vpop.permute.xlu0 %5378
        %5380 = vrot.lane.b32.xlu0 %v4805, 32
        %v5381 = vpop.permute.xlu0 %5380
        %5446 = vrot.lane.b32.xlu0 %v4806, 64
        %v5447 = vpop.permute.xlu0 %5446
        %5448 = vrot.lane.b32.xlu0 %v4807, 64
        %v5449 = vpop.permute.xlu0 %5448
        %5450 = vrot.lane.b32.xlu0 %v4808, 64
        %v5451 = vpop.permute.xlu0 %5450
        %5452 = vrot.lane.b32.xlu0 %v4809, 64
        %v5453 = vpop.permute.xlu0 %5452
        %5454 = vrot.lane.b32.xlu0 %v4810, 64
        %v5455 = vpop.permute.xlu0 %5454
        %5456 = vrot.lane.b32.xlu0 %v4811, 64
        %v5457 = vpop.permute.xlu0 %5456
        %5458 = vrot.lane.b32.xlu0 %v4812, 64
        %v5459 = vpop.permute.xlu0 %5458
        %5460 = vrot.lane.b32.xlu0 %v4813, 64
        %v5461 = vpop.permute.xlu0 %5460
        %5462 = vrot.lane.b32.xlu0 %v4814, 64
        %v5463 = vpop.permute.xlu0 %5462
        %5464 = vrot.lane.b32.xlu0 %v4815, 64
        %v5465 = vpop.permute.xlu0 %5464
        %5466 = vrot.lane.b32.xlu0 %v4816, 64
        %v5467 = vpop.permute.xlu0 %5466
        %5468 = vrot.lane.b32.xlu0 %v4817, 64
        %v5469 = vpop.permute.xlu0 %5468
        %5470 = vrot.lane.b32.xlu0 %v4818, 64
        %v5471 = vpop.permute.xlu0 %5470
        %5472 = vrot.lane.b32.xlu0 %v4819, 64
        %v5473 = vpop.permute.xlu0 %5472
        %5474 = vrot.lane.b32.xlu0 %v4820, 64
        %v5475 = vpop.permute.xlu0 %5474
        %5476 = vrot.lane.b32.xlu0 %v4821, 64
        %v5477 = vpop.permute.xlu0 %5476
        %5478 = vrot.lane.b32.xlu0 %v4822, 64
        %v5479 = vpop.permute.xlu0 %5478
        %5480 = vrot.lane.b32.xlu0 %v4823, 64
        %v5481 = vpop.permute.xlu0 %5480
        %5482 = vrot.lane.b32.xlu0 %v4824, 64
        %v5483 = vpop.permute.xlu0 %5482
        %5484 = vrot.lane.b32.xlu0 %v4825, 64
        %v5485 = vpop.permute.xlu0 %5484
        %5486 = vrot.lane.b32.xlu0 %v4826, 64
        %v5487 = vpop.permute.xlu0 %5486
        %5488 = vrot.lane.b32.xlu0 %v4827, 64
        %v5489 = vpop.permute.xlu0 %5488
        %5490 = vrot.lane.b32.xlu0 %v4828, 64
        %v5491 = vpop.permute.xlu0 %5490
        %5492 = vrot.lane.b32.xlu0 %v4829, 64
        %v5493 = vpop.permute.xlu0 %5492
        %5494 = vrot.lane.b32.xlu0 %v4830, 64
        %v5495 = vpop.permute.xlu0 %5494
        %5496 = vrot.lane.b32.xlu0 %v4831, 64
        %v5497 = vpop.permute.xlu0 %5496
        %5498 = vrot.lane.b32.xlu0 %v4832, 64
        %v5499 = vpop.permute.xlu0 %5498
        %5500 = vrot.lane.b32.xlu0 %v4833, 64
        %v5501 = vpop.permute.xlu0 %5500
        %5502 = vrot.lane.b32.xlu0 %v4834, 64
        %v5503 = vpop.permute.xlu0 %5502
        %5504 = vrot.lane.b32.xlu0 %v4835, 64
        %v5505 = vpop.permute.xlu0 %5504
        %5506 = vrot.lane.b32.xlu0 %v4836, 64
        %v5507 = vpop.permute.xlu0 %5506
        %5508 = vrot.lane.b32.xlu0 %v4837, 64
        %v5509 = vpop.permute.xlu0 %5508
        %5574 = vrot.lane.b32.xlu0 %v4838, 96
        %v5575 = vpop.permute.xlu0 %5574
        %5576 = vrot.lane.b32.xlu0 %v4839, 96
        %v5577 = vpop.permute.xlu0 %5576
        %5578 = vrot.lane.b32.xlu0 %v4840, 96
        %v5579 = vpop.permute.xlu0 %5578
        %5580 = vrot.lane.b32.xlu0 %v4841, 96
        %v5581 = vpop.permute.xlu0 %5580
        %5582 = vrot.lane.b32.xlu0 %v4842, 96
        %v5583 = vpop.permute.xlu0 %5582
        %5584 = vrot.lane.b32.xlu0 %v4843, 96
        %v5585 = vpop.permute.xlu0 %5584
        %5586 = vrot.lane.b32.xlu0 %v4844, 96
        %v5587 = vpop.permute.xlu0 %5586
        %5588 = vrot.lane.b32.xlu0 %v4845, 96
        %v5589 = vpop.permute.xlu0 %5588
        %5590 = vrot.lane.b32.xlu0 %v4846, 96
        %v5591 = vpop.permute.xlu0 %5590
        %5592 = vrot.lane.b32.xlu0 %v4847, 96
        %v5593 = vpop.permute.xlu0 %5592
        %5594 = vrot.lane.b32.xlu0 %v4848, 96
        %v5595 = vpop.permute.xlu0 %5594
        %5596 = vrot.lane.b32.xlu0 %v4849, 96
        %v5597 = vpop.permute.xlu0 %5596
        %5598 = vrot.lane.b32.xlu0 %v4850, 96
        %v5599 = vpop.permute.xlu0 %5598
        %5600 = vrot.lane.b32.xlu0 %v4851, 96
        %v5601 = vpop.permute.xlu0 %5600
        %5602 = vrot.lane.b32.xlu0 %v4852, 96
        %v5603 = vpop.permute.xlu0 %5602
        %5604 = vrot.lane.b32.xlu0 %v4853, 96
        %v5605 = vpop.permute.xlu0 %5604
        %5606 = vrot.lane.b32.xlu0 %v4854, 96
        %v5607 = vpop.permute.xlu0 %5606
        %5608 = vrot.lane.b32.xlu0 %v4855, 96
        %v5609 = vpop.permute.xlu0 %5608
        %5610 = vrot.lane.b32.xlu0 %v4856, 96
        %v5611 = vpop.permute.xlu0 %5610
        %5612 = vrot.lane.b32.xlu0 %v4857, 96
        %v5613 = vpop.permute.xlu0 %5612
        %5614 = vrot.lane.b32.xlu0 %v4858, 96
        %v5615 = vpop.permute.xlu0 %5614
        %5616 = vrot.lane.b32.xlu0 %v4859, 96
        %v5617 = vpop.permute.xlu0 %5616
        %5618 = vrot.lane.b32.xlu0 %v4860, 96
        %v5619 = vpop.permute.xlu0 %5618
        %5620 = vrot.lane.b32.xlu0 %v4861, 96
        %v5621 = vpop.permute.xlu0 %5620
        %5622 = vrot.lane.b32.xlu0 %v4862, 96
        %v5623 = vpop.permute.xlu0 %5622
        %5624 = vrot.lane.b32.xlu0 %v4863, 96
        %v5625 = vpop.permute.xlu0 %5624
        %5626 = vrot.lane.b32.xlu0 %v4864, 96
        %v5627 = vpop.permute.xlu0 %5626
        %5628 = vrot.lane.b32.xlu0 %v4865, 96
        %v5629 = vpop.permute.xlu0 %5628
        %5630 = vrot.lane.b32.xlu0 %v4866, 96
        %v5631 = vpop.permute.xlu0 %5630
        %5632 = vrot.lane.b32.xlu0 %v4867, 96
        %v5633 = vpop.permute.xlu0 %5632
        %5634 = vrot.lane.b32.xlu0 %v4868, 96
        %v5635 = vpop.permute.xlu0 %5634
        %5636 = vrot.lane.b32.xlu0 %v4869, 96
        %v5637 = vpop.permute.xlu0 %5636
        %v5670 = vsel %vm482, %v4614, %v4935
        %v5671 = vsel %vm482, %v4615, %v4937
        %v5672 = vsel %vm482, %v4616, %v4939
        %v5673 = vsel %vm482, %v4617, %v4941
        %v5674 = vsel %vm482, %v4618, %v4943
        %v5675 = vsel %vm482, %v4619, %v4945
        %v5676 = vsel %vm482, %v4620, %v4947
        %v5677 = vsel %vm482, %v4621, %v4949
        %v5678 = vsel %vm482, %v4622, %v4951
        %v5679 = vsel %vm482, %v4623, %v4953
        %v5680 = vsel %vm482, %v4624, %v4955
        %v5681 = vsel %vm482, %v4625, %v4957
        %v5682 = vsel %vm482, %v4626, %v4959
        %v5683 = vsel %vm482, %v4627, %v4961
        %v5684 = vsel %vm482, %v4628, %v4963
        %v5685 = vsel %vm482, %v4629, %v4965
        %v5686 = vsel %vm482, %v4630, %v4967
        %v5687 = vsel %vm482, %v4631, %v4969
        %v5688 = vsel %vm482, %v4632, %v4971
        %v5689 = vsel %vm482, %v4633, %v4973
        %v5690 = vsel %vm482, %v4634, %v4975
        %v5691 = vsel %vm482, %v4635, %v4977
        %v5692 = vsel %vm482, %v4636, %v4979
        %v5693 = vsel %vm482, %v4637, %v4981
        %v5694 = vsel %vm482, %v4638, %v4983
        %v5695 = vsel %vm482, %v4639, %v4985
        %v5696 = vsel %vm482, %v4640, %v4987
        %v5697 = vsel %vm482, %v4641, %v4989
        %v5698 = vsel %vm482, %v4642, %v4991
        %v5699 = vsel %vm482, %v4643, %v4993
        %v5700 = vsel %vm482, %v4644, %v4995
        %v5701 = vsel %vm482, %v4645, %v4997
        %v5702 = vsel %vm1682, %v5670, %v5063
        %v5703 = vsel %vm1682, %v5671, %v5065
        %v5704 = vsel %vm1682, %v5672, %v5067
        %v5705 = vsel %vm1682, %v5673, %v5069
        %v5706 = vsel %vm1682, %v5674, %v5071
        %v5707 = vsel %vm1682, %v5675, %v5073
        %v5708 = vsel %vm1682, %v5676, %v5075
        %v5709 = vsel %vm1682, %v5677, %v5077
        %v5710 = vsel %vm1682, %v5678, %v5079
        %v5711 = vsel %vm1682, %v5679, %v5081
        %v5712 = vsel %vm1682, %v5680, %v5083
        %v5713 = vsel %vm1682, %v5681, %v5085
        %v5714 = vsel %vm1682, %v5682, %v5087
        %v5715 = vsel %vm1682, %v5683, %v5089
        %v5716 = vsel %vm1682, %v5684, %v5091
        %v5717 = vsel %vm1682, %v5685, %v5093
        %v5718 = vsel %vm1682, %v5686, %v5095
        %v5719 = vsel %vm1682, %v5687, %v5097
        %v5720 = vsel %vm1682, %v5688, %v5099
        %v5721 = vsel %vm1682, %v5689, %v5101
        %v5722 = vsel %vm1682, %v5690, %v5103
        %v5723 = vsel %vm1682, %v5691, %v5105
        %v5724 = vsel %vm1682, %v5692, %v5107
        %v5725 = vsel %vm1682, %v5693, %v5109
        %v5726 = vsel %vm1682, %v5694, %v5111
        %v5727 = vsel %vm1682, %v5695, %v5113
        %v5728 = vsel %vm1682, %v5696, %v5115
        %v5729 = vsel %vm1682, %v5697, %v5117
        %v5730 = vsel %vm1682, %v5698, %v5119
        %v5731 = vsel %vm1682, %v5699, %v5121
        %v5732 = vsel %vm1682, %v5700, %v5123
        %v5733 = vsel %vm1682, %v5701, %v5125
        %v5734 = vsel %vm1715, %v5702, %v5191
        %v5735 = vsel %vm1715, %v5703, %v5193
        %v5736 = vsel %vm1715, %v5704, %v5195
        %v5737 = vsel %vm1715, %v5705, %v5197
        %v5738 = vsel %vm1715, %v5706, %v5199
        %v5739 = vsel %vm1715, %v5707, %v5201
        %v5740 = vsel %vm1715, %v5708, %v5203
        %v5741 = vsel %vm1715, %v5709, %v5205
        %v5742 = vsel %vm1715, %v5710, %v5207
        %v5743 = vsel %vm1715, %v5711, %v5209
        %v5744 = vsel %vm1715, %v5712, %v5211
        %v5745 = vsel %vm1715, %v5713, %v5213
        %v5746 = vsel %vm1715, %v5714, %v5215
        %v5747 = vsel %vm1715, %v5715, %v5217
        %v5748 = vsel %vm1715, %v5716, %v5219
        %v5749 = vsel %vm1715, %v5717, %v5221
        %v5750 = vsel %vm1715, %v5718, %v5223
        %v5751 = vsel %vm1715, %v5719, %v5225
        %v5752 = vsel %vm1715, %v5720, %v5227
        %v5753 = vsel %vm1715, %v5721, %v5229
        %v5754 = vsel %vm1715, %v5722, %v5231
        %v5755 = vsel %vm1715, %v5723, %v5233
        %v5756 = vsel %vm1715, %v5724, %v5235
        %v5757 = vsel %vm1715, %v5725, %v5237
        %v5758 = vsel %vm1715, %v5726, %v5239
        %v5759 = vsel %vm1715, %v5727, %v5241
        %v5760 = vsel %vm1715, %v5728, %v5243
        %v5761 = vsel %vm1715, %v5729, %v5245
        %v5762 = vsel %vm1715, %v5730, %v5247
        %v5763 = vsel %vm1715, %v5731, %v5249
        %v5764 = vsel %vm1715, %v5732, %v5251
        %v5765 = vsel %vm1715, %v5733, %v5253
        %v5766 = vsel %vm482, %v4742, %v5319
        %v5767 = vsel %vm482, %v4743, %v5321
        %v5768 = vsel %vm482, %v4744, %v5323
        %v5769 = vsel %vm482, %v4745, %v5325
        %v5770 = vsel %vm482, %v4746, %v5327
        %v5771 = vsel %vm482, %v4747, %v5329
        %v5772 = vsel %vm482, %v4748, %v5331
        %v5773 = vsel %vm482, %v4749, %v5333
        %v5774 = vsel %vm482, %v4750, %v5335
        %v5775 = vsel %vm482, %v4751, %v5337
        %v5776 = vsel %vm482, %v4752, %v5339
        %v5777 = vsel %vm482, %v4753, %v5341
        %v5778 = vsel %vm482, %v4754, %v5343
        %v5779 = vsel %vm482, %v4755, %v5345
        %v5780 = vsel %vm482, %v4756, %v5347
        %v5781 = vsel %vm482, %v4757, %v5349
        %v5782 = vsel %vm482, %v4758, %v5351
        %v5783 = vsel %vm482, %v4759, %v5353
        %v5784 = vsel %vm482, %v4760, %v5355
        %v5785 = vsel %vm482, %v4761, %v5357
        %v5786 = vsel %vm482, %v4762, %v5359
        %v5787 = vsel %vm482, %v4763, %v5361
        %v5788 = vsel %vm482, %v4764, %v5363
        %v5789 = vsel %vm482, %v4765, %v5365
        %v5790 = vsel %vm482, %v4766, %v5367
        %v5791 = vsel %vm482, %v4767, %v5369
        %v5792 = vsel %vm482, %v4768, %v5371
        %v5793 = vsel %vm482, %v4769, %v5373
        %v5794 = vsel %vm482, %v4770, %v5375
        %v5795 = vsel %vm482, %v4771, %v5377
        %v5796 = vsel %vm482, %v4772, %v5379
        %v5797 = vsel %vm482, %v4773, %v5381
        %v5798 = vsel %vm1682, %v5766, %v5447
        %v5799 = vsel %vm1682, %v5767, %v5449
        %v5800 = vsel %vm1682, %v5768, %v5451
        %v5801 = vsel %vm1682, %v5769, %v5453
        %v5802 = vsel %vm1682, %v5770, %v5455
        %v5803 = vsel %vm1682, %v5771, %v5457
        %v5804 = vsel %vm1682, %v5772, %v5459
        %v5805 = vsel %vm1682, %v5773, %v5461
        %v5806 = vsel %vm1682, %v5774, %v5463
        %v5807 = vsel %vm1682, %v5775, %v5465
        %v5808 = vsel %vm1682, %v5776, %v5467
        %v5809 = vsel %vm1682, %v5777, %v5469
        %v5810 = vsel %vm1682, %v5778, %v5471
        %v5811 = vsel %vm1682, %v5779, %v5473
        %v5812 = vsel %vm1682, %v5780, %v5475
        %v5813 = vsel %vm1682, %v5781, %v5477
        %v5814 = vsel %vm1682, %v5782, %v5479
        %v5815 = vsel %vm1682, %v5783, %v5481
        %v5816 = vsel %vm1682, %v5784, %v5483
        %v5817 = vsel %vm1682, %v5785, %v5485
        %v5818 = vsel %vm1682, %v5786, %v5487
        %v5819 = vsel %vm1682, %v5787, %v5489
        %v5820 = vsel %vm1682, %v5788, %v5491
        %v5821 = vsel %vm1682, %v5789, %v5493
        %v5822 = vsel %vm1682, %v5790, %v5495
        %v5823 = vsel %vm1682, %v5791, %v5497
        %v5824 = vsel %vm1682, %v5792, %v5499
        %v5825 = vsel %vm1682, %v5793, %v5501
        %v5826 = vsel %vm1682, %v5794, %v5503
        %v5827 = vsel %vm1682, %v5795, %v5505
        %v5828 = vsel %vm1682, %v5796, %v5507
        %v5829 = vsel %vm1682, %v5797, %v5509
        %v5830 = vsel %vm1715, %v5798, %v5575
        %v5831 = vsel %vm1715, %v5799, %v5577
        %v5832 = vsel %vm1715, %v5800, %v5579
        %v5833 = vsel %vm1715, %v5801, %v5581
        %v5834 = vsel %vm1715, %v5802, %v5583
        %v5835 = vsel %vm1715, %v5803, %v5585
        %v5836 = vsel %vm1715, %v5804, %v5587
        %v5837 = vsel %vm1715, %v5805, %v5589
        %v5838 = vsel %vm1715, %v5806, %v5591
        %v5839 = vsel %vm1715, %v5807, %v5593
        %v5840 = vsel %vm1715, %v5808, %v5595
        %v5841 = vsel %vm1715, %v5809, %v5597
        %v5842 = vsel %vm1715, %v5810, %v5599
        %v5843 = vsel %vm1715, %v5811, %v5601
        %v5844 = vsel %vm1715, %v5812, %v5603
        %v5845 = vsel %vm1715, %v5813, %v5605
        %v5846 = vsel %vm1715, %v5814, %v5607
        %v5847 = vsel %vm1715, %v5815, %v5609
        %v5848 = vsel %vm1715, %v5816, %v5611
        %v5849 = vsel %vm1715, %v5817, %v5613
        %v5850 = vsel %vm1715, %v5818, %v5615
        %v5851 = vsel %vm1715, %v5819, %v5617
        %v5852 = vsel %vm1715, %v5820, %v5619
        %v5853 = vsel %vm1715, %v5821, %v5621
        %v5854 = vsel %vm1715, %v5822, %v5623
        %v5855 = vsel %vm1715, %v5823, %v5625
        %v5856 = vsel %vm1715, %v5824, %v5627
        %v5857 = vsel %vm1715, %v5825, %v5629
        %v5858 = vsel %vm1715, %v5826, %v5631
        %v5859 = vsel %vm1715, %v5827, %v5633
        %v5860 = vsel %vm1715, %v5828, %v5635
        %v5861 = vsel %vm1715, %v5829, %v5637
        %v5862 = vld [vmem:[#allocation9] sm:$0xff]
        %v5863 = vld [vmem:[#allocation9 + $0x8] sm:$0xff]
        %v5864 = vld [vmem:[#allocation9 + $0x10] sm:$0xff]
        %v5865 = vld [vmem:[#allocation9 + $0x18] sm:$0xff]
        %v5866 = vld [vmem:[#allocation9 + $0x20] sm:$0xff]
        %v5867 = vld [vmem:[#allocation9 + $0x28] sm:$0xff]
        %v5868 = vld [vmem:[#allocation9 + $0x30] sm:$0xff]
        %v5869 = vld [vmem:[#allocation9 + $0x38] sm:$0xff]
        %v5870 = vld [vmem:[#allocation9 + $0x40] sm:$0xff]
        %v5871 = vld [vmem:[#allocation9 + $0x48] sm:$0xff]
        %v5872 = vld [vmem:[#allocation9 + $0x50] sm:$0xff]
        %v5873 = vld [vmem:[#allocation9 + $0x58] sm:$0xff]
        %v5874 = vld [vmem:[#allocation9 + $0x60] sm:$0xff]
        %v5875 = vld [vmem:[#allocation9 + $0x68] sm:$0xff]
        %v5876 = vld [vmem:[#allocation9 + $0x70] sm:$0xff]
        %v5877 = vld [vmem:[#allocation9 + $0x78] sm:$0xff]
        %v5878 = vld [vmem:[#allocation9 + $0x80] sm:$0xff]
        %v5879 = vld [vmem:[#allocation9 + $0x88] sm:$0xff]
        %v5880 = vld [vmem:[#allocation9 + $0x90] sm:$0xff]
        %v5881 = vld [vmem:[#allocation9 + $0x98] sm:$0xff]
        %v5882 = vld [vmem:[#allocation9 + $0xa0] sm:$0xff]
        %v5883 = vld [vmem:[#allocation9 + $0xa8] sm:$0xff]
        %v5884 = vld [vmem:[#allocation9 + $0xb0] sm:$0xff]
        %v5885 = vld [vmem:[#allocation9 + $0xb8] sm:$0xff]
        %v5886 = vld [vmem:[#allocation9 + $0xc0] sm:$0xff]
        %v5887 = vld [vmem:[#allocation9 + $0xc8] sm:$0xff]
        %v5888 = vld [vmem:[#allocation9 + $0xd0] sm:$0xff]
        %v5889 = vld [vmem:[#allocation9 + $0xd8] sm:$0xff]
        %v5890 = vld [vmem:[#allocation9 + $0xe0] sm:$0xff]
        %v5891 = vld [vmem:[#allocation9 + $0xe8] sm:$0xff]
        %v5892 = vld [vmem:[#allocation9 + $0xf0] sm:$0xff]
        %v5893 = vld [vmem:[#allocation9 + $0xf8] sm:$0xff]
        %v5894 = vld [vmem:[#allocation9 + $0x100] sm:$0xff]
        %v5895 = vld [vmem:[#allocation9 + $0x108] sm:$0xff]
        %v5896 = vld [vmem:[#allocation9 + $0x110] sm:$0xff]
        %v5897 = vld [vmem:[#allocation9 + $0x118] sm:$0xff]
        %v5898 = vld [vmem:[%s6] sm:$0x1]
        %v5900 = vlaneseq
        %v5901 = vshrl.u32 %v5900, 7
        %v5902 = vsub.s32 0, %v5901
        %v5903 = vrot.slane %v5898, %v5902
        %v5906 = vsel %vm482, %v4870, 0
        %v5909 = vsel %vm482, %v4871, 0
        %v5912 = vsel %vm482, %v4872, 0
        %v5915 = vsel %vm482, %v4873, 0
        %v5918 = vsel %vm482, %v4874, 0
        %v5921 = vsel %vm482, %v4875, 0
        %v5924 = vsel %vm482, %v4876, 0
        %v5927 = vsel %vm482, %v4877, 0
        %v5930 = vsel %vm482, %v4878, 0
        %v5933 = vsel %vm482, %v4879, 0
        %v5936 = vsel %vm482, %v4880, 0
        %v5939 = vsel %vm482, %v4881, 0
        %v5942 = vsel %vm482, %v4882, 0
        %v5945 = vsel %vm482, %v4883, 0
        %v5948 = vsel %vm482, %v4884, 0
        %v5951 = vsel %vm482, %v4885, 0
        %v5954 = vsel %vm482, %v4886, 0
        %v5957 = vsel %vm482, %v4887, 0
        %v5960 = vsel %vm482, %v4888, 0
        %v5963 = vsel %vm482, %v4889, 0
        %v5966 = vsel %vm482, %v4890, 0
        %v5969 = vsel %vm482, %v4891, 0
        %v5972 = vsel %vm482, %v4892, 0
        %v5975 = vsel %vm482, %v4893, 0
        %v5978 = vsel %vm482, %v4894, 0
        %v5981 = vsel %vm482, %v4895, 0
        %v5984 = vsel %vm482, %v4896, 0
        %v5987 = vsel %vm482, %v4897, 0
        %v5990 = vsel %vm482, %v4898, 0
        %v5993 = vsel %vm482, %v4899, 0
        %v5996 = vsel %vm482, %v4900, 0
        %v5999 = vsel %vm482, %v4901, 0
        %6001 = vmatprep.subr.mxu0 0.0
        %6002 = vmatpush1.msra.mxu0 %v5877
        %6003 = vmatprep.subr.mxu0 0.0
        %6004 = vmatpush1.msra.mxu0 %v5876
        %6005 = vmatprep.subr.mxu0 0.0
        %6006 = vmatpush1.msra.mxu0 %v5875
        %6007 = vmatprep.subr.mxu0 0.0
        %6008 = vmatpush1.msra.mxu0 %v5874
        %6009 = vmatprep.subr.mxu0 0.0
        %6010 = vmatpush1.msra.mxu0 %v5873
        %6011 = vmatprep.subr.mxu0 0.0
        %6012 = vmatpush1.msra.mxu0 %v5872
        %6013 = vmatprep.subr.mxu0 0.0
        %6014 = vmatpush1.msra.mxu0 %v5871
        %6015 = vmatprep.subr.mxu0 0.0
        %6016 = vmatpush1.msra.mxu0 %v5870
        %6017 = vmatprep.subr.mxu0 0.0
        %6018 = vmatpush1.msra.mxu0 %v5869
        %6019 = vmatprep.subr.mxu0 0.0
        %6020 = vmatpush1.msra.mxu0 %v5868
        %6021 = vmatprep.subr.mxu0 0.0
        %6022 = vmatpush1.msra.mxu0 %v5867
        %6023 = vmatprep.subr.mxu0 0.0
        %6024 = vmatpush1.msra.mxu0 %v5866
        %6025 = vmatprep.subr.mxu0 0.0
        %6026 = vmatpush1.msra.mxu0 %v5865
        %6027 = vmatprep.subr.mxu0 0.0
        %6028 = vmatpush1.msra.mxu0 %v5864
        %6029 = vmatprep.subr.mxu0 0.0
        %6030 = vmatpush1.msra.mxu0 %v5863
        %6031 = vmatprep.subr.mxu0 0.0
        %6032 = vmatpush1.msra.mxu0 %v5862
        %6033 = vmatprep.subr.mxu0 0.0
        %6034 = vmatpush2.msra.mxu0 %v5893
        %6035 = vmatprep.subr.mxu0 0.0
        %6036 = vmatpush2.msra.mxu0 %v5892
        %6037 = vmatprep.subr.mxu0 0.0
        %6038 = vmatpush2.msra.mxu0 %v5891
        %6039 = vmatprep.subr.mxu0 0.0
        %6040 = vmatpush2.msra.mxu0 %v5890
        %6041 = vmatprep.subr.mxu0 0.0
        %6042 = vmatpush2.msra.mxu0 %v5889
        %6043 = vmatprep.subr.mxu0 0.0
        %6044 = vmatpush2.msra.mxu0 %v5888
        %6045 = vmatprep.subr.mxu0 0.0
        %6046 = vmatpush2.msra.mxu0 %v5887
        %6047 = vmatprep.subr.mxu0 0.0
        %6048 = vmatpush2.msra.mxu0 %v5886
        %6049 = vmatprep.subr.mxu0 0.0
        %6050 = vmatpush2.msra.mxu0 %v5885
        %6051 = vmatprep.subr.mxu0 0.0
        %6052 = vmatpush2.msra.mxu0 %v5884
        %6053 = vmatprep.subr.mxu0 0.0
        %6054 = vmatpush2.msra.mxu0 %v5883
        %6055 = vmatprep.subr.mxu0 0.0
        %6056 = vmatpush2.msra.mxu0 %v5882
        %6057 = vmatprep.subr.mxu0 0.0
        %6058 = vmatpush2.msra.mxu0 %v5881
        %6059 = vmatprep.subr.mxu0 0.0
        %6060 = vmatpush2.msra.mxu0 %v5880
        %6061 = vmatprep.subr.mxu0 0.0
        %6062 = vmatpush2.msra.mxu0 %v5879
        %6063 = vmatprep.subr.mxu0 0.0
        %6064 = vmatpush2.msra.mxu0 %v5878
        %6065 = vmatprep.mubr.f32.mxu0 %v5830
        %6066 = vmatmul.mubr.f32.gmra.mxu0 %v5734
        %v6067 = vpop.f32.mrf.mxu0
        %v6068 = vadd.f32 %v5903, %v6067
        %v6069 = vpop.f32.mrf.mxu0
        %6070 = vmatprep.mubr.f32.mxu0 %v5831
        %6071 = vmatmul.mubr.f32.gmra.mxu0 %v5735
        %v6072 = vpop.f32.mrf.mxu0
        %v6073 = vadd.f32 %v5903, %v6072
        %v6074 = vpop.f32.mrf.mxu0
        %6075 = vmatprep.mubr.f32.mxu0 %v5832
        %6076 = vmatmul.mubr.f32.gmra.mxu0 %v5736
        %v6077 = vpop.f32.mrf.mxu0
        %v6078 = vadd.f32 %v5903, %v6077
        %v6079 = vpop.f32.mrf.mxu0
        %6080 = vmatprep.mubr.f32.mxu0 %v5833
        %6081 = vmatmul.mubr.f32.gmra.mxu0 %v5737
        %v6082 = vpop.f32.mrf.mxu0
        %v6083 = vadd.f32 %v5903, %v6082
        %v6084 = vpop.f32.mrf.mxu0
        %6085 = vmatprep.mubr.f32.mxu0 %v5834
        %6086 = vmatmul.mubr.f32.gmra.mxu0 %v5738
        %v6087 = vpop.f32.mrf.mxu0
        %v6088 = vadd.f32 %v5903, %v6087
        %v6089 = vpop.f32.mrf.mxu0
        %6090 = vmatprep.mubr.f32.mxu0 %v5835
        %6091 = vmatmul.mubr.f32.gmra.mxu0 %v5739
        %v6092 = vpop.f32.mrf.mxu0
        %v6093 = vadd.f32 %v5903, %v6092
        %v6094 = vpop.f32.mrf.mxu0
        %6095 = vmatprep.mubr.f32.mxu0 %v5836
        %6096 = vmatmul.mubr.f32.gmra.mxu0 %v5740
        %v6097 = vpop.f32.mrf.mxu0
        %v6098 = vadd.f32 %v5903, %v6097
        %v6099 = vpop.f32.mrf.mxu0
        %6100 = vmatprep.mubr.f32.mxu0 %v5837
        %6101 = vmatmul.mubr.f32.gmra.mxu0 %v5741
        %v6102 = vpop.f32.mrf.mxu0
        %v6103 = vadd.f32 %v5903, %v6102
        %v6104 = vpop.f32.mrf.mxu0
        %6105 = vmatprep.mubr.f32.mxu0 %v5838
        %6106 = vmatmul.mubr.f32.gmra.mxu0 %v5742
        %v6107 = vpop.f32.mrf.mxu0
        %v6108 = vadd.f32 %v5903, %v6107
        %v6109 = vpop.f32.mrf.mxu0
        %6110 = vmatprep.mubr.f32.mxu0 %v5839
        %6111 = vmatmul.mubr.f32.gmra.mxu0 %v5743
        %v6112 = vpop.f32.mrf.mxu0
        %v6113 = vadd.f32 %v5903, %v6112
        %v6114 = vpop.f32.mrf.mxu0
        %6115 = vmatprep.mubr.f32.mxu0 %v5840
        %6116 = vmatmul.mubr.f32.gmra.mxu0 %v5744
        %v6117 = vpop.f32.mrf.mxu0
        %v6118 = vadd.f32 %v5903, %v6117
        %v6119 = vpop.f32.mrf.mxu0
        %6120 = vmatprep.mubr.f32.mxu0 %v5841
        %6121 = vmatmul.mubr.f32.gmra.mxu0 %v5745
        %v6122 = vpop.f32.mrf.mxu0
        %v6123 = vadd.f32 %v5903, %v6122
        %v6124 = vpop.f32.mrf.mxu0
        %6125 = vmatprep.mubr.f32.mxu0 %v5842
        %6126 = vmatmul.mubr.f32.gmra.mxu0 %v5746
        %v6127 = vpop.f32.mrf.mxu0
        %v6128 = vadd.f32 %v5903, %v6127
        %v6129 = vpop.f32.mrf.mxu0
        %6130 = vmatprep.mubr.f32.mxu0 %v5843
        %6131 = vmatmul.mubr.f32.gmra.mxu0 %v5747
        %v6132 = vpop.f32.mrf.mxu0
        %v6133 = vadd.f32 %v5903, %v6132
        %v6134 = vpop.f32.mrf.mxu0
        %6135 = vmatprep.mubr.f32.mxu0 %v5844
        %6136 = vmatmul.mubr.f32.gmra.mxu0 %v5748
        %v6137 = vpop.f32.mrf.mxu0
        %v6138 = vadd.f32 %v5903, %v6137
        %v6139 = vpop.f32.mrf.mxu0
        %6140 = vmatprep.mubr.f32.mxu0 %v5845
        %6141 = vmatmul.mubr.f32.gmra.mxu0 %v5749
        %v6142 = vpop.f32.mrf.mxu0
        %v6143 = vadd.f32 %v5903, %v6142
        %v6144 = vpop.f32.mrf.mxu0
        %6145 = vmatprep.mubr.f32.mxu0 %v5846
        %6146 = vmatmul.mubr.f32.gmra.mxu0 %v5750
        %v6147 = vpop.f32.mrf.mxu0
        %v6148 = vadd.f32 %v5903, %v6147
        %v6149 = vpop.f32.mrf.mxu0
        %6150 = vmatprep.mubr.f32.mxu0 %v5847
        %6151 = vmatmul.mubr.f32.gmra.mxu0 %v5751
        %v6152 = vpop.f32.mrf.mxu0
        %v6153 = vadd.f32 %v5903, %v6152
        %v6154 = vpop.f32.mrf.mxu0
        %6155 = vmatprep.mubr.f32.mxu0 %v5848
        %6156 = vmatmul.mubr.f32.gmra.mxu0 %v5752
        %v6157 = vpop.f32.mrf.mxu0
        %v6158 = vadd.f32 %v5903, %v6157
        %v6159 = vpop.f32.mrf.mxu0
        %6160 = vmatprep.mubr.f32.mxu0 %v5849
        %6161 = vmatmul.mubr.f32.gmra.mxu0 %v5753
        %v6162 = vpop.f32.mrf.mxu0
        %v6163 = vadd.f32 %v5903, %v6162
        %v6164 = vpop.f32.mrf.mxu0
        %6165 = vmatprep.mubr.f32.mxu0 %v5850
        %6166 = vmatmul.mubr.f32.gmra.mxu0 %v5754
        %v6167 = vpop.f32.mrf.mxu0
        %v6168 = vadd.f32 %v5903, %v6167
        %v6169 = vpop.f32.mrf.mxu0
        %6170 = vmatprep.mubr.f32.mxu0 %v5851
        %6171 = vmatmul.mubr.f32.gmra.mxu0 %v5755
        %v6172 = vpop.f32.mrf.mxu0
        %v6173 = vadd.f32 %v5903, %v6172
        %v6174 = vpop.f32.mrf.mxu0
        %6175 = vmatprep.mubr.f32.mxu0 %v5852
        %6176 = vmatmul.mubr.f32.gmra.mxu0 %v5756
        %v6177 = vpop.f32.mrf.mxu0
        %v6178 = vadd.f32 %v5903, %v6177
        %v6179 = vpop.f32.mrf.mxu0
        %6180 = vmatprep.mubr.f32.mxu0 %v5853
        %6181 = vmatmul.mubr.f32.gmra.mxu0 %v5757
        %v6182 = vpop.f32.mrf.mxu0
        %v6183 = vadd.f32 %v5903, %v6182
        %v6184 = vpop.f32.mrf.mxu0
        %6185 = vmatprep.mubr.f32.mxu0 %v5854
        %6186 = vmatmul.mubr.f32.gmra.mxu0 %v5758
        %v6187 = vpop.f32.mrf.mxu0
        %v6188 = vadd.f32 %v5903, %v6187
        %v6189 = vpop.f32.mrf.mxu0
        %6190 = vmatprep.mubr.f32.mxu0 %v5855
        %6191 = vmatmul.mubr.f32.gmra.mxu0 %v5759
        %v6192 = vpop.f32.mrf.mxu0
        %v6193 = vadd.f32 %v5903, %v6192
        %v6194 = vpop.f32.mrf.mxu0
        %6195 = vmatprep.mubr.f32.mxu0 %v5856
        %6196 = vmatmul.mubr.f32.gmra.mxu0 %v5760
        %v6197 = vpop.f32.mrf.mxu0
        %v6198 = vadd.f32 %v5903, %v6197
        %v6199 = vpop.f32.mrf.mxu0
        %6200 = vmatprep.mubr.f32.mxu0 %v5857
        %6201 = vmatmul.mubr.f32.gmra.mxu0 %v5761
        %v6202 = vpop.f32.mrf.mxu0
        %v6203 = vadd.f32 %v5903, %v6202
        %v6204 = vpop.f32.mrf.mxu0
        %6205 = vmatprep.mubr.f32.mxu0 %v5858
        %6206 = vmatmul.mubr.f32.gmra.mxu0 %v5762
        %v6207 = vpop.f32.mrf.mxu0
        %v6208 = vadd.f32 %v5903, %v6207
        %v6209 = vpop.f32.mrf.mxu0
        %6210 = vmatprep.mubr.f32.mxu0 %v5859
        %6211 = vmatmul.mubr.f32.gmra.mxu0 %v5763
        %v6212 = vpop.f32.mrf.mxu0
        %v6213 = vadd.f32 %v5903, %v6212
        %v6214 = vpop.f32.mrf.mxu0
        %6215 = vmatprep.mubr.f32.mxu0 %v5860
        %6216 = vmatmul.mubr.f32.gmra.mxu0 %v5764
        %v6217 = vpop.f32.mrf.mxu0
        %v6218 = vadd.f32 %v5903, %v6217
        %v6219 = vpop.f32.mrf.mxu0
        %6220 = vmatprep.mubr.f32.mxu0 %v5861
        %6221 = vmatmul.mubr.f32.gmra.mxu0 %v5765
        %v6222 = vpop.f32.mrf.mxu0
        %v6223 = vadd.f32 %v5903, %v6222
        %v6224 = vpop.f32.mrf.mxu0
        %6225 = vdwg.mxu0
        %6226 = vmatprep.subr.mxu0 0.0
        %6227 = vmatpush1.msra.mxu0 0.0
        %6228 = vmatprep.subr.mxu0 0.0
        %6229 = vmatpush1.msra.mxu0 0.0
        %6230 = vmatprep.subr.mxu0 0.0
        %6231 = vmatpush1.msra.mxu0 0.0
        %6232 = vmatprep.subr.mxu0 0.0
        %6233 = vmatpush1.msra.mxu0 0.0
        %6234 = vmatprep.subr.mxu0 0.0
        %6235 = vmatpush1.msra.mxu0 0.0
        %6236 = vmatprep.subr.mxu0 0.0
        %6237 = vmatpush1.msra.mxu0 0.0
        %6238 = vmatprep.subr.mxu0 0.0
        %6239 = vmatpush1.msra.mxu0 0.0
        %6240 = vmatprep.subr.mxu0 0.0
        %6241 = vmatpush1.msra.mxu0 0.0
        %6242 = vmatprep.subr.mxu0 0.0
        %6243 = vmatpush1.msra.mxu0 0.0
        %6244 = vmatprep.subr.mxu0 0.0
        %6245 = vmatpush1.msra.mxu0 0.0
        %6246 = vmatprep.subr.mxu0 0.0
        %6247 = vmatpush1.msra.mxu0 0.0
        %6248 = vmatprep.subr.mxu0 0.0
        %6249 = vmatpush1.msra.mxu0 0.0
        %6250 = vmatprep.subr.mxu0 0.0
        %6251 = vmatpush1.msra.mxu0 %v5897
        %6252 = vmatprep.subr.mxu0 0.0
        %6253 = vmatpush1.msra.mxu0 %v5896
        %6254 = vmatprep.subr.mxu0 0.0
        %6255 = vmatpush1.msra.mxu0 %v5895
        %6256 = vmatprep.subr.mxu0 0.0
        %6257 = vmatpush1.msra.mxu0 %v5894
        %6258 = vmatprep.subr.mxu0 0.0
        %6259 = vmatpush2.msra.mxu0 0.0
        %6260 = vmatprep.subr.mxu0 0.0
        %6261 = vmatpush2.msra.mxu0 0.0
        %6262 = vmatprep.subr.mxu0 0.0
        %6263 = vmatpush2.msra.mxu0 0.0
        %6264 = vmatprep.subr.mxu0 0.0
        %6265 = vmatpush2.msra.mxu0 0.0
        %6266 = vmatprep.subr.mxu0 0.0
        %6267 = vmatpush2.msra.mxu0 0.0
        %6268 = vmatprep.subr.mxu0 0.0
        %6269 = vmatpush2.msra.mxu0 0.0
        %6270 = vmatprep.subr.mxu0 0.0
        %6271 = vmatpush2.msra.mxu0 0.0
        %6272 = vmatprep.subr.mxu0 0.0
        %6273 = vmatpush2.msra.mxu0 0.0
        %6274 = vmatprep.subr.mxu0 0.0
        %6275 = vmatpush2.msra.mxu0 0.0
        %6276 = vmatprep.subr.mxu0 0.0
        %6277 = vmatpush2.msra.mxu0 0.0
        %6278 = vmatprep.subr.mxu0 0.0
        %6279 = vmatpush2.msra.mxu0 0.0
        %6280 = vmatprep.subr.mxu0 0.0
        %6281 = vmatpush2.msra.mxu0 0.0
        %6282 = vmatprep.subr.mxu0 0.0
        %6283 = vmatpush2.msra.mxu0 0.0
        %6284 = vmatprep.subr.mxu0 0.0
        %6285 = vmatpush2.msra.mxu0 0.0
        %6286 = vmatprep.subr.mxu0 0.0
        %6287 = vmatpush2.msra.mxu0 0.0
        %6288 = vmatprep.subr.mxu0 0.0
        %6289 = vmatpush2.msra.mxu0 0.0
        %6290 = vmatprep.mubr.f32.mxu0 0.0
        %6291 = vmatmul.mubr.f32.gmra.mxu0 %v5906
        %v6292 = vpop.f32.mrf.mxu0
        %v6293 = vadd.f32 %v6068, %v6292
        %v6294 = vpop.f32.mrf.mxu0
        %6295 = vmatprep.mubr.f32.mxu0 0.0
        %6296 = vmatmul.mubr.f32.gmra.mxu0 %v5909
        %v6297 = vpop.f32.mrf.mxu0
        %v6298 = vadd.f32 %v6073, %v6297
        %v6299 = vpop.f32.mrf.mxu0
        %6300 = vmatprep.mubr.f32.mxu0 0.0
        %6301 = vmatmul.mubr.f32.gmra.mxu0 %v5912
        %v6302 = vpop.f32.mrf.mxu0
        %v6303 = vadd.f32 %v6078, %v6302
        %v6304 = vpop.f32.mrf.mxu0
        %6305 = vmatprep.mubr.f32.mxu0 0.0
        %6306 = vmatmul.mubr.f32.gmra.mxu0 %v5915
        %v6307 = vpop.f32.mrf.mxu0
        %v6308 = vadd.f32 %v6083, %v6307
        %v6309 = vpop.f32.mrf.mxu0
        %6310 = vmatprep.mubr.f32.mxu0 0.0
        %6311 = vmatmul.mubr.f32.gmra.mxu0 %v5918
        %v6312 = vpop.f32.mrf.mxu0
        %v6313 = vadd.f32 %v6088, %v6312
        %v6314 = vpop.f32.mrf.mxu0
        %6315 = vmatprep.mubr.f32.mxu0 0.0
        %6316 = vmatmul.mubr.f32.gmra.mxu0 %v5921
        %v6317 = vpop.f32.mrf.mxu0
        %v6318 = vadd.f32 %v6093, %v6317
        %v6319 = vpop.f32.mrf.mxu0
        %6320 = vmatprep.mubr.f32.mxu0 0.0
        %6321 = vmatmul.mubr.f32.gmra.mxu0 %v5924
        %v6322 = vpop.f32.mrf.mxu0
        %v6323 = vadd.f32 %v6098, %v6322
        %v6324 = vpop.f32.mrf.mxu0
        %6325 = vmatprep.mubr.f32.mxu0 0.0
        %6326 = vmatmul.mubr.f32.gmra.mxu0 %v5927
        %v6327 = vpop.f32.mrf.mxu0
        %v6328 = vadd.f32 %v6103, %v6327
        %v6329 = vpop.f32.mrf.mxu0
        %6330 = vmatprep.mubr.f32.mxu0 0.0
        %6331 = vmatmul.mubr.f32.gmra.mxu0 %v5930
        %v6332 = vpop.f32.mrf.mxu0
        %v6333 = vadd.f32 %v6108, %v6332
        %v6334 = vpop.f32.mrf.mxu0
        %6335 = vmatprep.mubr.f32.mxu0 0.0
        %6336 = vmatmul.mubr.f32.gmra.mxu0 %v5933
        %v6337 = vpop.f32.mrf.mxu0
        %v6338 = vadd.f32 %v6113, %v6337
        %v6339 = vpop.f32.mrf.mxu0
        %6340 = vmatprep.mubr.f32.mxu0 0.0
        %6341 = vmatmul.mubr.f32.gmra.mxu0 %v5936
        %v6342 = vpop.f32.mrf.mxu0
        %v6343 = vadd.f32 %v6118, %v6342
        %v6344 = vpop.f32.mrf.mxu0
        %6345 = vmatprep.mubr.f32.mxu0 0.0
        %6346 = vmatmul.mubr.f32.gmra.mxu0 %v5939
        %v6347 = vpop.f32.mrf.mxu0
        %v6348 = vadd.f32 %v6123, %v6347
        %v6349 = vpop.f32.mrf.mxu0
        %6350 = vmatprep.mubr.f32.mxu0 0.0
        %6351 = vmatmul.mubr.f32.gmra.mxu0 %v5942
        %v6352 = vpop.f32.mrf.mxu0
        %v6353 = vadd.f32 %v6128, %v6352
        %v6354 = vpop.f32.mrf.mxu0
        %6355 = vmatprep.mubr.f32.mxu0 0.0
        %6356 = vmatmul.mubr.f32.gmra.mxu0 %v5945
        %v6357 = vpop.f32.mrf.mxu0
        %v6358 = vadd.f32 %v6133, %v6357
        %v6359 = vpop.f32.mrf.mxu0
        %6360 = vmatprep.mubr.f32.mxu0 0.0
        %6361 = vmatmul.mubr.f32.gmra.mxu0 %v5948
        %v6362 = vpop.f32.mrf.mxu0
        %v6363 = vadd.f32 %v6138, %v6362
        %v6364 = vpop.f32.mrf.mxu0
        %6365 = vmatprep.mubr.f32.mxu0 0.0
        %6366 = vmatmul.mubr.f32.gmra.mxu0 %v5951
        %v6367 = vpop.f32.mrf.mxu0
        %v6368 = vadd.f32 %v6143, %v6367
        %v6369 = vpop.f32.mrf.mxu0
        %6370 = vmatprep.mubr.f32.mxu0 0.0
        %6371 = vmatmul.mubr.f32.gmra.mxu0 %v5954
        %v6372 = vpop.f32.mrf.mxu0
        %v6373 = vadd.f32 %v6148, %v6372
        %v6374 = vpop.f32.mrf.mxu0
        %6375 = vmatprep.mubr.f32.mxu0 0.0
        %6376 = vmatmul.mubr.f32.gmra.mxu0 %v5957
        %v6377 = vpop.f32.mrf.mxu0
        %v6378 = vadd.f32 %v6153, %v6377
        %v6379 = vpop.f32.mrf.mxu0
        %6380 = vmatprep.mubr.f32.mxu0 0.0
        %6381 = vmatmul.mubr.f32.gmra.mxu0 %v5960
        %v6382 = vpop.f32.mrf.mxu0
        %v6383 = vadd.f32 %v6158, %v6382
        %v6384 = vpop.f32.mrf.mxu0
        %6385 = vmatprep.mubr.f32.mxu0 0.0
        %6386 = vmatmul.mubr.f32.gmra.mxu0 %v5963
        %v6387 = vpop.f32.mrf.mxu0
        %v6388 = vadd.f32 %v6163, %v6387
        %v6389 = vpop.f32.mrf.mxu0
        %6390 = vmatprep.mubr.f32.mxu0 0.0
        %6391 = vmatmul.mubr.f32.gmra.mxu0 %v5966
        %v6392 = vpop.f32.mrf.mxu0
        %v6393 = vadd.f32 %v6168, %v6392
        %v6394 = vpop.f32.mrf.mxu0
        %6395 = vmatprep.mubr.f32.mxu0 0.0
        %6396 = vmatmul.mubr.f32.gmra.mxu0 %v5969
        %v6397 = vpop.f32.mrf.mxu0
        %v6398 = vadd.f32 %v6173, %v6397
        %v6399 = vpop.f32.mrf.mxu0
        %6400 = vmatprep.mubr.f32.mxu0 0.0
        %6401 = vmatmul.mubr.f32.gmra.mxu0 %v5972
        %v6402 = vpop.f32.mrf.mxu0
        %v6403 = vadd.f32 %v6178, %v6402
        %v6404 = vpop.f32.mrf.mxu0
        %6405 = vmatprep.mubr.f32.mxu0 0.0
        %6406 = vmatmul.mubr.f32.gmra.mxu0 %v5975
        %v6407 = vpop.f32.mrf.mxu0
        %v6408 = vadd.f32 %v6183, %v6407
        %v6409 = vpop.f32.mrf.mxu0
        %6410 = vmatprep.mubr.f32.mxu0 0.0
        %6411 = vmatmul.mubr.f32.gmra.mxu0 %v5978
        %v6412 = vpop.f32.mrf.mxu0
        %v6413 = vadd.f32 %v6188, %v6412
        %v6414 = vpop.f32.mrf.mxu0
        %6415 = vmatprep.mubr.f32.mxu0 0.0
        %6416 = vmatmul.mubr.f32.gmra.mxu0 %v5981
        %v6417 = vpop.f32.mrf.mxu0
        %v6418 = vadd.f32 %v6193, %v6417
        %v6419 = vpop.f32.mrf.mxu0
        %6420 = vmatprep.mubr.f32.mxu0 0.0
        %6421 = vmatmul.mubr.f32.gmra.mxu0 %v5984
        %v6422 = vpop.f32.mrf.mxu0
        %v6423 = vadd.f32 %v6198, %v6422
        %v6424 = vpop.f32.mrf.mxu0
        %6425 = vmatprep.mubr.f32.mxu0 0.0
        %6426 = vmatmul.mubr.f32.gmra.mxu0 %v5987
        %v6427 = vpop.f32.mrf.mxu0
        %v6428 = vadd.f32 %v6203, %v6427
        %v6429 = vpop.f32.mrf.mxu0
        %6430 = vmatprep.mubr.f32.mxu0 0.0
        %6431 = vmatmul.mubr.f32.gmra.mxu0 %v5990
        %v6432 = vpop.f32.mrf.mxu0
        %v6433 = vadd.f32 %v6208, %v6432
        %v6434 = vpop.f32.mrf.mxu0
        %6435 = vmatprep.mubr.f32.mxu0 0.0
        %6436 = vmatmul.mubr.f32.gmra.mxu0 %v5993
        %v6437 = vpop.f32.mrf.mxu0
        %v6438 = vadd.f32 %v6213, %v6437
        %v6439 = vpop.f32.mrf.mxu0
        %6440 = vmatprep.mubr.f32.mxu0 0.0
        %6441 = vmatmul.mubr.f32.gmra.mxu0 %v5996
        %v6442 = vpop.f32.mrf.mxu0
        %v6443 = vadd.f32 %v6218, %v6442
        %v6444 = vpop.f32.mrf.mxu0
        %6445 = vmatprep.mubr.f32.mxu0 0.0
        %6446 = vmatmul.mubr.f32.gmra.mxu0 %v5999
        %v6447 = vpop.f32.mrf.mxu0
        %v6448 = vadd.f32 %v6223, %v6447
        %v6449 = vpop.f32.mrf.mxu0
        %6450 = vdwg.mxu0
        %v6451 = vmul.f32 %v6293, 0.2
        %v6452 = vmul.f32 %v6298, 0.2
        %v6453 = vmul.f32 %v6303, 0.2
        %v6454 = vmul.f32 %v6308, 0.2
        %v6455 = vmul.f32 %v6313, 0.2
        %v6456 = vmul.f32 %v6318, 0.2
        %v6457 = vmul.f32 %v6323, 0.2
        %v6458 = vmul.f32 %v6328, 0.2
        %v6459 = vmul.f32 %v6333, 0.2
        %v6460 = vmul.f32 %v6338, 0.2
        %v6461 = vmul.f32 %v6343, 0.2
        %v6462 = vmul.f32 %v6348, 0.2
        %v6463 = vmul.f32 %v6353, 0.2
        %v6464 = vmul.f32 %v6358, 0.2
        %v6465 = vmul.f32 %v6363, 0.2
        %v6466 = vmul.f32 %v6368, 0.2
        %v6467 = vmul.f32 %v6373, 0.2
        %v6468 = vmul.f32 %v6378, 0.2
        %v6469 = vmul.f32 %v6383, 0.2
        %v6470 = vmul.f32 %v6388, 0.2
        %v6471 = vmul.f32 %v6393, 0.2
        %v6472 = vmul.f32 %v6398, 0.2
        %v6473 = vmul.f32 %v6403, 0.2
        %v6474 = vmul.f32 %v6408, 0.2
        %v6475 = vmul.f32 %v6413, 0.2
        %v6476 = vmul.f32 %v6418, 0.2
        %v6477 = vmul.f32 %v6423, 0.2
        %v6478 = vmul.f32 %v6428, 0.2
        %v6479 = vmul.f32 %v6433, 0.2
        %v6480 = vmul.f32 %v6438, 0.2
        %v6481 = vmul.f32 %v6443, 0.2
        %v6482 = vmul.f32 %v6448, 0.2
        %v6483 = vmax.f32 %v6293, %v6451
        %v6484 = vmax.f32 %v6298, %v6452
        %v6485 = vmax.f32 %v6303, %v6453
        %v6486 = vmax.f32 %v6308, %v6454
        %v6487 = vmax.f32 %v6313, %v6455
        %v6488 = vmax.f32 %v6318, %v6456
        %v6489 = vmax.f32 %v6323, %v6457
        %v6490 = vmax.f32 %v6328, %v6458
        %v6491 = vmax.f32 %v6333, %v6459
        %v6492 = vmax.f32 %v6338, %v6460
        %v6493 = vmax.f32 %v6343, %v6461
        %v6494 = vmax.f32 %v6348, %v6462
        %v6495 = vmax.f32 %v6353, %v6463
        %v6496 = vmax.f32 %v6358, %v6464
        %v6497 = vmax.f32 %v6363, %v6465
        %v6498 = vmax.f32 %v6368, %v6466
        %v6499 = vmax.f32 %v6373, %v6467
        %v6500 = vmax.f32 %v6378, %v6468
        %v6501 = vmax.f32 %v6383, %v6469
        %v6502 = vmax.f32 %v6388, %v6470
        %v6503 = vmax.f32 %v6393, %v6471
        %v6504 = vmax.f32 %v6398, %v6472
        %v6505 = vmax.f32 %v6403, %v6473
        %v6506 = vmax.f32 %v6408, %v6474
        %v6507 = vmax.f32 %v6413, %v6475
        %v6508 = vmax.f32 %v6418, %v6476
        %v6509 = vmax.f32 %v6423, %v6477
        %v6510 = vmax.f32 %v6428, %v6478
        %v6511 = vmax.f32 %v6433, %v6479
        %v6512 = vmax.f32 %v6438, %v6480
        %v6513 = vmax.f32 %v6443, %v6481
        %v6514 = vmax.f32 %v6448, %v6482
        %v6515 = vsel %vm482, %v6483, 0.0
        %v6516 = vsel %vm482, %v6484, 0.0
        %v6517 = vadd.f32 %v6515, %v6516
        %v6518 = vsel %vm482, %v6485, 0.0
        %v6519 = vadd.f32 %v6517, %v6518
        %v6520 = vsel %vm482, %v6486, 0.0
        %v6521 = vadd.f32 %v6519, %v6520
        %v6522 = vsel %vm482, %v6487, 0.0
        %v6523 = vadd.f32 %v6521, %v6522
        %v6524 = vsel %vm482, %v6488, 0.0
        %v6525 = vadd.f32 %v6523, %v6524
        %v6526 = vsel %vm482, %v6489, 0.0
        %v6527 = vadd.f32 %v6525, %v6526
        %v6528 = vsel %vm482, %v6490, 0.0
        %v6529 = vadd.f32 %v6527, %v6528
        %v6530 = vsel %vm482, %v6491, 0.0
        %v6531 = vadd.f32 %v6529, %v6530
        %v6532 = vsel %vm482, %v6492, 0.0
        %v6533 = vadd.f32 %v6531, %v6532
        %v6534 = vsel %vm482, %v6493, 0.0
        %v6535 = vadd.f32 %v6533, %v6534
        %v6536 = vsel %vm482, %v6494, 0.0
        %v6537 = vadd.f32 %v6535, %v6536
        %v6538 = vsel %vm482, %v6495, 0.0
        %v6539 = vadd.f32 %v6537, %v6538
        %v6540 = vsel %vm482, %v6496, 0.0
        %v6541 = vadd.f32 %v6539, %v6540
        %v6542 = vsel %vm482, %v6497, 0.0
        %v6543 = vadd.f32 %v6541, %v6542
        %v6544 = vsel %vm482, %v6498, 0.0
        %v6545 = vadd.f32 %v6543, %v6544
        %v6546 = vsel %vm482, %v6499, 0.0
        %v6547 = vadd.f32 %v6545, %v6546
        %v6548 = vsel %vm482, %v6500, 0.0
        %v6549 = vadd.f32 %v6547, %v6548
        %v6550 = vsel %vm482, %v6501, 0.0
        %v6551 = vadd.f32 %v6549, %v6550
        %v6552 = vsel %vm482, %v6502, 0.0
        %v6553 = vadd.f32 %v6551, %v6552
        %v6554 = vsel %vm482, %v6503, 0.0
        %v6555 = vadd.f32 %v6553, %v6554
        %v6556 = vsel %vm482, %v6504, 0.0
        %v6557 = vadd.f32 %v6555, %v6556
        %v6558 = vsel %vm482, %v6505, 0.0
        %v6559 = vadd.f32 %v6557, %v6558
        %v6560 = vsel %vm482, %v6506, 0.0
        %v6561 = vadd.f32 %v6559, %v6560
        %v6562 = vsel %vm482, %v6507, 0.0
        %v6563 = vadd.f32 %v6561, %v6562
        %v6564 = vsel %vm482, %v6508, 0.0
        %v6565 = vadd.f32 %v6563, %v6564
        %v6566 = vsel %vm482, %v6509, 0.0
        %v6567 = vadd.f32 %v6565, %v6566
        %v6568 = vsel %vm482, %v6510, 0.0
        %v6569 = vadd.f32 %v6567, %v6568
        %v6570 = vsel %vm482, %v6511, 0.0
        %v6571 = vadd.f32 %v6569, %v6570
        %v6572 = vsel %vm482, %v6512, 0.0
        %v6573 = vadd.f32 %v6571, %v6572
        %v6574 = vsel %vm482, %v6513, 0.0
        %v6575 = vadd.f32 %v6573, %v6574
        %v6576 = vsel %vm482, %v6514, 0.0
        %v6577 = vadd.f32 %v6575, %v6576
        %v6578 = vrot.slane %v6577, 4
        %v6579 = vadd.f32 %v6577, %v6578
        %v6580 = vrot.slane %v6579, 2
        %v6581 = vadd.f32 %v6579, %v6580
        %v6582 = vrot.slane %v6581, 1
        %v6583 = vadd.f32 %v6581, %v6582
        %v6584 = vmul.f32 %v6583, 0.00390625
        %v6585 = vld [vmem:[%s7] sm:$0xff]
        %v6586 = vld [vmem:[%s7 + $0x8] sm:$0xff]
        %v6587 = vld [vmem:[%s7 + $0x10] sm:$0xff]
        %v6588 = vld [vmem:[%s7 + $0x18] sm:$0xff]
        %v6589 = vld [vmem:[%s8] sm:$0x1]
        %v6591 = vsel %vm482, %v6584, 0
        %6593 = vmatprep.subr.mxu0 0.0
        %6594 = vmatpush1.msra.mxu0 0.0
        %6595 = vmatprep.subr.mxu0 0.0
        %6596 = vmatpush1.msra.mxu0 0.0
        %6597 = vmatprep.subr.mxu0 0.0
        %6598 = vmatpush1.msra.mxu0 0.0
        %6599 = vmatprep.subr.mxu0 0.0
        %6600 = vmatpush1.msra.mxu0 0.0
        %6601 = vmatprep.subr.mxu0 0.0
        %6602 = vmatpush1.msra.mxu0 0.0
        %6603 = vmatprep.subr.mxu0 0.0
        %6604 = vmatpush1.msra.mxu0 0.0
        %6605 = vmatprep.subr.mxu0 0.0
        %6606 = vmatpush1.msra.mxu0 0.0
        %6607 = vmatprep.subr.mxu0 0.0
        %6608 = vmatpush1.msra.mxu0 0.0
        %6609 = vmatprep.subr.mxu0 0.0
        %6610 = vmatpush1.msra.mxu0 0.0
        %6611 = vmatprep.subr.mxu0 0.0
        %6612 = vmatpush1.msra.mxu0 0.0
        %6613 = vmatprep.subr.mxu0 0.0
        %6614 = vmatpush1.msra.mxu0 0.0
        %6615 = vmatprep.subr.mxu0 0.0
        %6616 = vmatpush1.msra.mxu0 0.0
        %6617 = vmatprep.subr.mxu0 0.0
        %6618 = vmatpush1.msra.mxu0 %v6588
        %6619 = vmatprep.subr.mxu0 0.0
        %6620 = vmatpush1.msra.mxu0 %v6587
        %6621 = vmatprep.subr.mxu0 0.0
        %6622 = vmatpush1.msra.mxu0 %v6586
        %6623 = vmatprep.subr.mxu0 0.0
        %6624 = vmatpush1.msra.mxu0 %v6585
        %6625 = vmatprep.subr.mxu0 0.0
        %6626 = vmatpush2.msra.mxu0 0.0
        %6627 = vmatprep.subr.mxu0 0.0
        %6628 = vmatpush2.msra.mxu0 0.0
        %6629 = vmatprep.subr.mxu0 0.0
        %6630 = vmatpush2.msra.mxu0 0.0
        %6631 = vmatprep.subr.mxu0 0.0
        %6632 = vmatpush2.msra.mxu0 0.0
        %6633 = vmatprep.subr.mxu0 0.0
        %6634 = vmatpush2.msra.mxu0 0.0
        %6635 = vmatprep.subr.mxu0 0.0
        %6636 = vmatpush2.msra.mxu0 0.0
        %6637 = vmatprep.subr.mxu0 0.0
        %6638 = vmatpush2.msra.mxu0 0.0
        %6639 = vmatprep.subr.mxu0 0.0
        %6640 = vmatpush2.msra.mxu0 0.0
        %6641 = vmatprep.subr.mxu0 0.0
        %6642 = vmatpush2.msra.mxu0 0.0
        %6643 = vmatprep.subr.mxu0 0.0
        %6644 = vmatpush2.msra.mxu0 0.0
        %6645 = vmatprep.subr.mxu0 0.0
        %6646 = vmatpush2.msra.mxu0 0.0
        %6647 = vmatprep.subr.mxu0 0.0
        %6648 = vmatpush2.msra.mxu0 0.0
        %6649 = vmatprep.subr.mxu0 0.0
        %6650 = vmatpush2.msra.mxu0 0.0
        %6651 = vmatprep.subr.mxu0 0.0
        %6652 = vmatpush2.msra.mxu0 0.0
        %6653 = vmatprep.subr.mxu0 0.0
        %6654 = vmatpush2.msra.mxu0 0.0
        %6655 = vmatprep.subr.mxu0 0.0
        %6656 = vmatpush2.msra.mxu0 0.0
        %6657 = vmatprep.mubr.f32.mxu0 0.0
        %6658 = vmatmul.mubr.f32.gmra.mxu0 %v6591
        %v6659 = vpop.f32.mrf.mxu0
        %v6660 = vadd.f32 %v6589, %v6659
        %v6661 = vpop.f32.mrf.mxu0
        %6662 = vdwg.mxu0
        %v6663 = vmax.f32 %v6660, 0.0
        %v6664 = vld [vmem:[%s9] sm:$0x3]
        %v6665 = vld [vmem:[%s10] sm:$0x1]
        %vm6666 = vcmask 15360
        %v6668 = vsel %vm6666, %v6663, 0
        %vm6670 = vcmask 1041408
        %v6672 = vsel %vm6670, %v6664, 0
        %6674 = vmatprep.subr.mxu0 0.0
        %6675 = vmatpush1.msra.mxu0 0.0
        %6676 = vmatprep.subr.mxu0 0.0
        %6677 = vmatpush1.msra.mxu0 0.0
        %6678 = vmatprep.subr.mxu0 0.0
        %6679 = vmatpush1.msra.mxu0 0.0
        %6680 = vmatprep.subr.mxu0 0.0
        %6681 = vmatpush1.msra.mxu0 0.0
        %6682 = vmatprep.subr.mxu0 0.0
        %6683 = vmatpush1.msra.mxu0 0.0
        %6684 = vmatprep.subr.mxu0 0.0
        %6685 = vmatpush1.msra.mxu0 0.0
        %6686 = vmatprep.subr.mxu0 0.0
        %6687 = vmatpush1.msra.mxu0 0.0
        %6688 = vmatprep.subr.mxu0 0.0
        %6689 = vmatpush1.msra.mxu0 0.0
        %6690 = vmatprep.subr.mxu0 0.0
        %6691 = vmatpush1.msra.mxu0 0.0
        %6692 = vmatprep.subr.mxu0 0.0
        %6693 = vmatpush1.msra.mxu0 0.0
        %6694 = vmatprep.subr.mxu0 0.0
        %6695 = vmatpush1.msra.mxu0 0.0
        %6696 = vmatprep.subr.mxu0 0.0
        %6697 = vmatpush1.msra.mxu0 0.0
        %6698 = vmatprep.subr.mxu0 0.0
        %6699 = vmatpush1.msra.mxu0 0.0
        %6700 = vmatprep.subr.mxu0 0.0
        %6701 = vmatpush1.msra.mxu0 0.0
        %6702 = vmatprep.subr.mxu0 0.0
        %6703 = vmatpush1.msra.mxu0 0.0
        %6704 = vmatprep.subr.mxu0 0.0
        %6705 = vmatpush1.msra.mxu0 %v6672
        %6706 = vmatprep.subr.mxu0 0.0
        %6707 = vmatpush2.msra.mxu0 0.0
        %6708 = vmatprep.subr.mxu0 0.0
        %6709 = vmatpush2.msra.mxu0 0.0
        %6710 = vmatprep.subr.mxu0 0.0
        %6711 = vmatpush2.msra.mxu0 0.0
        %6712 = vmatprep.subr.mxu0 0.0
        %6713 = vmatpush2.msra.mxu0 0.0
        %6714 = vmatprep.subr.mxu0 0.0
        %6715 = vmatpush2.msra.mxu0 0.0
        %6716 = vmatprep.subr.mxu0 0.0
        %6717 = vmatpush2.msra.mxu0 0.0
        %6718 = vmatprep.subr.mxu0 0.0
        %6719 = vmatpush2.msra.mxu0 0.0
        %6720 = vmatprep.subr.mxu0 0.0
        %6721 = vmatpush2.msra.mxu0 0.0
        %6722 = vmatprep.subr.mxu0 0.0
        %6723 = vmatpush2.msra.mxu0 0.0
        %6724 = vmatprep.subr.mxu0 0.0
        %6725 = vmatpush2.msra.mxu0 0.0
        %6726 = vmatprep.subr.mxu0 0.0
        %6727 = vmatpush2.msra.mxu0 0.0
        %6728 = vmatprep.subr.mxu0 0.0
        %6729 = vmatpush2.msra.mxu0 0.0
        %6730 = vmatprep.subr.mxu0 0.0
        %6731 = vmatpush2.msra.mxu0 0.0
        %6732 = vmatprep.subr.mxu0 0.0
        %6733 = vmatpush2.msra.mxu0 0.0
        %6734 = vmatprep.subr.mxu0 0.0
        %6735 = vmatpush2.msra.mxu0 0.0
        %6736 = vmatprep.subr.mxu0 0.0
        %6737 = vmatpush2.msra.mxu0 0.0
        %6738 = vmatprep.mubr.f32.mxu0 0.0
        %6739 = vmatmul.mubr.f32.gmra.mxu0 %v6668
        %v6740 = vpop.f32.mrf.mxu0
        %v6741 = vadd.f32 %v6665, %v6740
        %v6742 = vpop.f32.mrf.mxu0
        %6743 = vdwg.mxu0
        %v6744 = vsub.f32 0.0, %v6741
        %v6745 = vmul.f32 %v6744, 1.442695
        %v6746 = vpow.pop %v6745
        %v6747 = vadd.f32 %v6746, 1.0
        %v6748 = vrcp.pop %v6747
        %v6749 = vmul.f32 1.0, %v6748
        %v6750 = vlaneseq
        %v6751 = vshrl.u32 %v6750, 7
        %v6752 = vsub.s32 0, %v6751
        %v6753 = vrot.slane %v6749, %v6752
        %v6754 = vmul.f32 %v6483, %v6753
        %v6755 = vmul.f32 %v6484, %v6753
        %v6756 = vmul.f32 %v6485, %v6753
        %v6757 = vmul.f32 %v6486, %v6753
        %v6758 = vmul.f32 %v6487, %v6753
        %v6759 = vmul.f32 %v6488, %v6753
        %v6760 = vmul.f32 %v6489, %v6753
        %v6761 = vmul.f32 %v6490, %v6753
        %v6762 = vmul.f32 %v6491, %v6753
        %v6763 = vmul.f32 %v6492, %v6753
        %v6764 = vmul.f32 %v6493, %v6753
        %v6765 = vmul.f32 %v6494, %v6753
        %v6766 = vmul.f32 %v6495, %v6753
        %v6767 = vmul.f32 %v6496, %v6753
        %v6768 = vmul.f32 %v6497, %v6753
        %v6769 = vmul.f32 %v6498, %v6753
        %v6770 = vmul.f32 %v6499, %v6753
        %v6771 = vmul.f32 %v6500, %v6753
        %v6772 = vmul.f32 %v6501, %v6753
        %v6773 = vmul.f32 %v6502, %v6753
        %v6774 = vmul.f32 %v6503, %v6753
        %v6775 = vmul.f32 %v6504, %v6753
        %v6776 = vmul.f32 %v6505, %v6753
        %v6777 = vmul.f32 %v6506, %v6753
        %v6778 = vmul.f32 %v6507, %v6753
        %v6779 = vmul.f32 %v6508, %v6753
        %v6780 = vmul.f32 %v6509, %v6753
        %v6781 = vmul.f32 %v6510, %v6753
        %v6782 = vmul.f32 %v6511, %v6753
        %v6783 = vmul.f32 %v6512, %v6753
        %v6784 = vmul.f32 %v6513, %v6753
        %v6785 = vmul.f32 %v6514, %v6753
        %6786 = vst.msk [vmem:[%s448] sm:$0xff] %vm482, %v6754
        %6787 = vst.msk [vmem:[%s448 + $0x8] sm:$0xff] %vm482, %v6755
        %6788 = vst.msk [vmem:[%s448 + $0x10] sm:$0xff] %vm482, %v6756
        %6789 = vst.msk [vmem:[%s448 + $0x18] sm:$0xff] %vm482, %v6757
        %6790 = vst.msk [vmem:[%s448 + $0x20] sm:$0xff] %vm482, %v6758
        %6791 = vst.msk [vmem:[%s448 + $0x28] sm:$0xff] %vm482, %v6759
        %6792 = vst.msk [vmem:[%s448 + $0x30] sm:$0xff] %vm482, %v6760
        %6793 = vst.msk [vmem:[%s448 + $0x38] sm:$0xff] %vm482, %v6761
        %6794 = vst.msk [vmem:[%s448 + $0x40] sm:$0xff] %vm482, %v6762
        %6795 = vst.msk [vmem:[%s448 + $0x48] sm:$0xff] %vm482, %v6763
        %6796 = vst.msk [vmem:[%s448 + $0x50] sm:$0xff] %vm482, %v6764
        %6797 = vst.msk [vmem:[%s448 + $0x58] sm:$0xff] %vm482, %v6765
        %6798 = vst.msk [vmem:[%s448 + $0x60] sm:$0xff] %vm482, %v6766
        %6799 = vst.msk [vmem:[%s448 + $0x68] sm:$0xff] %vm482, %v6767
        %6800 = vst.msk [vmem:[%s448 + $0x70] sm:$0xff] %vm482, %v6768
        %6801 = vst.msk [vmem:[%s448 + $0x78] sm:$0xff] %vm482, %v6769
        %6802 = vst.msk [vmem:[%s448 + $0x80] sm:$0xff] %vm482, %v6770
        %6803 = vst.msk [vmem:[%s448 + $0x88] sm:$0xff] %vm482, %v6771
        %6804 = vst.msk [vmem:[%s448 + $0x90] sm:$0xff] %vm482, %v6772
        %6805 = vst.msk [vmem:[%s448 + $0x98] sm:$0xff] %vm482, %v6773
        %6806 = vst.msk [vmem:[%s448 + $0xa0] sm:$0xff] %vm482, %v6774
        %6807 = vst.msk [vmem:[%s448 + $0xa8] sm:$0xff] %vm482, %v6775
        %6808 = vst.msk [vmem:[%s448 + $0xb0] sm:$0xff] %vm482, %v6776
        %6809 = vst.msk [vmem:[%s448 + $0xb8] sm:$0xff] %vm482, %v6777
        %6810 = vst.msk [vmem:[%s448 + $0xc0] sm:$0xff] %vm482, %v6778
        %6811 = vst.msk [vmem:[%s448 + $0xc8] sm:$0xff] %vm482, %v6779
        %6812 = vst.msk [vmem:[%s448 + $0xd0] sm:$0xff] %vm482, %v6780
        %6813 = vst.msk [vmem:[%s448 + $0xd8] sm:$0xff] %vm482, %v6781
        %6814 = vst.msk [vmem:[%s448 + $0xe0] sm:$0xff] %vm482, %v6782
        %6815 = vst.msk [vmem:[%s448 + $0xe8] sm:$0xff] %vm482, %v6783
        %6816 = vst.msk [vmem:[%s448 + $0xf0] sm:$0xff] %vm482, %v6784
        %6817 = vst.msk [vmem:[%s448 + $0xf8] sm:$0xff] %vm482, %v6785
        %s6818 = sand.u32 %s274, 1
        %s6819 = scalar_lea.sflag [#allocation5], %s6818
        %s6820 = sand.u32 %s274, 1
        %s6821 = smul.addr %s6820, 256
        %s6822 = scalar_lea.vmem [#allocation11], %s6821
        // Predicated region
        $region81: #{cablock_forward.1} parent=63 // pred_check
          %p6823 = pneg %p284
        $region82: #{cablock_forward.1} parent=63 // pred_check_branch
          %6825 = sbr.rel (%p6823) target = $region84
        $region83: #{cablock_forward.1} parent=63 // pred_region
          %s6827 = ssub.s32 4096, 4096
          %6828 = vsyncadd %s6819, %s6827
          %s6829 = smul.addr %s30, 32
          %s6830 = smul.addr %s6829, 128
          %s6831 = scalar_lea.hbm %s11, %s6830
          %s6832 = sshll.u32 %s6822, 4
          %s6833 = int_to_ptr.vmem [resolvable:$true] %s6832
          %6838 = dma.vmem_to_hbm [thread:$0]  %s6833, 4096, %s6831, %s6819, 128, 128, 8
        $region84: #{cablock_forward.1} parent=63 // pred_fallthru
          _
      $region64: #{cablock_forward.1} parent=5 // pred_fallthru
        _
      %p6839 = scmp.le.s32.totalorder 2, %s25
      // Predicated region
      $region85: #{cablock_forward.1} parent=5 // pred_check
        %p6840 = pneg %p6839
      $region86: #{cablock_forward.1} parent=5 // pred_check_branch
        %6842 = sbr.rel (%p6840) target = $region88
      $region87: #{cablock_forward.1} parent=5 // pred_region
        %s6843 = ssub.s32 %s25, 2
        // Predicated region
        $region89: #{cablock_forward.1} parent=87 // pred_check
          %p6844 = pneg %p290
        $region90: #{cablock_forward.1} parent=87 // pred_check_branch
          %6846 = sbr.rel (%p6844) target = $region92
        $region91: #{cablock_forward.1} parent=87 // pred_region
          %s6847 = sand.u32 %s275, 1
          %s6848 = scalar_lea.sflag [#allocation5], %s6847
          %s6849 = sand.u32 %s275, 1
          %s6850 = smul.addr %s6849, 256
          %s6851 = scalar_lea.vmem [#allocation11], %s6850
          %6852 = dma.done %s6848, 4096
        $region92: #{cablock_forward.1} parent=87 // pred_fallthru
          _
      $region88: #{cablock_forward.1} parent=5 // pred_fallthru
        _
    $region6: #{cablock_forward.1} parent=1 // loop_footer
      %s29 = sadd.s32 1, %s25
    $region7: #{cablock_forward.1} parent=1 // loop_footer_branch
      %24 = sbr.rel target = $region3
    $region8: #{cablock_forward.1} parent=1 // loop_exit
      _
    %6853 = vsyncpa [#allocation4], 1
    %s6854 = scalar_lea.sflag [#allocation4], 1
    %6855 = vsyncpa %s6854, 1
    %6856 = vsyncpa [#allocation7], 1
    %6857 = vsyncpa [#allocation10], 1
    %6858 = vsyncpa [#allocation5], 1
    %s6859 = scalar_lea.sflag [#allocation5], 1
    %6860 = vsyncpa %s6859, 1

</llo_original>
